<compile_context>
chip_gen: v5e
topology: v5e:2x2
jax: 0.10.0
libtpu: 0.0.40
codegen_flags: <defaults>
</compile_context>

<pallas_src>
import math
from functools import partial

import jax
import jax.numpy as jnp
from jax.experimental import pallas as pl
from jax.experimental.pallas import tpu as pltpu


# Ordered names of the fused, per-layer parameter tensors (stacked over L)
# streamed into the kernel one layer per grid step.
_LAYER_KEYS = (
    'ln1_g', 'ln1_b',
    'ch_qkv_w', 'ch_qkv_b',
    'tk_qkv_w', 'tk_qkv_b',
    'c1_q_w', 'c1_q_b', 'c1_kv_w', 'c1_kv_b',
    'c2_q_w', 'c2_q_b', 'c2_kv_w', 'c2_kv_b',
    'ln2_g', 'ln2_b',
    'f1_w', 'f1_b', 'f2_w', 'f2_b',
)


# ----------------------------- in-kernel helpers -----------------------------

def _softmax(x):
    m = jnp.max(x, axis=-1, keepdims=True)
    e = jnp.exp(x - m)
    # reciprocal on the EUP slot instead of a VALU divide chain
    return e * pl.reciprocal(jnp.sum(e, axis=-1, keepdims=True), approx=True)


def _layernorm(x, gamma, beta, eps=1e-12):
    # eps=1e-12 matches nn.LayerNorm(..., eps=1e-12) in the PyTorch module
    mu = jnp.mean(x, axis=-1, keepdims=True)
    var = jnp.mean(jnp.square(x - mu), axis=-1, keepdims=True)
    return (x - mu) * jax.lax.rsqrt(var + eps) * gamma + beta


def _mm(a, b):
    """2-D matmul on the MXU: bf16 inputs, f32 accumulation."""
    return jax.lax.dot_general(
        a.astype(jnp.bfloat16), b.astype(jnp.bfloat16),
        (((1,), (0,)), ((), ())), preferred_element_type=jnp.float32)


def _bmm(eq, a, b):
    """Batched einsum on the MXU (canonical bmm / rhs-transposed forms only)."""
    return jnp.einsum(eq, a.astype(jnp.bfloat16), b.astype(jnp.bfloat16),
                      preferred_element_type=jnp.float32)


# ------------------------------- fused kernel --------------------------------

def bnt_fused_kernel(*refs, n_heads, Bb, S, D, K_din):
    nl = len(_LAYER_KEYS)
    xcol_ref, convw_ref, biaspos_ref = refs[0:3]
    lw = dict(zip(_LAYER_KEYS, refs[3:3 + nl]))
    clsw_ref, clsb_ref = refs[3 + nl], refs[4 + nl]
    feat_ref, logit_ref = refs[5 + nl], refs[6 + nl]
    h_sc, ch_sc, tk_sc, a_sc = refs[7 + nl:11 + nl]

    T = S + 1
    N = Bb * T
    dh = D // n_heads
    scale = 1.0 / math.sqrt(dh)
    li = pl.program_id(1)                    # encoder layer index (grid axis)

    # ---- embedding: only at the first layer step of each batch block --------
    # Row 0 of each im2col slab is all zeros (CLS slot); bias_pos row 0 holds
    # cls_token + pos[0], rows 1..T hold conv_bias + pos[1:T], so the whole
    # embedding is one matmul + one broadcast add (no tile, no concat).
    @pl.when(li == 0)
    def _embed():
        xcol = xcol_ref[...].reshape(N, K_din)
        emb = _mm(xcol, convw_ref[...]).reshape(Bb, T, D)
        h_sc[...] = (emb + biaspos_ref[...]).reshape(N, D)

    # ---- attention helpers ---------------------------------------------------
    def project(x2, w_key, b_key):
        # (N, D) @ (D, W) + (1, W), viewed as (Bb, T, W); W in {D, 2D, 3D}
        w = lw[w_key][...]
        return (_mm(x2, w) + lw[b_key][...]).reshape(Bb, T, w.shape[-1])

    def token_attn(q3, kv3, k_off, v_off, dest_ref, dest_off):
        # scaled-dot-product attention over tokens; per-head results go into
        # static lane slices of `dest_ref` (no concatenates).
        # TODO(synk): switch the head loop to lax.fori_loop at realistic H.
        for hd in range(n_heads):
            o = hd * dh
            q = q3[:, :, o:o + dh]
            k = kv3[:, :, k_off + o:k_off + o + dh]
            v = kv3[:, :, v_off + o:v_off + o + dh]
            p = _softmax(_bmm('bqd,bkd->bqk', q, k) * scale)       # (Bb,T,T)
            dest_ref[:, :, dest_off + o:dest_off + o + dh] = \
                _bmm('bqk,bkd->bqd', p, v)

    def channel_attn(qkv3, dest_ref):
        # attn = softmax(Q^T K / sqrt(dh)) over channels; out = V @ attn.
        # One minor-dims swapaxes of the Q slab keeps every contraction in a
        # canonical dot form (no K/V transposes, no lhs-transposed matmuls).
        qT = jnp.swapaxes(qkv3[:, :, :D], 1, 2)                    # (Bb,D,T)
        for hd in range(n_heads):
            o = hd * dh
            g = _bmm('bdt,bte->bde', qT[:, o:o + dh, :],
                     qkv3[:, :, D + o:D + o + dh]) * scale         # (Bb,dh,dh)
            p = _softmax(g)
            dest_ref[:, :, o:o + dh] = _bmm(
                'btd,bde->bte', qkv3[:, :, 2 * D + o:2 * D + o + dh], p)

    # ---- one encoder layer per grid step (weights streamed per layer) -------
    x = h_sc[...]                                                  # (N, D) f32
    xn = _layernorm(x, lw['ln1_g'][...], lw['ln1_b'][...])

    channel_attn(project(xn, 'ch_qkv_w', 'ch_qkv_b'), ch_sc)
    tk_qkv = project(xn, 'tk_qkv_w', 'tk_qkv_b')
    token_attn(tk_qkv, tk_qkv, D, 2 * D, tk_sc, 0)

    xn3 = xn.reshape(Bb, T, D)
    ch = (xn3 + ch_sc[...]).reshape(N, D)       # residuals add the LN'd input
    tk = (xn3 + tk_sc[...]).reshape(N, D)

    # cross attention 1: Q from ch, K/V from tk -> a_sc[..., :D]
    token_attn(project(ch, 'c1_q_w', 'c1_q_b'),
               project(tk, 'c1_kv_w', 'c1_kv_b'), 0, D, a_sc, 0)
    # cross attention 2: Q from tk, K/V from ch -> a_sc[..., D:]
    token_attn(project(tk, 'c2_q_w', 'c2_q_b'),
               project(ch, 'c2_kv_w', 'c2_kv_b'), 0, D, a_sc, D)

    a = _layernorm(a_sc[...].reshape(N, 2 * D),
                   lw['ln2_g'][...], lw['ln2_b'][...])
    hid = jax.nn.gelu(_mm(a, lw['f1_w'][...]) + lw['f1_b'][...],
                      approximate=True)                            # (N, 4D)
    # final residual adds the LayerNorm'd block input (matches PyTorch)
    h_sc[...] = xn + _mm(hid, lw['f2_w'][...]) + lw['f2_b'][...]   # (N, D)

    # ---- pooler (mean over tokens 1..T, skip CLS) + classifier ---------------
    @pl.when(li == pl.num_programs(1) - 1)
    def _head():
        h3 = h_sc[...].reshape(Bb, T, D)
        feat = (jnp.sum(h3, axis=1) - h3[:, 0, :]) * (1.0 / S)     # (Bb, D)
        feat_ref[...] = feat
        logit_ref[...] = jax.lax.dot_general(
            feat, clsw_ref[...], (((1,), (0,)), ((), ())),
            preferred_element_type=jnp.float32) + clsb_ref[...]


# ------------------------------ wrapper (glue) --------------------------------

def _tpu_defaults(batch):
    """Generation-dependent grid / VMEM choices (v7x: 2 TCs, 64 MiB VMEM)."""
    try:
        kind = jax.devices()[0].device_kind.lower()
    except Exception:
        kind = ''
    is_v7 = ('v7' in kind) or ('7x' in kind)
    n_blocks = 2 if (is_v7 and batch % 2 == 0 and batch >= 2) else 1
    if is_v7:
        vmem = 48 * 1024 * 1024      # leave pipeline headroom below 64 MiB
    elif ('v5' in kind) or ('v6' in kind):
        vmem = 96 * 1024 * 1024      # weights are layer-streamed; 128 MiB part
    else:
        vmem = None                  # older / unknown parts: keep the default
    return n_blocks, vmem


@partial(jax.jit, static_argnames=('n_heads', 'K', 'n_blocks'))
def bnt_forward(params, x, *, n_heads, K, n_blocks=None):
    B, S, d_in = x.shape
    D = params['conv_w'].shape[2]
    T = S + 1
    L = len(params['layers'])
    n_classes = params['cls_w'].shape[1]
    assert D % n_heads == 0
    bf16, f32 = jnp.bfloat16, jnp.float32

    nb_default, vmem_bytes = _tpu_defaults(B)
    if n_blocks is None:
        n_blocks = nb_default
    assert B % n_blocks == 0
    Bb = B // n_blocks
    N = Bb * T
    Kd = K * d_in

    # ---- im2col + zero CLS row (layout plumbing, plain XLA, once/call) ------
    pad_l = (K - 1) // 2
    pad_r = K - 1 - pad_l
    xpad = jnp.pad(x, ((0, 0), (pad_l, pad_r), (0, 0)))
    xcol = jnp.concatenate([xpad[:, k:k + S, :] for k in range(K)], axis=-1)
    xcol = jnp.pad(xcol, ((0, 0), (1, 0), (0, 0))).astype(bf16)   # (B, T, Kd)

    conv_w = params['conv_w'].reshape(Kd, D).astype(bf16)         # (Kd, D)
    # row 0: cls + pos[0]; rows 1..T: conv bias + pos[1:T]
    bias_pos = jnp.concatenate(
        [params['cls'] + params['pos'][0:1],
         params['conv_b'] + params['pos'][1:T]], axis=0).astype(f32)   # (T, D)

    # ---- fuse QKV weights per attention block, stack over layers ------------
    def fuse(lp):
        cat = lambda names: jnp.concatenate([lp[n] for n in names], axis=-1)
        return {
            'ln1_g': lp['ln1_g'].astype(f32), 'ln1_b': lp['ln1_b'].astype(f32),
            'ch_qkv_w': cat(('ch_wq', 'ch_wk', 'ch_wv')).astype(bf16),
            'ch_qkv_b': cat(('ch_bq', 'ch_bk', 'ch_bv')).astype(f32),
            'tk_qkv_w': cat(('tk_wq', 'tk_wk', 'tk_wv')).astype(bf16),
            'tk_qkv_b': cat(('tk_bq', 'tk_bk', 'tk_bv')).astype(f32),
            'c1_q_w': lp['c1_wq'].astype(bf16), 'c1_q_b': lp['c1_bq'].astype(f32),
            'c1_kv_w': cat(('c1_wk', 'c1_wv')).astype(bf16),
            'c1_kv_b': cat(('c1_bk', 'c1_bv')).astype(f32),
            'c2_q_w': lp['c2_wq'].astype(bf16), 'c2_q_b': lp['c2_bq'].astype(f32),
            'c2_kv_w': cat(('c2_wk', 'c2_wv')).astype(bf16),
            'c2_kv_b': cat(('c2_bk', 'c2_bv')).astype(f32),
            'ln2_g': lp['ln2_g'].astype(f32), 'ln2_b': lp['ln2_b'].astype(f32),
            'f1_w': lp['f1_w'].astype(bf16), 'f1_b': lp['f1_b'].astype(f32),
            'f2_w': lp['f2_w'].astype(bf16), 'f2_b': lp['f2_b'].astype(f32),
        }

    fused = [fuse(lp) for lp in params['layers']]
    stacked = {k: jnp.stack([fl[k] for fl in fused], axis=0)
               for k in _LAYER_KEYS}

    # ---- lane-padded classifier (unmasked stores; sliced back after call) ---
    ncp = ((n_classes + 127) // 128) * 128
    cls_w = jnp.zeros((D, ncp), f32).at[:, :n_classes].set(
        params['cls_w'].astype(f32))
    cls_b = jnp.zeros((1, ncp), f32).at[:, :n_classes].set(
        params['cls_b'].astype(f32))

    inputs = ([xcol, conv_w, bias_pos]
              + [stacked[k] for k in _LAYER_KEYS]
              + [cls_w, cls_b])

    # NOTE(perf): the constant-index specs below could be single-buffered via
    # pipeline_mode=pl.Buffered(1) on runtimes that honor it; the big per-layer
    # weights are already streamed one layer per grid step.
    in_specs = [pl.BlockSpec((Bb, T, Kd), lambda b, l: (b, 0, 0)),
                pl.BlockSpec((Kd, D), lambda b, l: (0, 0)),
                pl.BlockSpec((T, D), lambda b, l: (0, 0))]
    for k in _LAYER_KEYS:
        tail = stacked[k].shape[1:]
        in_specs.append(pl.BlockSpec((None,) + tail, lambda b, l: (l, 0, 0)))
    in_specs += [pl.BlockSpec((D, ncp), lambda b, l: (0, 0)),
                 pl.BlockSpec((1, ncp), lambda b, l: (0, 0))]

    out_shape = (jax.ShapeDtypeStruct((n_blocks, Bb, D), f32),
                 jax.ShapeDtypeStruct((n_blocks, Bb, ncp), f32))
    out_specs = (pl.BlockSpec((None, Bb, D), lambda b, l: (b, 0, 0)),
                 pl.BlockSpec((None, Bb, ncp), lambda b, l: (b, 0, 0)))

    scratch = [pltpu.VMEM((N, D), f32),          # hidden state, carried over layers
               pltpu.VMEM((Bb, T, D), f32),      # channel-attention output
               pltpu.VMEM((Bb, T, D), f32),      # token-attention output
               pltpu.VMEM((Bb, T, 2 * D), f32)]  # [cross1 | cross2] -> LN2/FFN

    kernel = partial(bnt_fused_kernel, n_heads=n_heads, Bb=Bb, S=S, D=D,
                     K_din=Kd)

    feat, logits = pl.pallas_call(
        kernel,
        out_shape=out_shape,
        grid=(n_blocks, L),
        in_specs=in_specs,
        out_specs=out_specs,
        scratch_shapes=scratch,
        compiler_params=pltpu.CompilerParams(
            dimension_semantics=("parallel", "arbitrary"),
            vmem_limit_bytes=vmem_bytes),
    )(*inputs)

    return feat.reshape(B, D), logits.reshape(B, ncp)[:, :n_classes]


# ------------------------------ parameter init --------------------------------

def init_params(key, d_in, d_hid, n_layers, n_classes, K, max_len):
    keys = iter(jax.random.split(key, 512))

    def xavier(shape, fan_in, fan_out):
        bound = math.sqrt(6.0 / (fan_in + fan_out))
        return jax.random.uniform(next(keys), shape, jnp.float32, -bound, bound)

    p = {}
    # Conv1d weight stored as (K, d_in, d_hid): tap k is a row-block of the
    # (K*d_in, d_hid) im2col matmul (PyTorch layout (d_hid, d_in, K) maps via
    # transpose(2, 1, 0)).
    p['conv_w'] = xavier((K, d_in, d_hid), d_in * K, d_hid * K)
    p['conv_b'] = jnp.zeros((1, d_hid), jnp.float32)
    p['pos'] = 0.02 * jax.random.normal(next(keys), (max_len, d_hid), jnp.float32)
    p['cls'] = jax.random.normal(next(keys), (1, d_hid), jnp.float32)

    layers = []
    for _ in range(n_layers):
        lp = {
            'ln1_g': jnp.ones((1, d_hid), jnp.float32),
            'ln1_b': jnp.zeros((1, d_hid), jnp.float32),
            'ln2_g': jnp.ones((1, 2 * d_hid), jnp.float32),
            'ln2_b': jnp.zeros((1, 2 * d_hid), jnp.float32),
            'f1_w': xavier((2 * d_hid, 4 * d_hid), 2 * d_hid, 4 * d_hid),
            'f1_b': jnp.zeros((1, 4 * d_hid), jnp.float32),
            'f2_w': xavier((4 * d_hid, d_hid), 4 * d_hid, d_hid),
            'f2_b': jnp.zeros((1, d_hid), jnp.float32),
        }
        for blk in ('ch', 'tk', 'c1', 'c2'):
            for nm in ('q', 'k', 'v'):
                lp[f'{blk}_w{nm}'] = xavier((d_hid, d_hid), d_hid, d_hid)
                lp[f'{blk}_b{nm}'] = jnp.zeros((1, d_hid), jnp.float32)
        layers.append(lp)
    p['layers'] = layers

    p['cls_w'] = xavier((d_hid, n_classes), d_hid, n_classes)
    p['cls_b'] = jnp.zeros((1, n_classes), jnp.float32)
    return p


# ------------------------------------ main ------------------------------------

if __name__ == "__main__":
    B, S, d_in = 2, 8, 16          # batch, sequence length, input features (ROIs)
    d_hid, n_layers, n_classes = 32, 2, 3
    n_heads, K, max_len = 4, 3, 32

    key = jax.random.PRNGKey(0)
    kx, kp = jax.random.split(key)
    x = jax.random.normal(kx, (B, S, d_in), jnp.float32)
    params = init_params(kp, d_in, d_hid, n_layers, n_classes, K, max_len)

    features, logits = bnt_forward(params, x, n_heads=n_heads, K=K)
    jax.block_until_ready((features, logits))

    assert features.shape == (B, d_hid)
    assert logits.shape == (B, n_classes)
    assert bool(jnp.all(jnp.isfinite(features)))
    assert bool(jnp.all(jnp.isfinite(logits)))
    print("KERNEL_OK")
</pallas_src>

<mosaic_0001>
module attributes {stable_mosaic.version = 11 : i64} {
  func.func @bnt_fused_kernel(%arg0: i32, %arg1: i32, %arg2: memref<2x9x48xbf16, #tpu.memory_space<vmem>>, %arg3: memref<48x32xbf16, #tpu.memory_space<vmem>>, %arg4: memref<9x32xf32, #tpu.memory_space<vmem>>, %arg5: memref<1x1x32xf32, #tpu.memory_space<vmem>>, %arg6: memref<1x1x32xf32, #tpu.memory_space<vmem>>, %arg7: memref<1x32x96xbf16, #tpu.memory_space<vmem>>, %arg8: memref<1x1x96xf32, #tpu.memory_space<vmem>>, %arg9: memref<1x32x96xbf16, #tpu.memory_space<vmem>>, %arg10: memref<1x1x96xf32, #tpu.memory_space<vmem>>, %arg11: memref<1x32x32xbf16, #tpu.memory_space<vmem>>, %arg12: memref<1x1x32xf32, #tpu.memory_space<vmem>>, %arg13: memref<1x32x64xbf16, #tpu.memory_space<vmem>>, %arg14: memref<1x1x64xf32, #tpu.memory_space<vmem>>, %arg15: memref<1x32x32xbf16, #tpu.memory_space<vmem>>, %arg16: memref<1x1x32xf32, #tpu.memory_space<vmem>>, %arg17: memref<1x32x64xbf16, #tpu.memory_space<vmem>>, %arg18: memref<1x1x64xf32, #tpu.memory_space<vmem>>, %arg19: memref<1x1x64xf32, #tpu.memory_space<vmem>>, %arg20: memref<1x1x64xf32, #tpu.memory_space<vmem>>, %arg21: memref<1x64x128xbf16, #tpu.memory_space<vmem>>, %arg22: memref<1x1x128xf32, #tpu.memory_space<vmem>>, %arg23: memref<1x128x32xbf16, #tpu.memory_space<vmem>>, %arg24: memref<1x1x32xf32, #tpu.memory_space<vmem>>, %arg25: memref<32x128xf32, #tpu.memory_space<vmem>>, %arg26: memref<1x128xf32, #tpu.memory_space<vmem>>, %arg27: memref<1x2x32xf32, #tpu.memory_space<vmem>>, %arg28: memref<1x2x128xf32, #tpu.memory_space<vmem>>, %arg29: memref<18x32xf32, #tpu.memory_space<vmem>>, %arg30: memref<2x9x32xf32, #tpu.memory_space<vmem>>, %arg31: memref<2x9x32xf32, #tpu.memory_space<vmem>>, %arg32: memref<2x9x64xf32, #tpu.memory_space<vmem>>) attributes {dimension_semantics = [#tpu.dimension_semantics<parallel>, #tpu.dimension_semantics<arbitrary>], iteration_bounds = array<i64: 1, 2>, scalar_prefetch = 0 : i64, scratch_operands = 4 : i64, tpu.core_type = #tpu.core_type<tc>, window_params = [{transform_indices = @transform_0, window_bounds = array<i64: 2, 9, 48>}, {pipeline_mode = #tpu.pipeline_mode<synchronous>, transform_indices = @transform_1, window_bounds = array<i64: 48, 32>}, {pipeline_mode = #tpu.pipeline_mode<synchronous>, transform_indices = @transform_2, window_bounds = array<i64: 9, 32>}, {transform_indices = @transform_3, window_bounds = array<i64: 1, 1, 32>}, {transform_indices = @transform_4, window_bounds = array<i64: 1, 1, 32>}, {transform_indices = @transform_5, window_bounds = array<i64: 1, 32, 96>}, {transform_indices = @transform_6, window_bounds = array<i64: 1, 1, 96>}, {transform_indices = @transform_7, window_bounds = array<i64: 1, 32, 96>}, {transform_indices = @transform_8, window_bounds = array<i64: 1, 1, 96>}, {transform_indices = @transform_9, window_bounds = array<i64: 1, 32, 32>}, {transform_indices = @transform_10, window_bounds = array<i64: 1, 1, 32>}, {transform_indices = @transform_11, window_bounds = array<i64: 1, 32, 64>}, {transform_indices = @transform_12, window_bounds = array<i64: 1, 1, 64>}, {transform_indices = @transform_13, window_bounds = array<i64: 1, 32, 32>}, {transform_indices = @transform_14, window_bounds = array<i64: 1, 1, 32>}, {transform_indices = @transform_15, window_bounds = array<i64: 1, 32, 64>}, {transform_indices = @transform_16, window_bounds = array<i64: 1, 1, 64>}, {transform_indices = @transform_17, window_bounds = array<i64: 1, 1, 64>}, {transform_indices = @transform_18, window_bounds = array<i64: 1, 1, 64>}, {transform_indices = @transform_19, window_bounds = array<i64: 1, 64, 128>}, {transform_indices = @transform_20, window_bounds = array<i64: 1, 1, 128>}, {transform_indices = @transform_21, window_bounds = array<i64: 1, 128, 32>}, {transform_indices = @transform_22, window_bounds = array<i64: 1, 1, 32>}, {pipeline_mode = #tpu.pipeline_mode<synchronous>, transform_indices = @transform_23, window_bounds = array<i64: 32, 128>}, {pipeline_mode = #tpu.pipeline_mode<synchronous>, transform_indices = @transform_24, window_bounds = array<i64: 1, 128>}, {transform_indices = @transform_25, window_bounds = array<i64: 1, 2, 32>}, {transform_indices = @transform_26, window_bounds = array<i64: 1, 2, 128>}]} {
    %c0_i32 = arith.constant 0 : i32
    %0 = arith.cmpi eq, %arg1, %c0_i32 : i32
    %1 = arith.extui %0 : i1 to i32
    %c0_i32_0 = arith.constant 0 : i32
    %2 = arith.cmpi ne, %1, %c0_i32_0 : i32
    scf.if %2 {
      %c0_216 = arith.constant 0 : index
      %c0_217 = arith.constant 0 : index
      %c0_218 = arith.constant 0 : index
      %507 = vector.load %arg2[%c0_216, %c0_217, %c0_218] : memref<2x9x48xbf16, #tpu.memory_space<vmem>>, vector<2x9x48xbf16>
      %508 = vector.shape_cast %507 : vector<2x9x48xbf16> to vector<18x48xbf16>
      %c0_219 = arith.constant 0 : index
      %c0_220 = arith.constant 0 : index
      %509 = vector.load %arg3[%c0_219, %c0_220] : memref<48x32xbf16, #tpu.memory_space<vmem>>, vector<48x32xbf16>
      %cst_221 = arith.constant dense<0.000000e+00> : vector<18x32xf32>
      %510 = tpu.matmul %508, %509, %cst_221 {dimension_numbers = #tpu.dot_dimension_numbers<[1], [0], [0], [1], [0, 0, 1, 1], [], []>} : vector<18x48xbf16>, vector<48x32xbf16>, vector<18x32xf32> -> vector<18x32xf32>
      %511 = vector.shape_cast %510 : vector<18x32xf32> to vector<2x9x32xf32>
      %c0_222 = arith.constant 0 : index
      %c0_223 = arith.constant 0 : index
      %512 = vector.load %arg4[%c0_222, %c0_223] : memref<9x32xf32, #tpu.memory_space<vmem>>, vector<9x32xf32>
      %513 = vector.shape_cast %512 : vector<9x32xf32> to vector<1x9x32xf32>
      %514 = vector.broadcast %513 : vector<1x9x32xf32> to vector<2x9x32xf32>
      %515 = arith.addf %511, %514 : vector<2x9x32xf32>
      %516 = vector.shape_cast %515 : vector<2x9x32xf32> to vector<18x32xf32>
      %c0_224 = arith.constant 0 : index
      %c0_225 = arith.constant 0 : index
      %517 = vector.load %arg29[%c0_224, %c0_225] : memref<18x32xf32, #tpu.memory_space<vmem>>, vector<18x32xf32>
      tpu.vector_store %arg29[%c0_224, %c0_225], %516 {strides = array<i32>} : memref<18x32xf32, #tpu.memory_space<vmem>>, vector<18x32xf32>,
    } else {
    }
    %c0 = arith.constant 0 : index
    %c0_1 = arith.constant 0 : index
    %3 = vector.load %arg29[%c0, %c0_1] : memref<18x32xf32, #tpu.memory_space<vmem>>, vector<18x32xf32>
    %c0_2 = arith.constant 0 : index
    %c0_3 = arith.constant 0 : index
    %c0_4 = arith.constant 0 : index
    %4 = vector.load %arg5[%c0_2, %c0_3, %c0_4] : memref<1x1x32xf32, #tpu.memory_space<vmem>>, vector<1x1x32xf32>
    %5 = vector.shape_cast %4 : vector<1x1x32xf32> to vector<1x32xf32>
    %c0_5 = arith.constant 0 : index
    %c0_6 = arith.constant 0 : index
    %c0_7 = arith.constant 0 : index
    %6 = vector.load %arg6[%c0_5, %c0_6, %c0_7] : memref<1x1x32xf32, #tpu.memory_space<vmem>>, vector<1x1x32xf32>
    %7 = vector.shape_cast %6 : vector<1x1x32xf32> to vector<1x32xf32>
    %cst = arith.constant dense<0.000000e+00> : vector<18xf32>
    %8 = vector.multi_reduction <add>, %3, %cst [1] : vector<18x32xf32> to vector<18xf32>
    %9 = vector.shape_cast %8 : vector<18xf32> to vector<18x1xf32>
    %cst_8 = arith.constant 3.200000e+01 : f32
    %10 = vector.broadcast %cst_8 : f32 to vector<18x1xf32>
    %11 = arith.divf %9, %10 : vector<18x1xf32>
    %12 = vector.broadcast %11 : vector<18x1xf32> to vector<18x32xf32>
    %13 = arith.subf %3, %12 : vector<18x32xf32>
    %14 = arith.mulf %13, %13 : vector<18x32xf32>
    %cst_9 = arith.constant dense<0.000000e+00> : vector<18xf32>
    %15 = vector.multi_reduction <add>, %14, %cst_9 [1] : vector<18x32xf32> to vector<18xf32>
    %16 = vector.shape_cast %15 : vector<18xf32> to vector<18x1xf32>
    %cst_10 = arith.constant 3.200000e+01 : f32
    %17 = vector.broadcast %cst_10 : f32 to vector<18x1xf32>
    %18 = arith.divf %16, %17 : vector<18x1xf32>
    %19 = vector.broadcast %11 : vector<18x1xf32> to vector<18x32xf32>
    %20 = arith.subf %3, %19 : vector<18x32xf32>
    %cst_11 = arith.constant 9.99999996E-13 : f32
    %21 = vector.broadcast %cst_11 : f32 to vector<18x1xf32>
    %22 = arith.addf %18, %21 : vector<18x1xf32>
    %23 = math.rsqrt %22 : vector<18x1xf32>
    %24 = vector.broadcast %23 : vector<18x1xf32> to vector<18x32xf32>
    %25 = arith.mulf %20, %24 : vector<18x32xf32>
    %26 = vector.broadcast %5 : vector<1x32xf32> to vector<18x32xf32>
    %27 = arith.mulf %25, %26 : vector<18x32xf32>
    %28 = vector.broadcast %7 : vector<1x32xf32> to vector<18x32xf32>
    %29 = arith.addf %27, %28 : vector<18x32xf32>
    %c0_12 = arith.constant 0 : index
    %c0_13 = arith.constant 0 : index
    %c0_14 = arith.constant 0 : index
    %30 = vector.load %arg7[%c0_12, %c0_13, %c0_14] : memref<1x32x96xbf16, #tpu.memory_space<vmem>>, vector<1x32x96xbf16>
    %31 = vector.shape_cast %30 : vector<1x32x96xbf16> to vector<32x96xbf16>
    %32 = arith.truncf %29 : vector<18x32xf32> to vector<18x32xbf16>
    %cst_15 = arith.constant dense<0.000000e+00> : vector<18x96xf32>
    %33 = tpu.matmul %32, %31, %cst_15 {dimension_numbers = #tpu.dot_dimension_numbers<[1], [0], [0], [1], [0, 0, 1, 1], [], []>} : vector<18x32xbf16>, vector<32x96xbf16>, vector<18x96xf32> -> vector<18x96xf32>
    %c0_16 = arith.constant 0 : index
    %c0_17 = arith.constant 0 : index
    %c0_18 = arith.constant 0 : index
    %34 = vector.load %arg8[%c0_16, %c0_17, %c0_18] : memref<1x1x96xf32, #tpu.memory_space<vmem>>, vector<1x1x96xf32>
    %35 = vector.shape_cast %34 : vector<1x1x96xf32> to vector<1x96xf32>
    %36 = vector.broadcast %35 : vector<1x96xf32> to vector<18x96xf32>
    %37 = arith.addf %33, %36 : vector<18x96xf32>
    %38 = vector.shape_cast %37 : vector<18x96xf32> to vector<2x9x96xf32>
    %39 = vector.extract_strided_slice %38 {offsets = [0, 0, 0], sizes = [2, 9, 32], strides = [1, 1, 1]} : vector<2x9x96xf32> to vector<2x9x32xf32>
    %40 = tpu.transpose %39, [0, 2, 1] : vector<2x9x32xf32> -> vector<2x32x9xf32>
    %41 = vector.extract_strided_slice %40 {offsets = [0, 0, 0], sizes = [2, 8, 9], strides = [1, 1, 1]} : vector<2x32x9xf32> to vector<2x8x9xf32>
    %42 = vector.extract_strided_slice %38 {offsets = [0, 0, 32], sizes = [2, 9, 8], strides = [1, 1, 1]} : vector<2x9x96xf32> to vector<2x9x8xf32>
    %43 = arith.truncf %41 : vector<2x8x9xf32> to vector<2x8x9xbf16>
    %44 = arith.truncf %42 : vector<2x9x8xf32> to vector<2x9x8xbf16>
    "tpu.trace_start"() <{level = 10 : i32, message = "bdt,bte->bde"}> : () -> ()
    %cst_19 = arith.constant dense<0.000000e+00> : vector<2x8x8xf32>
    %45 = tpu.matmul %43, %44, %cst_19 {dimension_numbers = #tpu.dot_dimension_numbers<[2], [1], [1], [2], [0, 0, 0, 1, 1, 2], [0], [0]>} : vector<2x8x9xbf16>, vector<2x9x8xbf16>, vector<2x8x8xf32> -> vector<2x8x8xf32>
    "tpu.trace_stop"() : () -> ()
    %cst_20 = arith.constant 0.353553385 : f32
    %46 = vector.broadcast %cst_20 : f32 to vector<2x8x8xf32>
    %47 = arith.mulf %45, %46 : vector<2x8x8xf32>
    %cst_21 = arith.constant dense<0xFF800000> : vector<2x8xf32>
    %48 = vector.multi_reduction <maximumf>, %47, %cst_21 [2] : vector<2x8x8xf32> to vector<2x8xf32>
    %49 = vector.shape_cast %48 : vector<2x8xf32> to vector<2x8x1xf32>
    %50 = vector.broadcast %49 : vector<2x8x1xf32> to vector<2x8x8xf32>
    %51 = arith.subf %47, %50 : vector<2x8x8xf32>
    %52 = math.exp %51 : vector<2x8x8xf32>
    %cst_22 = arith.constant dense<0.000000e+00> : vector<2x8xf32>
    %53 = vector.multi_reduction <add>, %52, %cst_22 [2] : vector<2x8x8xf32> to vector<2x8xf32>
    %54 = vector.shape_cast %53 : vector<2x8xf32> to vector<2x8x1xf32>
    %55 = tpu.reciprocal %54 {approx = true} : vector<2x8x1xf32> -> vector<2x8x1xf32>
    %56 = vector.broadcast %55 : vector<2x8x1xf32> to vector<2x8x8xf32>
    %57 = arith.mulf %52, %56 : vector<2x8x8xf32>
    %58 = vector.extract_strided_slice %38 {offsets = [0, 0, 64], sizes = [2, 9, 8], strides = [1, 1, 1]} : vector<2x9x96xf32> to vector<2x9x8xf32>
    %59 = arith.truncf %58 : vector<2x9x8xf32> to vector<2x9x8xbf16>
    %60 = arith.truncf %57 : vector<2x8x8xf32> to vector<2x8x8xbf16>
    "tpu.trace_start"() <{level = 10 : i32, message = "btd,bde->bte"}> : () -> ()
    %cst_23 = arith.constant dense<0.000000e+00> : vector<2x9x8xf32>
    %61 = tpu.matmul %59, %60, %cst_23 {dimension_numbers = #tpu.dot_dimension_numbers<[2], [1], [1], [2], [0, 0, 0, 1, 1, 2], [0], [0]>} : vector<2x9x8xbf16>, vector<2x8x8xbf16>, vector<2x9x8xf32> -> vector<2x9x8xf32>
    "tpu.trace_stop"() : () -> ()
    %c0_24 = arith.constant 0 : index
    %c0_25 = arith.constant 0 : index
    %c0_26 = arith.constant 0 : index
    %62 = vector.load %arg30[%c0_24, %c0_25, %c0_26] : memref<2x9x32xf32, #tpu.memory_space<vmem>>, vector<2x9x8xf32>
    tpu.vector_store %arg30[%c0_24, %c0_25, %c0_26], %61 {strides = array<i32>} : memref<2x9x32xf32, #tpu.memory_space<vmem>>, vector<2x9x8xf32>,
    %63 = vector.extract_strided_slice %40 {offsets = [0, 8, 0], sizes = [2, 8, 9], strides = [1, 1, 1]} : vector<2x32x9xf32> to vector<2x8x9xf32>
    %64 = vector.extract_strided_slice %38 {offsets = [0, 0, 40], sizes = [2, 9, 8], strides = [1, 1, 1]} : vector<2x9x96xf32> to vector<2x9x8xf32>
    %65 = arith.truncf %63 : vector<2x8x9xf32> to vector<2x8x9xbf16>
    %66 = arith.truncf %64 : vector<2x9x8xf32> to vector<2x9x8xbf16>
    "tpu.trace_start"() <{level = 10 : i32, message = "bdt,bte->bde"}> : () -> ()
    %cst_27 = arith.constant dense<0.000000e+00> : vector<2x8x8xf32>
    %67 = tpu.matmul %65, %66, %cst_27 {dimension_numbers = #tpu.dot_dimension_numbers<[2], [1], [1], [2], [0, 0, 0, 1, 1, 2], [0], [0]>} : vector<2x8x9xbf16>, vector<2x9x8xbf16>, vector<2x8x8xf32> -> vector<2x8x8xf32>
    "tpu.trace_stop"() : () -> ()
    %cst_28 = arith.constant 0.353553385 : f32
    %68 = vector.broadcast %cst_28 : f32 to vector<2x8x8xf32>
    %69 = arith.mulf %67, %68 : vector<2x8x8xf32>
    %cst_29 = arith.constant dense<0xFF800000> : vector<2x8xf32>
    %70 = vector.multi_reduction <maximumf>, %69, %cst_29 [2] : vector<2x8x8xf32> to vector<2x8xf32>
    %71 = vector.shape_cast %70 : vector<2x8xf32> to vector<2x8x1xf32>
    %72 = vector.broadcast %71 : vector<2x8x1xf32> to vector<2x8x8xf32>
    %73 = arith.subf %69, %72 : vector<2x8x8xf32>
    %74 = math.exp %73 : vector<2x8x8xf32>
    %cst_30 = arith.constant dense<0.000000e+00> : vector<2x8xf32>
    %75 = vector.multi_reduction <add>, %74, %cst_30 [2] : vector<2x8x8xf32> to vector<2x8xf32>
    %76 = vector.shape_cast %75 : vector<2x8xf32> to vector<2x8x1xf32>
    %77 = tpu.reciprocal %76 {approx = true} : vector<2x8x1xf32> -> vector<2x8x1xf32>
    %78 = vector.broadcast %77 : vector<2x8x1xf32> to vector<2x8x8xf32>
    %79 = arith.mulf %74, %78 : vector<2x8x8xf32>
    %80 = vector.extract_strided_slice %38 {offsets = [0, 0, 72], sizes = [2, 9, 8], strides = [1, 1, 1]} : vector<2x9x96xf32> to vector<2x9x8xf32>
    %81 = arith.truncf %80 : vector<2x9x8xf32> to vector<2x9x8xbf16>
    %82 = arith.truncf %79 : vector<2x8x8xf32> to vector<2x8x8xbf16>
    "tpu.trace_start"() <{level = 10 : i32, message = "btd,bde->bte"}> : () -> ()
    %cst_31 = arith.constant dense<0.000000e+00> : vector<2x9x8xf32>
    %83 = tpu.matmul %81, %82, %cst_31 {dimension_numbers = #tpu.dot_dimension_numbers<[2], [1], [1], [2], [0, 0, 0, 1, 1, 2], [0], [0]>} : vector<2x9x8xbf16>, vector<2x8x8xbf16>, vector<2x9x8xf32> -> vector<2x9x8xf32>
    "tpu.trace_stop"() : () -> ()
    %c0_32 = arith.constant 0 : index
    %c0_33 = arith.constant 0 : index
    %c8 = arith.constant 8 : index
    %84 = vector.load %arg30[%c0_32, %c0_33, %c8] : memref<2x9x32xf32, #tpu.memory_space<vmem>>, vector<2x9x8xf32>
    tpu.vector_store %arg30[%c0_32, %c0_33, %c8], %83 {strides = array<i32>} : memref<2x9x32xf32, #tpu.memory_space<vmem>>, vector<2x9x8xf32>,
    %85 = vector.extract_strided_slice %40 {offsets = [0, 16, 0], sizes = [2, 8, 9], strides = [1, 1, 1]} : vector<2x32x9xf32> to vector<2x8x9xf32>
    %86 = vector.extract_strided_slice %38 {offsets = [0, 0, 48], sizes = [2, 9, 8], strides = [1, 1, 1]} : vector<2x9x96xf32> to vector<2x9x8xf32>
    %87 = arith.truncf %85 : vector<2x8x9xf32> to vector<2x8x9xbf16>
    %88 = arith.truncf %86 : vector<2x9x8xf32> to vector<2x9x8xbf16>
    "tpu.trace_start"() <{level = 10 : i32, message = "bdt,bte->bde"}> : () -> ()
    %cst_34 = arith.constant dense<0.000000e+00> : vector<2x8x8xf32>
    %89 = tpu.matmul %87, %88, %cst_34 {dimension_numbers = #tpu.dot_dimension_numbers<[2], [1], [1], [2], [0, 0, 0, 1, 1, 2], [0], [0]>} : vector<2x8x9xbf16>, vector<2x9x8xbf16>, vector<2x8x8xf32> -> vector<2x8x8xf32>
    "tpu.trace_stop"() : () -> ()
    %cst_35 = arith.constant 0.353553385 : f32
    %90 = vector.broadcast %cst_35 : f32 to vector<2x8x8xf32>
    %91 = arith.mulf %89, %90 : vector<2x8x8xf32>
    %cst_36 = arith.constant dense<0xFF800000> : vector<2x8xf32>
    %92 = vector.multi_reduction <maximumf>, %91, %cst_36 [2] : vector<2x8x8xf32> to vector<2x8xf32>
    %93 = vector.shape_cast %92 : vector<2x8xf32> to vector<2x8x1xf32>
    %94 = vector.broadcast %93 : vector<2x8x1xf32> to vector<2x8x8xf32>
    %95 = arith.subf %91, %94 : vector<2x8x8xf32>
    %96 = math.exp %95 : vector<2x8x8xf32>
    %cst_37 = arith.constant dense<0.000000e+00> : vector<2x8xf32>
    %97 = vector.multi_reduction <add>, %96, %cst_37 [2] : vector<2x8x8xf32> to vector<2x8xf32>
    %98 = vector.shape_cast %97 : vector<2x8xf32> to vector<2x8x1xf32>
    %99 = tpu.reciprocal %98 {approx = true} : vector<2x8x1xf32> -> vector<2x8x1xf32>
    %100 = vector.broadcast %99 : vector<2x8x1xf32> to vector<2x8x8xf32>
    %101 = arith.mulf %96, %100 : vector<2x8x8xf32>
    %102 = vector.extract_strided_slice %38 {offsets = [0, 0, 80], sizes = [2, 9, 8], strides = [1, 1, 1]} : vector<2x9x96xf32> to vector<2x9x8xf32>
    %103 = arith.truncf %102 : vector<2x9x8xf32> to vector<2x9x8xbf16>
    %104 = arith.truncf %101 : vector<2x8x8xf32> to vector<2x8x8xbf16>
    "tpu.trace_start"() <{level = 10 : i32, message = "btd,bde->bte"}> : () -> ()
    %cst_38 = arith.constant dense<0.000000e+00> : vector<2x9x8xf32>
    %105 = tpu.matmul %103, %104, %cst_38 {dimension_numbers = #tpu.dot_dimension_numbers<[2], [1], [1], [2], [0, 0, 0, 1, 1, 2], [0], [0]>} : vector<2x9x8xbf16>, vector<2x8x8xbf16>, vector<2x9x8xf32> -> vector<2x9x8xf32>
    "tpu.trace_stop"() : () -> ()
    %c0_39 = arith.constant 0 : index
    %c0_40 = arith.constant 0 : index
    %c16 = arith.constant 16 : index
    %106 = vector.load %arg30[%c0_39, %c0_40, %c16] : memref<2x9x32xf32, #tpu.memory_space<vmem>>, vector<2x9x8xf32>
    tpu.vector_store %arg30[%c0_39, %c0_40, %c16], %105 {strides = array<i32>} : memref<2x9x32xf32, #tpu.memory_space<vmem>>, vector<2x9x8xf32>,
    %107 = vector.extract_strided_slice %40 {offsets = [0, 24, 0], sizes = [2, 8, 9], strides = [1, 1, 1]} : vector<2x32x9xf32> to vector<2x8x9xf32>
    %108 = vector.extract_strided_slice %38 {offsets = [0, 0, 56], sizes = [2, 9, 8], strides = [1, 1, 1]} : vector<2x9x96xf32> to vector<2x9x8xf32>
    %109 = arith.truncf %107 : vector<2x8x9xf32> to vector<2x8x9xbf16>
    %110 = arith.truncf %108 : vector<2x9x8xf32> to vector<2x9x8xbf16>
    "tpu.trace_start"() <{level = 10 : i32, message = "bdt,bte->bde"}> : () -> ()
    %cst_41 = arith.constant dense<0.000000e+00> : vector<2x8x8xf32>
    %111 = tpu.matmul %109, %110, %cst_41 {dimension_numbers = #tpu.dot_dimension_numbers<[2], [1], [1], [2], [0, 0, 0, 1, 1, 2], [0], [0]>} : vector<2x8x9xbf16>, vector<2x9x8xbf16>, vector<2x8x8xf32> -> vector<2x8x8xf32>
    "tpu.trace_stop"() : () -> ()
    %cst_42 = arith.constant 0.353553385 : f32
    %112 = vector.broadcast %cst_42 : f32 to vector<2x8x8xf32>
    %113 = arith.mulf %111, %112 : vector<2x8x8xf32>
    %cst_43 = arith.constant dense<0xFF800000> : vector<2x8xf32>
    %114 = vector.multi_reduction <maximumf>, %113, %cst_43 [2] : vector<2x8x8xf32> to vector<2x8xf32>
    %115 = vector.shape_cast %114 : vector<2x8xf32> to vector<2x8x1xf32>
    %116 = vector.broadcast %115 : vector<2x8x1xf32> to vector<2x8x8xf32>
    %117 = arith.subf %113, %116 : vector<2x8x8xf32>
    %118 = math.exp %117 : vector<2x8x8xf32>
    %cst_44 = arith.constant dense<0.000000e+00> : vector<2x8xf32>
    %119 = vector.multi_reduction <add>, %118, %cst_44 [2] : vector<2x8x8xf32> to vector<2x8xf32>
    %120 = vector.shape_cast %119 : vector<2x8xf32> to vector<2x8x1xf32>
    %121 = tpu.reciprocal %120 {approx = true} : vector<2x8x1xf32> -> vector<2x8x1xf32>
    %122 = vector.broadcast %121 : vector<2x8x1xf32> to vector<2x8x8xf32>
    %123 = arith.mulf %118, %122 : vector<2x8x8xf32>
    %124 = vector.extract_strided_slice %38 {offsets = [0, 0, 88], sizes = [2, 9, 8], strides = [1, 1, 1]} : vector<2x9x96xf32> to vector<2x9x8xf32>
    %125 = arith.truncf %124 : vector<2x9x8xf32> to vector<2x9x8xbf16>
    %126 = arith.truncf %123 : vector<2x8x8xf32> to vector<2x8x8xbf16>
    "tpu.trace_start"() <{level = 10 : i32, message = "btd,bde->bte"}> : () -> ()
    %cst_45 = arith.constant dense<0.000000e+00> : vector<2x9x8xf32>
    %127 = tpu.matmul %125, %126, %cst_45 {dimension_numbers = #tpu.dot_dimension_numbers<[2], [1], [1], [2], [0, 0, 0, 1, 1, 2], [0], [0]>} : vector<2x9x8xbf16>, vector<2x8x8xbf16>, vector<2x9x8xf32> -> vector<2x9x8xf32>
    "tpu.trace_stop"() : () -> ()
    %c0_46 = arith.constant 0 : index
    %c0_47 = arith.constant 0 : index
    %c24 = arith.constant 24 : index
    %128 = vector.load %arg30[%c0_46, %c0_47, %c24] : memref<2x9x32xf32, #tpu.memory_space<vmem>>, vector<2x9x8xf32>
    tpu.vector_store %arg30[%c0_46, %c0_47, %c24], %127 {strides = array<i32>} : memref<2x9x32xf32, #tpu.memory_space<vmem>>, vector<2x9x8xf32>,
    %c0_48 = arith.constant 0 : index
    %c0_49 = arith.constant 0 : index
    %c0_50 = arith.constant 0 : index
    %129 = vector.load %arg9[%c0_48, %c0_49, %c0_50] : memref<1x32x96xbf16, #tpu.memory_space<vmem>>, vector<1x32x96xbf16>
    %130 = vector.shape_cast %129 : vector<1x32x96xbf16> to vector<32x96xbf16>
    %131 = arith.truncf %29 : vector<18x32xf32> to vector<18x32xbf16>
    %cst_51 = arith.constant dense<0.000000e+00> : vector<18x96xf32>
    %132 = tpu.matmul %131, %130, %cst_51 {dimension_numbers = #tpu.dot_dimension_numbers<[1], [0], [0], [1], [0, 0, 1, 1], [], []>} : vector<18x32xbf16>, vector<32x96xbf16>, vector<18x96xf32> -> vector<18x96xf32>
    %c0_52 = arith.constant 0 : index
    %c0_53 = arith.constant 0 : index
    %c0_54 = arith.constant 0 : index
    %133 = vector.load %arg10[%c0_52, %c0_53, %c0_54] : memref<1x1x96xf32, #tpu.memory_space<vmem>>, vector<1x1x96xf32>
    %134 = vector.shape_cast %133 : vector<1x1x96xf32> to vector<1x96xf32>
    %135 = vector.broadcast %134 : vector<1x96xf32> to vector<18x96xf32>
    %136 = arith.addf %132, %135 : vector<18x96xf32>
    %137 = vector.shape_cast %136 : vector<18x96xf32> to vector<2x9x96xf32>
    %138 = vector.extract_strided_slice %137 {offsets = [0, 0, 0], sizes = [2, 9, 8], strides = [1, 1, 1]} : vector<2x9x96xf32> to vector<2x9x8xf32>
    %139 = vector.extract_strided_slice %137 {offsets = [0, 0, 32], sizes = [2, 9, 8], strides = [1, 1, 1]} : vector<2x9x96xf32> to vector<2x9x8xf32>
    %140 = vector.extract_strided_slice %137 {offsets = [0, 0, 64], sizes = [2, 9, 8], strides = [1, 1, 1]} : vector<2x9x96xf32> to vector<2x9x8xf32>
    %141 = arith.truncf %138 : vector<2x9x8xf32> to vector<2x9x8xbf16>
    %142 = arith.truncf %139 : vector<2x9x8xf32> to vector<2x9x8xbf16>
    "tpu.trace_start"() <{level = 10 : i32, message = "bqd,bkd->bqk"}> : () -> ()
    %cst_55 = arith.constant dense<0.000000e+00> : vector<2x9x9xf32>
    %143 = tpu.matmul %141, %142, %cst_55 {dimension_numbers = #tpu.dot_dimension_numbers<[2], [2], [1], [1], [0, 0, 0, 1, 1, 1], [0], [0]>} : vector<2x9x8xbf16>, vector<2x9x8xbf16>, vector<2x9x9xf32> -> vector<2x9x9xf32>
    "tpu.trace_stop"() : () -> ()
    %cst_56 = arith.constant 0.353553385 : f32
    %144 = vector.broadcast %cst_56 : f32 to vector<2x9x9xf32>
    %145 = arith.mulf %143, %144 : vector<2x9x9xf32>
    %cst_57 = arith.constant dense<0xFF800000> : vector<2x9xf32>
    %146 = vector.multi_reduction <maximumf>, %145, %cst_57 [2] : vector<2x9x9xf32> to vector<2x9xf32>
    %147 = vector.shape_cast %146 : vector<2x9xf32> to vector<2x9x1xf32>
    %148 = vector.broadcast %147 : vector<2x9x1xf32> to vector<2x9x9xf32>
    %149 = arith.subf %145, %148 : vector<2x9x9xf32>
    %150 = math.exp %149 : vector<2x9x9xf32>
    %cst_58 = arith.constant dense<0.000000e+00> : vector<2x9xf32>
    %151 = vector.multi_reduction <add>, %150, %cst_58 [2] : vector<2x9x9xf32> to vector<2x9xf32>
    %152 = vector.shape_cast %151 : vector<2x9xf32> to vector<2x9x1xf32>
    %153 = tpu.reciprocal %152 {approx = true} : vector<2x9x1xf32> -> vector<2x9x1xf32>
    %154 = vector.broadcast %153 : vector<2x9x1xf32> to vector<2x9x9xf32>
    %155 = arith.mulf %150, %154 : vector<2x9x9xf32>
    %156 = arith.truncf %155 : vector<2x9x9xf32> to vector<2x9x9xbf16>
    %157 = arith.truncf %140 : vector<2x9x8xf32> to vector<2x9x8xbf16>
    "tpu.trace_start"() <{level = 10 : i32, message = "bqk,bkd->bqd"}> : () -> ()
    %cst_59 = arith.constant dense<0.000000e+00> : vector<2x9x8xf32>
    %158 = tpu.matmul %156, %157, %cst_59 {dimension_numbers = #tpu.dot_dimension_numbers<[2], [1], [1], [2], [0, 0, 0, 1, 1, 2], [0], [0]>} : vector<2x9x9xbf16>, vector<2x9x8xbf16>, vector<2x9x8xf32> -> vector<2x9x8xf32>
    "tpu.trace_stop"() : () -> ()
    %c0_60 = arith.constant 0 : index
    %c0_61 = arith.constant 0 : index
    %c0_62 = arith.constant 0 : index
    %159 = vector.load %arg31[%c0_60, %c0_61, %c0_62] : memref<2x9x32xf32, #tpu.memory_space<vmem>>, vector<2x9x8xf32>
    tpu.vector_store %arg31[%c0_60, %c0_61, %c0_62], %158 {strides = array<i32>} : memref<2x9x32xf32, #tpu.memory_space<vmem>>, vector<2x9x8xf32>,
    %160 = vector.extract_strided_slice %137 {offsets = [0, 0, 8], sizes = [2, 9, 8], strides = [1, 1, 1]} : vector<2x9x96xf32> to vector<2x9x8xf32>
    %161 = vector.extract_strided_slice %137 {offsets = [0, 0, 40], sizes = [2, 9, 8], strides = [1, 1, 1]} : vector<2x9x96xf32> to vector<2x9x8xf32>
    %162 = vector.extract_strided_slice %137 {offsets = [0, 0, 72], sizes = [2, 9, 8], strides = [1, 1, 1]} : vector<2x9x96xf32> to vector<2x9x8xf32>
    %163 = arith.truncf %160 : vector<2x9x8xf32> to vector<2x9x8xbf16>
    %164 = arith.truncf %161 : vector<2x9x8xf32> to vector<2x9x8xbf16>
    "tpu.trace_start"() <{level = 10 : i32, message = "bqd,bkd->bqk"}> : () -> ()
    %cst_63 = arith.constant dense<0.000000e+00> : vector<2x9x9xf32>
    %165 = tpu.matmul %163, %164, %cst_63 {dimension_numbers = #tpu.dot_dimension_numbers<[2], [2], [1], [1], [0, 0, 0, 1, 1, 1], [0], [0]>} : vector<2x9x8xbf16>, vector<2x9x8xbf16>, vector<2x9x9xf32> -> vector<2x9x9xf32>
    "tpu.trace_stop"() : () -> ()
    %cst_64 = arith.constant 0.353553385 : f32
    %166 = vector.broadcast %cst_64 : f32 to vector<2x9x9xf32>
    %167 = arith.mulf %165, %166 : vector<2x9x9xf32>
    %cst_65 = arith.constant dense<0xFF800000> : vector<2x9xf32>
    %168 = vector.multi_reduction <maximumf>, %167, %cst_65 [2] : vector<2x9x9xf32> to vector<2x9xf32>
    %169 = vector.shape_cast %168 : vector<2x9xf32> to vector<2x9x1xf32>
    %170 = vector.broadcast %169 : vector<2x9x1xf32> to vector<2x9x9xf32>
    %171 = arith.subf %167, %170 : vector<2x9x9xf32>
    %172 = math.exp %171 : vector<2x9x9xf32>
    %cst_66 = arith.constant dense<0.000000e+00> : vector<2x9xf32>
    %173 = vector.multi_reduction <add>, %172, %cst_66 [2] : vector<2x9x9xf32> to vector<2x9xf32>
    %174 = vector.shape_cast %173 : vector<2x9xf32> to vector<2x9x1xf32>
    %175 = tpu.reciprocal %174 {approx = true} : vector<2x9x1xf32> -> vector<2x9x1xf32>
    %176 = vector.broadcast %175 : vector<2x9x1xf32> to vector<2x9x9xf32>
    %177 = arith.mulf %172, %176 : vector<2x9x9xf32>
    %178 = arith.truncf %177 : vector<2x9x9xf32> to vector<2x9x9xbf16>
    %179 = arith.truncf %162 : vector<2x9x8xf32> to vector<2x9x8xbf16>
    "tpu.trace_start"() <{level = 10 : i32, message = "bqk,bkd->bqd"}> : () -> ()
    %cst_67 = arith.constant dense<0.000000e+00> : vector<2x9x8xf32>
    %180 = tpu.matmul %178, %179, %cst_67 {dimension_numbers = #tpu.dot_dimension_numbers<[2], [1], [1], [2], [0, 0, 0, 1, 1, 2], [0], [0]>} : vector<2x9x9xbf16>, vector<2x9x8xbf16>, vector<2x9x8xf32> -> vector<2x9x8xf32>
    "tpu.trace_stop"() : () -> ()
    %c0_68 = arith.constant 0 : index
    %c0_69 = arith.constant 0 : index
    %c8_70 = arith.constant 8 : index
    %181 = vector.load %arg31[%c0_68, %c0_69, %c8_70] : memref<2x9x32xf32, #tpu.memory_space<vmem>>, vector<2x9x8xf32>
    tpu.vector_store %arg31[%c0_68, %c0_69, %c8_70], %180 {strides = array<i32>} : memref<2x9x32xf32, #tpu.memory_space<vmem>>, vector<2x9x8xf32>,
    %182 = vector.extract_strided_slice %137 {offsets = [0, 0, 16], sizes = [2, 9, 8], strides = [1, 1, 1]} : vector<2x9x96xf32> to vector<2x9x8xf32>
    %183 = vector.extract_strided_slice %137 {offsets = [0, 0, 48], sizes = [2, 9, 8], strides = [1, 1, 1]} : vector<2x9x96xf32> to vector<2x9x8xf32>
    %184 = vector.extract_strided_slice %137 {offsets = [0, 0, 80], sizes = [2, 9, 8], strides = [1, 1, 1]} : vector<2x9x96xf32> to vector<2x9x8xf32>
    %185 = arith.truncf %182 : vector<2x9x8xf32> to vector<2x9x8xbf16>
    %186 = arith.truncf %183 : vector<2x9x8xf32> to vector<2x9x8xbf16>
    "tpu.trace_start"() <{level = 10 : i32, message = "bqd,bkd->bqk"}> : () -> ()
    %cst_71 = arith.constant dense<0.000000e+00> : vector<2x9x9xf32>
    %187 = tpu.matmul %185, %186, %cst_71 {dimension_numbers = #tpu.dot_dimension_numbers<[2], [2], [1], [1], [0, 0, 0, 1, 1, 1], [0], [0]>} : vector<2x9x8xbf16>, vector<2x9x8xbf16>, vector<2x9x9xf32> -> vector<2x9x9xf32>
    "tpu.trace_stop"() : () -> ()
    %cst_72 = arith.constant 0.353553385 : f32
    %188 = vector.broadcast %cst_72 : f32 to vector<2x9x9xf32>
    %189 = arith.mulf %187, %188 : vector<2x9x9xf32>
    %cst_73 = arith.constant dense<0xFF800000> : vector<2x9xf32>
    %190 = vector.multi_reduction <maximumf>, %189, %cst_73 [2] : vector<2x9x9xf32> to vector<2x9xf32>
    %191 = vector.shape_cast %190 : vector<2x9xf32> to vector<2x9x1xf32>
    %192 = vector.broadcast %191 : vector<2x9x1xf32> to vector<2x9x9xf32>
    %193 = arith.subf %189, %192 : vector<2x9x9xf32>
    %194 = math.exp %193 : vector<2x9x9xf32>
    %cst_74 = arith.constant dense<0.000000e+00> : vector<2x9xf32>
    %195 = vector.multi_reduction <add>, %194, %cst_74 [2] : vector<2x9x9xf32> to vector<2x9xf32>
    %196 = vector.shape_cast %195 : vector<2x9xf32> to vector<2x9x1xf32>
    %197 = tpu.reciprocal %196 {approx = true} : vector<2x9x1xf32> -> vector<2x9x1xf32>
    %198 = vector.broadcast %197 : vector<2x9x1xf32> to vector<2x9x9xf32>
    %199 = arith.mulf %194, %198 : vector<2x9x9xf32>
    %200 = arith.truncf %199 : vector<2x9x9xf32> to vector<2x9x9xbf16>
    %201 = arith.truncf %184 : vector<2x9x8xf32> to vector<2x9x8xbf16>
    "tpu.trace_start"() <{level = 10 : i32, message = "bqk,bkd->bqd"}> : () -> ()
    %cst_75 = arith.constant dense<0.000000e+00> : vector<2x9x8xf32>
    %202 = tpu.matmul %200, %201, %cst_75 {dimension_numbers = #tpu.dot_dimension_numbers<[2], [1], [1], [2], [0, 0, 0, 1, 1, 2], [0], [0]>} : vector<2x9x9xbf16>, vector<2x9x8xbf16>, vector<2x9x8xf32> -> vector<2x9x8xf32>
    "tpu.trace_stop"() : () -> ()
    %c0_76 = arith.constant 0 : index
    %c0_77 = arith.constant 0 : index
    %c16_78 = arith.constant 16 : index
    %203 = vector.load %arg31[%c0_76, %c0_77, %c16_78] : memref<2x9x32xf32, #tpu.memory_space<vmem>>, vector<2x9x8xf32>
    tpu.vector_store %arg31[%c0_76, %c0_77, %c16_78], %202 {strides = array<i32>} : memref<2x9x32xf32, #tpu.memory_space<vmem>>, vector<2x9x8xf32>,
    %204 = vector.extract_strided_slice %137 {offsets = [0, 0, 24], sizes = [2, 9, 8], strides = [1, 1, 1]} : vector<2x9x96xf32> to vector<2x9x8xf32>
    %205 = vector.extract_strided_slice %137 {offsets = [0, 0, 56], sizes = [2, 9, 8], strides = [1, 1, 1]} : vector<2x9x96xf32> to vector<2x9x8xf32>
    %206 = vector.extract_strided_slice %137 {offsets = [0, 0, 88], sizes = [2, 9, 8], strides = [1, 1, 1]} : vector<2x9x96xf32> to vector<2x9x8xf32>
    %207 = arith.truncf %204 : vector<2x9x8xf32> to vector<2x9x8xbf16>
    %208 = arith.truncf %205 : vector<2x9x8xf32> to vector<2x9x8xbf16>
    "tpu.trace_start"() <{level = 10 : i32, message = "bqd,bkd->bqk"}> : () -> ()
    %cst_79 = arith.constant dense<0.000000e+00> : vector<2x9x9xf32>
    %209 = tpu.matmul %207, %208, %cst_79 {dimension_numbers = #tpu.dot_dimension_numbers<[2], [2], [1], [1], [0, 0, 0, 1, 1, 1], [0], [0]>} : vector<2x9x8xbf16>, vector<2x9x8xbf16>, vector<2x9x9xf32> -> vector<2x9x9xf32>
    "tpu.trace_stop"() : () -> ()
    %cst_80 = arith.constant 0.353553385 : f32
    %210 = vector.broadcast %cst_80 : f32 to vector<2x9x9xf32>
    %211 = arith.mulf %209, %210 : vector<2x9x9xf32>
    %cst_81 = arith.constant dense<0xFF800000> : vector<2x9xf32>
    %212 = vector.multi_reduction <maximumf>, %211, %cst_81 [2] : vector<2x9x9xf32> to vector<2x9xf32>
    %213 = vector.shape_cast %212 : vector<2x9xf32> to vector<2x9x1xf32>
    %214 = vector.broadcast %213 : vector<2x9x1xf32> to vector<2x9x9xf32>
    %215 = arith.subf %211, %214 : vector<2x9x9xf32>
    %216 = math.exp %215 : vector<2x9x9xf32>
    %cst_82 = arith.constant dense<0.000000e+00> : vector<2x9xf32>
    %217 = vector.multi_reduction <add>, %216, %cst_82 [2] : vector<2x9x9xf32> to vector<2x9xf32>
    %218 = vector.shape_cast %217 : vector<2x9xf32> to vector<2x9x1xf32>
    %219 = tpu.reciprocal %218 {approx = true} : vector<2x9x1xf32> -> vector<2x9x1xf32>
    %220 = vector.broadcast %219 : vector<2x9x1xf32> to vector<2x9x9xf32>
    %221 = arith.mulf %216, %220 : vector<2x9x9xf32>
    %222 = arith.truncf %221 : vector<2x9x9xf32> to vector<2x9x9xbf16>
    %223 = arith.truncf %206 : vector<2x9x8xf32> to vector<2x9x8xbf16>
    "tpu.trace_start"() <{level = 10 : i32, message = "bqk,bkd->bqd"}> : () -> ()
    %cst_83 = arith.constant dense<0.000000e+00> : vector<2x9x8xf32>
    %224 = tpu.matmul %222, %223, %cst_83 {dimension_numbers = #tpu.dot_dimension_numbers<[2], [1], [1], [2], [0, 0, 0, 1, 1, 2], [0], [0]>} : vector<2x9x9xbf16>, vector<2x9x8xbf16>, vector<2x9x8xf32> -> vector<2x9x8xf32>
    "tpu.trace_stop"() : () -> ()
    %c0_84 = arith.constant 0 : index
    %c0_85 = arith.constant 0 : index
    %c24_86 = arith.constant 24 : index
    %225 = vector.load %arg31[%c0_84, %c0_85, %c24_86] : memref<2x9x32xf32, #tpu.memory_space<vmem>>, vector<2x9x8xf32>
    tpu.vector_store %arg31[%c0_84, %c0_85, %c24_86], %224 {strides = array<i32>} : memref<2x9x32xf32, #tpu.memory_space<vmem>>, vector<2x9x8xf32>,
    %226 = vector.shape_cast %29 : vector<18x32xf32> to vector<2x9x32xf32>
    %c0_87 = arith.constant 0 : index
    %c0_88 = arith.constant 0 : index
    %c0_89 = arith.constant 0 : index
    %227 = vector.load %arg30[%c0_87, %c0_88, %c0_89] : memref<2x9x32xf32, #tpu.memory_space<vmem>>, vector<2x9x32xf32>
    %228 = arith.addf %226, %227 : vector<2x9x32xf32>
    %229 = vector.shape_cast %228 : vector<2x9x32xf32> to vector<18x32xf32>
    %c0_90 = arith.constant 0 : index
    %c0_91 = arith.constant 0 : index
    %c0_92 = arith.constant 0 : index
    %230 = vector.load %arg31[%c0_90, %c0_91, %c0_92] : memref<2x9x32xf32, #tpu.memory_space<vmem>>, vector<2x9x32xf32>
    %231 = arith.addf %226, %230 : vector<2x9x32xf32>
    %232 = vector.shape_cast %231 : vector<2x9x32xf32> to vector<18x32xf32>
    %c0_93 = arith.constant 0 : index
    %c0_94 = arith.constant 0 : index
    %c0_95 = arith.constant 0 : index
    %233 = vector.load %arg11[%c0_93, %c0_94, %c0_95] : memref<1x32x32xbf16, #tpu.memory_space<vmem>>, vector<1x32x32xbf16>
    %234 = vector.shape_cast %233 : vector<1x32x32xbf16> to vector<32x32xbf16>
    %235 = arith.truncf %229 : vector<18x32xf32> to vector<18x32xbf16>
    %cst_96 = arith.constant dense<0.000000e+00> : vector<18x32xf32>
    %236 = tpu.matmul %235, %234, %cst_96 {dimension_numbers = #tpu.dot_dimension_numbers<[1], [0], [0], [1], [0, 0, 1, 1], [], []>} : vector<18x32xbf16>, vector<32x32xbf16>, vector<18x32xf32> -> vector<18x32xf32>
    %c0_97 = arith.constant 0 : index
    %c0_98 = arith.constant 0 : index
    %c0_99 = arith.constant 0 : index
    %237 = vector.load %arg12[%c0_97, %c0_98, %c0_99] : memref<1x1x32xf32, #tpu.memory_space<vmem>>, vector<1x1x32xf32>
    %238 = vector.shape_cast %237 : vector<1x1x32xf32> to vector<1x32xf32>
    %239 = vector.broadcast %238 : vector<1x32xf32> to vector<18x32xf32>
    %240 = arith.addf %236, %239 : vector<18x32xf32>
    %241 = vector.shape_cast %240 : vector<18x32xf32> to vector<2x9x32xf32>
    %c0_100 = arith.constant 0 : index
    %c0_101 = arith.constant 0 : index
    %c0_102 = arith.constant 0 : index
    %242 = vector.load %arg13[%c0_100, %c0_101, %c0_102] : memref<1x32x64xbf16, #tpu.memory_space<vmem>>, vector<1x32x64xbf16>
    %243 = vector.shape_cast %242 : vector<1x32x64xbf16> to vector<32x64xbf16>
    %244 = arith.truncf %232 : vector<18x32xf32> to vector<18x32xbf16>
    %cst_103 = arith.constant dense<0.000000e+00> : vector<18x64xf32>
    %245 = tpu.matmul %244, %243, %cst_103 {dimension_numbers = #tpu.dot_dimension_numbers<[1], [0], [0], [1], [0, 0, 1, 1], [], []>} : vector<18x32xbf16>, vector<32x64xbf16>, vector<18x64xf32> -> vector<18x64xf32>
    %c0_104 = arith.constant 0 : index
    %c0_105 = arith.constant 0 : index
    %c0_106 = arith.constant 0 : index
    %246 = vector.load %arg14[%c0_104, %c0_105, %c0_106] : memref<1x1x64xf32, #tpu.memory_space<vmem>>, vector<1x1x64xf32>
    %247 = vector.shape_cast %246 : vector<1x1x64xf32> to vector<1x64xf32>
    %248 = vector.broadcast %247 : vector<1x64xf32> to vector<18x64xf32>
    %249 = arith.addf %245, %248 : vector<18x64xf32>
    %250 = vector.shape_cast %249 : vector<18x64xf32> to vector<2x9x64xf32>
    %251 = vector.extract_strided_slice %241 {offsets = [0, 0, 0], sizes = [2, 9, 8], strides = [1, 1, 1]} : vector<2x9x32xf32> to vector<2x9x8xf32>
    %252 = vector.extract_strided_slice %250 {offsets = [0, 0, 0], sizes = [2, 9, 8], strides = [1, 1, 1]} : vector<2x9x64xf32> to vector<2x9x8xf32>
    %253 = vector.extract_strided_slice %250 {offsets = [0, 0, 32], sizes = [2, 9, 8], strides = [1, 1, 1]} : vector<2x9x64xf32> to vector<2x9x8xf32>
    %254 = arith.truncf %251 : vector<2x9x8xf32> to vector<2x9x8xbf16>
    %255 = arith.truncf %252 : vector<2x9x8xf32> to vector<2x9x8xbf16>
    "tpu.trace_start"() <{level = 10 : i32, message = "bqd,bkd->bqk"}> : () -> ()
    %cst_107 = arith.constant dense<0.000000e+00> : vector<2x9x9xf32>
    %256 = tpu.matmul %254, %255, %cst_107 {dimension_numbers = #tpu.dot_dimension_numbers<[2], [2], [1], [1], [0, 0, 0, 1, 1, 1], [0], [0]>} : vector<2x9x8xbf16>, vector<2x9x8xbf16>, vector<2x9x9xf32> -> vector<2x9x9xf32>
    "tpu.trace_stop"() : () -> ()
    %cst_108 = arith.constant 0.353553385 : f32
    %257 = vector.broadcast %cst_108 : f32 to vector<2x9x9xf32>
    %258 = arith.mulf %256, %257 : vector<2x9x9xf32>
    %cst_109 = arith.constant dense<0xFF800000> : vector<2x9xf32>
    %259 = vector.multi_reduction <maximumf>, %258, %cst_109 [2] : vector<2x9x9xf32> to vector<2x9xf32>
    %260 = vector.shape_cast %259 : vector<2x9xf32> to vector<2x9x1xf32>
    %261 = vector.broadcast %260 : vector<2x9x1xf32> to vector<2x9x9xf32>
    %262 = arith.subf %258, %261 : vector<2x9x9xf32>
    %263 = math.exp %262 : vector<2x9x9xf32>
    %cst_110 = arith.constant dense<0.000000e+00> : vector<2x9xf32>
    %264 = vector.multi_reduction <add>, %263, %cst_110 [2] : vector<2x9x9xf32> to vector<2x9xf32>
    %265 = vector.shape_cast %264 : vector<2x9xf32> to vector<2x9x1xf32>
    %266 = tpu.reciprocal %265 {approx = true} : vector<2x9x1xf32> -> vector<2x9x1xf32>
    %267 = vector.broadcast %266 : vector<2x9x1xf32> to vector<2x9x9xf32>
    %268 = arith.mulf %263, %267 : vector<2x9x9xf32>
    %269 = arith.truncf %268 : vector<2x9x9xf32> to vector<2x9x9xbf16>
    %270 = arith.truncf %253 : vector<2x9x8xf32> to vector<2x9x8xbf16>
    "tpu.trace_start"() <{level = 10 : i32, message = "bqk,bkd->bqd"}> : () -> ()
    %cst_111 = arith.constant dense<0.000000e+00> : vector<2x9x8xf32>
    %271 = tpu.matmul %269, %270, %cst_111 {dimension_numbers = #tpu.dot_dimension_numbers<[2], [1], [1], [2], [0, 0, 0, 1, 1, 2], [0], [0]>} : vector<2x9x9xbf16>, vector<2x9x8xbf16>, vector<2x9x8xf32> -> vector<2x9x8xf32>
    "tpu.trace_stop"() : () -> ()
    %c0_112 = arith.constant 0 : index
    %c0_113 = arith.constant 0 : index
    %c0_114 = arith.constant 0 : index
    %272 = vector.load %arg32[%c0_112, %c0_113, %c0_114] : memref<2x9x64xf32, #tpu.memory_space<vmem>>, vector<2x9x8xf32>
    tpu.vector_store %arg32[%c0_112, %c0_113, %c0_114], %271 {strides = array<i32>} : memref<2x9x64xf32, #tpu.memory_space<vmem>>, vector<2x9x8xf32>,
    %273 = vector.extract_strided_slice %241 {offsets = [0, 0, 8], sizes = [2, 9, 8], strides = [1, 1, 1]} : vector<2x9x32xf32> to vector<2x9x8xf32>
    %274 = vector.extract_strided_slice %250 {offsets = [0, 0, 8], sizes = [2, 9, 8], strides = [1, 1, 1]} : vector<2x9x64xf32> to vector<2x9x8xf32>
    %275 = vector.extract_strided_slice %250 {offsets = [0, 0, 40], sizes = [2, 9, 8], strides = [1, 1, 1]} : vector<2x9x64xf32> to vector<2x9x8xf32>
    %276 = arith.truncf %273 : vector<2x9x8xf32> to vector<2x9x8xbf16>
    %277 = arith.truncf %274 : vector<2x9x8xf32> to vector<2x9x8xbf16>
    "tpu.trace_start"() <{level = 10 : i32, message = "bqd,bkd->bqk"}> : () -> ()
    %cst_115 = arith.constant dense<0.000000e+00> : vector<2x9x9xf32>
    %278 = tpu.matmul %276, %277, %cst_115 {dimension_numbers = #tpu.dot_dimension_numbers<[2], [2], [1], [1], [0, 0, 0, 1, 1, 1], [0], [0]>} : vector<2x9x8xbf16>, vector<2x9x8xbf16>, vector<2x9x9xf32> -> vector<2x9x9xf32>
    "tpu.trace_stop"() : () -> ()
    %cst_116 = arith.constant 0.353553385 : f32
    %279 = vector.broadcast %cst_116 : f32 to vector<2x9x9xf32>
    %280 = arith.mulf %278, %279 : vector<2x9x9xf32>
    %cst_117 = arith.constant dense<0xFF800000> : vector<2x9xf32>
    %281 = vector.multi_reduction <maximumf>, %280, %cst_117 [2] : vector<2x9x9xf32> to vector<2x9xf32>
    %282 = vector.shape_cast %281 : vector<2x9xf32> to vector<2x9x1xf32>
    %283 = vector.broadcast %282 : vector<2x9x1xf32> to vector<2x9x9xf32>
    %284 = arith.subf %280, %283 : vector<2x9x9xf32>
    %285 = math.exp %284 : vector<2x9x9xf32>
    %cst_118 = arith.constant dense<0.000000e+00> : vector<2x9xf32>
    %286 = vector.multi_reduction <add>, %285, %cst_118 [2] : vector<2x9x9xf32> to vector<2x9xf32>
    %287 = vector.shape_cast %286 : vector<2x9xf32> to vector<2x9x1xf32>
    %288 = tpu.reciprocal %287 {approx = true} : vector<2x9x1xf32> -> vector<2x9x1xf32>
    %289 = vector.broadcast %288 : vector<2x9x1xf32> to vector<2x9x9xf32>
    %290 = arith.mulf %285, %289 : vector<2x9x9xf32>
    %291 = arith.truncf %290 : vector<2x9x9xf32> to vector<2x9x9xbf16>
    %292 = arith.truncf %275 : vector<2x9x8xf32> to vector<2x9x8xbf16>
    "tpu.trace_start"() <{level = 10 : i32, message = "bqk,bkd->bqd"}> : () -> ()
    %cst_119 = arith.constant dense<0.000000e+00> : vector<2x9x8xf32>
    %293 = tpu.matmul %291, %292, %cst_119 {dimension_numbers = #tpu.dot_dimension_numbers<[2], [1], [1], [2], [0, 0, 0, 1, 1, 2], [0], [0]>} : vector<2x9x9xbf16>, vector<2x9x8xbf16>, vector<2x9x8xf32> -> vector<2x9x8xf32>
    "tpu.trace_stop"() : () -> ()
    %c0_120 = arith.constant 0 : index
    %c0_121 = arith.constant 0 : index
    %c8_122 = arith.constant 8 : index
    %294 = vector.load %arg32[%c0_120, %c0_121, %c8_122] : memref<2x9x64xf32, #tpu.memory_space<vmem>>, vector<2x9x8xf32>
    tpu.vector_store %arg32[%c0_120, %c0_121, %c8_122], %293 {strides = array<i32>} : memref<2x9x64xf32, #tpu.memory_space<vmem>>, vector<2x9x8xf32>,
    %295 = vector.extract_strided_slice %241 {offsets = [0, 0, 16], sizes = [2, 9, 8], strides = [1, 1, 1]} : vector<2x9x32xf32> to vector<2x9x8xf32>
    %296 = vector.extract_strided_slice %250 {offsets = [0, 0, 16], sizes = [2, 9, 8], strides = [1, 1, 1]} : vector<2x9x64xf32> to vector<2x9x8xf32>
    %297 = vector.extract_strided_slice %250 {offsets = [0, 0, 48], sizes = [2, 9, 8], strides = [1, 1, 1]} : vector<2x9x64xf32> to vector<2x9x8xf32>
    %298 = arith.truncf %295 : vector<2x9x8xf32> to vector<2x9x8xbf16>
    %299 = arith.truncf %296 : vector<2x9x8xf32> to vector<2x9x8xbf16>
    "tpu.trace_start"() <{level = 10 : i32, message = "bqd,bkd->bqk"}> : () -> ()
    %cst_123 = arith.constant dense<0.000000e+00> : vector<2x9x9xf32>
    %300 = tpu.matmul %298, %299, %cst_123 {dimension_numbers = #tpu.dot_dimension_numbers<[2], [2], [1], [1], [0, 0, 0, 1, 1, 1], [0], [0]>} : vector<2x9x8xbf16>, vector<2x9x8xbf16>, vector<2x9x9xf32> -> vector<2x9x9xf32>
    "tpu.trace_stop"() : () -> ()
    %cst_124 = arith.constant 0.353553385 : f32
    %301 = vector.broadcast %cst_124 : f32 to vector<2x9x9xf32>
    %302 = arith.mulf %300, %301 : vector<2x9x9xf32>
    %cst_125 = arith.constant dense<0xFF800000> : vector<2x9xf32>
    %303 = vector.multi_reduction <maximumf>, %302, %cst_125 [2] : vector<2x9x9xf32> to vector<2x9xf32>
    %304 = vector.shape_cast %303 : vector<2x9xf32> to vector<2x9x1xf32>
    %305 = vector.broadcast %304 : vector<2x9x1xf32> to vector<2x9x9xf32>
    %306 = arith.subf %302, %305 : vector<2x9x9xf32>
    %307 = math.exp %306 : vector<2x9x9xf32>
    %cst_126 = arith.constant dense<0.000000e+00> : vector<2x9xf32>
    %308 = vector.multi_reduction <add>, %307, %cst_126 [2] : vector<2x9x9xf32> to vector<2x9xf32>
    %309 = vector.shape_cast %308 : vector<2x9xf32> to vector<2x9x1xf32>
    %310 = tpu.reciprocal %309 {approx = true} : vector<2x9x1xf32> -> vector<2x9x1xf32>
    %311 = vector.broadcast %310 : vector<2x9x1xf32> to vector<2x9x9xf32>
    %312 = arith.mulf %307, %311 : vector<2x9x9xf32>
    %313 = arith.truncf %312 : vector<2x9x9xf32> to vector<2x9x9xbf16>
    %314 = arith.truncf %297 : vector<2x9x8xf32> to vector<2x9x8xbf16>
    "tpu.trace_start"() <{level = 10 : i32, message = "bqk,bkd->bqd"}> : () -> ()
    %cst_127 = arith.constant dense<0.000000e+00> : vector<2x9x8xf32>
    %315 = tpu.matmul %313, %314, %cst_127 {dimension_numbers = #tpu.dot_dimension_numbers<[2], [1], [1], [2], [0, 0, 0, 1, 1, 2], [0], [0]>} : vector<2x9x9xbf16>, vector<2x9x8xbf16>, vector<2x9x8xf32> -> vector<2x9x8xf32>
    "tpu.trace_stop"() : () -> ()
    %c0_128 = arith.constant 0 : index
    %c0_129 = arith.constant 0 : index
    %c16_130 = arith.constant 16 : index
    %316 = vector.load %arg32[%c0_128, %c0_129, %c16_130] : memref<2x9x64xf32, #tpu.memory_space<vmem>>, vector<2x9x8xf32>
    tpu.vector_store %arg32[%c0_128, %c0_129, %c16_130], %315 {strides = array<i32>} : memref<2x9x64xf32, #tpu.memory_space<vmem>>, vector<2x9x8xf32>,
    %317 = vector.extract_strided_slice %241 {offsets = [0, 0, 24], sizes = [2, 9, 8], strides = [1, 1, 1]} : vector<2x9x32xf32> to vector<2x9x8xf32>
    %318 = vector.extract_strided_slice %250 {offsets = [0, 0, 24], sizes = [2, 9, 8], strides = [1, 1, 1]} : vector<2x9x64xf32> to vector<2x9x8xf32>
    %319 = vector.extract_strided_slice %250 {offsets = [0, 0, 56], sizes = [2, 9, 8], strides = [1, 1, 1]} : vector<2x9x64xf32> to vector<2x9x8xf32>
    %320 = arith.truncf %317 : vector<2x9x8xf32> to vector<2x9x8xbf16>
    %321 = arith.truncf %318 : vector<2x9x8xf32> to vector<2x9x8xbf16>
    "tpu.trace_start"() <{level = 10 : i32, message = "bqd,bkd->bqk"}> : () -> ()
    %cst_131 = arith.constant dense<0.000000e+00> : vector<2x9x9xf32>
    %322 = tpu.matmul %320, %321, %cst_131 {dimension_numbers = #tpu.dot_dimension_numbers<[2], [2], [1], [1], [0, 0, 0, 1, 1, 1], [0], [0]>} : vector<2x9x8xbf16>, vector<2x9x8xbf16>, vector<2x9x9xf32> -> vector<2x9x9xf32>
    "tpu.trace_stop"() : () -> ()
    %cst_132 = arith.constant 0.353553385 : f32
    %323 = vector.broadcast %cst_132 : f32 to vector<2x9x9xf32>
    %324 = arith.mulf %322, %323 : vector<2x9x9xf32>
    %cst_133 = arith.constant dense<0xFF800000> : vector<2x9xf32>
    %325 = vector.multi_reduction <maximumf>, %324, %cst_133 [2] : vector<2x9x9xf32> to vector<2x9xf32>
    %326 = vector.shape_cast %325 : vector<2x9xf32> to vector<2x9x1xf32>
    %327 = vector.broadcast %326 : vector<2x9x1xf32> to vector<2x9x9xf32>
    %328 = arith.subf %324, %327 : vector<2x9x9xf32>
    %329 = math.exp %328 : vector<2x9x9xf32>
    %cst_134 = arith.constant dense<0.000000e+00> : vector<2x9xf32>
    %330 = vector.multi_reduction <add>, %329, %cst_134 [2] : vector<2x9x9xf32> to vector<2x9xf32>
    %331 = vector.shape_cast %330 : vector<2x9xf32> to vector<2x9x1xf32>
    %332 = tpu.reciprocal %331 {approx = true} : vector<2x9x1xf32> -> vector<2x9x1xf32>
    %333 = vector.broadcast %332 : vector<2x9x1xf32> to vector<2x9x9xf32>
    %334 = arith.mulf %329, %333 : vector<2x9x9xf32>
    %335 = arith.truncf %334 : vector<2x9x9xf32> to vector<2x9x9xbf16>
    %336 = arith.truncf %319 : vector<2x9x8xf32> to vector<2x9x8xbf16>
    "tpu.trace_start"() <{level = 10 : i32, message = "bqk,bkd->bqd"}> : () -> ()
    %cst_135 = arith.constant dense<0.000000e+00> : vector<2x9x8xf32>
    %337 = tpu.matmul %335, %336, %cst_135 {dimension_numbers = #tpu.dot_dimension_numbers<[2], [1], [1], [2], [0, 0, 0, 1, 1, 2], [0], [0]>} : vector<2x9x9xbf16>, vector<2x9x8xbf16>, vector<2x9x8xf32> -> vector<2x9x8xf32>
    "tpu.trace_stop"() : () -> ()
    %c0_136 = arith.constant 0 : index
    %c0_137 = arith.constant 0 : index
    %c24_138 = arith.constant 24 : index
    %338 = vector.load %arg32[%c0_136, %c0_137, %c24_138] : memref<2x9x64xf32, #tpu.memory_space<vmem>>, vector<2x9x8xf32>
    tpu.vector_store %arg32[%c0_136, %c0_137, %c24_138], %337 {strides = array<i32>} : memref<2x9x64xf32, #tpu.memory_space<vmem>>, vector<2x9x8xf32>,
    %c0_139 = arith.constant 0 : index
    %c0_140 = arith.constant 0 : index
    %c0_141 = arith.constant 0 : index
    %339 = vector.load %arg15[%c0_139, %c0_140, %c0_141] : memref<1x32x32xbf16, #tpu.memory_space<vmem>>, vector<1x32x32xbf16>
    %340 = vector.shape_cast %339 : vector<1x32x32xbf16> to vector<32x32xbf16>
    %341 = arith.truncf %232 : vector<18x32xf32> to vector<18x32xbf16>
    %cst_142 = arith.constant dense<0.000000e+00> : vector<18x32xf32>
    %342 = tpu.matmul %341, %340, %cst_142 {dimension_numbers = #tpu.dot_dimension_numbers<[1], [0], [0], [1], [0, 0, 1, 1], [], []>} : vector<18x32xbf16>, vector<32x32xbf16>, vector<18x32xf32> -> vector<18x32xf32>
    %c0_143 = arith.constant 0 : index
    %c0_144 = arith.constant 0 : index
    %c0_145 = arith.constant 0 : index
    %343 = vector.load %arg16[%c0_143, %c0_144, %c0_145] : memref<1x1x32xf32, #tpu.memory_space<vmem>>, vector<1x1x32xf32>
    %344 = vector.shape_cast %343 : vector<1x1x32xf32> to vector<1x32xf32>
    %345 = vector.broadcast %344 : vector<1x32xf32> to vector<18x32xf32>
    %346 = arith.addf %342, %345 : vector<18x32xf32>
    %347 = vector.shape_cast %346 : vector<18x32xf32> to vector<2x9x32xf32>
    %c0_146 = arith.constant 0 : index
    %c0_147 = arith.constant 0 : index
    %c0_148 = arith.constant 0 : index
    %348 = vector.load %arg17[%c0_146, %c0_147, %c0_148] : memref<1x32x64xbf16, #tpu.memory_space<vmem>>, vector<1x32x64xbf16>
    %349 = vector.shape_cast %348 : vector<1x32x64xbf16> to vector<32x64xbf16>
    %350 = arith.truncf %229 : vector<18x32xf32> to vector<18x32xbf16>
    %cst_149 = arith.constant dense<0.000000e+00> : vector<18x64xf32>
    %351 = tpu.matmul %350, %349, %cst_149 {dimension_numbers = #tpu.dot_dimension_numbers<[1], [0], [0], [1], [0, 0, 1, 1], [], []>} : vector<18x32xbf16>, vector<32x64xbf16>, vector<18x64xf32> -> vector<18x64xf32>
    %c0_150 = arith.constant 0 : index
    %c0_151 = arith.constant 0 : index
    %c0_152 = arith.constant 0 : index
    %352 = vector.load %arg18[%c0_150, %c0_151, %c0_152] : memref<1x1x64xf32, #tpu.memory_space<vmem>>, vector<1x1x64xf32>
    %353 = vector.shape_cast %352 : vector<1x1x64xf32> to vector<1x64xf32>
    %354 = vector.broadcast %353 : vector<1x64xf32> to vector<18x64xf32>
    %355 = arith.addf %351, %354 : vector<18x64xf32>
    %356 = vector.shape_cast %355 : vector<18x64xf32> to vector<2x9x64xf32>
    %357 = vector.extract_strided_slice %347 {offsets = [0, 0, 0], sizes = [2, 9, 8], strides = [1, 1, 1]} : vector<2x9x32xf32> to vector<2x9x8xf32>
    %358 = vector.extract_strided_slice %356 {offsets = [0, 0, 0], sizes = [2, 9, 8], strides = [1, 1, 1]} : vector<2x9x64xf32> to vector<2x9x8xf32>
    %359 = vector.extract_strided_slice %356 {offsets = [0, 0, 32], sizes = [2, 9, 8], strides = [1, 1, 1]} : vector<2x9x64xf32> to vector<2x9x8xf32>
    %360 = arith.truncf %357 : vector<2x9x8xf32> to vector<2x9x8xbf16>
    %361 = arith.truncf %358 : vector<2x9x8xf32> to vector<2x9x8xbf16>
    "tpu.trace_start"() <{level = 10 : i32, message = "bqd,bkd->bqk"}> : () -> ()
    %cst_153 = arith.constant dense<0.000000e+00> : vector<2x9x9xf32>
    %362 = tpu.matmul %360, %361, %cst_153 {dimension_numbers = #tpu.dot_dimension_numbers<[2], [2], [1], [1], [0, 0, 0, 1, 1, 1], [0], [0]>} : vector<2x9x8xbf16>, vector<2x9x8xbf16>, vector<2x9x9xf32> -> vector<2x9x9xf32>
    "tpu.trace_stop"() : () -> ()
    %cst_154 = arith.constant 0.353553385 : f32
    %363 = vector.broadcast %cst_154 : f32 to vector<2x9x9xf32>
    %364 = arith.mulf %362, %363 : vector<2x9x9xf32>
    %cst_155 = arith.constant dense<0xFF800000> : vector<2x9xf32>
    %365 = vector.multi_reduction <maximumf>, %364, %cst_155 [2] : vector<2x9x9xf32> to vector<2x9xf32>
    %366 = vector.shape_cast %365 : vector<2x9xf32> to vector<2x9x1xf32>
    %367 = vector.broadcast %366 : vector<2x9x1xf32> to vector<2x9x9xf32>
    %368 = arith.subf %364, %367 : vector<2x9x9xf32>
    %369 = math.exp %368 : vector<2x9x9xf32>
    %cst_156 = arith.constant dense<0.000000e+00> : vector<2x9xf32>
    %370 = vector.multi_reduction <add>, %369, %cst_156 [2] : vector<2x9x9xf32> to vector<2x9xf32>
    %371 = vector.shape_cast %370 : vector<2x9xf32> to vector<2x9x1xf32>
    %372 = tpu.reciprocal %371 {approx = true} : vector<2x9x1xf32> -> vector<2x9x1xf32>
    %373 = vector.broadcast %372 : vector<2x9x1xf32> to vector<2x9x9xf32>
    %374 = arith.mulf %369, %373 : vector<2x9x9xf32>
    %375 = arith.truncf %374 : vector<2x9x9xf32> to vector<2x9x9xbf16>
    %376 = arith.truncf %359 : vector<2x9x8xf32> to vector<2x9x8xbf16>
    "tpu.trace_start"() <{level = 10 : i32, message = "bqk,bkd->bqd"}> : () -> ()
    %cst_157 = arith.constant dense<0.000000e+00> : vector<2x9x8xf32>
    %377 = tpu.matmul %375, %376, %cst_157 {dimension_numbers = #tpu.dot_dimension_numbers<[2], [1], [1], [2], [0, 0, 0, 1, 1, 2], [0], [0]>} : vector<2x9x9xbf16>, vector<2x9x8xbf16>, vector<2x9x8xf32> -> vector<2x9x8xf32>
    "tpu.trace_stop"() : () -> ()
    %c0_158 = arith.constant 0 : index
    %c0_159 = arith.constant 0 : index
    %c32 = arith.constant 32 : index
    %378 = vector.load %arg32[%c0_158, %c0_159, %c32] : memref<2x9x64xf32, #tpu.memory_space<vmem>>, vector<2x9x8xf32>
    tpu.vector_store %arg32[%c0_158, %c0_159, %c32], %377 {strides = array<i32>} : memref<2x9x64xf32, #tpu.memory_space<vmem>>, vector<2x9x8xf32>,
    %379 = vector.extract_strided_slice %347 {offsets = [0, 0, 8], sizes = [2, 9, 8], strides = [1, 1, 1]} : vector<2x9x32xf32> to vector<2x9x8xf32>
    %380 = vector.extract_strided_slice %356 {offsets = [0, 0, 8], sizes = [2, 9, 8], strides = [1, 1, 1]} : vector<2x9x64xf32> to vector<2x9x8xf32>
    %381 = vector.extract_strided_slice %356 {offsets = [0, 0, 40], sizes = [2, 9, 8], strides = [1, 1, 1]} : vector<2x9x64xf32> to vector<2x9x8xf32>
    %382 = arith.truncf %379 : vector<2x9x8xf32> to vector<2x9x8xbf16>
    %383 = arith.truncf %380 : vector<2x9x8xf32> to vector<2x9x8xbf16>
    "tpu.trace_start"() <{level = 10 : i32, message = "bqd,bkd->bqk"}> : () -> ()
    %cst_160 = arith.constant dense<0.000000e+00> : vector<2x9x9xf32>
    %384 = tpu.matmul %382, %383, %cst_160 {dimension_numbers = #tpu.dot_dimension_numbers<[2], [2], [1], [1], [0, 0, 0, 1, 1, 1], [0], [0]>} : vector<2x9x8xbf16>, vector<2x9x8xbf16>, vector<2x9x9xf32> -> vector<2x9x9xf32>
    "tpu.trace_stop"() : () -> ()
    %cst_161 = arith.constant 0.353553385 : f32
    %385 = vector.broadcast %cst_161 : f32 to vector<2x9x9xf32>
    %386 = arith.mulf %384, %385 : vector<2x9x9xf32>
    %cst_162 = arith.constant dense<0xFF800000> : vector<2x9xf32>
    %387 = vector.multi_reduction <maximumf>, %386, %cst_162 [2] : vector<2x9x9xf32> to vector<2x9xf32>
    %388 = vector.shape_cast %387 : vector<2x9xf32> to vector<2x9x1xf32>
    %389 = vector.broadcast %388 : vector<2x9x1xf32> to vector<2x9x9xf32>
    %390 = arith.subf %386, %389 : vector<2x9x9xf32>
    %391 = math.exp %390 : vector<2x9x9xf32>
    %cst_163 = arith.constant dense<0.000000e+00> : vector<2x9xf32>
    %392 = vector.multi_reduction <add>, %391, %cst_163 [2] : vector<2x9x9xf32> to vector<2x9xf32>
    %393 = vector.shape_cast %392 : vector<2x9xf32> to vector<2x9x1xf32>
    %394 = tpu.reciprocal %393 {approx = true} : vector<2x9x1xf32> -> vector<2x9x1xf32>
    %395 = vector.broadcast %394 : vector<2x9x1xf32> to vector<2x9x9xf32>
    %396 = arith.mulf %391, %395 : vector<2x9x9xf32>
    %397 = arith.truncf %396 : vector<2x9x9xf32> to vector<2x9x9xbf16>
    %398 = arith.truncf %381 : vector<2x9x8xf32> to vector<2x9x8xbf16>
    "tpu.trace_start"() <{level = 10 : i32, message = "bqk,bkd->bqd"}> : () -> ()
    %cst_164 = arith.constant dense<0.000000e+00> : vector<2x9x8xf32>
    %399 = tpu.matmul %397, %398, %cst_164 {dimension_numbers = #tpu.dot_dimension_numbers<[2], [1], [1], [2], [0, 0, 0, 1, 1, 2], [0], [0]>} : vector<2x9x9xbf16>, vector<2x9x8xbf16>, vector<2x9x8xf32> -> vector<2x9x8xf32>
    "tpu.trace_stop"() : () -> ()
    %c0_165 = arith.constant 0 : index
    %c0_166 = arith.constant 0 : index
    %c40 = arith.constant 40 : index
    %400 = vector.load %arg32[%c0_165, %c0_166, %c40] : memref<2x9x64xf32, #tpu.memory_space<vmem>>, vector<2x9x8xf32>
    tpu.vector_store %arg32[%c0_165, %c0_166, %c40], %399 {strides = array<i32>} : memref<2x9x64xf32, #tpu.memory_space<vmem>>, vector<2x9x8xf32>,
    %401 = vector.extract_strided_slice %347 {offsets = [0, 0, 16], sizes = [2, 9, 8], strides = [1, 1, 1]} : vector<2x9x32xf32> to vector<2x9x8xf32>
    %402 = vector.extract_strided_slice %356 {offsets = [0, 0, 16], sizes = [2, 9, 8], strides = [1, 1, 1]} : vector<2x9x64xf32> to vector<2x9x8xf32>
    %403 = vector.extract_strided_slice %356 {offsets = [0, 0, 48], sizes = [2, 9, 8], strides = [1, 1, 1]} : vector<2x9x64xf32> to vector<2x9x8xf32>
    %404 = arith.truncf %401 : vector<2x9x8xf32> to vector<2x9x8xbf16>
    %405 = arith.truncf %402 : vector<2x9x8xf32> to vector<2x9x8xbf16>
    "tpu.trace_start"() <{level = 10 : i32, message = "bqd,bkd->bqk"}> : () -> ()
    %cst_167 = arith.constant dense<0.000000e+00> : vector<2x9x9xf32>
    %406 = tpu.matmul %404, %405, %cst_167 {dimension_numbers = #tpu.dot_dimension_numbers<[2], [2], [1], [1], [0, 0, 0, 1, 1, 1], [0], [0]>} : vector<2x9x8xbf16>, vector<2x9x8xbf16>, vector<2x9x9xf32> -> vector<2x9x9xf32>
    "tpu.trace_stop"() : () -> ()
    %cst_168 = arith.constant 0.353553385 : f32
    %407 = vector.broadcast %cst_168 : f32 to vector<2x9x9xf32>
    %408 = arith.mulf %406, %407 : vector<2x9x9xf32>
    %cst_169 = arith.constant dense<0xFF800000> : vector<2x9xf32>
    %409 = vector.multi_reduction <maximumf>, %408, %cst_169 [2] : vector<2x9x9xf32> to vector<2x9xf32>
    %410 = vector.shape_cast %409 : vector<2x9xf32> to vector<2x9x1xf32>
    %411 = vector.broadcast %410 : vector<2x9x1xf32> to vector<2x9x9xf32>
    %412 = arith.subf %408, %411 : vector<2x9x9xf32>
    %413 = math.exp %412 : vector<2x9x9xf32>
    %cst_170 = arith.constant dense<0.000000e+00> : vector<2x9xf32>
    %414 = vector.multi_reduction <add>, %413, %cst_170 [2] : vector<2x9x9xf32> to vector<2x9xf32>
    %415 = vector.shape_cast %414 : vector<2x9xf32> to vector<2x9x1xf32>
    %416 = tpu.reciprocal %415 {approx = true} : vector<2x9x1xf32> -> vector<2x9x1xf32>
    %417 = vector.broadcast %416 : vector<2x9x1xf32> to vector<2x9x9xf32>
    %418 = arith.mulf %413, %417 : vector<2x9x9xf32>
    %419 = arith.truncf %418 : vector<2x9x9xf32> to vector<2x9x9xbf16>
    %420 = arith.truncf %403 : vector<2x9x8xf32> to vector<2x9x8xbf16>
    "tpu.trace_start"() <{level = 10 : i32, message = "bqk,bkd->bqd"}> : () -> ()
    %cst_171 = arith.constant dense<0.000000e+00> : vector<2x9x8xf32>
    %421 = tpu.matmul %419, %420, %cst_171 {dimension_numbers = #tpu.dot_dimension_numbers<[2], [1], [1], [2], [0, 0, 0, 1, 1, 2], [0], [0]>} : vector<2x9x9xbf16>, vector<2x9x8xbf16>, vector<2x9x8xf32> -> vector<2x9x8xf32>
    "tpu.trace_stop"() : () -> ()
    %c0_172 = arith.constant 0 : index
    %c0_173 = arith.constant 0 : index
    %c48 = arith.constant 48 : index
    %422 = vector.load %arg32[%c0_172, %c0_173, %c48] : memref<2x9x64xf32, #tpu.memory_space<vmem>>, vector<2x9x8xf32>
    tpu.vector_store %arg32[%c0_172, %c0_173, %c48], %421 {strides = array<i32>} : memref<2x9x64xf32, #tpu.memory_space<vmem>>, vector<2x9x8xf32>,
    %423 = vector.extract_strided_slice %347 {offsets = [0, 0, 24], sizes = [2, 9, 8], strides = [1, 1, 1]} : vector<2x9x32xf32> to vector<2x9x8xf32>
    %424 = vector.extract_strided_slice %356 {offsets = [0, 0, 24], sizes = [2, 9, 8], strides = [1, 1, 1]} : vector<2x9x64xf32> to vector<2x9x8xf32>
    %425 = vector.extract_strided_slice %356 {offsets = [0, 0, 56], sizes = [2, 9, 8], strides = [1, 1, 1]} : vector<2x9x64xf32> to vector<2x9x8xf32>
    %426 = arith.truncf %423 : vector<2x9x8xf32> to vector<2x9x8xbf16>
    %427 = arith.truncf %424 : vector<2x9x8xf32> to vector<2x9x8xbf16>
    "tpu.trace_start"() <{level = 10 : i32, message = "bqd,bkd->bqk"}> : () -> ()
    %cst_174 = arith.constant dense<0.000000e+00> : vector<2x9x9xf32>
    %428 = tpu.matmul %426, %427, %cst_174 {dimension_numbers = #tpu.dot_dimension_numbers<[2], [2], [1], [1], [0, 0, 0, 1, 1, 1], [0], [0]>} : vector<2x9x8xbf16>, vector<2x9x8xbf16>, vector<2x9x9xf32> -> vector<2x9x9xf32>
    "tpu.trace_stop"() : () -> ()
    %cst_175 = arith.constant 0.353553385 : f32
    %429 = vector.broadcast %cst_175 : f32 to vector<2x9x9xf32>
    %430 = arith.mulf %428, %429 : vector<2x9x9xf32>
    %cst_176 = arith.constant dense<0xFF800000> : vector<2x9xf32>
    %431 = vector.multi_reduction <maximumf>, %430, %cst_176 [2] : vector<2x9x9xf32> to vector<2x9xf32>
    %432 = vector.shape_cast %431 : vector<2x9xf32> to vector<2x9x1xf32>
    %433 = vector.broadcast %432 : vector<2x9x1xf32> to vector<2x9x9xf32>
    %434 = arith.subf %430, %433 : vector<2x9x9xf32>
    %435 = math.exp %434 : vector<2x9x9xf32>
    %cst_177 = arith.constant dense<0.000000e+00> : vector<2x9xf32>
    %436 = vector.multi_reduction <add>, %435, %cst_177 [2] : vector<2x9x9xf32> to vector<2x9xf32>
    %437 = vector.shape_cast %436 : vector<2x9xf32> to vector<2x9x1xf32>
    %438 = tpu.reciprocal %437 {approx = true} : vector<2x9x1xf32> -> vector<2x9x1xf32>
    %439 = vector.broadcast %438 : vector<2x9x1xf32> to vector<2x9x9xf32>
    %440 = arith.mulf %435, %439 : vector<2x9x9xf32>
    %441 = arith.truncf %440 : vector<2x9x9xf32> to vector<2x9x9xbf16>
    %442 = arith.truncf %425 : vector<2x9x8xf32> to vector<2x9x8xbf16>
    "tpu.trace_start"() <{level = 10 : i32, message = "bqk,bkd->bqd"}> : () -> ()
    %cst_178 = arith.constant dense<0.000000e+00> : vector<2x9x8xf32>
    %443 = tpu.matmul %441, %442, %cst_178 {dimension_numbers = #tpu.dot_dimension_numbers<[2], [1], [1], [2], [0, 0, 0, 1, 1, 2], [0], [0]>} : vector<2x9x9xbf16>, vector<2x9x8xbf16>, vector<2x9x8xf32> -> vector<2x9x8xf32>
    "tpu.trace_stop"() : () -> ()
    %c0_179 = arith.constant 0 : index
    %c0_180 = arith.constant 0 : index
    %c56 = arith.constant 56 : index
    %444 = vector.load %arg32[%c0_179, %c0_180, %c56] : memref<2x9x64xf32, #tpu.memory_space<vmem>>, vector<2x9x8xf32>
    tpu.vector_store %arg32[%c0_179, %c0_180, %c56], %443 {strides = array<i32>} : memref<2x9x64xf32, #tpu.memory_space<vmem>>, vector<2x9x8xf32>,
    %c0_181 = arith.constant 0 : index
    %c0_182 = arith.constant 0 : index
    %c0_183 = arith.constant 0 : index
    %445 = vector.load %arg32[%c0_181, %c0_182, %c0_183] : memref<2x9x64xf32, #tpu.memory_space<vmem>>, vector<2x9x64xf32>
    %446 = vector.shape_cast %445 : vector<2x9x64xf32> to vector<18x64xf32>
    %c0_184 = arith.constant 0 : index
    %c0_185 = arith.constant 0 : index
    %c0_186 = arith.constant 0 : index
    %447 = vector.load %arg19[%c0_184, %c0_185, %c0_186] : memref<1x1x64xf32, #tpu.memory_space<vmem>>, vector<1x1x64xf32>
    %448 = vector.shape_cast %447 : vector<1x1x64xf32> to vector<1x64xf32>
    %c0_187 = arith.constant 0 : index
    %c0_188 = arith.constant 0 : index
    %c0_189 = arith.constant 0 : index
    %449 = vector.load %arg20[%c0_187, %c0_188, %c0_189] : memref<1x1x64xf32, #tpu.memory_space<vmem>>, vector<1x1x64xf32>
    %450 = vector.shape_cast %449 : vector<1x1x64xf32> to vector<1x64xf32>
    %cst_190 = arith.constant dense<0.000000e+00> : vector<18xf32>
    %451 = vector.multi_reduction <add>, %446, %cst_190 [1] : vector<18x64xf32> to vector<18xf32>
    %452 = vector.shape_cast %451 : vector<18xf32> to vector<18x1xf32>
    %cst_191 = arith.constant 6.400000e+01 : f32
    %453 = vector.broadcast %cst_191 : f32 to vector<18x1xf32>
    %454 = arith.divf %452, %453 : vector<18x1xf32>
    %455 = vector.broadcast %454 : vector<18x1xf32> to vector<18x64xf32>
    %456 = arith.subf %446, %455 : vector<18x64xf32>
    %457 = arith.mulf %456, %456 : vector<18x64xf32>
    %cst_192 = arith.constant dense<0.000000e+00> : vector<18xf32>
    %458 = vector.multi_reduction <add>, %457, %cst_192 [1] : vector<18x64xf32> to vector<18xf32>
    %459 = vector.shape_cast %458 : vector<18xf32> to vector<18x1xf32>
    %cst_193 = arith.constant 6.400000e+01 : f32
    %460 = vector.broadcast %cst_193 : f32 to vector<18x1xf32>
    %461 = arith.divf %459, %460 : vector<18x1xf32>
    %462 = vector.broadcast %454 : vector<18x1xf32> to vector<18x64xf32>
    %463 = arith.subf %446, %462 : vector<18x64xf32>
    %cst_194 = arith.constant 9.99999996E-13 : f32
    %464 = vector.broadcast %cst_194 : f32 to vector<18x1xf32>
    %465 = arith.addf %461, %464 : vector<18x1xf32>
    %466 = math.rsqrt %465 : vector<18x1xf32>
    %467 = vector.broadcast %466 : vector<18x1xf32> to vector<18x64xf32>
    %468 = arith.mulf %463, %467 : vector<18x64xf32>
    %469 = vector.broadcast %448 : vector<1x64xf32> to vector<18x64xf32>
    %470 = arith.mulf %468, %469 : vector<18x64xf32>
    %471 = vector.broadcast %450 : vector<1x64xf32> to vector<18x64xf32>
    %472 = arith.addf %470, %471 : vector<18x64xf32>
    %c0_195 = arith.constant 0 : index
    %c0_196 = arith.constant 0 : index
    %c0_197 = arith.constant 0 : index
    %473 = vector.load %arg21[%c0_195, %c0_196, %c0_197] : memref<1x64x128xbf16, #tpu.memory_space<vmem>>, vector<1x64x128xbf16>
    %474 = vector.shape_cast %473 : vector<1x64x128xbf16> to vector<64x128xbf16>
    %475 = arith.truncf %472 : vector<18x64xf32> to vector<18x64xbf16>
    %cst_198 = arith.constant dense<0.000000e+00> : vector<18x128xf32>
    %476 = tpu.matmul %475, %474, %cst_198 {dimension_numbers = #tpu.dot_dimension_numbers<[1], [0], [0], [1], [0, 0, 1, 1], [], []>} : vector<18x64xbf16>, vector<64x128xbf16>, vector<18x128xf32> -> vector<18x128xf32>
    %c0_199 = arith.constant 0 : index
    %c0_200 = arith.constant 0 : index
    %c0_201 = arith.constant 0 : index
    %477 = vector.load %arg22[%c0_199, %c0_200, %c0_201] : memref<1x1x128xf32, #tpu.memory_space<vmem>>, vector<1x1x128xf32>
    %478 = vector.shape_cast %477 : vector<1x1x128xf32> to vector<1x128xf32>
    %479 = vector.broadcast %478 : vector<1x128xf32> to vector<18x128xf32>
    %480 = arith.addf %476, %479 : vector<18x128xf32>
    %481 = arith.mulf %480, %480 : vector<18x128xf32>
    %482 = arith.mulf %480, %481 : vector<18x128xf32>
    %cst_202 = arith.constant 4.471500e-02 : f32
    %483 = vector.broadcast %cst_202 : f32 to vector<18x128xf32>
    %484 = arith.mulf %483, %482 : vector<18x128xf32>
    %485 = arith.addf %480, %484 : vector<18x128xf32>
    %cst_203 = arith.constant 0.797884583 : f32
    %486 = vector.broadcast %cst_203 : f32 to vector<18x128xf32>
    %487 = arith.mulf %486, %485 : vector<18x128xf32>
    %488 = math.tanh %487 : vector<18x128xf32>
    %cst_204 = arith.constant 1.000000e+00 : f32
    %489 = vector.broadcast %cst_204 : f32 to vector<18x128xf32>
    %490 = arith.addf %489, %488 : vector<18x128xf32>
    %cst_205 = arith.constant 5.000000e-01 : f32
    %491 = vector.broadcast %cst_205 : f32 to vector<18x128xf32>
    %492 = arith.mulf %491, %490 : vector<18x128xf32>
    %493 = arith.mulf %480, %492 : vector<18x128xf32>
    %c0_206 = arith.constant 0 : index
    %c0_207 = arith.constant 0 : index
    %c0_208 = arith.constant 0 : index
    %494 = vector.load %arg23[%c0_206, %c0_207, %c0_208] : memref<1x128x32xbf16, #tpu.memory_space<vmem>>, vector<1x128x32xbf16>
    %495 = vector.shape_cast %494 : vector<1x128x32xbf16> to vector<128x32xbf16>
    %496 = arith.truncf %493 : vector<18x128xf32> to vector<18x128xbf16>
    %cst_209 = arith.constant dense<0.000000e+00> : vector<18x32xf32>
    %497 = tpu.matmul %496, %495, %cst_209 {dimension_numbers = #tpu.dot_dimension_numbers<[1], [0], [0], [1], [0, 0, 1, 1], [], []>} : vector<18x128xbf16>, vector<128x32xbf16>, vector<18x32xf32> -> vector<18x32xf32>
    %498 = arith.addf %29, %497 : vector<18x32xf32>
    %c0_210 = arith.constant 0 : index
    %c0_211 = arith.constant 0 : index
    %c0_212 = arith.constant 0 : index
    %499 = vector.load %arg24[%c0_210, %c0_211, %c0_212] : memref<1x1x32xf32, #tpu.memory_space<vmem>>, vector<1x1x32xf32>
    %500 = vector.shape_cast %499 : vector<1x1x32xf32> to vector<1x32xf32>
    %501 = vector.broadcast %500 : vector<1x32xf32> to vector<18x32xf32>
    %502 = arith.addf %498, %501 : vector<18x32xf32>
    %c0_213 = arith.constant 0 : index
    %c0_214 = arith.constant 0 : index
    %503 = vector.load %arg29[%c0_213, %c0_214] : memref<18x32xf32, #tpu.memory_space<vmem>>, vector<18x32xf32>
    tpu.vector_store %arg29[%c0_213, %c0_214], %502 {strides = array<i32>} : memref<18x32xf32, #tpu.memory_space<vmem>>, vector<18x32xf32>,
    %c1_i32 = arith.constant 1 : i32
    %504 = arith.cmpi eq, %arg1, %c1_i32 : i32
    %505 = arith.extui %504 : i1 to i32
    %c0_i32_215 = arith.constant 0 : i32
    %506 = arith.cmpi ne, %505, %c0_i32_215 : i32
    scf.if %506 {
      %c0_216 = arith.constant 0 : index
      %c0_217 = arith.constant 0 : index
      %507 = vector.load %arg29[%c0_216, %c0_217] : memref<18x32xf32, #tpu.memory_space<vmem>>, vector<18x32xf32>
      %508 = vector.shape_cast %507 : vector<18x32xf32> to vector<2x9x32xf32>
      %cst_218 = arith.constant dense<0.000000e+00> : vector<2x32xf32>
      %509 = vector.multi_reduction <add>, %508, %cst_218 [1] : vector<2x9x32xf32> to vector<2x32xf32>
      %510 = vector.extract_strided_slice %508 {offsets = [0, 0, 0], sizes = [2, 1, 32], strides = [1, 1, 1]} : vector<2x9x32xf32> to vector<2x1x32xf32>
      %511 = vector.shape_cast %510 : vector<2x1x32xf32> to vector<2x32xf32>
      %512 = arith.subf %509, %511 : vector<2x32xf32>
      %cst_219 = arith.constant 1.250000e-01 : f32
      %513 = vector.broadcast %cst_219 : f32 to vector<2x32xf32>
      %514 = arith.mulf %512, %513 : vector<2x32xf32>
      %c0_220 = arith.constant 0 : index
      %c0_221 = arith.constant 0 : index
      %c0_222 = arith.constant 0 : index
      %515 = vector.load %arg27[%c0_220, %c0_221, %c0_222] : memref<1x2x32xf32, #tpu.memory_space<vmem>>, vector<1x2x32xf32>
      %516 = vector.shape_cast %515 : vector<1x2x32xf32> to vector<2x32xf32>
      %517 = vector.shape_cast %514 : vector<2x32xf32> to vector<1x2x32xf32>
      tpu.vector_store %arg27[%c0_220, %c0_221, %c0_222], %517 {strides = array<i32>} : memref<1x2x32xf32, #tpu.memory_space<vmem>>, vector<1x2x32xf32>,
      %c0_223 = arith.constant 0 : index
      %c0_224 = arith.constant 0 : index
      %518 = vector.load %arg25[%c0_223, %c0_224] : memref<32x128xf32, #tpu.memory_space<vmem>>, vector<32x128xf32>
      %cst_225 = arith.constant dense<0.000000e+00> : vector<2x128xf32>
      %519 = tpu.matmul %514, %518, %cst_225 {dimension_numbers = #tpu.dot_dimension_numbers<[1], [0], [0], [1], [0, 0, 1, 1], [], []>} : vector<2x32xf32>, vector<32x128xf32>, vector<2x128xf32> -> vector<2x128xf32>
      %c0_226 = arith.constant 0 : index
      %c0_227 = arith.constant 0 : index
      %520 = vector.load %arg26[%c0_226, %c0_227] : memref<1x128xf32, #tpu.memory_space<vmem>>, vector<1x128xf32>
      %521 = vector.broadcast %520 : vector<1x128xf32> to vector<2x128xf32>
      %522 = arith.addf %519, %521 : vector<2x128xf32>
      %c0_228 = arith.constant 0 : index
      %c0_229 = arith.constant 0 : index
      %c0_230 = arith.constant 0 : index
      %523 = vector.load %arg28[%c0_228, %c0_229, %c0_230] : memref<1x2x128xf32, #tpu.memory_space<vmem>>, vector<1x2x128xf32>
      %524 = vector.shape_cast %523 : vector<1x2x128xf32> to vector<2x128xf32>
      %525 = vector.shape_cast %522 : vector<2x128xf32> to vector<1x2x128xf32>
      tpu.vector_store %arg28[%c0_228, %c0_229, %c0_230], %525 {strides = array<i32>} : memref<1x2x128xf32, #tpu.memory_space<vmem>>, vector<1x2x128xf32>,
    } else {
    }
    return
  }
  func.func @transform_0(%arg0: i32, %arg1: i32) -> (i32, i32, i32) {
    %c0_i32 = arith.constant 0 : i32
    %c0_i32_0 = arith.constant 0 : i32
    %c0_i32_1 = arith.constant 0 : i32
    return %arg0, %c0_i32, %c0_i32_0 : i32, i32, i32
  }
  func.func @transform_1(%arg0: i32, %arg1: i32) -> (i32, i32) {
    %c0_i32 = arith.constant 0 : i32
    %c0_i32_0 = arith.constant 0 : i32
    %c0_i32_1 = arith.constant 0 : i32
    return %c0_i32, %c0_i32_0 : i32, i32
  }
  func.func @transform_2(%arg0: i32, %arg1: i32) -> (i32, i32) {
    %c0_i32 = arith.constant 0 : i32
    %c0_i32_0 = arith.constant 0 : i32
    %c0_i32_1 = arith.constant 0 : i32
    return %c0_i32, %c0_i32_0 : i32, i32
  }
  func.func @transform_3(%arg0: i32, %arg1: i32) -> (i32, i32, i32) {
    %c0_i32 = arith.constant 0 : i32
    %c0_i32_0 = arith.constant 0 : i32
    %c0_i32_1 = arith.constant 0 : i32
    return %arg1, %c0_i32, %c0_i32_0 : i32, i32, i32
  }
  func.func @transform_4(%arg0: i32, %arg1: i32) -> (i32, i32, i32) {
    %c0_i32 = arith.constant 0 : i32
    %c0_i32_0 = arith.constant 0 : i32
    %c0_i32_1 = arith.constant 0 : i32
    return %arg1, %c0_i32, %c0_i32_0 : i32, i32, i32
  }
  func.func @transform_5(%arg0: i32, %arg1: i32) -> (i32, i32, i32) {
    %c0_i32 = arith.constant 0 : i32
    %c0_i32_0 = arith.constant 0 : i32
    %c0_i32_1 = arith.constant 0 : i32
    return %arg1, %c0_i32, %c0_i32_0 : i32, i32, i32
  }
  func.func @transform_6(%arg0: i32, %arg1: i32) -> (i32, i32, i32) {
    %c0_i32 = arith.constant 0 : i32
    %c0_i32_0 = arith.constant 0 : i32
    %c0_i32_1 = arith.constant 0 : i32
    return %arg1, %c0_i32, %c0_i32_0 : i32, i32, i32
  }
  func.func @transform_7(%arg0: i32, %arg1: i32) -> (i32, i32, i32) {
    %c0_i32 = arith.constant 0 : i32
    %c0_i32_0 = arith.constant 0 : i32
    %c0_i32_1 = arith.constant 0 : i32
    return %arg1, %c0_i32, %c0_i32_0 : i32, i32, i32
  }
  func.func @transform_8(%arg0: i32, %arg1: i32) -> (i32, i32, i32) {
    %c0_i32 = arith.constant 0 : i32
    %c0_i32_0 = arith.constant 0 : i32
    %c0_i32_1 = arith.constant 0 : i32
    return %arg1, %c0_i32, %c0_i32_0 : i32, i32, i32
  }
  func.func @transform_9(%arg0: i32, %arg1: i32) -> (i32, i32, i32) {
    %c0_i32 = arith.constant 0 : i32
    %c0_i32_0 = arith.constant 0 : i32
    %c0_i32_1 = arith.constant 0 : i32
    return %arg1, %c0_i32, %c0_i32_0 : i32, i32, i32
  }
  func.func @transform_10(%arg0: i32, %arg1: i32) -> (i32, i32, i32) {
    %c0_i32 = arith.constant 0 : i32
    %c0_i32_0 = arith.constant 0 : i32
    %c0_i32_1 = arith.constant 0 : i32
    return %arg1, %c0_i32, %c0_i32_0 : i32, i32, i32
  }
  func.func @transform_11(%arg0: i32, %arg1: i32) -> (i32, i32, i32) {
    %c0_i32 = arith.constant 0 : i32
    %c0_i32_0 = arith.constant 0 : i32
    %c0_i32_1 = arith.constant 0 : i32
    return %arg1, %c0_i32, %c0_i32_0 : i32, i32, i32
  }
  func.func @transform_12(%arg0: i32, %arg1: i32) -> (i32, i32, i32) {
    %c0_i32 = arith.constant 0 : i32
    %c0_i32_0 = arith.constant 0 : i32
    %c0_i32_1 = arith.constant 0 : i32
    return %arg1, %c0_i32, %c0_i32_0 : i32, i32, i32
  }
  func.func @transform_13(%arg0: i32, %arg1: i32) -> (i32, i32, i32) {
    %c0_i32 = arith.constant 0 : i32
    %c0_i32_0 = arith.constant 0 : i32
    %c0_i32_1 = arith.constant 0 : i32
    return %arg1, %c0_i32, %c0_i32_0 : i32, i32, i32
  }
  func.func @transform_14(%arg0: i32, %arg1: i32) -> (i32, i32, i32) {
    %c0_i32 = arith.constant 0 : i32
    %c0_i32_0 = arith.constant 0 : i32
    %c0_i32_1 = arith.constant 0 : i32
    return %arg1, %c0_i32, %c0_i32_0 : i32, i32, i32
  }
  func.func @transform_15(%arg0: i32, %arg1: i32) -> (i32, i32, i32) {
    %c0_i32 = arith.constant 0 : i32
    %c0_i32_0 = arith.constant 0 : i32
    %c0_i32_1 = arith.constant 0 : i32
    return %arg1, %c0_i32, %c0_i32_0 : i32, i32, i32
  }
  func.func @transform_16(%arg0: i32, %arg1: i32) -> (i32, i32, i32) {
    %c0_i32 = arith.constant 0 : i32
    %c0_i32_0 = arith.constant 0 : i32
    %c0_i32_1 = arith.constant 0 : i32
    return %arg1, %c0_i32, %c0_i32_0 : i32, i32, i32
  }
  func.func @transform_17(%arg0: i32, %arg1: i32) -> (i32, i32, i32) {
    %c0_i32 = arith.constant 0 : i32
    %c0_i32_0 = arith.constant 0 : i32
    %c0_i32_1 = arith.constant 0 : i32
    return %arg1, %c0_i32, %c0_i32_0 : i32, i32, i32
  }
  func.func @transform_18(%arg0: i32, %arg1: i32) -> (i32, i32, i32) {
    %c0_i32 = arith.constant 0 : i32
    %c0_i32_0 = arith.constant 0 : i32
    %c0_i32_1 = arith.constant 0 : i32
    return %arg1, %c0_i32, %c0_i32_0 : i32, i32, i32
  }
  func.func @transform_19(%arg0: i32, %arg1: i32) -> (i32, i32, i32) {
    %c0_i32 = arith.constant 0 : i32
    %c0_i32_0 = arith.constant 0 : i32
    %c0_i32_1 = arith.constant 0 : i32
    return %arg1, %c0_i32, %c0_i32_0 : i32, i32, i32
  }
  func.func @transform_20(%arg0: i32, %arg1: i32) -> (i32, i32, i32) {
    %c0_i32 = arith.constant 0 : i32
    %c0_i32_0 = arith.constant 0 : i32
    %c0_i32_1 = arith.constant 0 : i32
    return %arg1, %c0_i32, %c0_i32_0 : i32, i32, i32
  }
  func.func @transform_21(%arg0: i32, %arg1: i32) -> (i32, i32, i32) {
    %c0_i32 = arith.constant 0 : i32
    %c0_i32_0 = arith.constant 0 : i32
    %c0_i32_1 = arith.constant 0 : i32
    return %arg1, %c0_i32, %c0_i32_0 : i32, i32, i32
  }
  func.func @transform_22(%arg0: i32, %arg1: i32) -> (i32, i32, i32) {
    %c0_i32 = arith.constant 0 : i32
    %c0_i32_0 = arith.constant 0 : i32
    %c0_i32_1 = arith.constant 0 : i32
    return %arg1, %c0_i32, %c0_i32_0 : i32, i32, i32
  }
  func.func @transform_23(%arg0: i32, %arg1: i32) -> (i32, i32) {
    %c0_i32 = arith.constant 0 : i32
    %c0_i32_0 = arith.constant 0 : i32
    %c0_i32_1 = arith.constant 0 : i32
    return %c0_i32, %c0_i32_0 : i32, i32
  }
  func.func @transform_24(%arg0: i32, %arg1: i32) -> (i32, i32) {
    %c0_i32 = arith.constant 0 : i32
    %c0_i32_0 = arith.constant 0 : i32
    %c0_i32_1 = arith.constant 0 : i32
    return %c0_i32, %c0_i32_0 : i32, i32
  }
  func.func @transform_25(%arg0: i32, %arg1: i32) -> (i32, i32, i32) {
    %c0_i32 = arith.constant 0 : i32
    %c0_i32_0 = arith.constant 0 : i32
    %c0_i32_1 = arith.constant 0 : i32
    return %arg0, %c0_i32, %c0_i32_0 : i32, i32, i32
  }
  func.func @transform_26(%arg0: i32, %arg1: i32) -> (i32, i32, i32) {
    %c0_i32 = arith.constant 0 : i32
    %c0_i32_0 = arith.constant 0 : i32
    %c0_i32_1 = arith.constant 0 : i32
    return %arg0, %c0_i32, %c0_i32_0 : i32, i32, i32
  }
}

</mosaic_0001>

<llo_original>
// kernel: bnt_forward.1
$region0: #{bnt_forward.1}
  #allocation0 [shape = 'u32[]', space=smem, size = 0x4, offset = 0x4, fixed_abs, tag = 'smem constant byte address 0x4 - core index']
  #allocation1 [shape = 'u32[72,128]{1,0:T(1,128)}', space=vmem, size = 0x9000, scoped, tag = 'internal scratch']
  #allocation2 [shape = 'f32[18,32]{1,0:T(8,128)}', space=vmem, size = 0x3000, scoped, tag = 'scratch operand']
  #allocation3 [shape = 'f32[2,9,32]{2,1,0:T(8,128)}', space=vmem, size = 0x4000, scoped, tag = 'scratch operand']
  #allocation4 [shape = 'f32[2,9,32]{2,1,0:T(8,128)}', space=vmem, size = 0x4000, scoped, tag = 'scratch operand']
  #allocation5 [shape = 'f32[2,9,64]{2,1,0:T(8,128)}', space=vmem, size = 0x4000, scoped, tag = 'scratch operand']
  %s0 = inlined_call_operand.vmem [shape: bf16[2,9,48], index: 0, kind: input, shape index: {}]
  %s1 = inlined_call_operand.vmem [shape: bf16[48,32], index: 1, kind: input, shape index: {}]
  %s2 = inlined_call_operand.vmem [shape: f32[9,32], index: 2, kind: input, shape index: {}]
  %s3 = inlined_call_operand.vmem [shape: f32[2,1,32], index: 3, kind: input, shape index: {}]
  %s4 = inlined_call_operand.vmem [shape: f32[2,1,32], index: 4, kind: input, shape index: {}]
  %s5 = inlined_call_operand.vmem [shape: bf16[2,32,96], index: 5, kind: input, shape index: {}]
  %s6 = inlined_call_operand.vmem [shape: f32[2,1,96], index: 6, kind: input, shape index: {}]
  %s7 = inlined_call_operand.vmem [shape: bf16[2,32,96], index: 7, kind: input, shape index: {}]
  %s8 = inlined_call_operand.vmem [shape: f32[2,1,96], index: 8, kind: input, shape index: {}]
  %s9 = inlined_call_operand.vmem [shape: bf16[2,32,32], index: 9, kind: input, shape index: {}]
  %s10 = inlined_call_operand.vmem [shape: f32[2,1,32], index: 10, kind: input, shape index: {}]
  %s11 = inlined_call_operand.vmem [shape: bf16[2,32,64], index: 11, kind: input, shape index: {}]
  %s12 = inlined_call_operand.vmem [shape: f32[2,1,64], index: 12, kind: input, shape index: {}]
  %s13 = inlined_call_operand.vmem [shape: bf16[2,32,32], index: 13, kind: input, shape index: {}]
  %s14 = inlined_call_operand.vmem [shape: f32[2,1,32], index: 14, kind: input, shape index: {}]
  %s15 = inlined_call_operand.vmem [shape: bf16[2,32,64], index: 15, kind: input, shape index: {}]
  %s16 = inlined_call_operand.vmem [shape: f32[2,1,64], index: 16, kind: input, shape index: {}]
  %s17 = inlined_call_operand.vmem [shape: f32[2,1,64], index: 17, kind: input, shape index: {}]
  %s18 = inlined_call_operand.vmem [shape: f32[2,1,64], index: 18, kind: input, shape index: {}]
  %s19 = inlined_call_operand.vmem [shape: bf16[2,64,128], index: 19, kind: input, shape index: {}]
  %s20 = inlined_call_operand.vmem [shape: f32[2,1,128], index: 20, kind: input, shape index: {}]
  %s21 = inlined_call_operand.vmem [shape: bf16[2,128,32], index: 21, kind: input, shape index: {}]
  %s22 = inlined_call_operand.vmem [shape: f32[2,1,32], index: 22, kind: input, shape index: {}]
  %s23 = inlined_call_operand.vmem [shape: f32[32,128], index: 23, kind: input, shape index: {}]
  %s24 = inlined_call_operand.vmem [shape: f32[1,128], index: 24, kind: input, shape index: {}]
  %s25 = inlined_call_operand.hbm [shape: f32[1,2,32], index: 25, kind: output, shape index: {0}]
  %s26 = inlined_call_operand.hbm [shape: f32[1,2,128], index: 26, kind: output, shape index: {1}]
  %27 = xla_tuple %s25, %s26
  %s28 = sld [smem:[#allocation0]]
  $region149: #{bnt_forward.1} parent=0
    _
  %s30 = ssub.s32 1, %s28
  %s31 = scalar_select 0, %s30, %s28
  $region1: #{bnt_forward.1} parent=0
    #allocation6 [shape = 'u8[1024]{0}', space=vmem, size = 0x400, scoped, tag = 'output window, operand 0, single buffered']
    #allocation7 [shape = 's32[2]{0}', space=sflag, size = 0x8, scoped, tag = 'scoped memory for bnt_forward.1']
    #allocation8 [shape = 'u8[1024]{0}', space=vmem, size = 0x400, scoped, tag = 'output window, operand 1, single buffered']
    #allocation9 [shape = 's32[1]{0}', space=sflag, size = 0x4, scoped, tag = 'scoped memory for bnt_forward.1']
    %32 = vsyncpa [#allocation7], 0
    %33 = vsyncpa [#allocation9], 0
    loop: start=0, step=1, limit=4
    $region2: #{bnt_forward.1} parent=1 // loop_pre_header
      _
    $region3: #{bnt_forward.1} parent=1 // loop_header
      %s35 = sphi 0, %s39
      %p36 = scmp.ge.s32.totalorder %s35, 4
      %s42 = sphi 0, %s54
      %s43 = sphi 0, %s50
      %s44 = sphi 0, %s42
      %s45 = sphi 0, %s43
      %s46 = sphi 0, %s44
      %s47 = sphi 0, %s45
      %s57 = sphi 0, %s59
      %s60 = sphi 0, %s57
      %s61 = sphi 0, %s60
      %s77 = sphi 0, %s61
      %s81 = sphi 0, %s81
      %s83 = sphi 0, %s81
      %s84 = sphi 0, %s83
      %s98 = sphi 0, %s84
      %s102 = sphi 0, %s102
      %s104 = sphi 0, %s102
      %s105 = sphi 0, %s104
      %s119 = sphi 0, %s105
      %s125 = sphi 0, %s127
      %s128 = sphi 0, %s125
      %s129 = sphi 0, %s128
      %s145 = sphi 0, %s129
      %s151 = sphi 0, %s153
      %s154 = sphi 0, %s151
      %s155 = sphi 0, %s154
      %s171 = sphi 0, %s155
      %s177 = sphi 0, %s179
      %s180 = sphi 0, %s177
      %s181 = sphi 0, %s180
      %s197 = sphi 0, %s181
      %s203 = sphi 0, %s205
      %s206 = sphi 0, %s203
      %s207 = sphi 0, %s206
      %s223 = sphi 0, %s207
      %s229 = sphi 0, %s231
      %s232 = sphi 0, %s229
      %s233 = sphi 0, %s232
      %s249 = sphi 0, %s233
      %s255 = sphi 0, %s257
      %s258 = sphi 0, %s255
      %s259 = sphi 0, %s258
      %s275 = sphi 0, %s259
      %s281 = sphi 0, %s283
      %s284 = sphi 0, %s281
      %s285 = sphi 0, %s284
      %s301 = sphi 0, %s285
      %s307 = sphi 0, %s309
      %s310 = sphi 0, %s307
      %s311 = sphi 0, %s310
      %s327 = sphi 0, %s311
      %s333 = sphi 0, %s335
      %s336 = sphi 0, %s333
      %s337 = sphi 0, %s336
      %s353 = sphi 0, %s337
      %s359 = sphi 0, %s361
      %s362 = sphi 0, %s359
      %s363 = sphi 0, %s362
      %s379 = sphi 0, %s363
      %s385 = sphi 0, %s387
      %s388 = sphi 0, %s385
      %s389 = sphi 0, %s388
      %s405 = sphi 0, %s389
      %s411 = sphi 0, %s413
      %s414 = sphi 0, %s411
      %s415 = sphi 0, %s414
      %s431 = sphi 0, %s415
      %s437 = sphi 0, %s439
      %s440 = sphi 0, %s437
      %s441 = sphi 0, %s440
      %s457 = sphi 0, %s441
      %s463 = sphi 0, %s465
      %s466 = sphi 0, %s463
      %s467 = sphi 0, %s466
      %s483 = sphi 0, %s467
      %s489 = sphi 0, %s491
      %s492 = sphi 0, %s489
      %s493 = sphi 0, %s492
      %s509 = sphi 0, %s493
      %s515 = sphi 0, %s517
      %s518 = sphi 0, %s515
      %s519 = sphi 0, %s518
      %s535 = sphi 0, %s519
      %s541 = sphi 0, %s543
      %s544 = sphi 0, %s541
      %s545 = sphi 0, %s544
      %s561 = sphi 0, %s545
      %s567 = sphi 0, %s569
      %s570 = sphi 0, %s567
      %s571 = sphi 0, %s570
      %s587 = sphi 0, %s571
      %s593 = sphi 0, %s595
      %s596 = sphi 0, %s593
      %s597 = sphi 0, %s596
      %s613 = sphi 0, %s597
      %s619 = sphi 0, %s621
      %s622 = sphi 0, %s619
      %s623 = sphi 0, %s622
      %s639 = sphi 0, %s623
      %s643 = sphi 0, %s643
      %s645 = sphi 0, %s643
      %s646 = sphi 0, %s645
      %s660 = sphi 0, %s646
      %s664 = sphi 0, %s664
      %s666 = sphi 0, %s664
      %s667 = sphi 0, %s666
      %s681 = sphi 0, %s667
      %s687 = sphi 0, %s689
      %s690 = sphi 0, %s687
      %s691 = sphi 0, %s690
      %s707 = sphi 0, %s691
      %s713 = sphi 0, %s715
      %s716 = sphi 0, %s713
      %s717 = sphi 0, %s716
      %s733 = sphi 0, %s717
    $region4: #{bnt_forward.1} parent=1 // loop_header_branch
      %38 = sbr.rel (%p36) target = $region8
    $region5: #{bnt_forward.1} parent=1 // loop_body
      %s40 = ssub.s32 %s35, 1
      %s41 = ssub.s32 %s35, 2
      %s48 = sadd.s32 1, %s43
      %p49 = scmp.ge.s32.totalorder %s48, 2
      %s50 = scalar_select %p49, 0, %s48
      %s51 = sadd.s32 1, %s42
      %s52 = scalar_select %p49, %s51, %s42
      %p53 = scmp.ge.s32.totalorder %s52, 1
      %s54 = scalar_select %p53, 0, %s52
      %s55 = ssub.s32 %s42, %s54
      %p56 = scmp.eq.s32.totalorder %s55, 0
      %s58 = sadd.s32 %s57, 1
      %s59 = scalar_select %p56, %s57, %s58
      %p62 = pneg %p56
      %p63 = scmp.eq.s32.totalorder %s35, 1
      %p64 = por %p62, %p63
      %p65 = scmp.ne.s32.totalorder %s57, %s60
      %p66 = scmp.eq.s32.totalorder %s35, 0
      %p67 = por %p65, %p66
      %p68 = scmp.ne.s32.totalorder %s57, %s60
      %p69 = scmp.eq.s32.totalorder %s40, 1
      %p70 = por %p68, %p69
      %p71 = scmp.ne.s32.totalorder %s60, %s61
      %p72 = scmp.eq.s32.totalorder %s40, 0
      %p73 = por %p71, %p72
      %p74 = scmp.ne.s32.totalorder %s60, %s61
      %p75 = scmp.eq.s32.totalorder %s41, 1
      %p76 = por %p74, %p75
      %p78 = scmp.ne.s32.totalorder %s61, %s77
      %p79 = scmp.eq.s32.totalorder %s41, 0
      %p80 = por %p78, %p79
      %s82 = sadd.s32 %s81, 1
      %p85 = scmp.eq.s32.totalorder %s35, 1
      %p86 = scmp.ne.s32.totalorder %s81, %s83
      %p87 = scmp.eq.s32.totalorder %s35, 0
      %p88 = por %p86, %p87
      %p89 = scmp.ne.s32.totalorder %s81, %s83
      %p90 = scmp.eq.s32.totalorder %s40, 1
      %p91 = por %p89, %p90
      %p92 = scmp.ne.s32.totalorder %s83, %s84
      %p93 = scmp.eq.s32.totalorder %s40, 0
      %p94 = por %p92, %p93
      %p95 = scmp.ne.s32.totalorder %s83, %s84
      %p96 = scmp.eq.s32.totalorder %s41, 1
      %p97 = por %p95, %p96
      %p99 = scmp.ne.s32.totalorder %s84, %s98
      %p100 = scmp.eq.s32.totalorder %s41, 0
      %p101 = por %p99, %p100
      %s103 = sadd.s32 %s102, 1
      %p106 = scmp.eq.s32.totalorder %s35, 1
      %p107 = scmp.ne.s32.totalorder %s102, %s104
      %p108 = scmp.eq.s32.totalorder %s35, 0
      %p109 = por %p107, %p108
      %p110 = scmp.ne.s32.totalorder %s102, %s104
      %p111 = scmp.eq.s32.totalorder %s40, 1
      %p112 = por %p110, %p111
      %p113 = scmp.ne.s32.totalorder %s104, %s105
      %p114 = scmp.eq.s32.totalorder %s40, 0
      %p115 = por %p113, %p114
      %p116 = scmp.ne.s32.totalorder %s104, %s105
      %p117 = scmp.eq.s32.totalorder %s41, 1
      %p118 = por %p116, %p117
      %p120 = scmp.ne.s32.totalorder %s105, %s119
      %p121 = scmp.eq.s32.totalorder %s41, 0
      %p122 = por %p120, %p121
      %s123 = ssub.s32 %s43, %s50
      %p124 = scmp.eq.s32.totalorder %s123, 0
      %s126 = sadd.s32 %s125, 1
      %s127 = scalar_select %p124, %s125, %s126
      %p130 = pneg %p124
      %p131 = scmp.eq.s32.totalorder %s35, 1
      %p132 = por %p130, %p131
      %p133 = scmp.ne.s32.totalorder %s125, %s128
      %p134 = scmp.eq.s32.totalorder %s35, 0
      %p135 = por %p133, %p134
      %p136 = scmp.ne.s32.totalorder %s125, %s128
      %p137 = scmp.eq.s32.totalorder %s40, 1
      %p138 = por %p136, %p137
      %p139 = scmp.ne.s32.totalorder %s128, %s129
      %p140 = scmp.eq.s32.totalorder %s40, 0
      %p141 = por %p139, %p140
      %p142 = scmp.ne.s32.totalorder %s128, %s129
      %p143 = scmp.eq.s32.totalorder %s41, 1
      %p144 = por %p142, %p143
      %p146 = scmp.ne.s32.totalorder %s129, %s145
      %p147 = scmp.eq.s32.totalorder %s41, 0
      %p148 = por %p146, %p147
      %s149 = ssub.s32 %s43, %s50
      %p150 = scmp.eq.s32.totalorder %s149, 0
      %s152 = sadd.s32 %s151, 1
      %s153 = scalar_select %p150, %s151, %s152
      %p156 = pneg %p150
      %p157 = scmp.eq.s32.totalorder %s35, 1
      %p158 = por %p156, %p157
      %p159 = scmp.ne.s32.totalorder %s151, %s154
      %p160 = scmp.eq.s32.totalorder %s35, 0
      %p161 = por %p159, %p160
      %p162 = scmp.ne.s32.totalorder %s151, %s154
      %p163 = scmp.eq.s32.totalorder %s40, 1
      %p164 = por %p162, %p163
      %p165 = scmp.ne.s32.totalorder %s154, %s155
      %p166 = scmp.eq.s32.totalorder %s40, 0
      %p167 = por %p165, %p166
      %p168 = scmp.ne.s32.totalorder %s154, %s155
      %p169 = scmp.eq.s32.totalorder %s41, 1
      %p170 = por %p168, %p169
      %p172 = scmp.ne.s32.totalorder %s155, %s171
      %p173 = scmp.eq.s32.totalorder %s41, 0
      %p174 = por %p172, %p173
      %s175 = ssub.s32 %s43, %s50
      %p176 = scmp.eq.s32.totalorder %s175, 0
      %s178 = sadd.s32 %s177, 1
      %s179 = scalar_select %p176, %s177, %s178
      %p182 = pneg %p176
      %p183 = scmp.eq.s32.totalorder %s35, 1
      %p184 = por %p182, %p183
      %p185 = scmp.ne.s32.totalorder %s177, %s180
      %p186 = scmp.eq.s32.totalorder %s35, 0
      %p187 = por %p185, %p186
      %p188 = scmp.ne.s32.totalorder %s177, %s180
      %p189 = scmp.eq.s32.totalorder %s40, 1
      %p190 = por %p188, %p189
      %p191 = scmp.ne.s32.totalorder %s180, %s181
      %p192 = scmp.eq.s32.totalorder %s40, 0
      %p193 = por %p191, %p192
      %p194 = scmp.ne.s32.totalorder %s180, %s181
      %p195 = scmp.eq.s32.totalorder %s41, 1
      %p196 = por %p194, %p195
      %p198 = scmp.ne.s32.totalorder %s181, %s197
      %p199 = scmp.eq.s32.totalorder %s41, 0
      %p200 = por %p198, %p199
      %s201 = ssub.s32 %s43, %s50
      %p202 = scmp.eq.s32.totalorder %s201, 0
      %s204 = sadd.s32 %s203, 1
      %s205 = scalar_select %p202, %s203, %s204
      %p208 = pneg %p202
      %p209 = scmp.eq.s32.totalorder %s35, 1
      %p210 = por %p208, %p209
      %p211 = scmp.ne.s32.totalorder %s203, %s206
      %p212 = scmp.eq.s32.totalorder %s35, 0
      %p213 = por %p211, %p212
      %p214 = scmp.ne.s32.totalorder %s203, %s206
      %p215 = scmp.eq.s32.totalorder %s40, 1
      %p216 = por %p214, %p215
      %p217 = scmp.ne.s32.totalorder %s206, %s207
      %p218 = scmp.eq.s32.totalorder %s40, 0
      %p219 = por %p217, %p218
      %p220 = scmp.ne.s32.totalorder %s206, %s207
      %p221 = scmp.eq.s32.totalorder %s41, 1
      %p222 = por %p220, %p221
      %p224 = scmp.ne.s32.totalorder %s207, %s223
      %p225 = scmp.eq.s32.totalorder %s41, 0
      %p226 = por %p224, %p225
      %s227 = ssub.s32 %s43, %s50
      %p228 = scmp.eq.s32.totalorder %s227, 0
      %s230 = sadd.s32 %s229, 1
      %s231 = scalar_select %p228, %s229, %s230
      %p234 = pneg %p228
      %p235 = scmp.eq.s32.totalorder %s35, 1
      %p236 = por %p234, %p235
      %p237 = scmp.ne.s32.totalorder %s229, %s232
      %p238 = scmp.eq.s32.totalorder %s35, 0
      %p239 = por %p237, %p238
      %p240 = scmp.ne.s32.totalorder %s229, %s232
      %p241 = scmp.eq.s32.totalorder %s40, 1
      %p242 = por %p240, %p241
      %p243 = scmp.ne.s32.totalorder %s232, %s233
      %p244 = scmp.eq.s32.totalorder %s40, 0
      %p245 = por %p243, %p244
      %p246 = scmp.ne.s32.totalorder %s232, %s233
      %p247 = scmp.eq.s32.totalorder %s41, 1
      %p248 = por %p246, %p247
      %p250 = scmp.ne.s32.totalorder %s233, %s249
      %p251 = scmp.eq.s32.totalorder %s41, 0
      %p252 = por %p250, %p251
      %s253 = ssub.s32 %s43, %s50
      %p254 = scmp.eq.s32.totalorder %s253, 0
      %s256 = sadd.s32 %s255, 1
      %s257 = scalar_select %p254, %s255, %s256
      %p260 = pneg %p254
      %p261 = scmp.eq.s32.totalorder %s35, 1
      %p262 = por %p260, %p261
      %p263 = scmp.ne.s32.totalorder %s255, %s258
      %p264 = scmp.eq.s32.totalorder %s35, 0
      %p265 = por %p263, %p264
      %p266 = scmp.ne.s32.totalorder %s255, %s258
      %p267 = scmp.eq.s32.totalorder %s40, 1
      %p268 = por %p266, %p267
      %p269 = scmp.ne.s32.totalorder %s258, %s259
      %p270 = scmp.eq.s32.totalorder %s40, 0
      %p271 = por %p269, %p270
      %p272 = scmp.ne.s32.totalorder %s258, %s259
      %p273 = scmp.eq.s32.totalorder %s41, 1
      %p274 = por %p272, %p273
      %p276 = scmp.ne.s32.totalorder %s259, %s275
      %p277 = scmp.eq.s32.totalorder %s41, 0
      %p278 = por %p276, %p277
      %s279 = ssub.s32 %s43, %s50
      %p280 = scmp.eq.s32.totalorder %s279, 0
      %s282 = sadd.s32 %s281, 1
      %s283 = scalar_select %p280, %s281, %s282
      %p286 = pneg %p280
      %p287 = scmp.eq.s32.totalorder %s35, 1
      %p288 = por %p286, %p287
      %p289 = scmp.ne.s32.totalorder %s281, %s284
      %p290 = scmp.eq.s32.totalorder %s35, 0
      %p291 = por %p289, %p290
      %p292 = scmp.ne.s32.totalorder %s281, %s284
      %p293 = scmp.eq.s32.totalorder %s40, 1
      %p294 = por %p292, %p293
      %p295 = scmp.ne.s32.totalorder %s284, %s285
      %p296 = scmp.eq.s32.totalorder %s40, 0
      %p297 = por %p295, %p296
      %p298 = scmp.ne.s32.totalorder %s284, %s285
      %p299 = scmp.eq.s32.totalorder %s41, 1
      %p300 = por %p298, %p299
      %p302 = scmp.ne.s32.totalorder %s285, %s301
      %p303 = scmp.eq.s32.totalorder %s41, 0
      %p304 = por %p302, %p303
      %s305 = ssub.s32 %s43, %s50
      %p306 = scmp.eq.s32.totalorder %s305, 0
      %s308 = sadd.s32 %s307, 1
      %s309 = scalar_select %p306, %s307, %s308
      %p312 = pneg %p306
      %p313 = scmp.eq.s32.totalorder %s35, 1
      %p314 = por %p312, %p313
      %p315 = scmp.ne.s32.totalorder %s307, %s310
      %p316 = scmp.eq.s32.totalorder %s35, 0
      %p317 = por %p315, %p316
      %p318 = scmp.ne.s32.totalorder %s307, %s310
      %p319 = scmp.eq.s32.totalorder %s40, 1
      %p320 = por %p318, %p319
      %p321 = scmp.ne.s32.totalorder %s310, %s311
      %p322 = scmp.eq.s32.totalorder %s40, 0
      %p323 = por %p321, %p322
      %p324 = scmp.ne.s32.totalorder %s310, %s311
      %p325 = scmp.eq.s32.totalorder %s41, 1
      %p326 = por %p324, %p325
      %p328 = scmp.ne.s32.totalorder %s311, %s327
      %p329 = scmp.eq.s32.totalorder %s41, 0
      %p330 = por %p328, %p329
      %s331 = ssub.s32 %s43, %s50
      %p332 = scmp.eq.s32.totalorder %s331, 0
      %s334 = sadd.s32 %s333, 1
      %s335 = scalar_select %p332, %s333, %s334
      %p338 = pneg %p332
      %p339 = scmp.eq.s32.totalorder %s35, 1
      %p340 = por %p338, %p339
      %p341 = scmp.ne.s32.totalorder %s333, %s336
      %p342 = scmp.eq.s32.totalorder %s35, 0
      %p343 = por %p341, %p342
      %p344 = scmp.ne.s32.totalorder %s333, %s336
      %p345 = scmp.eq.s32.totalorder %s40, 1
      %p346 = por %p344, %p345
      %p347 = scmp.ne.s32.totalorder %s336, %s337
      %p348 = scmp.eq.s32.totalorder %s40, 0
      %p349 = por %p347, %p348
      %p350 = scmp.ne.s32.totalorder %s336, %s337
      %p351 = scmp.eq.s32.totalorder %s41, 1
      %p352 = por %p350, %p351
      %p354 = scmp.ne.s32.totalorder %s337, %s353
      %p355 = scmp.eq.s32.totalorder %s41, 0
      %p356 = por %p354, %p355
      %s357 = ssub.s32 %s43, %s50
      %p358 = scmp.eq.s32.totalorder %s357, 0
      %s360 = sadd.s32 %s359, 1
      %s361 = scalar_select %p358, %s359, %s360
      %p364 = pneg %p358
      %p365 = scmp.eq.s32.totalorder %s35, 1
      %p366 = por %p364, %p365
      %p367 = scmp.ne.s32.totalorder %s359, %s362
      %p368 = scmp.eq.s32.totalorder %s35, 0
      %p369 = por %p367, %p368
      %p370 = scmp.ne.s32.totalorder %s359, %s362
      %p371 = scmp.eq.s32.totalorder %s40, 1
      %p372 = por %p370, %p371
      %p373 = scmp.ne.s32.totalorder %s362, %s363
      %p374 = scmp.eq.s32.totalorder %s40, 0
      %p375 = por %p373, %p374
      %p376 = scmp.ne.s32.totalorder %s362, %s363
      %p377 = scmp.eq.s32.totalorder %s41, 1
      %p378 = por %p376, %p377
      %p380 = scmp.ne.s32.totalorder %s363, %s379
      %p381 = scmp.eq.s32.totalorder %s41, 0
      %p382 = por %p380, %p381
      %s383 = ssub.s32 %s43, %s50
      %p384 = scmp.eq.s32.totalorder %s383, 0
      %s386 = sadd.s32 %s385, 1
      %s387 = scalar_select %p384, %s385, %s386
      %p390 = pneg %p384
      %p391 = scmp.eq.s32.totalorder %s35, 1
      %p392 = por %p390, %p391
      %p393 = scmp.ne.s32.totalorder %s385, %s388
      %p394 = scmp.eq.s32.totalorder %s35, 0
      %p395 = por %p393, %p394
      %p396 = scmp.ne.s32.totalorder %s385, %s388
      %p397 = scmp.eq.s32.totalorder %s40, 1
      %p398 = por %p396, %p397
      %p399 = scmp.ne.s32.totalorder %s388, %s389
      %p400 = scmp.eq.s32.totalorder %s40, 0
      %p401 = por %p399, %p400
      %p402 = scmp.ne.s32.totalorder %s388, %s389
      %p403 = scmp.eq.s32.totalorder %s41, 1
      %p404 = por %p402, %p403
      %p406 = scmp.ne.s32.totalorder %s389, %s405
      %p407 = scmp.eq.s32.totalorder %s41, 0
      %p408 = por %p406, %p407
      %s409 = ssub.s32 %s43, %s50
      %p410 = scmp.eq.s32.totalorder %s409, 0
      %s412 = sadd.s32 %s411, 1
      %s413 = scalar_select %p410, %s411, %s412
      %p416 = pneg %p410
      %p417 = scmp.eq.s32.totalorder %s35, 1
      %p418 = por %p416, %p417
      %p419 = scmp.ne.s32.totalorder %s411, %s414
      %p420 = scmp.eq.s32.totalorder %s35, 0
      %p421 = por %p419, %p420
      %p422 = scmp.ne.s32.totalorder %s411, %s414
      %p423 = scmp.eq.s32.totalorder %s40, 1
      %p424 = por %p422, %p423
      %p425 = scmp.ne.s32.totalorder %s414, %s415
      %p426 = scmp.eq.s32.totalorder %s40, 0
      %p427 = por %p425, %p426
      %p428 = scmp.ne.s32.totalorder %s414, %s415
      %p429 = scmp.eq.s32.totalorder %s41, 1
      %p430 = por %p428, %p429
      %p432 = scmp.ne.s32.totalorder %s415, %s431
      %p433 = scmp.eq.s32.totalorder %s41, 0
      %p434 = por %p432, %p433
      %s435 = ssub.s32 %s43, %s50
      %p436 = scmp.eq.s32.totalorder %s435, 0
      %s438 = sadd.s32 %s437, 1
      %s439 = scalar_select %p436, %s437, %s438
      %p442 = pneg %p436
      %p443 = scmp.eq.s32.totalorder %s35, 1
      %p444 = por %p442, %p443
      %p445 = scmp.ne.s32.totalorder %s437, %s440
      %p446 = scmp.eq.s32.totalorder %s35, 0
      %p447 = por %p445, %p446
      %p448 = scmp.ne.s32.totalorder %s437, %s440
      %p449 = scmp.eq.s32.totalorder %s40, 1
      %p450 = por %p448, %p449
      %p451 = scmp.ne.s32.totalorder %s440, %s441
      %p452 = scmp.eq.s32.totalorder %s40, 0
      %p453 = por %p451, %p452
      %p454 = scmp.ne.s32.totalorder %s440, %s441
      %p455 = scmp.eq.s32.totalorder %s41, 1
      %p456 = por %p454, %p455
      %p458 = scmp.ne.s32.totalorder %s441, %s457
      %p459 = scmp.eq.s32.totalorder %s41, 0
      %p460 = por %p458, %p459
      %s461 = ssub.s32 %s43, %s50
      %p462 = scmp.eq.s32.totalorder %s461, 0
      %s464 = sadd.s32 %s463, 1
      %s465 = scalar_select %p462, %s463, %s464
      %p468 = pneg %p462
      %p469 = scmp.eq.s32.totalorder %s35, 1
      %p470 = por %p468, %p469
      %p471 = scmp.ne.s32.totalorder %s463, %s466
      %p472 = scmp.eq.s32.totalorder %s35, 0
      %p473 = por %p471, %p472
      %p474 = scmp.ne.s32.totalorder %s463, %s466
      %p475 = scmp.eq.s32.totalorder %s40, 1
      %p476 = por %p474, %p475
      %p477 = scmp.ne.s32.totalorder %s466, %s467
      %p478 = scmp.eq.s32.totalorder %s40, 0
      %p479 = por %p477, %p478
      %p480 = scmp.ne.s32.totalorder %s466, %s467
      %p481 = scmp.eq.s32.totalorder %s41, 1
      %p482 = por %p480, %p481
      %p484 = scmp.ne.s32.totalorder %s467, %s483
      %p485 = scmp.eq.s32.totalorder %s41, 0
      %p486 = por %p484, %p485
      %s487 = ssub.s32 %s43, %s50
      %p488 = scmp.eq.s32.totalorder %s487, 0
      %s490 = sadd.s32 %s489, 1
      %s491 = scalar_select %p488, %s489, %s490
      %p494 = pneg %p488
      %p495 = scmp.eq.s32.totalorder %s35, 1
      %p496 = por %p494, %p495
      %p497 = scmp.ne.s32.totalorder %s489, %s492
      %p498 = scmp.eq.s32.totalorder %s35, 0
      %p499 = por %p497, %p498
      %p500 = scmp.ne.s32.totalorder %s489, %s492
      %p501 = scmp.eq.s32.totalorder %s40, 1
      %p502 = por %p500, %p501
      %p503 = scmp.ne.s32.totalorder %s492, %s493
      %p504 = scmp.eq.s32.totalorder %s40, 0
      %p505 = por %p503, %p504
      %p506 = scmp.ne.s32.totalorder %s492, %s493
      %p507 = scmp.eq.s32.totalorder %s41, 1
      %p508 = por %p506, %p507
      %p510 = scmp.ne.s32.totalorder %s493, %s509
      %p511 = scmp.eq.s32.totalorder %s41, 0
      %p512 = por %p510, %p511
      %s513 = ssub.s32 %s43, %s50
      %p514 = scmp.eq.s32.totalorder %s513, 0
      %s516 = sadd.s32 %s515, 1
      %s517 = scalar_select %p514, %s515, %s516
      %p520 = pneg %p514
      %p521 = scmp.eq.s32.totalorder %s35, 1
      %p522 = por %p520, %p521
      %p523 = scmp.ne.s32.totalorder %s515, %s518
      %p524 = scmp.eq.s32.totalorder %s35, 0
      %p525 = por %p523, %p524
      %p526 = scmp.ne.s32.totalorder %s515, %s518
      %p527 = scmp.eq.s32.totalorder %s40, 1
      %p528 = por %p526, %p527
      %p529 = scmp.ne.s32.totalorder %s518, %s519
      %p530 = scmp.eq.s32.totalorder %s40, 0
      %p531 = por %p529, %p530
      %p532 = scmp.ne.s32.totalorder %s518, %s519
      %p533 = scmp.eq.s32.totalorder %s41, 1
      %p534 = por %p532, %p533
      %p536 = scmp.ne.s32.totalorder %s519, %s535
      %p537 = scmp.eq.s32.totalorder %s41, 0
      %p538 = por %p536, %p537
      %s539 = ssub.s32 %s43, %s50
      %p540 = scmp.eq.s32.totalorder %s539, 0
      %s542 = sadd.s32 %s541, 1
      %s543 = scalar_select %p540, %s541, %s542
      %p546 = pneg %p540
      %p547 = scmp.eq.s32.totalorder %s35, 1
      %p548 = por %p546, %p547
      %p549 = scmp.ne.s32.totalorder %s541, %s544
      %p550 = scmp.eq.s32.totalorder %s35, 0
      %p551 = por %p549, %p550
      %p552 = scmp.ne.s32.totalorder %s541, %s544
      %p553 = scmp.eq.s32.totalorder %s40, 1
      %p554 = por %p552, %p553
      %p555 = scmp.ne.s32.totalorder %s544, %s545
      %p556 = scmp.eq.s32.totalorder %s40, 0
      %p557 = por %p555, %p556
      %p558 = scmp.ne.s32.totalorder %s544, %s545
      %p559 = scmp.eq.s32.totalorder %s41, 1
      %p560 = por %p558, %p559
      %p562 = scmp.ne.s32.totalorder %s545, %s561
      %p563 = scmp.eq.s32.totalorder %s41, 0
      %p564 = por %p562, %p563
      %s565 = ssub.s32 %s43, %s50
      %p566 = scmp.eq.s32.totalorder %s565, 0
      %s568 = sadd.s32 %s567, 1
      %s569 = scalar_select %p566, %s567, %s568
      %p572 = pneg %p566
      %p573 = scmp.eq.s32.totalorder %s35, 1
      %p574 = por %p572, %p573
      %p575 = scmp.ne.s32.totalorder %s567, %s570
      %p576 = scmp.eq.s32.totalorder %s35, 0
      %p577 = por %p575, %p576
      %p578 = scmp.ne.s32.totalorder %s567, %s570
      %p579 = scmp.eq.s32.totalorder %s40, 1
      %p580 = por %p578, %p579
      %p581 = scmp.ne.s32.totalorder %s570, %s571
      %p582 = scmp.eq.s32.totalorder %s40, 0
      %p583 = por %p581, %p582
      %p584 = scmp.ne.s32.totalorder %s570, %s571
      %p585 = scmp.eq.s32.totalorder %s41, 1
      %p586 = por %p584, %p585
      %p588 = scmp.ne.s32.totalorder %s571, %s587
      %p589 = scmp.eq.s32.totalorder %s41, 0
      %p590 = por %p588, %p589
      %s591 = ssub.s32 %s43, %s50
      %p592 = scmp.eq.s32.totalorder %s591, 0
      %s594 = sadd.s32 %s593, 1
      %s595 = scalar_select %p592, %s593, %s594
      %p598 = pneg %p592
      %p599 = scmp.eq.s32.totalorder %s35, 1
      %p600 = por %p598, %p599
      %p601 = scmp.ne.s32.totalorder %s593, %s596
      %p602 = scmp.eq.s32.totalorder %s35, 0
      %p603 = por %p601, %p602
      %p604 = scmp.ne.s32.totalorder %s593, %s596
      %p605 = scmp.eq.s32.totalorder %s40, 1
      %p606 = por %p604, %p605
      %p607 = scmp.ne.s32.totalorder %s596, %s597
      %p608 = scmp.eq.s32.totalorder %s40, 0
      %p609 = por %p607, %p608
      %p610 = scmp.ne.s32.totalorder %s596, %s597
      %p611 = scmp.eq.s32.totalorder %s41, 1
      %p612 = por %p610, %p611
      %p614 = scmp.ne.s32.totalorder %s597, %s613
      %p615 = scmp.eq.s32.totalorder %s41, 0
      %p616 = por %p614, %p615
      %s617 = ssub.s32 %s43, %s50
      %p618 = scmp.eq.s32.totalorder %s617, 0
      %s620 = sadd.s32 %s619, 1
      %s621 = scalar_select %p618, %s619, %s620
      %p624 = pneg %p618
      %p625 = scmp.eq.s32.totalorder %s35, 1
      %p626 = por %p624, %p625
      %p627 = scmp.ne.s32.totalorder %s619, %s622
      %p628 = scmp.eq.s32.totalorder %s35, 0
      %p629 = por %p627, %p628
      %p630 = scmp.ne.s32.totalorder %s619, %s622
      %p631 = scmp.eq.s32.totalorder %s40, 1
      %p632 = por %p630, %p631
      %p633 = scmp.ne.s32.totalorder %s622, %s623
      %p634 = scmp.eq.s32.totalorder %s40, 0
      %p635 = por %p633, %p634
      %p636 = scmp.ne.s32.totalorder %s622, %s623
      %p637 = scmp.eq.s32.totalorder %s41, 1
      %p638 = por %p636, %p637
      %p640 = scmp.ne.s32.totalorder %s623, %s639
      %p641 = scmp.eq.s32.totalorder %s41, 0
      %p642 = por %p640, %p641
      %s644 = sadd.s32 %s643, 1
      %p647 = scmp.eq.s32.totalorder %s35, 1
      %p648 = scmp.ne.s32.totalorder %s643, %s645
      %p649 = scmp.eq.s32.totalorder %s35, 0
      %p650 = por %p648, %p649
      %p651 = scmp.ne.s32.totalorder %s643, %s645
      %p652 = scmp.eq.s32.totalorder %s40, 1
      %p653 = por %p651, %p652
      %p654 = scmp.ne.s32.totalorder %s645, %s646
      %p655 = scmp.eq.s32.totalorder %s40, 0
      %p656 = por %p654, %p655
      %p657 = scmp.ne.s32.totalorder %s645, %s646
      %p658 = scmp.eq.s32.totalorder %s41, 1
      %p659 = por %p657, %p658
      %p661 = scmp.ne.s32.totalorder %s646, %s660
      %p662 = scmp.eq.s32.totalorder %s41, 0
      %p663 = por %p661, %p662
      %s665 = sadd.s32 %s664, 1
      %p668 = scmp.eq.s32.totalorder %s35, 1
      %p669 = scmp.ne.s32.totalorder %s664, %s666
      %p670 = scmp.eq.s32.totalorder %s35, 0
      %p671 = por %p669, %p670
      %p672 = scmp.ne.s32.totalorder %s664, %s666
      %p673 = scmp.eq.s32.totalorder %s40, 1
      %p674 = por %p672, %p673
      %p675 = scmp.ne.s32.totalorder %s666, %s667
      %p676 = scmp.eq.s32.totalorder %s40, 0
      %p677 = por %p675, %p676
      %p678 = scmp.ne.s32.totalorder %s666, %s667
      %p679 = scmp.eq.s32.totalorder %s41, 1
      %p680 = por %p678, %p679
      %p682 = scmp.ne.s32.totalorder %s667, %s681
      %p683 = scmp.eq.s32.totalorder %s41, 0
      %p684 = por %p682, %p683
      %s685 = ssub.s32 %s42, %s54
      %p686 = scmp.eq.s32.totalorder %s685, 0
      %s688 = sadd.s32 %s687, 1
      %s689 = scalar_select %p686, %s687, %s688
      %p692 = pneg %p686
      %p693 = scmp.eq.s32.totalorder %s35, 1
      %p694 = por %p692, %p693
      %p695 = scmp.ne.s32.totalorder %s687, %s690
      %p696 = scmp.eq.s32.totalorder %s35, 0
      %p697 = por %p695, %p696
      %p698 = scmp.ne.s32.totalorder %s687, %s690
      %p699 = scmp.eq.s32.totalorder %s40, 1
      %p700 = por %p698, %p699
      %p701 = scmp.ne.s32.totalorder %s690, %s691
      %p702 = scmp.eq.s32.totalorder %s40, 0
      %p703 = por %p701, %p702
      %p704 = scmp.ne.s32.totalorder %s690, %s691
      %p705 = scmp.eq.s32.totalorder %s41, 1
      %p706 = por %p704, %p705
      %p708 = scmp.ne.s32.totalorder %s691, %s707
      %p709 = scmp.eq.s32.totalorder %s41, 0
      %p710 = por %p708, %p709
      %s711 = ssub.s32 %s42, %s54
      %p712 = scmp.eq.s32.totalorder %s711, 0
      %s714 = sadd.s32 %s713, 1
      %s715 = scalar_select %p712, %s713, %s714
      %p718 = pneg %p712
      %p719 = scmp.eq.s32.totalorder %s35, 1
      %p720 = por %p718, %p719
      %p721 = scmp.ne.s32.totalorder %s713, %s716
      %p722 = scmp.eq.s32.totalorder %s35, 0
      %p723 = por %p721, %p722
      %p724 = scmp.ne.s32.totalorder %s713, %s716
      %p725 = scmp.eq.s32.totalorder %s40, 1
      %p726 = por %p724, %p725
      %p727 = scmp.ne.s32.totalorder %s716, %s717
      %p728 = scmp.eq.s32.totalorder %s40, 0
      %p729 = por %p727, %p728
      %p730 = scmp.ne.s32.totalorder %s716, %s717
      %p731 = scmp.eq.s32.totalorder %s41, 1
      %p732 = por %p730, %p731
      %p734 = scmp.ne.s32.totalorder %s717, %s733
      %p735 = scmp.eq.s32.totalorder %s41, 0
      %p736 = por %p734, %p735
      %p737 = scmp.le.s32.totalorder 1, %s35
      %p738 = scmp.lt.s32.totalorder %s35, 3
      %p739 = pnand %p737, %p738
      %p740 = pneg %p739
      // Predicated region
      $region9: #{bnt_forward.1} parent=5 // pred_check
        _
      $region10: #{bnt_forward.1} parent=5 // pred_check_branch
        %742 = sbr.rel (%p739) target = $region12
      $region11: #{bnt_forward.1} parent=5 // pred_region
        %s743 = ssub.s32 %s35, 1
        // Predicated region
        $region13: #{bnt_forward.1} parent=11 // pred_check
          %p744 = pneg %p73
        $region14: #{bnt_forward.1} parent=11 // pred_check_branch
          %746 = sbr.rel (%p744) target = $region16
        $region15: #{bnt_forward.1} parent=11 // pred_region
          %s747 = smul.u32 2, %s44
          %p748 = scmp.lt.s32.totalorder %s747, 1
          %s749 = scalar_select %p748, %s747, 1
          %s750 = smul.addr %s749, 2
          %s751 = smul.addr %s750, 4
          %s752 = scalar_lea.vmem %s0, %s751
          %s753 = smul.u32 2, %s44
        $region16: #{bnt_forward.1} parent=11 // pred_fallthru
          _
        // Predicated region
        $region17: #{bnt_forward.1} parent=11 // pred_check
          %p754 = pneg %p94
        $region18: #{bnt_forward.1} parent=11 // pred_check_branch
          %756 = sbr.rel (%p754) target = $region20
        $region19: #{bnt_forward.1} parent=11 // pred_region
          _
        $region20: #{bnt_forward.1} parent=11 // pred_fallthru
          _
        // Predicated region
        $region21: #{bnt_forward.1} parent=11 // pred_check
          %p757 = pneg %p115
        $region22: #{bnt_forward.1} parent=11 // pred_check_branch
          %759 = sbr.rel (%p757) target = $region24
        $region23: #{bnt_forward.1} parent=11 // pred_region
          _
        $region24: #{bnt_forward.1} parent=11 // pred_fallthru
          _
        // Predicated region
        $region25: #{bnt_forward.1} parent=11 // pred_check
          %p760 = pneg %p656
        $region26: #{bnt_forward.1} parent=11 // pred_check_branch
          %762 = sbr.rel (%p760) target = $region28
        $region27: #{bnt_forward.1} parent=11 // pred_region
          _
        $region28: #{bnt_forward.1} parent=11 // pred_fallthru
          _
        // Predicated region
        $region29: #{bnt_forward.1} parent=11 // pred_check
          %p763 = pneg %p677
        $region30: #{bnt_forward.1} parent=11 // pred_check_branch
          %765 = sbr.rel (%p763) target = $region32
        $region31: #{bnt_forward.1} parent=11 // pred_region
          _
        $region32: #{bnt_forward.1} parent=11 // pred_fallthru
          _
      $region12: #{bnt_forward.1} parent=5 // pred_fallthru
        _
      %p766 = scmp.lt.s32.totalorder %s35, 2
      // Predicated region
      $region33: #{bnt_forward.1} parent=5 // pred_check
        %p767 = pneg %p766
      $region34: #{bnt_forward.1} parent=5 // pred_check_branch
        %769 = sbr.rel (%p767) target = $region36
      $region35: #{bnt_forward.1} parent=5 // pred_region
        // Predicated region
        $region37: #{bnt_forward.1} parent=35 // pred_check
          %p770 = pneg %p135
        $region38: #{bnt_forward.1} parent=35 // pred_check_branch
          %772 = sbr.rel (%p770) target = $region40
        $region39: #{bnt_forward.1} parent=35 // pred_region
          %p773 = scmp.lt.s32.totalorder %s43, 1
          %s774 = scalar_select %p773, %s43, 1
          %s775 = scalar_lea.vmem %s3, %s774
        $region40: #{bnt_forward.1} parent=35 // pred_fallthru
          _
        // Predicated region
        $region41: #{bnt_forward.1} parent=35 // pred_check
          %p776 = pneg %p161
        $region42: #{bnt_forward.1} parent=35 // pred_check_branch
          %778 = sbr.rel (%p776) target = $region44
        $region43: #{bnt_forward.1} parent=35 // pred_region
          %p779 = scmp.lt.s32.totalorder %s43, 1
          %s780 = scalar_select %p779, %s43, 1
          %s781 = scalar_lea.vmem %s4, %s780
        $region44: #{bnt_forward.1} parent=35 // pred_fallthru
          _
        // Predicated region
        $region45: #{bnt_forward.1} parent=35 // pred_check
          %p782 = pneg %p187
        $region46: #{bnt_forward.1} parent=35 // pred_check_branch
          %784 = sbr.rel (%p782) target = $region48
        $region47: #{bnt_forward.1} parent=35 // pred_region
          %p785 = scmp.lt.s32.totalorder %s43, 1
          %s786 = scalar_select %p785, %s43, 1
          %s787 = smul.addr %s786, 4
          %s788 = smul.addr %s787, 4
          %s789 = scalar_lea.vmem %s5, %s788
        $region48: #{bnt_forward.1} parent=35 // pred_fallthru
          _
        // Predicated region
        $region49: #{bnt_forward.1} parent=35 // pred_check
          %p790 = pneg %p213
        $region50: #{bnt_forward.1} parent=35 // pred_check_branch
          %792 = sbr.rel (%p790) target = $region52
        $region51: #{bnt_forward.1} parent=35 // pred_region
          %p793 = scmp.lt.s32.totalorder %s43, 1
          %s794 = scalar_select %p793, %s43, 1
          %s795 = scalar_lea.vmem %s6, %s794
        $region52: #{bnt_forward.1} parent=35 // pred_fallthru
          _
        // Predicated region
        $region53: #{bnt_forward.1} parent=35 // pred_check
          %p796 = pneg %p239
        $region54: #{bnt_forward.1} parent=35 // pred_check_branch
          %798 = sbr.rel (%p796) target = $region56
        $region55: #{bnt_forward.1} parent=35 // pred_region
          %p799 = scmp.lt.s32.totalorder %s43, 1
          %s800 = scalar_select %p799, %s43, 1
          %s801 = smul.addr %s800, 4
          %s802 = smul.addr %s801, 4
          %s803 = scalar_lea.vmem %s7, %s802
        $region56: #{bnt_forward.1} parent=35 // pred_fallthru
          _
        // Predicated region
        $region57: #{bnt_forward.1} parent=35 // pred_check
          %p804 = pneg %p265
        $region58: #{bnt_forward.1} parent=35 // pred_check_branch
          %806 = sbr.rel (%p804) target = $region60
        $region59: #{bnt_forward.1} parent=35 // pred_region
          %p807 = scmp.lt.s32.totalorder %s43, 1
          %s808 = scalar_select %p807, %s43, 1
          %s809 = scalar_lea.vmem %s8, %s808
        $region60: #{bnt_forward.1} parent=35 // pred_fallthru
          _
        // Predicated region
        $region61: #{bnt_forward.1} parent=35 // pred_check
          %p810 = pneg %p291
        $region62: #{bnt_forward.1} parent=35 // pred_check_branch
          %812 = sbr.rel (%p810) target = $region64
        $region63: #{bnt_forward.1} parent=35 // pred_region
          %p813 = scmp.lt.s32.totalorder %s43, 1
          %s814 = scalar_select %p813, %s43, 1
          %s815 = smul.addr %s814, 4
          %s816 = smul.addr %s815, 4
          %s817 = scalar_lea.vmem %s9, %s816
        $region64: #{bnt_forward.1} parent=35 // pred_fallthru
          _
        // Predicated region
        $region65: #{bnt_forward.1} parent=35 // pred_check
          %p818 = pneg %p317
        $region66: #{bnt_forward.1} parent=35 // pred_check_branch
          %820 = sbr.rel (%p818) target = $region68
        $region67: #{bnt_forward.1} parent=35 // pred_region
          %p821 = scmp.lt.s32.totalorder %s43, 1
          %s822 = scalar_select %p821, %s43, 1
          %s823 = scalar_lea.vmem %s10, %s822
        $region68: #{bnt_forward.1} parent=35 // pred_fallthru
          _
        // Predicated region
        $region69: #{bnt_forward.1} parent=35 // pred_check
          %p824 = pneg %p343
        $region70: #{bnt_forward.1} parent=35 // pred_check_branch
          %826 = sbr.rel (%p824) target = $region72
        $region71: #{bnt_forward.1} parent=35 // pred_region
          %p827 = scmp.lt.s32.totalorder %s43, 1
          %s828 = scalar_select %p827, %s43, 1
          %s829 = smul.addr %s828, 4
          %s830 = smul.addr %s829, 4
          %s831 = scalar_lea.vmem %s11, %s830
        $region72: #{bnt_forward.1} parent=35 // pred_fallthru
          _
        // Predicated region
        $region73: #{bnt_forward.1} parent=35 // pred_check
          %p832 = pneg %p369
        $region74: #{bnt_forward.1} parent=35 // pred_check_branch
          %834 = sbr.rel (%p832) target = $region76
        $region75: #{bnt_forward.1} parent=35 // pred_region
          %p835 = scmp.lt.s32.totalorder %s43, 1
          %s836 = scalar_select %p835, %s43, 1
          %s837 = scalar_lea.vmem %s12, %s836
        $region76: #{bnt_forward.1} parent=35 // pred_fallthru
          _
        // Predicated region
        $region77: #{bnt_forward.1} parent=35 // pred_check
          %p838 = pneg %p395
        $region78: #{bnt_forward.1} parent=35 // pred_check_branch
          %840 = sbr.rel (%p838) target = $region80
        $region79: #{bnt_forward.1} parent=35 // pred_region
          %p841 = scmp.lt.s32.totalorder %s43, 1
          %s842 = scalar_select %p841, %s43, 1
          %s843 = smul.addr %s842, 4
          %s844 = smul.addr %s843, 4
          %s845 = scalar_lea.vmem %s13, %s844
        $region80: #{bnt_forward.1} parent=35 // pred_fallthru
          _
        // Predicated region
        $region81: #{bnt_forward.1} parent=35 // pred_check
          %p846 = pneg %p421
        $region82: #{bnt_forward.1} parent=35 // pred_check_branch
          %848 = sbr.rel (%p846) target = $region84
        $region83: #{bnt_forward.1} parent=35 // pred_region
          %p849 = scmp.lt.s32.totalorder %s43, 1
          %s850 = scalar_select %p849, %s43, 1
          %s851 = scalar_lea.vmem %s14, %s850
        $region84: #{bnt_forward.1} parent=35 // pred_fallthru
          _
        // Predicated region
        $region85: #{bnt_forward.1} parent=35 // pred_check
          %p852 = pneg %p447
        $region86: #{bnt_forward.1} parent=35 // pred_check_branch
          %854 = sbr.rel (%p852) target = $region88
        $region87: #{bnt_forward.1} parent=35 // pred_region
          %p855 = scmp.lt.s32.totalorder %s43, 1
          %s856 = scalar_select %p855, %s43, 1
          %s857 = smul.addr %s856, 4
          %s858 = smul.addr %s857, 4
          %s859 = scalar_lea.vmem %s15, %s858
        $region88: #{bnt_forward.1} parent=35 // pred_fallthru
          _
        // Predicated region
        $region89: #{bnt_forward.1} parent=35 // pred_check
          %p860 = pneg %p473
        $region90: #{bnt_forward.1} parent=35 // pred_check_branch
          %862 = sbr.rel (%p860) target = $region92
        $region91: #{bnt_forward.1} parent=35 // pred_region
          %p863 = scmp.lt.s32.totalorder %s43, 1
          %s864 = scalar_select %p863, %s43, 1
          %s865 = scalar_lea.vmem %s16, %s864
        $region92: #{bnt_forward.1} parent=35 // pred_fallthru
          _
        // Predicated region
        $region93: #{bnt_forward.1} parent=35 // pred_check
          %p866 = pneg %p499
        $region94: #{bnt_forward.1} parent=35 // pred_check_branch
          %868 = sbr.rel (%p866) target = $region96
        $region95: #{bnt_forward.1} parent=35 // pred_region
          %p869 = scmp.lt.s32.totalorder %s43, 1
          %s870 = scalar_select %p869, %s43, 1
          %s871 = scalar_lea.vmem %s17, %s870
        $region96: #{bnt_forward.1} parent=35 // pred_fallthru
          _
        // Predicated region
        $region97: #{bnt_forward.1} parent=35 // pred_check
          %p872 = pneg %p525
        $region98: #{bnt_forward.1} parent=35 // pred_check_branch
          %874 = sbr.rel (%p872) target = $region100
        $region99: #{bnt_forward.1} parent=35 // pred_region
          %p875 = scmp.lt.s32.totalorder %s43, 1
          %s876 = scalar_select %p875, %s43, 1
          %s877 = scalar_lea.vmem %s18, %s876
        $region100: #{bnt_forward.1} parent=35 // pred_fallthru
          _
        // Predicated region
        $region101: #{bnt_forward.1} parent=35 // pred_check
          %p878 = pneg %p551
        $region102: #{bnt_forward.1} parent=35 // pred_check_branch
          %880 = sbr.rel (%p878) target = $region104
        $region103: #{bnt_forward.1} parent=35 // pred_region
          %p881 = scmp.lt.s32.totalorder %s43, 1
          %s882 = scalar_select %p881, %s43, 1
          %s883 = smul.addr %s882, 8
          %s884 = smul.addr %s883, 4
          %s885 = scalar_lea.vmem %s19, %s884
        $region104: #{bnt_forward.1} parent=35 // pred_fallthru
          _
        // Predicated region
        $region105: #{bnt_forward.1} parent=35 // pred_check
          %p886 = pneg %p577
        $region106: #{bnt_forward.1} parent=35 // pred_check_branch
          %888 = sbr.rel (%p886) target = $region108
        $region107: #{bnt_forward.1} parent=35 // pred_region
          %p889 = scmp.lt.s32.totalorder %s43, 1
          %s890 = scalar_select %p889, %s43, 1
          %s891 = scalar_lea.vmem %s20, %s890
        $region108: #{bnt_forward.1} parent=35 // pred_fallthru
          _
        // Predicated region
        $region109: #{bnt_forward.1} parent=35 // pred_check
          %p892 = pneg %p603
        $region110: #{bnt_forward.1} parent=35 // pred_check_branch
          %894 = sbr.rel (%p892) target = $region112
        $region111: #{bnt_forward.1} parent=35 // pred_region
          %p895 = scmp.lt.s32.totalorder %s43, 1
          %s896 = scalar_select %p895, %s43, 1
          %s897 = smul.addr %s896, 16
          %s898 = smul.addr %s897, 4
          %s899 = scalar_lea.vmem %s21, %s898
        $region112: #{bnt_forward.1} parent=35 // pred_fallthru
          _
        // Predicated region
        $region113: #{bnt_forward.1} parent=35 // pred_check
          %p900 = pneg %p629
        $region114: #{bnt_forward.1} parent=35 // pred_check_branch
          %902 = sbr.rel (%p900) target = $region116
        $region115: #{bnt_forward.1} parent=35 // pred_region
          %p903 = scmp.lt.s32.totalorder %s43, 1
          %s904 = scalar_select %p903, %s43, 1
          %s905 = scalar_lea.vmem %s22, %s904
        $region116: #{bnt_forward.1} parent=35 // pred_fallthru
          _
      $region36: #{bnt_forward.1} parent=5 // pred_fallthru
        _
      %p906 = scmp.le.s32.totalorder 1, %s35
      %p907 = scmp.lt.s32.totalorder %s35, 3
      %p908 = pnand %p906, %p907
      %p909 = pneg %p908
      // Predicated region
      $region117: #{bnt_forward.1} parent=5 // pred_check
        _
      $region118: #{bnt_forward.1} parent=5 // pred_check_branch
        %911 = sbr.rel (%p908) target = $region120
      $region119: #{bnt_forward.1} parent=5 // pred_region
        %s912 = ssub.s32 %s35, 1
        %s913 = smul.u32 2, %s44
        %p914 = scmp.lt.s32.totalorder %s913, 1
        %s915 = scalar_select %p914, %s913, 1
        %s916 = smul.addr %s915, 2
        %s917 = smul.addr %s916, 4
        %s918 = scalar_lea.vmem %s0, %s917
        %p919 = pneg %p73
        %p920 = pneg %p70
        %p921 = pneg %p94
        %p922 = pneg %p91
        %p923 = pneg %p115
        %p924 = pneg %p112
        %p925 = scmp.lt.s32.totalorder %s45, 1
        %s926 = scalar_select %p925, %s45, 1
        %s927 = scalar_lea.vmem %s3, %s926
        %p928 = pneg %p141
        %p929 = pneg %p138
        %p930 = scmp.lt.s32.totalorder %s45, 1
        %s931 = scalar_select %p930, %s45, 1
        %s932 = scalar_lea.vmem %s4, %s931
        %p933 = pneg %p167
        %p934 = pneg %p164
        %p935 = scmp.lt.s32.totalorder %s45, 1
        %s936 = scalar_select %p935, %s45, 1
        %s937 = smul.addr %s936, 4
        %s938 = smul.addr %s937, 4
        %s939 = scalar_lea.vmem %s5, %s938
        %p940 = pneg %p193
        %p941 = pneg %p190
        %p942 = scmp.lt.s32.totalorder %s45, 1
        %s943 = scalar_select %p942, %s45, 1
        %s944 = scalar_lea.vmem %s6, %s943
        %p945 = pneg %p219
        %p946 = pneg %p216
        %p947 = scmp.lt.s32.totalorder %s45, 1
        %s948 = scalar_select %p947, %s45, 1
        %s949 = smul.addr %s948, 4
        %s950 = smul.addr %s949, 4
        %s951 = scalar_lea.vmem %s7, %s950
        %p952 = pneg %p245
        %p953 = pneg %p242
        %p954 = scmp.lt.s32.totalorder %s45, 1
        %s955 = scalar_select %p954, %s45, 1
        %s956 = scalar_lea.vmem %s8, %s955
        %p957 = pneg %p271
        %p958 = pneg %p268
        %p959 = scmp.lt.s32.totalorder %s45, 1
        %s960 = scalar_select %p959, %s45, 1
        %s961 = smul.addr %s960, 4
        %s962 = smul.addr %s961, 4
        %s963 = scalar_lea.vmem %s9, %s962
        %p964 = pneg %p297
        %p965 = pneg %p294
        %p966 = scmp.lt.s32.totalorder %s45, 1
        %s967 = scalar_select %p966, %s45, 1
        %s968 = scalar_lea.vmem %s10, %s967
        %p969 = pneg %p323
        %p970 = pneg %p320
        %p971 = scmp.lt.s32.totalorder %s45, 1
        %s972 = scalar_select %p971, %s45, 1
        %s973 = smul.addr %s972, 4
        %s974 = smul.addr %s973, 4
        %s975 = scalar_lea.vmem %s11, %s974
        %p976 = pneg %p349
        %p977 = pneg %p346
        %p978 = scmp.lt.s32.totalorder %s45, 1
        %s979 = scalar_select %p978, %s45, 1
        %s980 = scalar_lea.vmem %s12, %s979
        %p981 = pneg %p375
        %p982 = pneg %p372
        %p983 = scmp.lt.s32.totalorder %s45, 1
        %s984 = scalar_select %p983, %s45, 1
        %s985 = smul.addr %s984, 4
        %s986 = smul.addr %s985, 4
        %s987 = scalar_lea.vmem %s13, %s986
        %p988 = pneg %p401
        %p989 = pneg %p398
        %p990 = scmp.lt.s32.totalorder %s45, 1
        %s991 = scalar_select %p990, %s45, 1
        %s992 = scalar_lea.vmem %s14, %s991
        %p993 = pneg %p427
        %p994 = pneg %p424
        %p995 = scmp.lt.s32.totalorder %s45, 1
        %s996 = scalar_select %p995, %s45, 1
        %s997 = smul.addr %s996, 4
        %s998 = smul.addr %s997, 4
        %s999 = scalar_lea.vmem %s15, %s998
        %p1000 = pneg %p453
        %p1001 = pneg %p450
        %p1002 = scmp.lt.s32.totalorder %s45, 1
        %s1003 = scalar_select %p1002, %s45, 1
        %s1004 = scalar_lea.vmem %s16, %s1003
        %p1005 = pneg %p479
        %p1006 = pneg %p476
        %p1007 = scmp.lt.s32.totalorder %s45, 1
        %s1008 = scalar_select %p1007, %s45, 1
        %s1009 = scalar_lea.vmem %s17, %s1008
        %p1010 = pneg %p505
        %p1011 = pneg %p502
        %p1012 = scmp.lt.s32.totalorder %s45, 1
        %s1013 = scalar_select %p1012, %s45, 1
        %s1014 = scalar_lea.vmem %s18, %s1013
        %p1015 = pneg %p531
        %p1016 = pneg %p528
        %p1017 = scmp.lt.s32.totalorder %s45, 1
        %s1018 = scalar_select %p1017, %s45, 1
        %s1019 = smul.addr %s1018, 8
        %s1020 = smul.addr %s1019, 4
        %s1021 = scalar_lea.vmem %s19, %s1020
        %p1022 = pneg %p557
        %p1023 = pneg %p554
        %p1024 = scmp.lt.s32.totalorder %s45, 1
        %s1025 = scalar_select %p1024, %s45, 1
        %s1026 = scalar_lea.vmem %s20, %s1025
        %p1027 = pneg %p583
        %p1028 = pneg %p580
        %p1029 = scmp.lt.s32.totalorder %s45, 1
        %s1030 = scalar_select %p1029, %s45, 1
        %s1031 = smul.addr %s1030, 16
        %s1032 = smul.addr %s1031, 4
        %s1033 = scalar_lea.vmem %s21, %s1032
        %p1034 = pneg %p609
        %p1035 = pneg %p606
        %p1036 = scmp.lt.s32.totalorder %s45, 1
        %s1037 = scalar_select %p1036, %s45, 1
        %s1038 = scalar_lea.vmem %s22, %s1037
        %p1039 = pneg %p635
        %p1040 = pneg %p632
        %p1041 = pneg %p656
        %p1042 = pneg %p653
        %p1043 = pneg %p677
        %p1044 = pneg %p674
        %p1045 = pneg %p703
        %p1046 = pneg %p700
        %p1047 = pneg %p729
        %p1048 = pneg %p726
        %s1049 = smul.u32 2, %s44
        %p1050 = scmp.lt.s32.totalorder %s1049, 1
        %s1051 = scalar_select %p1050, %s1049, 1
        %s1052 = smul.addr %s1051, 2
        %s1053 = smul.addr %s1052, 4
        %s1054 = scalar_lea.vmem %s0, %s1053
        %s1055 = smul.u32 2, %s44
        %p1056 = scmp.lt.s32.totalorder %s45, 1
        %s1057 = scalar_select %p1056, %s45, 1
        %s1058 = scalar_lea.vmem %s3, %s1057
        %p1059 = scmp.lt.s32.totalorder %s45, 1
        %s1060 = scalar_select %p1059, %s45, 1
        %s1061 = scalar_lea.vmem %s4, %s1060
        %p1062 = scmp.lt.s32.totalorder %s45, 1
        %s1063 = scalar_select %p1062, %s45, 1
        %s1064 = smul.addr %s1063, 4
        %s1065 = smul.addr %s1064, 4
        %s1066 = scalar_lea.vmem %s5, %s1065
        %p1067 = scmp.lt.s32.totalorder %s45, 1
        %s1068 = scalar_select %p1067, %s45, 1
        %s1069 = scalar_lea.vmem %s6, %s1068
        %p1070 = scmp.lt.s32.totalorder %s45, 1
        %s1071 = scalar_select %p1070, %s45, 1
        %s1072 = smul.addr %s1071, 4
        %s1073 = smul.addr %s1072, 4
        %s1074 = scalar_lea.vmem %s7, %s1073
        %p1075 = scmp.lt.s32.totalorder %s45, 1
        %s1076 = scalar_select %p1075, %s45, 1
        %s1077 = scalar_lea.vmem %s8, %s1076
        %p1078 = scmp.lt.s32.totalorder %s45, 1
        %s1079 = scalar_select %p1078, %s45, 1
        %s1080 = smul.addr %s1079, 4
        %s1081 = smul.addr %s1080, 4
        %s1082 = scalar_lea.vmem %s9, %s1081
        %p1083 = scmp.lt.s32.totalorder %s45, 1
        %s1084 = scalar_select %p1083, %s45, 1
        %s1085 = scalar_lea.vmem %s10, %s1084
        %p1086 = scmp.lt.s32.totalorder %s45, 1
        %s1087 = scalar_select %p1086, %s45, 1
        %s1088 = smul.addr %s1087, 4
        %s1089 = smul.addr %s1088, 4
        %s1090 = scalar_lea.vmem %s11, %s1089
        %p1091 = scmp.lt.s32.totalorder %s45, 1
        %s1092 = scalar_select %p1091, %s45, 1
        %s1093 = scalar_lea.vmem %s12, %s1092
        %p1094 = scmp.lt.s32.totalorder %s45, 1
        %s1095 = scalar_select %p1094, %s45, 1
        %s1096 = smul.addr %s1095, 4
        %s1097 = smul.addr %s1096, 4
        %s1098 = scalar_lea.vmem %s13, %s1097
        %p1099 = scmp.lt.s32.totalorder %s45, 1
        %s1100 = scalar_select %p1099, %s45, 1
        %s1101 = scalar_lea.vmem %s14, %s1100
        %p1102 = scmp.lt.s32.totalorder %s45, 1
        %s1103 = scalar_select %p1102, %s45, 1
        %s1104 = smul.addr %s1103, 4
        %s1105 = smul.addr %s1104, 4
        %s1106 = scalar_lea.vmem %s15, %s1105
        %p1107 = scmp.lt.s32.totalorder %s45, 1
        %s1108 = scalar_select %p1107, %s45, 1
        %s1109 = scalar_lea.vmem %s16, %s1108
        %p1110 = scmp.lt.s32.totalorder %s45, 1
        %s1111 = scalar_select %p1110, %s45, 1
        %s1112 = scalar_lea.vmem %s17, %s1111
        %p1113 = scmp.lt.s32.totalorder %s45, 1
        %s1114 = scalar_select %p1113, %s45, 1
        %s1115 = scalar_lea.vmem %s18, %s1114
        %p1116 = scmp.lt.s32.totalorder %s45, 1
        %s1117 = scalar_select %p1116, %s45, 1
        %s1118 = smul.addr %s1117, 8
        %s1119 = smul.addr %s1118, 4
        %s1120 = scalar_lea.vmem %s19, %s1119
        %p1121 = scmp.lt.s32.totalorder %s45, 1
        %s1122 = scalar_select %p1121, %s45, 1
        %s1123 = scalar_lea.vmem %s20, %s1122
        %p1124 = scmp.lt.s32.totalorder %s45, 1
        %s1125 = scalar_select %p1124, %s45, 1
        %s1126 = smul.addr %s1125, 16
        %s1127 = smul.addr %s1126, 4
        %s1128 = scalar_lea.vmem %s21, %s1127
        %p1129 = scmp.lt.s32.totalorder %s45, 1
        %s1130 = scalar_select %p1129, %s45, 1
        %s1131 = scalar_lea.vmem %s22, %s1130
        %p1133 = scmp.eq.s32.totalorder %s45, 0
        // Predicated region
        $region121: #{bnt_forward.1} parent=119 // pred_check
          %p1134 = pneg %p1133
        $region122: #{bnt_forward.1} parent=119 // pred_check_branch
          %1136 = sbr.rel (%p1134) target = $region124
        $region123: #{bnt_forward.1} parent=119 // pred_region
          %v1137 = vld [vmem:[%s1054] sm:$0xf]
          %v1138 = vld [vmem:[%s1054 + $0x4] sm:$0x1]
          %v1139 = vld [vmem:[%s1054 + $0x8] sm:$0xf]
          %v1140 = vld [vmem:[%s1054 + $0xc] sm:$0x1]
          %v1145 = vrot.slane %v1137, 3
          %v1146 = vrot.slane %v1138, 3
          %v1147 = vrot.slane %v1139, 3
          %v1148 = vrot.slane %v1140, 3
          %vm1149 = vcmask 1040384
          %v1152 = vsel %vm1149, %v1137, %v1145
          %vm1154 = vcmask 1041409
          %v1155 = vsel %vm1154, %v1137, %v1145
          %v1157 = vrot.slane %v1155, 1
          %vm1158 = vcmask 1042434
          %v1159 = vsel %vm1158, %v1137, %v1145
          %v1161 = vrot.slane %v1159, 2
          %vm1162 = vcmask 1043459
          %v1163 = vsel %vm1162, %v1137, %v1145
          %v1165 = vrot.slane %v1163, 3
          %v1168 = vsel %vm1149, %v1138, %v1146
          %v1172 = vsel %vm1149, %v1139, %v1147
          %v1174 = vsel %vm1154, %v1139, %v1147
          %v1176 = vrot.slane %v1174, 1
          %v1177 = vsel %vm1158, %v1139, %v1147
          %v1179 = vrot.slane %v1177, 2
          %v1180 = vsel %vm1162, %v1139, %v1147
          %v1182 = vrot.slane %v1180, 3
          %v1185 = vsel %vm1149, %v1140, %v1148
          %v1187 = vunpack.i.l.s16 %v1152
          %v1188 = vunpack.i.h.s16 %v1152
          %v1189 = vunpack.i.l.s16 %v1157
          %v1190 = vunpack.i.h.s16 %v1157
          %v1191 = vunpack.i.l.s16 %v1161
          %v1192 = vunpack.i.h.s16 %v1161
          %v1193 = vunpack.i.l.s16 %v1165
          %v1194 = vunpack.i.h.s16 %v1165
          %v1195 = vunpack.i.l.s16 %v1168
          %v1196 = vunpack.i.l.s16 %v1172
          %v1197 = vunpack.i.h.s16 %v1172
          %v1198 = vunpack.i.l.s16 %v1176
          %v1199 = vunpack.i.h.s16 %v1176
          %v1200 = vunpack.i.l.s16 %v1179
          %v1201 = vunpack.i.h.s16 %v1179
          %v1202 = vunpack.i.l.s16 %v1182
          %v1203 = vunpack.i.h.s16 %v1182
          %v1204 = vunpack.i.l.s16 %v1185
          %v1205 = vld [vmem:[%s1] sm:$0xf]
          %v1206 = vld [vmem:[%s1 + $0x4] sm:$0xf]
          %v1207 = vld [vmem:[%s1 + $0x8] sm:$0xf]
          %v1208 = vld [vmem:[%s1 + $0xc] sm:$0xf]
          %v1209 = vld [vmem:[%s1 + $0x10] sm:$0xf]
          %v1210 = vld [vmem:[%s1 + $0x14] sm:$0xf]
          %v1211 = vpack.i.b16 %v1188, %v1187
          %v1212 = vpack.i.b16 %v1190, %v1189
          %v1213 = vpack.i.b16 %v1192, %v1191
          %v1214 = vpack.i.b16 %v1194, %v1193
          %v1215 = vpack.i.b16 %v1196, %v1195
          %v1216 = vpack.i.b16 %v1198, %v1197
          %v1217 = vpack.i.b16 %v1200, %v1199
          %v1218 = vpack.i.b16 %v1202, %v1201
          %v1219 = vpack.i.b16 %v1204, %v1203
          %1221 = vst [vmem:[#allocation1] ss:$9 sm:$0xff] %v1211
          %s1223 = scalar_lea.vmem [#allocation1], 1
          %1224 = vst [vmem:[%s1223] ss:$9 sm:$0xff] %v1212
          %s1226 = scalar_lea.vmem [#allocation1], 2
          %1227 = vst [vmem:[%s1226] ss:$9 sm:$0xff] %v1213
          %s1229 = scalar_lea.vmem [#allocation1], 3
          %1230 = vst [vmem:[%s1229] ss:$9 sm:$0xff] %v1214
          %s1232 = scalar_lea.vmem [#allocation1], 4
          %1233 = vst [vmem:[%s1232] ss:$9 sm:$0xff] %v1215
          %s1235 = scalar_lea.vmem [#allocation1], 5
          %1236 = vst [vmem:[%s1235] ss:$9 sm:$0xff] %v1216
          %s1238 = scalar_lea.vmem [#allocation1], 6
          %1239 = vst [vmem:[%s1238] ss:$9 sm:$0xff] %v1217
          %s1241 = scalar_lea.vmem [#allocation1], 7
          %1242 = vst [vmem:[%s1241] ss:$9 sm:$0xff] %v1218
          %v1243 = vld [vmem:[#allocation1] sm:$0xff]
          %1245 = vst [vmem:[#allocation1] ss:$9 sm:$0xff] %v1219
          %v1246 = vld [vmem:[#allocation1] sm:$0xff]
          %v1253 = vunpack.c.l.b16 %v1205
          %v1254 = vunpack.c.l.b16 %v1206
          %v1255 = vunpack.c.l.b16 %v1207
          %v1256 = vunpack.c.l.b16 %v1208
          %v1257 = vunpack.c.l.b16 %v1209
          %v1258 = vunpack.c.l.b16 %v1210
          %v1259 = vpack.c.b16 %v1254, %v1253
          %v1260 = vpack.c.b16 %v1256, %v1255
          %v1261 = vpack.c.b16 %v1258, %v1257
          %vm1265 = vcmask 392192
          %v1266 = vsel %vm1265, %v1243, 0
          %v1268 = vsel %vm1265, %v1246, 0
          %1270 = vmatpush.bf16.msra.mxu0 0
          %1271 = vmatpush.bf16.msra.mxu0 0
          %1272 = vmatpush.bf16.msra.mxu0 0
          %1273 = vmatpush.bf16.msra.mxu0 0
          %1274 = vmatpush.bf16.msra.mxu0 0
          %1275 = vmatpush.bf16.msra.mxu0 %v1261
          %1276 = vmatpush.bf16.msra.mxu0 %v1260
          %1277 = vmatpush.bf16.msra.mxu0 %v1259
          %1278 = vmatmul.bf16.gmra.mxu0 %v1266
          %v1279 = vpop.f32.mrf.mxu0
          %v1280 = vadd.f32 0.0, %v1279
          %v1281 = vpop.f32.mrf.mxu0
          %v1282 = vadd.f32 0.0, %v1281
          %1283 = vmatmul.bf16.gmra.mxu0 %v1268
          %v1284 = vpop.f32.mrf.mxu0
          %v1285 = vadd.f32 0.0, %v1284
          %v1286 = vpop.f32.mrf.mxu0
          %1287 = vdwg.mxu0
          %v1291 = vrot.slane %v1280, 1
          %v1292 = vrot.slane %v1280, 2
          %v1293 = vrot.slane %v1280, 3
          %v1294 = vrot.slane %v1280, 4
          %v1295 = vrot.slane %v1280, 5
          %v1296 = vrot.slane %v1280, 6
          %v1297 = vrot.slane %v1280, 7
          %v1298 = vrot.slane %v1282, 1
          %v1299 = vrot.slane %v1282, 2
          %v1300 = vrot.slane %v1282, 3
          %v1301 = vrot.slane %v1282, 4
          %v1302 = vrot.slane %v1282, 5
          %v1303 = vrot.slane %v1282, 6
          %v1304 = vrot.slane %v1282, 7
          %v1305 = vrot.slane %v1285, 1
          %v1321 = vld [vmem:[%s2] sm:$0xff]
          %v1322 = vld [vmem:[%s2 + $0x8] sm:$0x1]
          %v1324 = vrot.slane %v1321, 1
          %v1325 = vrot.slane %v1321, 2
          %v1326 = vrot.slane %v1321, 3
          %v1327 = vrot.slane %v1321, 4
          %v1328 = vrot.slane %v1321, 5
          %v1329 = vrot.slane %v1321, 6
          %v1330 = vrot.slane %v1321, 7
          %v1338 = vadd.f32 %v1280, %v1321
          %v1339 = vadd.f32 %v1291, %v1324
          %v1340 = vadd.f32 %v1292, %v1325
          %v1341 = vadd.f32 %v1293, %v1326
          %v1342 = vadd.f32 %v1294, %v1327
          %v1343 = vadd.f32 %v1295, %v1328
          %v1344 = vadd.f32 %v1296, %v1329
          %v1345 = vadd.f32 %v1297, %v1330
          %v1346 = vadd.f32 %v1282, %v1322
          %v1347 = vadd.f32 %v1298, %v1321
          %v1348 = vadd.f32 %v1299, %v1324
          %v1349 = vadd.f32 %v1300, %v1325
          %v1350 = vadd.f32 %v1301, %v1326
          %v1351 = vadd.f32 %v1302, %v1327
          %v1352 = vadd.f32 %v1303, %v1328
          %v1353 = vadd.f32 %v1304, %v1329
          %v1354 = vadd.f32 %v1285, %v1330
          %v1355 = vadd.f32 %v1305, %v1322
          %1374 = vst [vmem:[#allocation1] ss:$9 sm:$0xff] %v1338
          %s1375 = scalar_lea.vmem [#allocation1], 1
          %1376 = vst [vmem:[%s1375] ss:$9 sm:$0xff] %v1339
          %s1377 = scalar_lea.vmem [#allocation1], 2
          %1378 = vst [vmem:[%s1377] ss:$9 sm:$0xff] %v1340
          %s1379 = scalar_lea.vmem [#allocation1], 3
          %1380 = vst [vmem:[%s1379] ss:$9 sm:$0xff] %v1341
          %s1381 = scalar_lea.vmem [#allocation1], 4
          %1382 = vst [vmem:[%s1381] ss:$9 sm:$0xff] %v1342
          %s1383 = scalar_lea.vmem [#allocation1], 5
          %1384 = vst [vmem:[%s1383] ss:$9 sm:$0xff] %v1343
          %s1385 = scalar_lea.vmem [#allocation1], 6
          %1386 = vst [vmem:[%s1385] ss:$9 sm:$0xff] %v1344
          %s1387 = scalar_lea.vmem [#allocation1], 7
          %1388 = vst [vmem:[%s1387] ss:$9 sm:$0xff] %v1345
          %v1389 = vld [vmem:[#allocation1] sm:$0xff]
          %1390 = vst [vmem:[#allocation1] ss:$9 sm:$0xff] %v1346
          %1391 = vst [vmem:[%s1375] ss:$9 sm:$0xff] %v1347
          %1392 = vst [vmem:[%s1377] ss:$9 sm:$0xff] %v1348
          %1393 = vst [vmem:[%s1379] ss:$9 sm:$0xff] %v1349
          %1394 = vst [vmem:[%s1381] ss:$9 sm:$0xff] %v1350
          %1395 = vst [vmem:[%s1383] ss:$9 sm:$0xff] %v1351
          %1396 = vst [vmem:[%s1385] ss:$9 sm:$0xff] %v1352
          %1397 = vst [vmem:[%s1387] ss:$9 sm:$0xff] %v1353
          %v1398 = vld [vmem:[#allocation1] sm:$0xff]
          %1399 = vst [vmem:[#allocation1] ss:$9 sm:$0xff] %v1354
          %1400 = vst [vmem:[%s1375] ss:$9 sm:$0xff] %v1355
          %v1401 = vld [vmem:[#allocation1] sm:$0xff]
          %vm1405 = vcmask 261120
          %1406 = vst.msk [vmem:[#allocation2] sm:$0xff] %vm1405, %v1389
          %1407 = vst.msk [vmem:[#allocation2 + $0x8] sm:$0xff] %vm1405, %v1398
          %vm1408 = vcmask 254976
          %1409 = vst.msk [vmem:[#allocation2 + $0x10] sm:$0x3] %vm1408, %v1401
        $region124: #{bnt_forward.1} parent=119 // pred_fallthru
          _
        %v1410 = vld [vmem:[#allocation2] sm:$0xff]
        %v1411 = vld [vmem:[#allocation2 + $0x8] sm:$0xff]
        %v1412 = vld [vmem:[#allocation2 + $0x10] sm:$0x3]
        %v1413 = vld [vmem:[%s1058] sm:$0x1]
        %v1414 = vld [vmem:[%s1061] sm:$0x1]
        %vm1415 = vcmask 261120
        %v1416 = vsel %vm1415, %v1410, 0.0
        %1417 = vadd.xlane.f32.xlu0 %v1416
        %v1418 = vpop.xlane.xlu0 %1417
        %v1419 = vsel %vm1415, %v1411, 0.0
        %1420 = vadd.xlane.f32.xlu0 %v1419
        %v1421 = vpop.xlane.xlu0 %1420
        %vm1422 = vcmask 254976
        %v1423 = vsel %vm1422, %v1412, 0.0
        %1424 = vadd.xlane.f32.xlu0 %v1423
        %v1425 = vpop.xlane.xlu0 %1424
        %v1426 = vrcp.pop 32.0
        %v1427 = vmul.f32 32.0, %v1426
        %v1428 = vsub.f32 1.0, %v1427
        %v1429 = vmul.f32 %v1426, %v1428
        %v1430 = vadd.f32 %v1426, %v1429
        %vm1431 = vweird.f32 %v1426
        %v1432 = vsel %vm1431, %v1426, %v1430
        %v1433 = vmul.f32 %v1418, %v1432
        %v1434 = vmul.f32 %v1421, %v1432
        %v1435 = vmul.f32 %v1425, %v1432
        %v1436 = vsub.f32 %v1410, %v1433
        %v1437 = vsub.f32 %v1411, %v1434
        %v1438 = vsub.f32 %v1412, %v1435
        %v1439 = vmul.f32 %v1436, %v1436
        %v1440 = vmul.f32 %v1437, %v1437
        %v1441 = vmul.f32 %v1438, %v1438
        %v1442 = vsel %vm1415, %v1439, 0.0
        %1443 = vadd.xlane.f32.xlu0 %v1442
        %v1444 = vpop.xlane.xlu0 %1443
        %v1445 = vsel %vm1415, %v1440, 0.0
        %1446 = vadd.xlane.f32.xlu0 %v1445
        %v1447 = vpop.xlane.xlu0 %1446
        %v1448 = vsel %vm1422, %v1441, 0.0
        %1449 = vadd.xlane.f32.xlu0 %v1448
        %v1450 = vpop.xlane.xlu0 %1449
        %v1451 = vmul.f32 %v1444, %v1432
        %v1452 = vmul.f32 %v1447, %v1432
        %v1453 = vmul.f32 %v1450, %v1432
        %v1454 = vadd.f32 %v1451, 1e-12
        %v1455 = vadd.f32 %v1452, 1e-12
        %v1456 = vadd.f32 %v1453, 1e-12
        %v1457 = vrsqrt.pop %v1454
        %v1458 = vmul.f32 %v1457, %v1454
        %v1459 = vmul.f32 %v1458, %v1457
        %v1460 = vmul.f32 0.5, %v1459
        %v1461 = vsub.f32 1.5, %v1460
        %v1462 = vmul.f32 %v1457, %v1461
        %vm1463 = vweird.f32 %v1454
        %vm1464 = vweird.f32 %v1457
        %vm1465 = vmor %vm1463, %vm1464
        %v1466 = vsel %vm1465, %v1457, %v1462
        %v1467 = vrsqrt.pop %v1455
        %v1468 = vmul.f32 %v1467, %v1455
        %v1469 = vmul.f32 %v1468, %v1467
        %v1470 = vmul.f32 0.5, %v1469
        %v1471 = vsub.f32 1.5, %v1470
        %v1472 = vmul.f32 %v1467, %v1471
        %vm1473 = vweird.f32 %v1455
        %vm1474 = vweird.f32 %v1467
        %vm1475 = vmor %vm1473, %vm1474
        %v1476 = vsel %vm1475, %v1467, %v1472
        %v1477 = vrsqrt.pop %v1456
        %v1478 = vmul.f32 %v1477, %v1456
        %v1479 = vmul.f32 %v1478, %v1477
        %v1480 = vmul.f32 0.5, %v1479
        %v1481 = vsub.f32 1.5, %v1480
        %v1482 = vmul.f32 %v1477, %v1481
        %vm1483 = vweird.f32 %v1456
        %vm1484 = vweird.f32 %v1477
        %vm1485 = vmor %vm1483, %vm1484
        %v1486 = vsel %vm1485, %v1477, %v1482
        %v1487 = vmul.f32 %v1436, %v1466
        %v1488 = vmul.f32 %v1437, %v1476
        %v1489 = vmul.f32 %v1438, %v1486
        %v1491 = vperm.slane %v1413, 0
        %v1493 = vmul.f32 %v1487, %v1491
        %v1494 = vmul.f32 %v1488, %v1491
        %v1495 = vmul.f32 %v1489, %v1491
        %v1497 = vperm.slane %v1414, 0
        %v1499 = vadd.f32 %v1493, %v1497
        %v1500 = vadd.f32 %v1494, %v1497
        %v1501 = vadd.f32 %v1495, %v1497
        %v1502 = vld [vmem:[%s1066] sm:$0xf]
        %v1503 = vld [vmem:[%s1066 + $0x4] sm:$0xf]
        %v1504 = vld [vmem:[%s1066 + $0x8] sm:$0xf]
        %v1505 = vld [vmem:[%s1066 + $0xc] sm:$0xf]
        %v1506 = vpack.c.bf16 %v1500, %v1499
        %v1507 = vpack.c.bf16 %v1501, %v1501
        %v1508 = vld [vmem:[%s1069] sm:$0x1]
        %v1510 = vperm.slane %v1508, 0
        %v1516 = vunpack.c.l.b16 %v1502
        %v1517 = vunpack.c.l.b16 %v1503
        %v1518 = vunpack.c.l.b16 %v1504
        %v1519 = vunpack.c.l.b16 %v1505
        %v1520 = vpack.c.b16 %v1517, %v1516
        %v1521 = vpack.c.b16 %v1519, %v1518
        %v1525 = vsel %vm1415, %v1506, 0
        %v1528 = vsel %vm1415, %v1507, 0
        %1530 = vmatpush.bf16.msra.mxu0 0
        %1531 = vmatpush.bf16.msra.mxu0 0
        %1532 = vmatpush.bf16.msra.mxu0 0
        %1533 = vmatpush.bf16.msra.mxu0 0
        %1534 = vmatpush.bf16.msra.mxu0 0
        %1535 = vmatpush.bf16.msra.mxu0 0
        %1536 = vmatpush.bf16.msra.mxu0 %v1521
        %1537 = vmatpush.bf16.msra.mxu0 %v1520
        %1538 = vmatmul.bf16.gmra.mxu0 %v1525
        %v1539 = vpop.f32.mrf.mxu0
        %v1540 = vadd.f32 %v1510, %v1539
        %v1541 = vpop.f32.mrf.mxu0
        %v1542 = vadd.f32 %v1510, %v1541
        %1543 = vmatmul.bf16.gmra.mxu0 %v1528
        %v1544 = vpop.f32.mrf.mxu0
        %v1545 = vadd.f32 %v1510, %v1544
        %v1546 = vpop.f32.mrf.mxu0
        %1547 = vdwg.mxu0
        %v1551 = vrot.slane %v1540, 1
        %v1552 = vrot.slane %v1540, 2
        %v1553 = vrot.slane %v1540, 3
        %v1554 = vrot.slane %v1540, 4
        %v1555 = vrot.slane %v1540, 5
        %v1556 = vrot.slane %v1540, 6
        %v1557 = vrot.slane %v1540, 7
        %v1558 = vrot.slane %v1542, 1
        %v1559 = vrot.slane %v1542, 2
        %v1560 = vrot.slane %v1542, 3
        %v1561 = vrot.slane %v1542, 4
        %v1562 = vrot.slane %v1542, 5
        %v1563 = vrot.slane %v1542, 6
        %v1564 = vrot.slane %v1542, 7
        %v1565 = vrot.slane %v1545, 1
        %1566 = vst [vmem:[#allocation1] ss:$9 sm:$0xff] %v1540
        %s1567 = scalar_lea.vmem [#allocation1], 1
        %1568 = vst [vmem:[%s1567] ss:$9 sm:$0xff] %v1551
        %s1569 = scalar_lea.vmem [#allocation1], 2
        %1570 = vst [vmem:[%s1569] ss:$9 sm:$0xff] %v1552
        %s1571 = scalar_lea.vmem [#allocation1], 3
        %1572 = vst [vmem:[%s1571] ss:$9 sm:$0xff] %v1553
        %s1573 = scalar_lea.vmem [#allocation1], 4
        %1574 = vst [vmem:[%s1573] ss:$9 sm:$0xff] %v1554
        %s1575 = scalar_lea.vmem [#allocation1], 5
        %1576 = vst [vmem:[%s1575] ss:$9 sm:$0xff] %v1555
        %s1577 = scalar_lea.vmem [#allocation1], 6
        %1578 = vst [vmem:[%s1577] ss:$9 sm:$0xff] %v1556
        %s1579 = scalar_lea.vmem [#allocation1], 7
        %1580 = vst [vmem:[%s1579] ss:$9 sm:$0xff] %v1557
        %v1581 = vld [vmem:[#allocation1] sm:$0xff]
        %1582 = vst [vmem:[#allocation1] ss:$9 sm:$0xff] %v1542
        %v1583 = vld [vmem:[#allocation1] sm:$0xff]
        %1584 = vst [vmem:[#allocation1] ss:$9 sm:$0xff] %v1558
        %1585 = vst [vmem:[%s1567] ss:$9 sm:$0xff] %v1559
        %1586 = vst [vmem:[%s1569] ss:$9 sm:$0xff] %v1560
        %1587 = vst [vmem:[%s1571] ss:$9 sm:$0xff] %v1561
        %1588 = vst [vmem:[%s1573] ss:$9 sm:$0xff] %v1562
        %1589 = vst [vmem:[%s1575] ss:$9 sm:$0xff] %v1563
        %1590 = vst [vmem:[%s1577] ss:$9 sm:$0xff] %v1564
        %1591 = vst [vmem:[%s1579] ss:$9 sm:$0xff] %v1545
        %v1592 = vld [vmem:[#allocation1] sm:$0xff]
        %1593 = vst [vmem:[#allocation1] ss:$9 sm:$0xff] %v1565
        %v1594 = vld [vmem:[#allocation1] sm:$0xff]
        %1599 = vxpose.xlu0.b32.start [1/16] %v1581, 128
        %1600 = vxpose.xlu0.b32.cont [2/16] %v1583, 128
        %1601 = vxpose.xlu0.b32.cont [3/16] 0.0, 128
        %1602 = vxpose.xlu0.b32.cont [4/16] 0.0, 128
        %1603 = vxpose.xlu0.b32.cont [5/16] 0.0, 128
        %1604 = vxpose.xlu0.b32.cont [6/16] 0.0, 128
        %1605 = vxpose.xlu0.b32.cont [7/16] 0.0, 128
        %1606 = vxpose.xlu0.b32.cont [8/16] 0.0, 128
        %1607 = vxpose.xlu0.b32.cont [9/16] 0.0, 128
        %1608 = vxpose.xlu0.b32.cont [10/16] 0.0, 128
        %1609 = vxpose.xlu0.b32.cont [11/16] 0.0, 128
        %1610 = vxpose.xlu0.b32.cont [12/16] 0.0, 128
        %1611 = vxpose.xlu0.b32.cont [13/16] 0.0, 128
        %1612 = vxpose.xlu0.b32.cont [14/16] 0.0, 128
        %1613 = vxpose.xlu0.b32.cont [15/16] 0.0, 128
        %1614 = vxpose.xlu0.b32.end [16/16] 0.0, 128
        %v1615 = vpop.trf.xlu0
        %v1616 = vpop.trf.xlu0
        %v1617 = vpop.trf.xlu0
        %v1618 = vpop.trf.xlu0
        %v1619 = vpop.trf.xlu0
        %v1620 = vpop.trf.xlu0
        %v1621 = vpop.trf.xlu0
        %v1622 = vpop.trf.xlu0
        %v1623 = vpop.trf.xlu0
        %v1624 = vpop.trf.xlu0
        %v1625 = vpop.trf.xlu0
        %v1626 = vpop.trf.xlu0
        %v1627 = vpop.trf.xlu0
        %v1628 = vpop.trf.xlu0
        %v1629 = vpop.trf.xlu0
        %v1630 = vpop.trf.xlu0
        %1631 = vxpose.xlu0.b32.start [1/16] %v1592, 128
        %1632 = vxpose.xlu0.b32.cont [2/16] %v1594, 128
        %1633 = vxpose.xlu0.b32.cont [3/16] 0.0, 128
        %1634 = vxpose.xlu0.b32.cont [4/16] 0.0, 128
        %1635 = vxpose.xlu0.b32.cont [5/16] 0.0, 128
        %1636 = vxpose.xlu0.b32.cont [6/16] 0.0, 128
        %1637 = vxpose.xlu0.b32.cont [7/16] 0.0, 128
        %1638 = vxpose.xlu0.b32.cont [8/16] 0.0, 128
        %1639 = vxpose.xlu0.b32.cont [9/16] 0.0, 128
        %1640 = vxpose.xlu0.b32.cont [10/16] 0.0, 128
        %1641 = vxpose.xlu0.b32.cont [11/16] 0.0, 128
        %1642 = vxpose.xlu0.b32.cont [12/16] 0.0, 128
        %1643 = vxpose.xlu0.b32.cont [13/16] 0.0, 128
        %1644 = vxpose.xlu0.b32.cont [14/16] 0.0, 128
        %1645 = vxpose.xlu0.b32.cont [15/16] 0.0, 128
        %1646 = vxpose.xlu0.b32.end [16/16] 0.0, 128
        %v1647 = vpop.trf.xlu0
        %v1648 = vpop.trf.xlu0
        %v1649 = vpop.trf.xlu0
        %v1650 = vpop.trf.xlu0
        %v1651 = vpop.trf.xlu0
        %v1652 = vpop.trf.xlu0
        %v1653 = vpop.trf.xlu0
        %v1654 = vpop.trf.xlu0
        %v1655 = vpop.trf.xlu0
        %v1656 = vpop.trf.xlu0
        %v1657 = vpop.trf.xlu0
        %v1658 = vpop.trf.xlu0
        %v1659 = vpop.trf.xlu0
        %v1660 = vpop.trf.xlu0
        %v1661 = vpop.trf.xlu0
        %v1662 = vpop.trf.xlu0
        %v1663 = vpack.c.bf16 %v1615, %v1615
        %v1664 = vpack.c.bf16 %v1647, %v1647
        %1665 = vst [vmem:[#allocation1] ss:$9 sm:$0xff] %v1540
        %s1666 = scalar_lea.vmem [#allocation1], 1
        %1667 = vst [vmem:[%s1666] ss:$9 sm:$0xff] %v1551
        %s1668 = scalar_lea.vmem [#allocation1], 2
        %1669 = vst [vmem:[%s1668] ss:$9 sm:$0xff] %v1552
        %s1670 = scalar_lea.vmem [#allocation1], 3
        %1671 = vst [vmem:[%s1670] ss:$9 sm:$0xff] %v1553
        %s1672 = scalar_lea.vmem [#allocation1], 4
        %1673 = vst [vmem:[%s1672] ss:$9 sm:$0xff] %v1554
        %s1674 = scalar_lea.vmem [#allocation1], 5
        %1675 = vst [vmem:[%s1674] ss:$9 sm:$0xff] %v1555
        %s1676 = scalar_lea.vmem [#allocation1], 6
        %1677 = vst [vmem:[%s1676] ss:$9 sm:$0xff] %v1556
        %s1678 = scalar_lea.vmem [#allocation1], 7
        %1679 = vst [vmem:[%s1678] ss:$9 sm:$0xff] %v1557
        %v1680 = vld [vmem:[#allocation1] sm:$0xff]
        %1681 = vst [vmem:[#allocation1] ss:$9 sm:$0xff] %v1542
        %v1682 = vld [vmem:[#allocation1] sm:$0xff]
        %1683 = vst [vmem:[#allocation1] ss:$9 sm:$0xff] %v1558
        %1684 = vst [vmem:[%s1666] ss:$9 sm:$0xff] %v1559
        %1685 = vst [vmem:[%s1668] ss:$9 sm:$0xff] %v1560
        %1686 = vst [vmem:[%s1670] ss:$9 sm:$0xff] %v1561
        %1687 = vst [vmem:[%s1672] ss:$9 sm:$0xff] %v1562
        %1688 = vst [vmem:[%s1674] ss:$9 sm:$0xff] %v1563
        %1689 = vst [vmem:[%s1676] ss:$9 sm:$0xff] %v1564
        %1690 = vst [vmem:[%s1678] ss:$9 sm:$0xff] %v1545
        %v1691 = vld [vmem:[#allocation1] sm:$0xff]
        %1692 = vst [vmem:[#allocation1] ss:$9 sm:$0xff] %v1565
        %v1693 = vld [vmem:[#allocation1] sm:$0xff]
        %v1698 = vpack.c.bf16 %v1680, %v1680
        %v1699 = vpack.c.bf16 %v1682, %v1682
        %v1700 = vpack.c.bf16 %v1691, %v1691
        %v1701 = vpack.c.bf16 %v1693, %v1693
        %v1704 = vunpack.c.l.b16 %v1698
        %v1705 = vunpack.c.l.b16 %v1699
        %v1706 = vpack.c.b16 %v1705, %v1704
        %1707 = vrot.lane.b32.xlu0 %v1706, 96
        %v1708 = vpop.permute.xlu0 %1707
        %vm1709 = vcmask 72704
        %v1711 = vsel %vm1709, %v1663, 0
        %vm1713 = vcmask 1043456
        %vm1714 = vcmask 1044480
        %v1715 = vsel %vm1713, 4294967295, 65535
        %v1716 = vsel %vm1714, %v1715, 0
        %v1718 = vand.u32 %v1708, %v1716
        %1720 = vmatpush.bf16.msra.mxu0 0
        %1721 = vmatpush.bf16.msra.mxu0 0
        %1722 = vmatpush.bf16.msra.mxu0 0
        %1723 = vmatpush.bf16.msra.mxu0 0
        %1724 = vmatpush.bf16.msra.mxu0 0
        %1725 = vmatpush.bf16.msra.mxu0 0
        %1726 = vmatpush.bf16.msra.mxu0 0
        %1727 = vmatpush.bf16.msra.mxu0 %v1718
        %1728 = vmatmul.bf16.gmra.mxu0 %v1711
        %v1729 = vpop.f32.mrf.mxu0
        %v1730 = vadd.f32 0.0, %v1729
        %v1731 = vpop.f32.mrf.mxu0
        %1732 = vdwg.mxu0
        %v1735 = vunpack.c.l.b16 %v1700
        %v1736 = vunpack.c.l.b16 %v1701
        %v1737 = vpack.c.b16 %v1736, %v1735
        %1738 = vrot.lane.b32.xlu0 %v1737, 96
        %v1739 = vpop.permute.xlu0 %1738
        %v1741 = vsel %vm1709, %v1664, 0
        %v1744 = vand.u32 %v1739, %v1716
        %1746 = vmatpush.bf16.msra.mxu0 0
        %1747 = vmatpush.bf16.msra.mxu0 0
        %1748 = vmatpush.bf16.msra.mxu0 0
        %1749 = vmatpush.bf16.msra.mxu0 0
        %1750 = vmatpush.bf16.msra.mxu0 0
        %1751 = vmatpush.bf16.msra.mxu0 0
        %1752 = vmatpush.bf16.msra.mxu0 0
        %1753 = vmatpush.bf16.msra.mxu0 %v1744
        %1754 = vmatmul.bf16.gmra.mxu0 %v1741
        %v1755 = vpop.f32.mrf.mxu0
        %v1756 = vadd.f32 0.0, %v1755
        %v1757 = vpop.f32.mrf.mxu0
        %1758 = vdwg.mxu0
        %v1759 = vmul.f32 %v1730, 0.35355338
        %v1760 = vmul.f32 %v1756, 0.35355338
        %vm1761 = vcmask 64512
        %v1762 = vsel %vm1761, %v1759, -inf
        %1763 = vmax.xlane.f32.xlu0 %v1762
        %v1764 = vpop.xlane.xlu0 %1763
        %v1765 = vsel %vm1761, %v1760, -inf
        %1766 = vmax.xlane.f32.xlu0 %v1765
        %v1767 = vpop.xlane.xlu0 %1766
        %v1768 = vsub.f32 %v1759, %v1764
        %v1769 = vsub.f32 %v1760, %v1767
        %v1770 = vmul.f32 %v1768, 1.442695
        %v1771 = vpow.pop %v1770
        %v1772 = vmul.f32 %v1769, 1.442695
        %v1773 = vpow.pop %v1772
        %v1774 = vsel %vm1761, %v1771, 0.0
        %1775 = vadd.xlane.f32.xlu0 %v1774
        %v1776 = vpop.xlane.xlu0 %1775
        %v1777 = vsel %vm1761, %v1773, 0.0
        %1778 = vadd.xlane.f32.xlu0 %v1777
        %v1779 = vpop.xlane.xlu0 %1778
        %v1780 = vrcp.pop %v1776
        %v1781 = vrcp.pop %v1779
        %v1782 = vmul.f32 %v1771, %v1780
        %v1783 = vmul.f32 %v1773, %v1781
        %1784 = vst [vmem:[#allocation1] ss:$9 sm:$0xff] %v1540
        %s1785 = scalar_lea.vmem [#allocation1], 1
        %1786 = vst [vmem:[%s1785] ss:$9 sm:$0xff] %v1551
        %s1787 = scalar_lea.vmem [#allocation1], 2
        %1788 = vst [vmem:[%s1787] ss:$9 sm:$0xff] %v1552
        %s1789 = scalar_lea.vmem [#allocation1], 3
        %1790 = vst [vmem:[%s1789] ss:$9 sm:$0xff] %v1553
        %s1791 = scalar_lea.vmem [#allocation1], 4
        %1792 = vst [vmem:[%s1791] ss:$9 sm:$0xff] %v1554
        %s1793 = scalar_lea.vmem [#allocation1], 5
        %1794 = vst [vmem:[%s1793] ss:$9 sm:$0xff] %v1555
        %s1795 = scalar_lea.vmem [#allocation1], 6
        %1796 = vst [vmem:[%s1795] ss:$9 sm:$0xff] %v1556
        %s1797 = scalar_lea.vmem [#allocation1], 7
        %1798 = vst [vmem:[%s1797] ss:$9 sm:$0xff] %v1557
        %v1799 = vld [vmem:[#allocation1] sm:$0xff]
        %1800 = vst [vmem:[#allocation1] ss:$9 sm:$0xff] %v1542
        %v1801 = vld [vmem:[#allocation1] sm:$0xff]
        %1802 = vst [vmem:[#allocation1] ss:$9 sm:$0xff] %v1558
        %1803 = vst [vmem:[%s1785] ss:$9 sm:$0xff] %v1559
        %1804 = vst [vmem:[%s1787] ss:$9 sm:$0xff] %v1560
        %1805 = vst [vmem:[%s1789] ss:$9 sm:$0xff] %v1561
        %1806 = vst [vmem:[%s1791] ss:$9 sm:$0xff] %v1562
        %1807 = vst [vmem:[%s1793] ss:$9 sm:$0xff] %v1563
        %1808 = vst [vmem:[%s1795] ss:$9 sm:$0xff] %v1564
        %1809 = vst [vmem:[%s1797] ss:$9 sm:$0xff] %v1545
        %v1810 = vld [vmem:[#allocation1] sm:$0xff]
        %1811 = vst [vmem:[#allocation1] ss:$9 sm:$0xff] %v1565
        %v1812 = vld [vmem:[#allocation1] sm:$0xff]
        %v1817 = vpack.c.bf16 %v1799, %v1799
        %v1818 = vpack.c.bf16 %v1801, %v1801
        %v1819 = vpack.c.bf16 %v1810, %v1810
        %v1820 = vpack.c.bf16 %v1812, %v1812
        %v1821 = vpack.c.bf16 %v1782, %v1782
        %v1822 = vpack.c.bf16 %v1783, %v1783
        %v1825 = vunpack.c.l.b16 %v1817
        %v1826 = vunpack.c.l.b16 %v1818
        %v1827 = vpack.c.b16 %v1826, %v1825
        %1828 = vrot.lane.b32.xlu0 %v1827, 64
        %v1829 = vpop.permute.xlu0 %1828
        %v1831 = vsel %vm1761, %v1829, 0
        %v1834 = vsel %vm1713, %v1821, 0
        %1836 = vmatpush.bf16.msra.mxu0 0
        %1837 = vmatpush.bf16.msra.mxu0 0
        %1838 = vmatpush.bf16.msra.mxu0 0
        %1839 = vmatpush.bf16.msra.mxu0 0
        %1840 = vmatpush.bf16.msra.mxu0 0
        %1841 = vmatpush.bf16.msra.mxu0 0
        %1842 = vmatpush.bf16.msra.mxu0 0
        %1843 = vmatpush.bf16.msra.mxu0 %v1834
        %1844 = vmatmul.bf16.gmra.mxu0 %v1831
        %v1845 = vpop.f32.mrf.mxu0
        %v1846 = vadd.f32 0.0, %v1845
        %v1847 = vpop.f32.mrf.mxu0
        %v1848 = vadd.f32 0.0, %v1847
        %1849 = vdwg.mxu0
        %v1852 = vunpack.c.l.b16 %v1819
        %v1853 = vunpack.c.l.b16 %v1820
        %v1854 = vpack.c.b16 %v1853, %v1852
        %1855 = vrot.lane.b32.xlu0 %v1854, 64
        %v1856 = vpop.permute.xlu0 %1855
        %v1858 = vsel %vm1761, %v1856, 0
        %v1861 = vsel %vm1713, %v1822, 0
        %1863 = vmatpush.bf16.msra.mxu0 0
        %1864 = vmatpush.bf16.msra.mxu0 0
        %1865 = vmatpush.bf16.msra.mxu0 0
        %1866 = vmatpush.bf16.msra.mxu0 0
        %1867 = vmatpush.bf16.msra.mxu0 0
        %1868 = vmatpush.bf16.msra.mxu0 0
        %1869 = vmatpush.bf16.msra.mxu0 0
        %1870 = vmatpush.bf16.msra.mxu0 %v1861
        %1871 = vmatmul.bf16.gmra.mxu0 %v1858
        %v1872 = vpop.f32.mrf.mxu0
        %v1873 = vadd.f32 0.0, %v1872
        %v1874 = vpop.f32.mrf.mxu0
        %v1875 = vadd.f32 0.0, %v1874
        %1876 = vdwg.mxu0
        %1877 = vst.msk [vmem:[#allocation3] sm:$0xff] %vm1761, %v1846
        %vm1878 = vcmask 57344
        %1879 = vst.msk [vmem:[#allocation3 + $0x8] sm:$0x1] %vm1878, %v1848
        %1880 = vst.msk [vmem:[#allocation3 + $0x10] sm:$0xff] %vm1761, %v1873
        %1881 = vst.msk [vmem:[#allocation3 + $0x18] sm:$0x1] %vm1878, %v1875
        %v1882 = vpack.c.bf16 %v1616, %v1616
        %v1883 = vpack.c.bf16 %v1648, %v1648
        %1884 = vst [vmem:[#allocation1] ss:$9 sm:$0xff] %v1540
        %s1885 = scalar_lea.vmem [#allocation1], 1
        %1886 = vst [vmem:[%s1885] ss:$9 sm:$0xff] %v1551
        %s1887 = scalar_lea.vmem [#allocation1], 2
        %1888 = vst [vmem:[%s1887] ss:$9 sm:$0xff] %v1552
        %s1889 = scalar_lea.vmem [#allocation1], 3
        %1890 = vst [vmem:[%s1889] ss:$9 sm:$0xff] %v1553
        %s1891 = scalar_lea.vmem [#allocation1], 4
        %1892 = vst [vmem:[%s1891] ss:$9 sm:$0xff] %v1554
        %s1893 = scalar_lea.vmem [#allocation1], 5
        %1894 = vst [vmem:[%s1893] ss:$9 sm:$0xff] %v1555
        %s1895 = scalar_lea.vmem [#allocation1], 6
        %1896 = vst [vmem:[%s1895] ss:$9 sm:$0xff] %v1556
        %s1897 = scalar_lea.vmem [#allocation1], 7
        %1898 = vst [vmem:[%s1897] ss:$9 sm:$0xff] %v1557
        %v1899 = vld [vmem:[#allocation1] sm:$0xff]
        %1900 = vst [vmem:[#allocation1] ss:$9 sm:$0xff] %v1542
        %v1901 = vld [vmem:[#allocation1] sm:$0xff]
        %1902 = vst [vmem:[#allocation1] ss:$9 sm:$0xff] %v1558
        %1903 = vst [vmem:[%s1885] ss:$9 sm:$0xff] %v1559
        %1904 = vst [vmem:[%s1887] ss:$9 sm:$0xff] %v1560
        %1905 = vst [vmem:[%s1889] ss:$9 sm:$0xff] %v1561
        %1906 = vst [vmem:[%s1891] ss:$9 sm:$0xff] %v1562
        %1907 = vst [vmem:[%s1893] ss:$9 sm:$0xff] %v1563
        %1908 = vst [vmem:[%s1895] ss:$9 sm:$0xff] %v1564
        %1909 = vst [vmem:[%s1897] ss:$9 sm:$0xff] %v1545
        %v1910 = vld [vmem:[#allocation1] sm:$0xff]
        %1911 = vst [vmem:[#allocation1] ss:$9 sm:$0xff] %v1565
        %v1912 = vld [vmem:[#allocation1] sm:$0xff]
        %v1917 = vpack.c.bf16 %v1899, %v1899
        %v1918 = vpack.c.bf16 %v1901, %v1901
        %v1919 = vpack.c.bf16 %v1910, %v1910
        %v1920 = vpack.c.bf16 %v1912, %v1912
        %v1923 = vunpack.c.l.b16 %v1917
        %v1924 = vunpack.c.l.b16 %v1918
        %v1925 = vpack.c.b16 %v1924, %v1923
        %1926 = vrot.lane.b32.xlu0 %v1925, 88
        %v1927 = vpop.permute.xlu0 %1926
        %v1929 = vsel %vm1709, %v1882, 0
        %v1932 = vand.u32 %v1927, %v1716
        %1934 = vmatpush.bf16.msra.mxu0 0
        %1935 = vmatpush.bf16.msra.mxu0 0
        %1936 = vmatpush.bf16.msra.mxu0 0
        %1937 = vmatpush.bf16.msra.mxu0 0
        %1938 = vmatpush.bf16.msra.mxu0 0
        %1939 = vmatpush.bf16.msra.mxu0 0
        %1940 = vmatpush.bf16.msra.mxu0 0
        %1941 = vmatpush.bf16.msra.mxu0 %v1932
        %1942 = vmatmul.bf16.gmra.mxu0 %v1929
        %v1943 = vpop.f32.mrf.mxu0
        %v1944 = vadd.f32 0.0, %v1943
        %v1945 = vpop.f32.mrf.mxu0
        %1946 = vdwg.mxu0
        %v1949 = vunpack.c.l.b16 %v1919
        %v1950 = vunpack.c.l.b16 %v1920
        %v1951 = vpack.c.b16 %v1950, %v1949
        %1952 = vrot.lane.b32.xlu0 %v1951, 88
        %v1953 = vpop.permute.xlu0 %1952
        %v1955 = vsel %vm1709, %v1883, 0
        %v1958 = vand.u32 %v1953, %v1716
        %1960 = vmatpush.bf16.msra.mxu0 0
        %1961 = vmatpush.bf16.msra.mxu0 0
        %1962 = vmatpush.bf16.msra.mxu0 0
        %1963 = vmatpush.bf16.msra.mxu0 0
        %1964 = vmatpush.bf16.msra.mxu0 0
        %1965 = vmatpush.bf16.msra.mxu0 0
        %1966 = vmatpush.bf16.msra.mxu0 0
        %1967 = vmatpush.bf16.msra.mxu0 %v1958
        %1968 = vmatmul.bf16.gmra.mxu0 %v1955
        %v1969 = vpop.f32.mrf.mxu0
        %v1970 = vadd.f32 0.0, %v1969
        %v1971 = vpop.f32.mrf.mxu0
        %1972 = vdwg.mxu0
        %v1973 = vmul.f32 %v1944, 0.35355338
        %v1974 = vmul.f32 %v1970, 0.35355338
        %v1975 = vsel %vm1761, %v1973, -inf
        %1976 = vmax.xlane.f32.xlu0 %v1975
        %v1977 = vpop.xlane.xlu0 %1976
        %v1978 = vsel %vm1761, %v1974, -inf
        %1979 = vmax.xlane.f32.xlu0 %v1978
        %v1980 = vpop.xlane.xlu0 %1979
        %v1981 = vsub.f32 %v1973, %v1977
        %v1982 = vsub.f32 %v1974, %v1980
        %v1983 = vmul.f32 %v1981, 1.442695
        %v1984 = vpow.pop %v1983
        %v1985 = vmul.f32 %v1982, 1.442695
        %v1986 = vpow.pop %v1985
        %v1987 = vsel %vm1761, %v1984, 0.0
        %1988 = vadd.xlane.f32.xlu0 %v1987
        %v1989 = vpop.xlane.xlu0 %1988
        %v1990 = vsel %vm1761, %v1986, 0.0
        %1991 = vadd.xlane.f32.xlu0 %v1990
        %v1992 = vpop.xlane.xlu0 %1991
        %v1993 = vrcp.pop %v1989
        %v1994 = vrcp.pop %v1992
        %v1995 = vmul.f32 %v1984, %v1993
        %v1996 = vmul.f32 %v1986, %v1994
        %1997 = vst [vmem:[#allocation1] ss:$9 sm:$0xff] %v1540
        %s1998 = scalar_lea.vmem [#allocation1], 1
        %1999 = vst [vmem:[%s1998] ss:$9 sm:$0xff] %v1551
        %s2000 = scalar_lea.vmem [#allocation1], 2
        %2001 = vst [vmem:[%s2000] ss:$9 sm:$0xff] %v1552
        %s2002 = scalar_lea.vmem [#allocation1], 3
        %2003 = vst [vmem:[%s2002] ss:$9 sm:$0xff] %v1553
        %s2004 = scalar_lea.vmem [#allocation1], 4
        %2005 = vst [vmem:[%s2004] ss:$9 sm:$0xff] %v1554
        %s2006 = scalar_lea.vmem [#allocation1], 5
        %2007 = vst [vmem:[%s2006] ss:$9 sm:$0xff] %v1555
        %s2008 = scalar_lea.vmem [#allocation1], 6
        %2009 = vst [vmem:[%s2008] ss:$9 sm:$0xff] %v1556
        %s2010 = scalar_lea.vmem [#allocation1], 7
        %2011 = vst [vmem:[%s2010] ss:$9 sm:$0xff] %v1557
        %v2012 = vld [vmem:[#allocation1] sm:$0xff]
        %2013 = vst [vmem:[#allocation1] ss:$9 sm:$0xff] %v1542
        %v2014 = vld [vmem:[#allocation1] sm:$0xff]
        %2015 = vst [vmem:[#allocation1] ss:$9 sm:$0xff] %v1558
        %2016 = vst [vmem:[%s1998] ss:$9 sm:$0xff] %v1559
        %2017 = vst [vmem:[%s2000] ss:$9 sm:$0xff] %v1560
        %2018 = vst [vmem:[%s2002] ss:$9 sm:$0xff] %v1561
        %2019 = vst [vmem:[%s2004] ss:$9 sm:$0xff] %v1562
        %2020 = vst [vmem:[%s2006] ss:$9 sm:$0xff] %v1563
        %2021 = vst [vmem:[%s2008] ss:$9 sm:$0xff] %v1564
        %2022 = vst [vmem:[%s2010] ss:$9 sm:$0xff] %v1545
        %v2023 = vld [vmem:[#allocation1] sm:$0xff]
        %2024 = vst [vmem:[#allocation1] ss:$9 sm:$0xff] %v1565
        %v2025 = vld [vmem:[#allocation1] sm:$0xff]
        %v2030 = vpack.c.bf16 %v2012, %v2012
        %v2031 = vpack.c.bf16 %v2014, %v2014
        %v2032 = vpack.c.bf16 %v2023, %v2023
        %v2033 = vpack.c.bf16 %v2025, %v2025
        %v2034 = vpack.c.bf16 %v1995, %v1995
        %v2035 = vpack.c.bf16 %v1996, %v1996
        %v2038 = vunpack.c.l.b16 %v2030
        %v2039 = vunpack.c.l.b16 %v2031
        %v2040 = vpack.c.b16 %v2039, %v2038
        %2041 = vrot.lane.b32.xlu0 %v2040, 56
        %v2042 = vpop.permute.xlu0 %2041
        %v2044 = vsel %vm1761, %v2042, 0
        %v2047 = vsel %vm1713, %v2034, 0
        %2049 = vmatpush.bf16.msra.mxu0 0
        %2050 = vmatpush.bf16.msra.mxu0 0
        %2051 = vmatpush.bf16.msra.mxu0 0
        %2052 = vmatpush.bf16.msra.mxu0 0
        %2053 = vmatpush.bf16.msra.mxu0 0
        %2054 = vmatpush.bf16.msra.mxu0 0
        %2055 = vmatpush.bf16.msra.mxu0 0
        %2056 = vmatpush.bf16.msra.mxu0 %v2047
        %2057 = vmatmul.bf16.gmra.mxu0 %v2044
        %v2058 = vpop.f32.mrf.mxu0
        %v2059 = vadd.f32 0.0, %v2058
        %v2060 = vpop.f32.mrf.mxu0
        %v2061 = vadd.f32 0.0, %v2060
        %2062 = vdwg.mxu0
        %v2065 = vunpack.c.l.b16 %v2032
        %v2066 = vunpack.c.l.b16 %v2033
        %v2067 = vpack.c.b16 %v2066, %v2065
        %2068 = vrot.lane.b32.xlu0 %v2067, 56
        %v2069 = vpop.permute.xlu0 %2068
        %v2071 = vsel %vm1761, %v2069, 0
        %v2074 = vsel %vm1713, %v2035, 0
        %2076 = vmatpush.bf16.msra.mxu0 0
        %2077 = vmatpush.bf16.msra.mxu0 0
        %2078 = vmatpush.bf16.msra.mxu0 0
        %2079 = vmatpush.bf16.msra.mxu0 0
        %2080 = vmatpush.bf16.msra.mxu0 0
        %2081 = vmatpush.bf16.msra.mxu0 0
        %2082 = vmatpush.bf16.msra.mxu0 0
        %2083 = vmatpush.bf16.msra.mxu0 %v2074
        %2084 = vmatmul.bf16.gmra.mxu0 %v2071
        %v2085 = vpop.f32.mrf.mxu0
        %v2086 = vadd.f32 0.0, %v2085
        %v2087 = vpop.f32.mrf.mxu0
        %v2088 = vadd.f32 0.0, %v2087
        %2089 = vdwg.mxu0
        %2094 = vrot.lane.b32.xlu0 %v2059, 8
        %v2095 = vpop.permute.xlu0 %2094
        %2096 = vrot.lane.b32.xlu0 %v2061, 8
        %v2097 = vpop.permute.xlu0 %2096
        %2098 = vrot.lane.b32.xlu0 %v2086, 8
        %v2099 = vpop.permute.xlu0 %2098
        %2100 = vrot.lane.b32.xlu0 %v2088, 8
        %v2101 = vpop.permute.xlu0 %2100
        %vm2106 = vcmask 130112
        %2107 = vst.msk [vmem:[#allocation3] sm:$0xff] %vm2106, %v2095
        %vm2108 = vcmask 122944
        %2109 = vst.msk [vmem:[#allocation3 + $0x8] sm:$0x1] %vm2108, %v2097
        %2110 = vst.msk [vmem:[#allocation3 + $0x10] sm:$0xff] %vm2106, %v2099
        %2111 = vst.msk [vmem:[#allocation3 + $0x18] sm:$0x1] %vm2108, %v2101
        %v2112 = vpack.c.bf16 %v1617, %v1617
        %v2113 = vpack.c.bf16 %v1649, %v1649
        %2114 = vst [vmem:[#allocation1] ss:$9 sm:$0xff] %v1540
        %s2115 = scalar_lea.vmem [#allocation1], 1
        %2116 = vst [vmem:[%s2115] ss:$9 sm:$0xff] %v1551
        %s2117 = scalar_lea.vmem [#allocation1], 2
        %2118 = vst [vmem:[%s2117] ss:$9 sm:$0xff] %v1552
        %s2119 = scalar_lea.vmem [#allocation1], 3
        %2120 = vst [vmem:[%s2119] ss:$9 sm:$0xff] %v1553
        %s2121 = scalar_lea.vmem [#allocation1], 4
        %2122 = vst [vmem:[%s2121] ss:$9 sm:$0xff] %v1554
        %s2123 = scalar_lea.vmem [#allocation1], 5
        %2124 = vst [vmem:[%s2123] ss:$9 sm:$0xff] %v1555
        %s2125 = scalar_lea.vmem [#allocation1], 6
        %2126 = vst [vmem:[%s2125] ss:$9 sm:$0xff] %v1556
        %s2127 = scalar_lea.vmem [#allocation1], 7
        %2128 = vst [vmem:[%s2127] ss:$9 sm:$0xff] %v1557
        %v2129 = vld [vmem:[#allocation1] sm:$0xff]
        %2130 = vst [vmem:[#allocation1] ss:$9 sm:$0xff] %v1542
        %v2131 = vld [vmem:[#allocation1] sm:$0xff]
        %2132 = vst [vmem:[#allocation1] ss:$9 sm:$0xff] %v1558
        %2133 = vst [vmem:[%s2115] ss:$9 sm:$0xff] %v1559
        %2134 = vst [vmem:[%s2117] ss:$9 sm:$0xff] %v1560
        %2135 = vst [vmem:[%s2119] ss:$9 sm:$0xff] %v1561
        %2136 = vst [vmem:[%s2121] ss:$9 sm:$0xff] %v1562
        %2137 = vst [vmem:[%s2123] ss:$9 sm:$0xff] %v1563
        %2138 = vst [vmem:[%s2125] ss:$9 sm:$0xff] %v1564
        %2139 = vst [vmem:[%s2127] ss:$9 sm:$0xff] %v1545
        %v2140 = vld [vmem:[#allocation1] sm:$0xff]
        %2141 = vst [vmem:[#allocation1] ss:$9 sm:$0xff] %v1565
        %v2142 = vld [vmem:[#allocation1] sm:$0xff]
        %v2147 = vpack.c.bf16 %v2129, %v2129
        %v2148 = vpack.c.bf16 %v2131, %v2131
        %v2149 = vpack.c.bf16 %v2140, %v2140
        %v2150 = vpack.c.bf16 %v2142, %v2142
        %v2153 = vunpack.c.l.b16 %v2147
        %v2154 = vunpack.c.l.b16 %v2148
        %v2155 = vpack.c.b16 %v2154, %v2153
        %2156 = vrot.lane.b32.xlu0 %v2155, 80
        %v2157 = vpop.permute.xlu0 %2156
        %v2159 = vsel %vm1709, %v2112, 0
        %v2162 = vand.u32 %v2157, %v1716
        %2164 = vmatpush.bf16.msra.mxu0 0
        %2165 = vmatpush.bf16.msra.mxu0 0
        %2166 = vmatpush.bf16.msra.mxu0 0
        %2167 = vmatpush.bf16.msra.mxu0 0
        %2168 = vmatpush.bf16.msra.mxu0 0
        %2169 = vmatpush.bf16.msra.mxu0 0
        %2170 = vmatpush.bf16.msra.mxu0 0
        %2171 = vmatpush.bf16.msra.mxu0 %v2162
        %2172 = vmatmul.bf16.gmra.mxu0 %v2159
        %v2173 = vpop.f32.mrf.mxu0
        %v2174 = vadd.f32 0.0, %v2173
        %v2175 = vpop.f32.mrf.mxu0
        %2176 = vdwg.mxu0
        %v2179 = vunpack.c.l.b16 %v2149
        %v2180 = vunpack.c.l.b16 %v2150
        %v2181 = vpack.c.b16 %v2180, %v2179
        %2182 = vrot.lane.b32.xlu0 %v2181, 80
        %v2183 = vpop.permute.xlu0 %2182
        %v2185 = vsel %vm1709, %v2113, 0
        %v2188 = vand.u32 %v2183, %v1716
        %2190 = vmatpush.bf16.msra.mxu0 0
        %2191 = vmatpush.bf16.msra.mxu0 0
        %2192 = vmatpush.bf16.msra.mxu0 0
        %2193 = vmatpush.bf16.msra.mxu0 0
        %2194 = vmatpush.bf16.msra.mxu0 0
        %2195 = vmatpush.bf16.msra.mxu0 0
        %2196 = vmatpush.bf16.msra.mxu0 0
        %2197 = vmatpush.bf16.msra.mxu0 %v2188
        %2198 = vmatmul.bf16.gmra.mxu0 %v2185
        %v2199 = vpop.f32.mrf.mxu0
        %v2200 = vadd.f32 0.0, %v2199
        %v2201 = vpop.f32.mrf.mxu0
        %2202 = vdwg.mxu0
        %v2203 = vmul.f32 %v2174, 0.35355338
        %v2204 = vmul.f32 %v2200, 0.35355338
        %v2205 = vsel %vm1761, %v2203, -inf
        %2206 = vmax.xlane.f32.xlu0 %v2205
        %v2207 = vpop.xlane.xlu0 %2206
        %v2208 = vsel %vm1761, %v2204, -inf
        %2209 = vmax.xlane.f32.xlu0 %v2208
        %v2210 = vpop.xlane.xlu0 %2209
        %v2211 = vsub.f32 %v2203, %v2207
        %v2212 = vsub.f32 %v2204, %v2210
        %v2213 = vmul.f32 %v2211, 1.442695
        %v2214 = vpow.pop %v2213
        %v2215 = vmul.f32 %v2212, 1.442695
        %v2216 = vpow.pop %v2215
        %v2217 = vsel %vm1761, %v2214, 0.0
        %2218 = vadd.xlane.f32.xlu0 %v2217
        %v2219 = vpop.xlane.xlu0 %2218
        %v2220 = vsel %vm1761, %v2216, 0.0
        %2221 = vadd.xlane.f32.xlu0 %v2220
        %v2222 = vpop.xlane.xlu0 %2221
        %v2223 = vrcp.pop %v2219
        %v2224 = vrcp.pop %v2222
        %v2225 = vmul.f32 %v2214, %v2223
        %v2226 = vmul.f32 %v2216, %v2224
        %2227 = vst [vmem:[#allocation1] ss:$9 sm:$0xff] %v1540
        %s2228 = scalar_lea.vmem [#allocation1], 1
        %2229 = vst [vmem:[%s2228] ss:$9 sm:$0xff] %v1551
        %s2230 = scalar_lea.vmem [#allocation1], 2
        %2231 = vst [vmem:[%s2230] ss:$9 sm:$0xff] %v1552
        %s2232 = scalar_lea.vmem [#allocation1], 3
        %2233 = vst [vmem:[%s2232] ss:$9 sm:$0xff] %v1553
        %s2234 = scalar_lea.vmem [#allocation1], 4
        %2235 = vst [vmem:[%s2234] ss:$9 sm:$0xff] %v1554
        %s2236 = scalar_lea.vmem [#allocation1], 5
        %2237 = vst [vmem:[%s2236] ss:$9 sm:$0xff] %v1555
        %s2238 = scalar_lea.vmem [#allocation1], 6
        %2239 = vst [vmem:[%s2238] ss:$9 sm:$0xff] %v1556
        %s2240 = scalar_lea.vmem [#allocation1], 7
        %2241 = vst [vmem:[%s2240] ss:$9 sm:$0xff] %v1557
        %v2242 = vld [vmem:[#allocation1] sm:$0xff]
        %2243 = vst [vmem:[#allocation1] ss:$9 sm:$0xff] %v1542
        %v2244 = vld [vmem:[#allocation1] sm:$0xff]
        %2245 = vst [vmem:[#allocation1] ss:$9 sm:$0xff] %v1558
        %2246 = vst [vmem:[%s2228] ss:$9 sm:$0xff] %v1559
        %2247 = vst [vmem:[%s2230] ss:$9 sm:$0xff] %v1560
        %2248 = vst [vmem:[%s2232] ss:$9 sm:$0xff] %v1561
        %2249 = vst [vmem:[%s2234] ss:$9 sm:$0xff] %v1562
        %2250 = vst [vmem:[%s2236] ss:$9 sm:$0xff] %v1563
        %2251 = vst [vmem:[%s2238] ss:$9 sm:$0xff] %v1564
        %2252 = vst [vmem:[%s2240] ss:$9 sm:$0xff] %v1545
        %v2253 = vld [vmem:[#allocation1] sm:$0xff]
        %2254 = vst [vmem:[#allocation1] ss:$9 sm:$0xff] %v1565
        %v2255 = vld [vmem:[#allocation1] sm:$0xff]
        %v2260 = vpack.c.bf16 %v2242, %v2242
        %v2261 = vpack.c.bf16 %v2244, %v2244
        %v2262 = vpack.c.bf16 %v2253, %v2253
        %v2263 = vpack.c.bf16 %v2255, %v2255
        %v2264 = vpack.c.bf16 %v2225, %v2225
        %v2265 = vpack.c.bf16 %v2226, %v2226
        %v2268 = vunpack.c.l.b16 %v2260
        %v2269 = vunpack.c.l.b16 %v2261
        %v2270 = vpack.c.b16 %v2269, %v2268
        %2271 = vrot.lane.b32.xlu0 %v2270, 48
        %v2272 = vpop.permute.xlu0 %2271
        %v2274 = vsel %vm1761, %v2272, 0
        %v2277 = vsel %vm1713, %v2264, 0
        %2279 = vmatpush.bf16.msra.mxu0 0
        %2280 = vmatpush.bf16.msra.mxu0 0
        %2281 = vmatpush.bf16.msra.mxu0 0
        %2282 = vmatpush.bf16.msra.mxu0 0
        %2283 = vmatpush.bf16.msra.mxu0 0
        %2284 = vmatpush.bf16.msra.mxu0 0
        %2285 = vmatpush.bf16.msra.mxu0 0
        %2286 = vmatpush.bf16.msra.mxu0 %v2277
        %2287 = vmatmul.bf16.gmra.mxu0 %v2274
        %v2288 = vpop.f32.mrf.mxu0
        %v2289 = vadd.f32 0.0, %v2288
        %v2290 = vpop.f32.mrf.mxu0
        %v2291 = vadd.f32 0.0, %v2290
        %2292 = vdwg.mxu0
        %v2295 = vunpack.c.l.b16 %v2262
        %v2296 = vunpack.c.l.b16 %v2263
        %v2297 = vpack.c.b16 %v2296, %v2295
        %2298 = vrot.lane.b32.xlu0 %v2297, 48
        %v2299 = vpop.permute.xlu0 %2298
        %v2301 = vsel %vm1761, %v2299, 0
        %v2304 = vsel %vm1713, %v2265, 0
        %2306 = vmatpush.bf16.msra.mxu0 0
        %2307 = vmatpush.bf16.msra.mxu0 0
        %2308 = vmatpush.bf16.msra.mxu0 0
        %2309 = vmatpush.bf16.msra.mxu0 0
        %2310 = vmatpush.bf16.msra.mxu0 0
        %2311 = vmatpush.bf16.msra.mxu0 0
        %2312 = vmatpush.bf16.msra.mxu0 0
        %2313 = vmatpush.bf16.msra.mxu0 %v2304
        %2314 = vmatmul.bf16.gmra.mxu0 %v2301
        %v2315 = vpop.f32.mrf.mxu0
        %v2316 = vadd.f32 0.0, %v2315
        %v2317 = vpop.f32.mrf.mxu0
        %v2318 = vadd.f32 0.0, %v2317
        %2319 = vdwg.mxu0
        %2324 = vrot.lane.b32.xlu0 %v2289, 16
        %v2325 = vpop.permute.xlu0 %2324
        %2326 = vrot.lane.b32.xlu0 %v2291, 16
        %v2327 = vpop.permute.xlu0 %2326
        %2328 = vrot.lane.b32.xlu0 %v2316, 16
        %v2329 = vpop.permute.xlu0 %2328
        %2330 = vrot.lane.b32.xlu0 %v2318, 16
        %v2331 = vpop.permute.xlu0 %2330
        %vm2336 = vcmask 195712
        %2337 = vst.msk [vmem:[#allocation3] sm:$0xff] %vm2336, %v2325
        %vm2338 = vcmask 188544
        %2339 = vst.msk [vmem:[#allocation3 + $0x8] sm:$0x1] %vm2338, %v2327
        %2340 = vst.msk [vmem:[#allocation3 + $0x10] sm:$0xff] %vm2336, %v2329
        %2341 = vst.msk [vmem:[#allocation3 + $0x18] sm:$0x1] %vm2338, %v2331
        %v2342 = vpack.c.bf16 %v1618, %v1618
        %v2343 = vpack.c.bf16 %v1650, %v1650
        %2344 = vst [vmem:[#allocation1] ss:$9 sm:$0xff] %v1540
        %s2345 = scalar_lea.vmem [#allocation1], 1
        %2346 = vst [vmem:[%s2345] ss:$9 sm:$0xff] %v1551
        %s2347 = scalar_lea.vmem [#allocation1], 2
        %2348 = vst [vmem:[%s2347] ss:$9 sm:$0xff] %v1552
        %s2349 = scalar_lea.vmem [#allocation1], 3
        %2350 = vst [vmem:[%s2349] ss:$9 sm:$0xff] %v1553
        %s2351 = scalar_lea.vmem [#allocation1], 4
        %2352 = vst [vmem:[%s2351] ss:$9 sm:$0xff] %v1554
        %s2353 = scalar_lea.vmem [#allocation1], 5
        %2354 = vst [vmem:[%s2353] ss:$9 sm:$0xff] %v1555
        %s2355 = scalar_lea.vmem [#allocation1], 6
        %2356 = vst [vmem:[%s2355] ss:$9 sm:$0xff] %v1556
        %s2357 = scalar_lea.vmem [#allocation1], 7
        %2358 = vst [vmem:[%s2357] ss:$9 sm:$0xff] %v1557
        %v2359 = vld [vmem:[#allocation1] sm:$0xff]
        %2360 = vst [vmem:[#allocation1] ss:$9 sm:$0xff] %v1542
        %v2361 = vld [vmem:[#allocation1] sm:$0xff]
        %2362 = vst [vmem:[#allocation1] ss:$9 sm:$0xff] %v1558
        %2363 = vst [vmem:[%s2345] ss:$9 sm:$0xff] %v1559
        %2364 = vst [vmem:[%s2347] ss:$9 sm:$0xff] %v1560
        %2365 = vst [vmem:[%s2349] ss:$9 sm:$0xff] %v1561
        %2366 = vst [vmem:[%s2351] ss:$9 sm:$0xff] %v1562
        %2367 = vst [vmem:[%s2353] ss:$9 sm:$0xff] %v1563
        %2368 = vst [vmem:[%s2355] ss:$9 sm:$0xff] %v1564
        %2369 = vst [vmem:[%s2357] ss:$9 sm:$0xff] %v1545
        %v2370 = vld [vmem:[#allocation1] sm:$0xff]
        %2371 = vst [vmem:[#allocation1] ss:$9 sm:$0xff] %v1565
        %v2372 = vld [vmem:[#allocation1] sm:$0xff]
        %v2377 = vpack.c.bf16 %v2359, %v2359
        %v2378 = vpack.c.bf16 %v2361, %v2361
        %v2379 = vpack.c.bf16 %v2370, %v2370
        %v2380 = vpack.c.bf16 %v2372, %v2372
        %v2383 = vunpack.c.l.b16 %v2377
        %v2384 = vunpack.c.l.b16 %v2378
        %v2385 = vpack.c.b16 %v2384, %v2383
        %2386 = vrot.lane.b32.xlu0 %v2385, 72
        %v2387 = vpop.permute.xlu0 %2386
        %v2389 = vsel %vm1709, %v2342, 0
        %v2392 = vand.u32 %v2387, %v1716
        %2394 = vmatpush.bf16.msra.mxu0 0
        %2395 = vmatpush.bf16.msra.mxu0 0
        %2396 = vmatpush.bf16.msra.mxu0 0
        %2397 = vmatpush.bf16.msra.mxu0 0
        %2398 = vmatpush.bf16.msra.mxu0 0
        %2399 = vmatpush.bf16.msra.mxu0 0
        %2400 = vmatpush.bf16.msra.mxu0 0
        %2401 = vmatpush.bf16.msra.mxu0 %v2392
        %2402 = vmatmul.bf16.gmra.mxu0 %v2389
        %v2403 = vpop.f32.mrf.mxu0
        %v2404 = vadd.f32 0.0, %v2403
        %v2405 = vpop.f32.mrf.mxu0
        %2406 = vdwg.mxu0
        %v2409 = vunpack.c.l.b16 %v2379
        %v2410 = vunpack.c.l.b16 %v2380
        %v2411 = vpack.c.b16 %v2410, %v2409
        %2412 = vrot.lane.b32.xlu0 %v2411, 72
        %v2413 = vpop.permute.xlu0 %2412
        %v2415 = vsel %vm1709, %v2343, 0
        %v2418 = vand.u32 %v2413, %v1716
        %2420 = vmatpush.bf16.msra.mxu0 0
        %2421 = vmatpush.bf16.msra.mxu0 0
        %2422 = vmatpush.bf16.msra.mxu0 0
        %2423 = vmatpush.bf16.msra.mxu0 0
        %2424 = vmatpush.bf16.msra.mxu0 0
        %2425 = vmatpush.bf16.msra.mxu0 0
        %2426 = vmatpush.bf16.msra.mxu0 0
        %2427 = vmatpush.bf16.msra.mxu0 %v2418
        %2428 = vmatmul.bf16.gmra.mxu0 %v2415
        %v2429 = vpop.f32.mrf.mxu0
        %v2430 = vadd.f32 0.0, %v2429
        %v2431 = vpop.f32.mrf.mxu0
        %2432 = vdwg.mxu0
        %v2433 = vmul.f32 %v2404, 0.35355338
        %v2434 = vmul.f32 %v2430, 0.35355338
        %v2435 = vsel %vm1761, %v2433, -inf
        %2436 = vmax.xlane.f32.xlu0 %v2435
        %v2437 = vpop.xlane.xlu0 %2436
        %v2438 = vsel %vm1761, %v2434, -inf
        %2439 = vmax.xlane.f32.xlu0 %v2438
        %v2440 = vpop.xlane.xlu0 %2439
        %v2441 = vsub.f32 %v2433, %v2437
        %v2442 = vsub.f32 %v2434, %v2440
        %v2443 = vmul.f32 %v2441, 1.442695
        %v2444 = vpow.pop %v2443
        %v2445 = vmul.f32 %v2442, 1.442695
        %v2446 = vpow.pop %v2445
        %v2447 = vsel %vm1761, %v2444, 0.0
        %2448 = vadd.xlane.f32.xlu0 %v2447
        %v2449 = vpop.xlane.xlu0 %2448
        %v2450 = vsel %vm1761, %v2446, 0.0
        %2451 = vadd.xlane.f32.xlu0 %v2450
        %v2452 = vpop.xlane.xlu0 %2451
        %v2453 = vrcp.pop %v2449
        %v2454 = vrcp.pop %v2452
        %v2455 = vmul.f32 %v2444, %v2453
        %v2456 = vmul.f32 %v2446, %v2454
        %2457 = vst [vmem:[#allocation1] ss:$9 sm:$0xff] %v1540
        %s2458 = scalar_lea.vmem [#allocation1], 1
        %2459 = vst [vmem:[%s2458] ss:$9 sm:$0xff] %v1551
        %s2460 = scalar_lea.vmem [#allocation1], 2
        %2461 = vst [vmem:[%s2460] ss:$9 sm:$0xff] %v1552
        %s2462 = scalar_lea.vmem [#allocation1], 3
        %2463 = vst [vmem:[%s2462] ss:$9 sm:$0xff] %v1553
        %s2464 = scalar_lea.vmem [#allocation1], 4
        %2465 = vst [vmem:[%s2464] ss:$9 sm:$0xff] %v1554
        %s2466 = scalar_lea.vmem [#allocation1], 5
        %2467 = vst [vmem:[%s2466] ss:$9 sm:$0xff] %v1555
        %s2468 = scalar_lea.vmem [#allocation1], 6
        %2469 = vst [vmem:[%s2468] ss:$9 sm:$0xff] %v1556
        %s2470 = scalar_lea.vmem [#allocation1], 7
        %2471 = vst [vmem:[%s2470] ss:$9 sm:$0xff] %v1557
        %v2472 = vld [vmem:[#allocation1] sm:$0xff]
        %2473 = vst [vmem:[#allocation1] ss:$9 sm:$0xff] %v1542
        %v2474 = vld [vmem:[#allocation1] sm:$0xff]
        %2475 = vst [vmem:[#allocation1] ss:$9 sm:$0xff] %v1558
        %2476 = vst [vmem:[%s2458] ss:$9 sm:$0xff] %v1559
        %2477 = vst [vmem:[%s2460] ss:$9 sm:$0xff] %v1560
        %2478 = vst [vmem:[%s2462] ss:$9 sm:$0xff] %v1561
        %2479 = vst [vmem:[%s2464] ss:$9 sm:$0xff] %v1562
        %2480 = vst [vmem:[%s2466] ss:$9 sm:$0xff] %v1563
        %2481 = vst [vmem:[%s2468] ss:$9 sm:$0xff] %v1564
        %2482 = vst [vmem:[%s2470] ss:$9 sm:$0xff] %v1545
        %v2483 = vld [vmem:[#allocation1] sm:$0xff]
        %2484 = vst [vmem:[#allocation1] ss:$9 sm:$0xff] %v1565
        %v2485 = vld [vmem:[#allocation1] sm:$0xff]
        %v2490 = vpack.c.bf16 %v2472, %v2472
        %v2491 = vpack.c.bf16 %v2474, %v2474
        %v2492 = vpack.c.bf16 %v2483, %v2483
        %v2493 = vpack.c.bf16 %v2485, %v2485
        %v2494 = vpack.c.bf16 %v2455, %v2455
        %v2495 = vpack.c.bf16 %v2456, %v2456
        %v2498 = vunpack.c.l.b16 %v2490
        %v2499 = vunpack.c.l.b16 %v2491
        %v2500 = vpack.c.b16 %v2499, %v2498
        %2501 = vrot.lane.b32.xlu0 %v2500, 40
        %v2502 = vpop.permute.xlu0 %2501
        %v2504 = vsel %vm1761, %v2502, 0
        %v2507 = vsel %vm1713, %v2494, 0
        %2509 = vmatpush.bf16.msra.mxu0 0
        %2510 = vmatpush.bf16.msra.mxu0 0
        %2511 = vmatpush.bf16.msra.mxu0 0
        %2512 = vmatpush.bf16.msra.mxu0 0
        %2513 = vmatpush.bf16.msra.mxu0 0
        %2514 = vmatpush.bf16.msra.mxu0 0
        %2515 = vmatpush.bf16.msra.mxu0 0
        %2516 = vmatpush.bf16.msra.mxu0 %v2507
        %2517 = vmatmul.bf16.gmra.mxu0 %v2504
        %v2518 = vpop.f32.mrf.mxu0
        %v2519 = vadd.f32 0.0, %v2518
        %v2520 = vpop.f32.mrf.mxu0
        %v2521 = vadd.f32 0.0, %v2520
        %2522 = vdwg.mxu0
        %v2525 = vunpack.c.l.b16 %v2492
        %v2526 = vunpack.c.l.b16 %v2493
        %v2527 = vpack.c.b16 %v2526, %v2525
        %2528 = vrot.lane.b32.xlu0 %v2527, 40
        %v2529 = vpop.permute.xlu0 %2528
        %v2531 = vsel %vm1761, %v2529, 0
        %v2534 = vsel %vm1713, %v2495, 0
        %2536 = vmatpush.bf16.msra.mxu0 0
        %2537 = vmatpush.bf16.msra.mxu0 0
        %2538 = vmatpush.bf16.msra.mxu0 0
        %2539 = vmatpush.bf16.msra.mxu0 0
        %2540 = vmatpush.bf16.msra.mxu0 0
        %2541 = vmatpush.bf16.msra.mxu0 0
        %2542 = vmatpush.bf16.msra.mxu0 0
        %2543 = vmatpush.bf16.msra.mxu0 %v2534
        %2544 = vmatmul.bf16.gmra.mxu0 %v2531
        %v2545 = vpop.f32.mrf.mxu0
        %v2546 = vadd.f32 0.0, %v2545
        %v2547 = vpop.f32.mrf.mxu0
        %v2548 = vadd.f32 0.0, %v2547
        %2549 = vdwg.mxu0
        %2554 = vrot.lane.b32.xlu0 %v2519, 24
        %v2555 = vpop.permute.xlu0 %2554
        %2556 = vrot.lane.b32.xlu0 %v2521, 24
        %v2557 = vpop.permute.xlu0 %2556
        %2558 = vrot.lane.b32.xlu0 %v2546, 24
        %v2559 = vpop.permute.xlu0 %2558
        %2560 = vrot.lane.b32.xlu0 %v2548, 24
        %v2561 = vpop.permute.xlu0 %2560
        %vm2566 = vcmask 261312
        %2567 = vst.msk [vmem:[#allocation3] sm:$0xff] %vm2566, %v2555
        %vm2568 = vcmask 254144
        %2569 = vst.msk [vmem:[#allocation3 + $0x8] sm:$0x1] %vm2568, %v2557
        %2570 = vst.msk [vmem:[#allocation3 + $0x10] sm:$0xff] %vm2566, %v2559
        %2571 = vst.msk [vmem:[#allocation3 + $0x18] sm:$0x1] %vm2568, %v2561
        %v2572 = vld [vmem:[%s1074] sm:$0xf]
        %v2573 = vld [vmem:[%s1074 + $0x4] sm:$0xf]
        %v2574 = vld [vmem:[%s1074 + $0x8] sm:$0xf]
        %v2575 = vld [vmem:[%s1074 + $0xc] sm:$0xf]
        %v2576 = vld [vmem:[%s1077] sm:$0x1]
        %v2578 = vperm.slane %v2576, 0
        %v2584 = vunpack.c.l.b16 %v2572
        %v2585 = vunpack.c.l.b16 %v2573
        %v2586 = vunpack.c.l.b16 %v2574
        %v2587 = vunpack.c.l.b16 %v2575
        %v2588 = vpack.c.b16 %v2585, %v2584
        %v2589 = vpack.c.b16 %v2587, %v2586
        %2592 = vmatpush.bf16.msra.mxu0 0
        %2593 = vmatpush.bf16.msra.mxu0 0
        %2594 = vmatpush.bf16.msra.mxu0 0
        %2595 = vmatpush.bf16.msra.mxu0 0
        %2596 = vmatpush.bf16.msra.mxu0 0
        %2597 = vmatpush.bf16.msra.mxu0 0
        %2598 = vmatpush.bf16.msra.mxu0 %v2589
        %2599 = vmatpush.bf16.msra.mxu0 %v2588
        %2600 = vmatmul.bf16.gmra.mxu0 %v1525
        %v2601 = vpop.f32.mrf.mxu0
        %v2602 = vadd.f32 %v2578, %v2601
        %v2603 = vpop.f32.mrf.mxu0
        %v2604 = vadd.f32 %v2578, %v2603
        %2605 = vmatmul.bf16.gmra.mxu0 %v1528
        %v2606 = vpop.f32.mrf.mxu0
        %v2607 = vadd.f32 %v2578, %v2606
        %v2608 = vpop.f32.mrf.mxu0
        %2609 = vdwg.mxu0
        %v2613 = vrot.slane %v2602, 1
        %v2614 = vrot.slane %v2602, 2
        %v2615 = vrot.slane %v2602, 3
        %v2616 = vrot.slane %v2602, 4
        %v2617 = vrot.slane %v2602, 5
        %v2618 = vrot.slane %v2602, 6
        %v2619 = vrot.slane %v2602, 7
        %v2620 = vrot.slane %v2604, 1
        %v2621 = vrot.slane %v2604, 2
        %v2622 = vrot.slane %v2604, 3
        %v2623 = vrot.slane %v2604, 4
        %v2624 = vrot.slane %v2604, 5
        %v2625 = vrot.slane %v2604, 6
        %v2626 = vrot.slane %v2604, 7
        %v2627 = vrot.slane %v2607, 1
        %2628 = vst [vmem:[#allocation1] ss:$9 sm:$0xff] %v2602
        %s2629 = scalar_lea.vmem [#allocation1], 1
        %2630 = vst [vmem:[%s2629] ss:$9 sm:$0xff] %v2613
        %s2631 = scalar_lea.vmem [#allocation1], 2
        %2632 = vst [vmem:[%s2631] ss:$9 sm:$0xff] %v2614
        %s2633 = scalar_lea.vmem [#allocation1], 3
        %2634 = vst [vmem:[%s2633] ss:$9 sm:$0xff] %v2615
        %s2635 = scalar_lea.vmem [#allocation1], 4
        %2636 = vst [vmem:[%s2635] ss:$9 sm:$0xff] %v2616
        %s2637 = scalar_lea.vmem [#allocation1], 5
        %2638 = vst [vmem:[%s2637] ss:$9 sm:$0xff] %v2617
        %s2639 = scalar_lea.vmem [#allocation1], 6
        %2640 = vst [vmem:[%s2639] ss:$9 sm:$0xff] %v2618
        %s2641 = scalar_lea.vmem [#allocation1], 7
        %2642 = vst [vmem:[%s2641] ss:$9 sm:$0xff] %v2619
        %v2643 = vld [vmem:[#allocation1] sm:$0xff]
        %2644 = vst [vmem:[#allocation1] ss:$9 sm:$0xff] %v2604
        %v2645 = vld [vmem:[#allocation1] sm:$0xff]
        %2646 = vst [vmem:[#allocation1] ss:$9 sm:$0xff] %v2620
        %2647 = vst [vmem:[%s2629] ss:$9 sm:$0xff] %v2621
        %2648 = vst [vmem:[%s2631] ss:$9 sm:$0xff] %v2622
        %2649 = vst [vmem:[%s2633] ss:$9 sm:$0xff] %v2623
        %2650 = vst [vmem:[%s2635] ss:$9 sm:$0xff] %v2624
        %2651 = vst [vmem:[%s2637] ss:$9 sm:$0xff] %v2625
        %2652 = vst [vmem:[%s2639] ss:$9 sm:$0xff] %v2626
        %2653 = vst [vmem:[%s2641] ss:$9 sm:$0xff] %v2607
        %v2654 = vld [vmem:[#allocation1] sm:$0xff]
        %2655 = vst [vmem:[#allocation1] ss:$9 sm:$0xff] %v2627
        %v2656 = vld [vmem:[#allocation1] sm:$0xff]
        %v2661 = vpack.c.bf16 %v2643, %v2643
        %v2662 = vpack.c.bf16 %v2645, %v2645
        %v2663 = vpack.c.bf16 %v2654, %v2654
        %v2664 = vpack.c.bf16 %v2656, %v2656
        %2665 = vst [vmem:[#allocation1] ss:$9 sm:$0xff] %v2602
        %s2666 = scalar_lea.vmem [#allocation1], 1
        %2667 = vst [vmem:[%s2666] ss:$9 sm:$0xff] %v2613
        %s2668 = scalar_lea.vmem [#allocation1], 2
        %2669 = vst [vmem:[%s2668] ss:$9 sm:$0xff] %v2614
        %s2670 = scalar_lea.vmem [#allocation1], 3
        %2671 = vst [vmem:[%s2670] ss:$9 sm:$0xff] %v2615
        %s2672 = scalar_lea.vmem [#allocation1], 4
        %2673 = vst [vmem:[%s2672] ss:$9 sm:$0xff] %v2616
        %s2674 = scalar_lea.vmem [#allocation1], 5
        %2675 = vst [vmem:[%s2674] ss:$9 sm:$0xff] %v2617
        %s2676 = scalar_lea.vmem [#allocation1], 6
        %2677 = vst [vmem:[%s2676] ss:$9 sm:$0xff] %v2618
        %s2678 = scalar_lea.vmem [#allocation1], 7
        %2679 = vst [vmem:[%s2678] ss:$9 sm:$0xff] %v2619
        %v2680 = vld [vmem:[#allocation1] sm:$0xff]
        %2681 = vst [vmem:[#allocation1] ss:$9 sm:$0xff] %v2604
        %v2682 = vld [vmem:[#allocation1] sm:$0xff]
        %2683 = vst [vmem:[#allocation1] ss:$9 sm:$0xff] %v2620
        %2684 = vst [vmem:[%s2666] ss:$9 sm:$0xff] %v2621
        %2685 = vst [vmem:[%s2668] ss:$9 sm:$0xff] %v2622
        %2686 = vst [vmem:[%s2670] ss:$9 sm:$0xff] %v2623
        %2687 = vst [vmem:[%s2672] ss:$9 sm:$0xff] %v2624
        %2688 = vst [vmem:[%s2674] ss:$9 sm:$0xff] %v2625
        %2689 = vst [vmem:[%s2676] ss:$9 sm:$0xff] %v2626
        %2690 = vst [vmem:[%s2678] ss:$9 sm:$0xff] %v2607
        %v2691 = vld [vmem:[#allocation1] sm:$0xff]
        %2692 = vst [vmem:[#allocation1] ss:$9 sm:$0xff] %v2627
        %v2693 = vld [vmem:[#allocation1] sm:$0xff]
        %v2698 = vpack.c.bf16 %v2680, %v2680
        %v2699 = vpack.c.bf16 %v2682, %v2682
        %v2700 = vpack.c.bf16 %v2691, %v2691
        %v2701 = vpack.c.bf16 %v2693, %v2693
        %v2704 = vunpack.c.l.b16 %v2661
        %v2705 = vunpack.c.l.b16 %v2662
        %v2706 = vpack.c.b16 %v2705, %v2704
        %v2709 = vunpack.c.l.b16 %v2698
        %v2710 = vunpack.c.l.b16 %v2699
        %v2711 = vpack.c.b16 %v2710, %v2709
        %2712 = vrot.lane.b32.xlu0 %v2711, 96
        %v2713 = vpop.permute.xlu0 %2712
        %v2715 = vsel %vm1761, %v2706, 0
        %v2718 = vsel %vm1761, %v2713, 0
        %2720 = vmatpush.bf16.xpose.msra.mxu0 0
        %2721 = vmatpush.bf16.xpose.msra.mxu0 0
        %2722 = vmatpush.bf16.xpose.msra.mxu0 0
        %2723 = vmatpush.bf16.xpose.msra.mxu0 0
        %2724 = vmatpush.bf16.xpose.msra.mxu0 0
        %2725 = vmatpush.bf16.xpose.msra.mxu0 0
        %2726 = vmatpush.bf16.xpose.msra.mxu0 0
        %2727 = vmatpush.bf16.xpose.msra.mxu0 %v2718
        %2728 = vmatmul.bf16.gmra.mxu0 %v2715
        %v2729 = vpop.f32.mrf.mxu0
        %v2730 = vadd.f32 0.0, %v2729
        %v2731 = vpop.f32.mrf.mxu0
        %v2732 = vadd.f32 0.0, %v2731
        %2733 = vdwg.mxu0
        %v2736 = vunpack.c.l.b16 %v2663
        %v2737 = vunpack.c.l.b16 %v2664
        %v2738 = vpack.c.b16 %v2737, %v2736
        %v2741 = vunpack.c.l.b16 %v2700
        %v2742 = vunpack.c.l.b16 %v2701
        %v2743 = vpack.c.b16 %v2742, %v2741
        %2744 = vrot.lane.b32.xlu0 %v2743, 96
        %v2745 = vpop.permute.xlu0 %2744
        %v2747 = vsel %vm1761, %v2738, 0
        %v2750 = vsel %vm1761, %v2745, 0
        %2752 = vmatpush.bf16.xpose.msra.mxu0 0
        %2753 = vmatpush.bf16.xpose.msra.mxu0 0
        %2754 = vmatpush.bf16.xpose.msra.mxu0 0
        %2755 = vmatpush.bf16.xpose.msra.mxu0 0
        %2756 = vmatpush.bf16.xpose.msra.mxu0 0
        %2757 = vmatpush.bf16.xpose.msra.mxu0 0
        %2758 = vmatpush.bf16.xpose.msra.mxu0 0
        %2759 = vmatpush.bf16.xpose.msra.mxu0 %v2750
        %2760 = vmatmul.bf16.gmra.mxu0 %v2747
        %v2761 = vpop.f32.mrf.mxu0
        %v2762 = vadd.f32 0.0, %v2761
        %v2763 = vpop.f32.mrf.mxu0
        %v2764 = vadd.f32 0.0, %v2763
        %2765 = vdwg.mxu0
        %v2766 = vmul.f32 %v2730, 0.35355338
        %v2767 = vmul.f32 %v2732, 0.35355338
        %v2768 = vmul.f32 %v2762, 0.35355338
        %v2769 = vmul.f32 %v2764, 0.35355338
        %v2770 = vsel %vm1709, %v2766, -inf
        %2771 = vmax.xlane.f32.xlu0 %v2770
        %v2772 = vpop.xlane.xlu0 %2771
        %vm2773 = vcmask 65536
        %v2774 = vsel %vm2773, %v2767, -inf
        %2775 = vmax.xlane.f32.xlu0 %v2774
        %v2776 = vpop.xlane.xlu0 %2775
        %v2777 = vsel %vm1709, %v2768, -inf
        %2778 = vmax.xlane.f32.xlu0 %v2777
        %v2779 = vpop.xlane.xlu0 %2778
        %v2780 = vsel %vm2773, %v2769, -inf
        %2781 = vmax.xlane.f32.xlu0 %v2780
        %v2782 = vpop.xlane.xlu0 %2781
        %v2783 = vsub.f32 %v2766, %v2772
        %v2784 = vsub.f32 %v2767, %v2776
        %v2785 = vsub.f32 %v2768, %v2779
        %v2786 = vsub.f32 %v2769, %v2782
        %v2787 = vmul.f32 %v2783, 1.442695
        %v2788 = vpow.pop %v2787
        %v2789 = vmul.f32 %v2784, 1.442695
        %v2790 = vpow.pop %v2789
        %v2791 = vmul.f32 %v2785, 1.442695
        %v2792 = vpow.pop %v2791
        %v2793 = vmul.f32 %v2786, 1.442695
        %v2794 = vpow.pop %v2793
        %v2795 = vsel %vm1709, %v2788, 0.0
        %2796 = vadd.xlane.f32.xlu0 %v2795
        %v2797 = vpop.xlane.xlu0 %2796
        %v2798 = vsel %vm2773, %v2790, 0.0
        %2799 = vadd.xlane.f32.xlu0 %v2798
        %v2800 = vpop.xlane.xlu0 %2799
        %v2801 = vsel %vm1709, %v2792, 0.0
        %2802 = vadd.xlane.f32.xlu0 %v2801
        %v2803 = vpop.xlane.xlu0 %2802
        %v2804 = vsel %vm2773, %v2794, 0.0
        %2805 = vadd.xlane.f32.xlu0 %v2804
        %v2806 = vpop.xlane.xlu0 %2805
        %v2807 = vrcp.pop %v2797
        %v2808 = vrcp.pop %v2800
        %v2809 = vrcp.pop %v2803
        %v2810 = vrcp.pop %v2806
        %v2811 = vmul.f32 %v2788, %v2807
        %v2812 = vmul.f32 %v2790, %v2808
        %v2813 = vmul.f32 %v2792, %v2809
        %v2814 = vmul.f32 %v2794, %v2810
        %v2815 = vpack.c.bf16 %v2811, %v2811
        %v2816 = vpack.c.bf16 %v2812, %v2812
        %v2817 = vpack.c.bf16 %v2813, %v2813
        %v2818 = vpack.c.bf16 %v2814, %v2814
        %2819 = vst [vmem:[#allocation1] ss:$9 sm:$0xff] %v2602
        %s2820 = scalar_lea.vmem [#allocation1], 1
        %2821 = vst [vmem:[%s2820] ss:$9 sm:$0xff] %v2613
        %s2822 = scalar_lea.vmem [#allocation1], 2
        %2823 = vst [vmem:[%s2822] ss:$9 sm:$0xff] %v2614
        %s2824 = scalar_lea.vmem [#allocation1], 3
        %2825 = vst [vmem:[%s2824] ss:$9 sm:$0xff] %v2615
        %s2826 = scalar_lea.vmem [#allocation1], 4
        %2827 = vst [vmem:[%s2826] ss:$9 sm:$0xff] %v2616
        %s2828 = scalar_lea.vmem [#allocation1], 5
        %2829 = vst [vmem:[%s2828] ss:$9 sm:$0xff] %v2617
        %s2830 = scalar_lea.vmem [#allocation1], 6
        %2831 = vst [vmem:[%s2830] ss:$9 sm:$0xff] %v2618
        %s2832 = scalar_lea.vmem [#allocation1], 7
        %2833 = vst [vmem:[%s2832] ss:$9 sm:$0xff] %v2619
        %v2834 = vld [vmem:[#allocation1] sm:$0xff]
        %2835 = vst [vmem:[#allocation1] ss:$9 sm:$0xff] %v2604
        %v2836 = vld [vmem:[#allocation1] sm:$0xff]
        %2837 = vst [vmem:[#allocation1] ss:$9 sm:$0xff] %v2620
        %2838 = vst [vmem:[%s2820] ss:$9 sm:$0xff] %v2621
        %2839 = vst [vmem:[%s2822] ss:$9 sm:$0xff] %v2622
        %2840 = vst [vmem:[%s2824] ss:$9 sm:$0xff] %v2623
        %2841 = vst [vmem:[%s2826] ss:$9 sm:$0xff] %v2624
        %2842 = vst [vmem:[%s2828] ss:$9 sm:$0xff] %v2625
        %2843 = vst [vmem:[%s2830] ss:$9 sm:$0xff] %v2626
        %2844 = vst [vmem:[%s2832] ss:$9 sm:$0xff] %v2607
        %v2845 = vld [vmem:[#allocation1] sm:$0xff]
        %2846 = vst [vmem:[#allocation1] ss:$9 sm:$0xff] %v2627
        %v2847 = vld [vmem:[#allocation1] sm:$0xff]
        %v2852 = vpack.c.bf16 %v2834, %v2834
        %v2853 = vpack.c.bf16 %v2836, %v2836
        %v2854 = vpack.c.bf16 %v2845, %v2845
        %v2855 = vpack.c.bf16 %v2847, %v2847
        %v2858 = vunpack.c.l.b16 %v2815
        %v2859 = vunpack.c.l.b16 %v2816
        %v2860 = vpack.c.b16 %v2859, %v2858
        %v2863 = vunpack.c.l.b16 %v2852
        %v2864 = vunpack.c.l.b16 %v2853
        %v2865 = vpack.c.b16 %v2864, %v2863
        %2866 = vrot.lane.b32.xlu0 %v2865, 64
        %v2867 = vpop.permute.xlu0 %2866
        %v2869 = vsel %vm1709, %v2860, 0
        %v2872 = vand.u32 %v2867, %v1716
        %2874 = vmatpush.bf16.msra.mxu0 0
        %2875 = vmatpush.bf16.msra.mxu0 0
        %2876 = vmatpush.bf16.msra.mxu0 0
        %2877 = vmatpush.bf16.msra.mxu0 0
        %2878 = vmatpush.bf16.msra.mxu0 0
        %2879 = vmatpush.bf16.msra.mxu0 0
        %2880 = vmatpush.bf16.msra.mxu0 0
        %2881 = vmatpush.bf16.msra.mxu0 %v2872
        %2882 = vmatmul.bf16.gmra.mxu0 %v2869
        %v2883 = vpop.f32.mrf.mxu0
        %v2884 = vadd.f32 0.0, %v2883
        %v2885 = vpop.f32.mrf.mxu0
        %v2886 = vadd.f32 0.0, %v2885
        %2887 = vdwg.mxu0
        %v2890 = vunpack.c.l.b16 %v2817
        %v2891 = vunpack.c.l.b16 %v2818
        %v2892 = vpack.c.b16 %v2891, %v2890
        %v2895 = vunpack.c.l.b16 %v2854
        %v2896 = vunpack.c.l.b16 %v2855
        %v2897 = vpack.c.b16 %v2896, %v2895
        %2898 = vrot.lane.b32.xlu0 %v2897, 64
        %v2899 = vpop.permute.xlu0 %2898
        %v2901 = vsel %vm1709, %v2892, 0
        %v2904 = vand.u32 %v2899, %v1716
        %2906 = vmatpush.bf16.msra.mxu0 0
        %2907 = vmatpush.bf16.msra.mxu0 0
        %2908 = vmatpush.bf16.msra.mxu0 0
        %2909 = vmatpush.bf16.msra.mxu0 0
        %2910 = vmatpush.bf16.msra.mxu0 0
        %2911 = vmatpush.bf16.msra.mxu0 0
        %2912 = vmatpush.bf16.msra.mxu0 0
        %2913 = vmatpush.bf16.msra.mxu0 %v2904
        %2914 = vmatmul.bf16.gmra.mxu0 %v2901
        %v2915 = vpop.f32.mrf.mxu0
        %v2916 = vadd.f32 0.0, %v2915
        %v2917 = vpop.f32.mrf.mxu0
        %v2918 = vadd.f32 0.0, %v2917
        %2919 = vdwg.mxu0
        %2920 = vst.msk [vmem:[#allocation4] sm:$0xff] %vm1761, %v2884
        %2921 = vst.msk [vmem:[#allocation4 + $0x8] sm:$0x1] %vm1878, %v2886
        %2922 = vst.msk [vmem:[#allocation4 + $0x10] sm:$0xff] %vm1761, %v2916
        %2923 = vst.msk [vmem:[#allocation4 + $0x18] sm:$0x1] %vm1878, %v2918
        %2924 = vst [vmem:[#allocation1] ss:$9 sm:$0xff] %v2602
        %s2925 = scalar_lea.vmem [#allocation1], 1
        %2926 = vst [vmem:[%s2925] ss:$9 sm:$0xff] %v2613
        %s2927 = scalar_lea.vmem [#allocation1], 2
        %2928 = vst [vmem:[%s2927] ss:$9 sm:$0xff] %v2614
        %s2929 = scalar_lea.vmem [#allocation1], 3
        %2930 = vst [vmem:[%s2929] ss:$9 sm:$0xff] %v2615
        %s2931 = scalar_lea.vmem [#allocation1], 4
        %2932 = vst [vmem:[%s2931] ss:$9 sm:$0xff] %v2616
        %s2933 = scalar_lea.vmem [#allocation1], 5
        %2934 = vst [vmem:[%s2933] ss:$9 sm:$0xff] %v2617
        %s2935 = scalar_lea.vmem [#allocation1], 6
        %2936 = vst [vmem:[%s2935] ss:$9 sm:$0xff] %v2618
        %s2937 = scalar_lea.vmem [#allocation1], 7
        %2938 = vst [vmem:[%s2937] ss:$9 sm:$0xff] %v2619
        %v2939 = vld [vmem:[#allocation1] sm:$0xff]
        %2940 = vst [vmem:[#allocation1] ss:$9 sm:$0xff] %v2604
        %v2941 = vld [vmem:[#allocation1] sm:$0xff]
        %2942 = vst [vmem:[#allocation1] ss:$9 sm:$0xff] %v2620
        %2943 = vst [vmem:[%s2925] ss:$9 sm:$0xff] %v2621
        %2944 = vst [vmem:[%s2927] ss:$9 sm:$0xff] %v2622
        %2945 = vst [vmem:[%s2929] ss:$9 sm:$0xff] %v2623
        %2946 = vst [vmem:[%s2931] ss:$9 sm:$0xff] %v2624
        %2947 = vst [vmem:[%s2933] ss:$9 sm:$0xff] %v2625
        %2948 = vst [vmem:[%s2935] ss:$9 sm:$0xff] %v2626
        %2949 = vst [vmem:[%s2937] ss:$9 sm:$0xff] %v2607
        %v2950 = vld [vmem:[#allocation1] sm:$0xff]
        %2951 = vst [vmem:[#allocation1] ss:$9 sm:$0xff] %v2627
        %v2952 = vld [vmem:[#allocation1] sm:$0xff]
        %v2957 = vpack.c.bf16 %v2939, %v2939
        %v2958 = vpack.c.bf16 %v2941, %v2941
        %v2959 = vpack.c.bf16 %v2950, %v2950
        %v2960 = vpack.c.bf16 %v2952, %v2952
        %2961 = vst [vmem:[#allocation1] ss:$9 sm:$0xff] %v2602
        %s2962 = scalar_lea.vmem [#allocation1], 1
        %2963 = vst [vmem:[%s2962] ss:$9 sm:$0xff] %v2613
        %s2964 = scalar_lea.vmem [#allocation1], 2
        %2965 = vst [vmem:[%s2964] ss:$9 sm:$0xff] %v2614
        %s2966 = scalar_lea.vmem [#allocation1], 3
        %2967 = vst [vmem:[%s2966] ss:$9 sm:$0xff] %v2615
        %s2968 = scalar_lea.vmem [#allocation1], 4
        %2969 = vst [vmem:[%s2968] ss:$9 sm:$0xff] %v2616
        %s2970 = scalar_lea.vmem [#allocation1], 5
        %2971 = vst [vmem:[%s2970] ss:$9 sm:$0xff] %v2617
        %s2972 = scalar_lea.vmem [#allocation1], 6
        %2973 = vst [vmem:[%s2972] ss:$9 sm:$0xff] %v2618
        %s2974 = scalar_lea.vmem [#allocation1], 7
        %2975 = vst [vmem:[%s2974] ss:$9 sm:$0xff] %v2619
        %v2976 = vld [vmem:[#allocation1] sm:$0xff]
        %2977 = vst [vmem:[#allocation1] ss:$9 sm:$0xff] %v2604
        %v2978 = vld [vmem:[#allocation1] sm:$0xff]
        %2979 = vst [vmem:[#allocation1] ss:$9 sm:$0xff] %v2620
        %2980 = vst [vmem:[%s2962] ss:$9 sm:$0xff] %v2621
        %2981 = vst [vmem:[%s2964] ss:$9 sm:$0xff] %v2622
        %2982 = vst [vmem:[%s2966] ss:$9 sm:$0xff] %v2623
        %2983 = vst [vmem:[%s2968] ss:$9 sm:$0xff] %v2624
        %2984 = vst [vmem:[%s2970] ss:$9 sm:$0xff] %v2625
        %2985 = vst [vmem:[%s2972] ss:$9 sm:$0xff] %v2626
        %2986 = vst [vmem:[%s2974] ss:$9 sm:$0xff] %v2607
        %v2987 = vld [vmem:[#allocation1] sm:$0xff]
        %2988 = vst [vmem:[#allocation1] ss:$9 sm:$0xff] %v2627
        %v2989 = vld [vmem:[#allocation1] sm:$0xff]
        %v2994 = vpack.c.bf16 %v2976, %v2976
        %v2995 = vpack.c.bf16 %v2978, %v2978
        %v2996 = vpack.c.bf16 %v2987, %v2987
        %v2997 = vpack.c.bf16 %v2989, %v2989
        %v3000 = vunpack.c.l.b16 %v2957
        %v3001 = vunpack.c.l.b16 %v2958
        %v3002 = vpack.c.b16 %v3001, %v3000
        %3003 = vrot.lane.b32.xlu0 %v3002, 120
        %v3004 = vpop.permute.xlu0 %3003
        %v3007 = vunpack.c.l.b16 %v2994
        %v3008 = vunpack.c.l.b16 %v2995
        %v3009 = vpack.c.b16 %v3008, %v3007
        %3010 = vrot.lane.b32.xlu0 %v3009, 88
        %v3011 = vpop.permute.xlu0 %3010
        %v3013 = vsel %vm1761, %v3004, 0
        %v3016 = vsel %vm1761, %v3011, 0
        %3018 = vmatpush.bf16.xpose.msra.mxu0 0
        %3019 = vmatpush.bf16.xpose.msra.mxu0 0
        %3020 = vmatpush.bf16.xpose.msra.mxu0 0
        %3021 = vmatpush.bf16.xpose.msra.mxu0 0
        %3022 = vmatpush.bf16.xpose.msra.mxu0 0
        %3023 = vmatpush.bf16.xpose.msra.mxu0 0
        %3024 = vmatpush.bf16.xpose.msra.mxu0 0
        %3025 = vmatpush.bf16.xpose.msra.mxu0 %v3016
        %3026 = vmatmul.bf16.gmra.mxu0 %v3013
        %v3027 = vpop.f32.mrf.mxu0
        %v3028 = vadd.f32 0.0, %v3027
        %v3029 = vpop.f32.mrf.mxu0
        %v3030 = vadd.f32 0.0, %v3029
        %3031 = vdwg.mxu0
        %v3034 = vunpack.c.l.b16 %v2959
        %v3035 = vunpack.c.l.b16 %v2960
        %v3036 = vpack.c.b16 %v3035, %v3034
        %3037 = vrot.lane.b32.xlu0 %v3036, 120
        %v3038 = vpop.permute.xlu0 %3037
        %v3041 = vunpack.c.l.b16 %v2996
        %v3042 = vunpack.c.l.b16 %v2997
        %v3043 = vpack.c.b16 %v3042, %v3041
        %3044 = vrot.lane.b32.xlu0 %v3043, 88
        %v3045 = vpop.permute.xlu0 %3044
        %v3047 = vsel %vm1761, %v3038, 0
        %v3050 = vsel %vm1761, %v3045, 0
        %3052 = vmatpush.bf16.xpose.msra.mxu0 0
        %3053 = vmatpush.bf16.xpose.msra.mxu0 0
        %3054 = vmatpush.bf16.xpose.msra.mxu0 0
        %3055 = vmatpush.bf16.xpose.msra.mxu0 0
        %3056 = vmatpush.bf16.xpose.msra.mxu0 0
        %3057 = vmatpush.bf16.xpose.msra.mxu0 0
        %3058 = vmatpush.bf16.xpose.msra.mxu0 0
        %3059 = vmatpush.bf16.xpose.msra.mxu0 %v3050
        %3060 = vmatmul.bf16.gmra.mxu0 %v3047
        %v3061 = vpop.f32.mrf.mxu0
        %v3062 = vadd.f32 0.0, %v3061
        %v3063 = vpop.f32.mrf.mxu0
        %v3064 = vadd.f32 0.0, %v3063
        %3065 = vdwg.mxu0
        %v3066 = vmul.f32 %v3028, 0.35355338
        %v3067 = vmul.f32 %v3030, 0.35355338
        %v3068 = vmul.f32 %v3062, 0.35355338
        %v3069 = vmul.f32 %v3064, 0.35355338
        %v3070 = vsel %vm1709, %v3066, -inf
        %3071 = vmax.xlane.f32.xlu0 %v3070
        %v3072 = vpop.xlane.xlu0 %3071
        %v3073 = vsel %vm2773, %v3067, -inf
        %3074 = vmax.xlane.f32.xlu0 %v3073
        %v3075 = vpop.xlane.xlu0 %3074
        %v3076 = vsel %vm1709, %v3068, -inf
        %3077 = vmax.xlane.f32.xlu0 %v3076
        %v3078 = vpop.xlane.xlu0 %3077
        %v3079 = vsel %vm2773, %v3069, -inf
        %3080 = vmax.xlane.f32.xlu0 %v3079
        %v3081 = vpop.xlane.xlu0 %3080
        %v3082 = vsub.f32 %v3066, %v3072
        %v3083 = vsub.f32 %v3067, %v3075
        %v3084 = vsub.f32 %v3068, %v3078
        %v3085 = vsub.f32 %v3069, %v3081
        %v3086 = vmul.f32 %v3082, 1.442695
        %v3087 = vpow.pop %v3086
        %v3088 = vmul.f32 %v3083, 1.442695
        %v3089 = vpow.pop %v3088
        %v3090 = vmul.f32 %v3084, 1.442695
        %v3091 = vpow.pop %v3090
        %v3092 = vmul.f32 %v3085, 1.442695
        %v3093 = vpow.pop %v3092
        %v3094 = vsel %vm1709, %v3087, 0.0
        %3095 = vadd.xlane.f32.xlu0 %v3094
        %v3096 = vpop.xlane.xlu0 %3095
        %v3097 = vsel %vm2773, %v3089, 0.0
        %3098 = vadd.xlane.f32.xlu0 %v3097
        %v3099 = vpop.xlane.xlu0 %3098
        %v3100 = vsel %vm1709, %v3091, 0.0
        %3101 = vadd.xlane.f32.xlu0 %v3100
        %v3102 = vpop.xlane.xlu0 %3101
        %v3103 = vsel %vm2773, %v3093, 0.0
        %3104 = vadd.xlane.f32.xlu0 %v3103
        %v3105 = vpop.xlane.xlu0 %3104
        %v3106 = vrcp.pop %v3096
        %v3107 = vrcp.pop %v3099
        %v3108 = vrcp.pop %v3102
        %v3109 = vrcp.pop %v3105
        %v3110 = vmul.f32 %v3087, %v3106
        %v3111 = vmul.f32 %v3089, %v3107
        %v3112 = vmul.f32 %v3091, %v3108
        %v3113 = vmul.f32 %v3093, %v3109
        %v3114 = vpack.c.bf16 %v3110, %v3110
        %v3115 = vpack.c.bf16 %v3111, %v3111
        %v3116 = vpack.c.bf16 %v3112, %v3112
        %v3117 = vpack.c.bf16 %v3113, %v3113
        %3118 = vst [vmem:[#allocation1] ss:$9 sm:$0xff] %v2602
        %s3119 = scalar_lea.vmem [#allocation1], 1
        %3120 = vst [vmem:[%s3119] ss:$9 sm:$0xff] %v2613
        %s3121 = scalar_lea.vmem [#allocation1], 2
        %3122 = vst [vmem:[%s3121] ss:$9 sm:$0xff] %v2614
        %s3123 = scalar_lea.vmem [#allocation1], 3
        %3124 = vst [vmem:[%s3123] ss:$9 sm:$0xff] %v2615
        %s3125 = scalar_lea.vmem [#allocation1], 4
        %3126 = vst [vmem:[%s3125] ss:$9 sm:$0xff] %v2616
        %s3127 = scalar_lea.vmem [#allocation1], 5
        %3128 = vst [vmem:[%s3127] ss:$9 sm:$0xff] %v2617
        %s3129 = scalar_lea.vmem [#allocation1], 6
        %3130 = vst [vmem:[%s3129] ss:$9 sm:$0xff] %v2618
        %s3131 = scalar_lea.vmem [#allocation1], 7
        %3132 = vst [vmem:[%s3131] ss:$9 sm:$0xff] %v2619
        %v3133 = vld [vmem:[#allocation1] sm:$0xff]
        %3134 = vst [vmem:[#allocation1] ss:$9 sm:$0xff] %v2604
        %v3135 = vld [vmem:[#allocation1] sm:$0xff]
        %3136 = vst [vmem:[#allocation1] ss:$9 sm:$0xff] %v2620
        %3137 = vst [vmem:[%s3119] ss:$9 sm:$0xff] %v2621
        %3138 = vst [vmem:[%s3121] ss:$9 sm:$0xff] %v2622
        %3139 = vst [vmem:[%s3123] ss:$9 sm:$0xff] %v2623
        %3140 = vst [vmem:[%s3125] ss:$9 sm:$0xff] %v2624
        %3141 = vst [vmem:[%s3127] ss:$9 sm:$0xff] %v2625
        %3142 = vst [vmem:[%s3129] ss:$9 sm:$0xff] %v2626
        %3143 = vst [vmem:[%s3131] ss:$9 sm:$0xff] %v2607
        %v3144 = vld [vmem:[#allocation1] sm:$0xff]
        %3145 = vst [vmem:[#allocation1] ss:$9 sm:$0xff] %v2627
        %v3146 = vld [vmem:[#allocation1] sm:$0xff]
        %v3151 = vpack.c.bf16 %v3133, %v3133
        %v3152 = vpack.c.bf16 %v3135, %v3135
        %v3153 = vpack.c.bf16 %v3144, %v3144
        %v3154 = vpack.c.bf16 %v3146, %v3146
        %v3157 = vunpack.c.l.b16 %v3114
        %v3158 = vunpack.c.l.b16 %v3115
        %v3159 = vpack.c.b16 %v3158, %v3157
        %v3162 = vunpack.c.l.b16 %v3151
        %v3163 = vunpack.c.l.b16 %v3152
        %v3164 = vpack.c.b16 %v3163, %v3162
        %3165 = vrot.lane.b32.xlu0 %v3164, 56
        %v3166 = vpop.permute.xlu0 %3165
        %v3168 = vsel %vm1709, %v3159, 0
        %v3171 = vand.u32 %v3166, %v1716
        %3173 = vmatpush.bf16.msra.mxu0 0
        %3174 = vmatpush.bf16.msra.mxu0 0
        %3175 = vmatpush.bf16.msra.mxu0 0
        %3176 = vmatpush.bf16.msra.mxu0 0
        %3177 = vmatpush.bf16.msra.mxu0 0
        %3178 = vmatpush.bf16.msra.mxu0 0
        %3179 = vmatpush.bf16.msra.mxu0 0
        %3180 = vmatpush.bf16.msra.mxu0 %v3171
        %3181 = vmatmul.bf16.gmra.mxu0 %v3168
        %v3182 = vpop.f32.mrf.mxu0
        %v3183 = vadd.f32 0.0, %v3182
        %v3184 = vpop.f32.mrf.mxu0
        %v3185 = vadd.f32 0.0, %v3184
        %3186 = vdwg.mxu0
        %v3189 = vunpack.c.l.b16 %v3116
        %v3190 = vunpack.c.l.b16 %v3117
        %v3191 = vpack.c.b16 %v3190, %v3189
        %v3194 = vunpack.c.l.b16 %v3153
        %v3195 = vunpack.c.l.b16 %v3154
        %v3196 = vpack.c.b16 %v3195, %v3194
        %3197 = vrot.lane.b32.xlu0 %v3196, 56
        %v3198 = vpop.permute.xlu0 %3197
        %v3200 = vsel %vm1709, %v3191, 0
        %v3203 = vand.u32 %v3198, %v1716
        %3205 = vmatpush.bf16.msra.mxu0 0
        %3206 = vmatpush.bf16.msra.mxu0 0
        %3207 = vmatpush.bf16.msra.mxu0 0
        %3208 = vmatpush.bf16.msra.mxu0 0
        %3209 = vmatpush.bf16.msra.mxu0 0
        %3210 = vmatpush.bf16.msra.mxu0 0
        %3211 = vmatpush.bf16.msra.mxu0 0
        %3212 = vmatpush.bf16.msra.mxu0 %v3203
        %3213 = vmatmul.bf16.gmra.mxu0 %v3200
        %v3214 = vpop.f32.mrf.mxu0
        %v3215 = vadd.f32 0.0, %v3214
        %v3216 = vpop.f32.mrf.mxu0
        %v3217 = vadd.f32 0.0, %v3216
        %3218 = vdwg.mxu0
        %3223 = vrot.lane.b32.xlu0 %v3183, 8
        %v3224 = vpop.permute.xlu0 %3223
        %3225 = vrot.lane.b32.xlu0 %v3185, 8
        %v3226 = vpop.permute.xlu0 %3225
        %3227 = vrot.lane.b32.xlu0 %v3215, 8
        %v3228 = vpop.permute.xlu0 %3227
        %3229 = vrot.lane.b32.xlu0 %v3217, 8
        %v3230 = vpop.permute.xlu0 %3229
        %3235 = vst.msk [vmem:[#allocation4] sm:$0xff] %vm2106, %v3224
        %3236 = vst.msk [vmem:[#allocation4 + $0x8] sm:$0x1] %vm2108, %v3226
        %3237 = vst.msk [vmem:[#allocation4 + $0x10] sm:$0xff] %vm2106, %v3228
        %3238 = vst.msk [vmem:[#allocation4 + $0x18] sm:$0x1] %vm2108, %v3230
        %3239 = vst [vmem:[#allocation1] ss:$9 sm:$0xff] %v2602
        %s3240 = scalar_lea.vmem [#allocation1], 1
        %3241 = vst [vmem:[%s3240] ss:$9 sm:$0xff] %v2613
        %s3242 = scalar_lea.vmem [#allocation1], 2
        %3243 = vst [vmem:[%s3242] ss:$9 sm:$0xff] %v2614
        %s3244 = scalar_lea.vmem [#allocation1], 3
        %3245 = vst [vmem:[%s3244] ss:$9 sm:$0xff] %v2615
        %s3246 = scalar_lea.vmem [#allocation1], 4
        %3247 = vst [vmem:[%s3246] ss:$9 sm:$0xff] %v2616
        %s3248 = scalar_lea.vmem [#allocation1], 5
        %3249 = vst [vmem:[%s3248] ss:$9 sm:$0xff] %v2617
        %s3250 = scalar_lea.vmem [#allocation1], 6
        %3251 = vst [vmem:[%s3250] ss:$9 sm:$0xff] %v2618
        %s3252 = scalar_lea.vmem [#allocation1], 7
        %3253 = vst [vmem:[%s3252] ss:$9 sm:$0xff] %v2619
        %v3254 = vld [vmem:[#allocation1] sm:$0xff]
        %3255 = vst [vmem:[#allocation1] ss:$9 sm:$0xff] %v2604
        %v3256 = vld [vmem:[#allocation1] sm:$0xff]
        %3257 = vst [vmem:[#allocation1] ss:$9 sm:$0xff] %v2620
        %3258 = vst [vmem:[%s3240] ss:$9 sm:$0xff] %v2621
        %3259 = vst [vmem:[%s3242] ss:$9 sm:$0xff] %v2622
        %3260 = vst [vmem:[%s3244] ss:$9 sm:$0xff] %v2623
        %3261 = vst [vmem:[%s3246] ss:$9 sm:$0xff] %v2624
        %3262 = vst [vmem:[%s3248] ss:$9 sm:$0xff] %v2625
        %3263 = vst [vmem:[%s3250] ss:$9 sm:$0xff] %v2626
        %3264 = vst [vmem:[%s3252] ss:$9 sm:$0xff] %v2607
        %v3265 = vld [vmem:[#allocation1] sm:$0xff]
        %3266 = vst [vmem:[#allocation1] ss:$9 sm:$0xff] %v2627
        %v3267 = vld [vmem:[#allocation1] sm:$0xff]
        %v3272 = vpack.c.bf16 %v3254, %v3254
        %v3273 = vpack.c.bf16 %v3256, %v3256
        %v3274 = vpack.c.bf16 %v3265, %v3265
        %v3275 = vpack.c.bf16 %v3267, %v3267
        %3276 = vst [vmem:[#allocation1] ss:$9 sm:$0xff] %v2602
        %s3277 = scalar_lea.vmem [#allocation1], 1
        %3278 = vst [vmem:[%s3277] ss:$9 sm:$0xff] %v2613
        %s3279 = scalar_lea.vmem [#allocation1], 2
        %3280 = vst [vmem:[%s3279] ss:$9 sm:$0xff] %v2614
        %s3281 = scalar_lea.vmem [#allocation1], 3
        %3282 = vst [vmem:[%s3281] ss:$9 sm:$0xff] %v2615
        %s3283 = scalar_lea.vmem [#allocation1], 4
        %3284 = vst [vmem:[%s3283] ss:$9 sm:$0xff] %v2616
        %s3285 = scalar_lea.vmem [#allocation1], 5
        %3286 = vst [vmem:[%s3285] ss:$9 sm:$0xff] %v2617
        %s3287 = scalar_lea.vmem [#allocation1], 6
        %3288 = vst [vmem:[%s3287] ss:$9 sm:$0xff] %v2618
        %s3289 = scalar_lea.vmem [#allocation1], 7
        %3290 = vst [vmem:[%s3289] ss:$9 sm:$0xff] %v2619
        %v3291 = vld [vmem:[#allocation1] sm:$0xff]
        %3292 = vst [vmem:[#allocation1] ss:$9 sm:$0xff] %v2604
        %v3293 = vld [vmem:[#allocation1] sm:$0xff]
        %3294 = vst [vmem:[#allocation1] ss:$9 sm:$0xff] %v2620
        %3295 = vst [vmem:[%s3277] ss:$9 sm:$0xff] %v2621
        %3296 = vst [vmem:[%s3279] ss:$9 sm:$0xff] %v2622
        %3297 = vst [vmem:[%s3281] ss:$9 sm:$0xff] %v2623
        %3298 = vst [vmem:[%s3283] ss:$9 sm:$0xff] %v2624
        %3299 = vst [vmem:[%s3285] ss:$9 sm:$0xff] %v2625
        %3300 = vst [vmem:[%s3287] ss:$9 sm:$0xff] %v2626
        %3301 = vst [vmem:[%s3289] ss:$9 sm:$0xff] %v2607
        %v3302 = vld [vmem:[#allocation1] sm:$0xff]
        %3303 = vst [vmem:[#allocation1] ss:$9 sm:$0xff] %v2627
        %v3304 = vld [vmem:[#allocation1] sm:$0xff]
        %v3309 = vpack.c.bf16 %v3291, %v3291
        %v3310 = vpack.c.bf16 %v3293, %v3293
        %v3311 = vpack.c.bf16 %v3302, %v3302
        %v3312 = vpack.c.bf16 %v3304, %v3304
        %v3315 = vunpack.c.l.b16 %v3272
        %v3316 = vunpack.c.l.b16 %v3273
        %v3317 = vpack.c.b16 %v3316, %v3315
        %3318 = vrot.lane.b32.xlu0 %v3317, 112
        %v3319 = vpop.permute.xlu0 %3318
        %v3322 = vunpack.c.l.b16 %v3309
        %v3323 = vunpack.c.l.b16 %v3310
        %v3324 = vpack.c.b16 %v3323, %v3322
        %3325 = vrot.lane.b32.xlu0 %v3324, 80
        %v3326 = vpop.permute.xlu0 %3325
        %v3328 = vsel %vm1761, %v3319, 0
        %v3331 = vsel %vm1761, %v3326, 0
        %3333 = vmatpush.bf16.xpose.msra.mxu0 0
        %3334 = vmatpush.bf16.xpose.msra.mxu0 0
        %3335 = vmatpush.bf16.xpose.msra.mxu0 0
        %3336 = vmatpush.bf16.xpose.msra.mxu0 0
        %3337 = vmatpush.bf16.xpose.msra.mxu0 0
        %3338 = vmatpush.bf16.xpose.msra.mxu0 0
        %3339 = vmatpush.bf16.xpose.msra.mxu0 0
        %3340 = vmatpush.bf16.xpose.msra.mxu0 %v3331
        %3341 = vmatmul.bf16.gmra.mxu0 %v3328
        %v3342 = vpop.f32.mrf.mxu0
        %v3343 = vadd.f32 0.0, %v3342
        %v3344 = vpop.f32.mrf.mxu0
        %v3345 = vadd.f32 0.0, %v3344
        %3346 = vdwg.mxu0
        %v3349 = vunpack.c.l.b16 %v3274
        %v3350 = vunpack.c.l.b16 %v3275
        %v3351 = vpack.c.b16 %v3350, %v3349
        %3352 = vrot.lane.b32.xlu0 %v3351, 112
        %v3353 = vpop.permute.xlu0 %3352
        %v3356 = vunpack.c.l.b16 %v3311
        %v3357 = vunpack.c.l.b16 %v3312
        %v3358 = vpack.c.b16 %v3357, %v3356
        %3359 = vrot.lane.b32.xlu0 %v3358, 80
        %v3360 = vpop.permute.xlu0 %3359
        %v3362 = vsel %vm1761, %v3353, 0
        %v3365 = vsel %vm1761, %v3360, 0
        %3367 = vmatpush.bf16.xpose.msra.mxu0 0
        %3368 = vmatpush.bf16.xpose.msra.mxu0 0
        %3369 = vmatpush.bf16.xpose.msra.mxu0 0
        %3370 = vmatpush.bf16.xpose.msra.mxu0 0
        %3371 = vmatpush.bf16.xpose.msra.mxu0 0
        %3372 = vmatpush.bf16.xpose.msra.mxu0 0
        %3373 = vmatpush.bf16.xpose.msra.mxu0 0
        %3374 = vmatpush.bf16.xpose.msra.mxu0 %v3365
        %3375 = vmatmul.bf16.gmra.mxu0 %v3362
        %v3376 = vpop.f32.mrf.mxu0
        %v3377 = vadd.f32 0.0, %v3376
        %v3378 = vpop.f32.mrf.mxu0
        %v3379 = vadd.f32 0.0, %v3378
        %3380 = vdwg.mxu0
        %v3381 = vmul.f32 %v3343, 0.35355338
        %v3382 = vmul.f32 %v3345, 0.35355338
        %v3383 = vmul.f32 %v3377, 0.35355338
        %v3384 = vmul.f32 %v3379, 0.35355338
        %v3385 = vsel %vm1709, %v3381, -inf
        %3386 = vmax.xlane.f32.xlu0 %v3385
        %v3387 = vpop.xlane.xlu0 %3386
        %v3388 = vsel %vm2773, %v3382, -inf
        %3389 = vmax.xlane.f32.xlu0 %v3388
        %v3390 = vpop.xlane.xlu0 %3389
        %v3391 = vsel %vm1709, %v3383, -inf
        %3392 = vmax.xlane.f32.xlu0 %v3391
        %v3393 = vpop.xlane.xlu0 %3392
        %v3394 = vsel %vm2773, %v3384, -inf
        %3395 = vmax.xlane.f32.xlu0 %v3394
        %v3396 = vpop.xlane.xlu0 %3395
        %v3397 = vsub.f32 %v3381, %v3387
        %v3398 = vsub.f32 %v3382, %v3390
        %v3399 = vsub.f32 %v3383, %v3393
        %v3400 = vsub.f32 %v3384, %v3396
        %v3401 = vmul.f32 %v3397, 1.442695
        %v3402 = vpow.pop %v3401
        %v3403 = vmul.f32 %v3398, 1.442695
        %v3404 = vpow.pop %v3403
        %v3405 = vmul.f32 %v3399, 1.442695
        %v3406 = vpow.pop %v3405
        %v3407 = vmul.f32 %v3400, 1.442695
        %v3408 = vpow.pop %v3407
        %v3409 = vsel %vm1709, %v3402, 0.0
        %3410 = vadd.xlane.f32.xlu0 %v3409
        %v3411 = vpop.xlane.xlu0 %3410
        %v3412 = vsel %vm2773, %v3404, 0.0
        %3413 = vadd.xlane.f32.xlu0 %v3412
        %v3414 = vpop.xlane.xlu0 %3413
        %v3415 = vsel %vm1709, %v3406, 0.0
        %3416 = vadd.xlane.f32.xlu0 %v3415
        %v3417 = vpop.xlane.xlu0 %3416
        %v3418 = vsel %vm2773, %v3408, 0.0
        %3419 = vadd.xlane.f32.xlu0 %v3418
        %v3420 = vpop.xlane.xlu0 %3419
        %v3421 = vrcp.pop %v3411
        %v3422 = vrcp.pop %v3414
        %v3423 = vrcp.pop %v3417
        %v3424 = vrcp.pop %v3420
        %v3425 = vmul.f32 %v3402, %v3421
        %v3426 = vmul.f32 %v3404, %v3422
        %v3427 = vmul.f32 %v3406, %v3423
        %v3428 = vmul.f32 %v3408, %v3424
        %v3429 = vpack.c.bf16 %v3425, %v3425
        %v3430 = vpack.c.bf16 %v3426, %v3426
        %v3431 = vpack.c.bf16 %v3427, %v3427
        %v3432 = vpack.c.bf16 %v3428, %v3428
        %3433 = vst [vmem:[#allocation1] ss:$9 sm:$0xff] %v2602
        %s3434 = scalar_lea.vmem [#allocation1], 1
        %3435 = vst [vmem:[%s3434] ss:$9 sm:$0xff] %v2613
        %s3436 = scalar_lea.vmem [#allocation1], 2
        %3437 = vst [vmem:[%s3436] ss:$9 sm:$0xff] %v2614
        %s3438 = scalar_lea.vmem [#allocation1], 3
        %3439 = vst [vmem:[%s3438] ss:$9 sm:$0xff] %v2615
        %s3440 = scalar_lea.vmem [#allocation1], 4
        %3441 = vst [vmem:[%s3440] ss:$9 sm:$0xff] %v2616
        %s3442 = scalar_lea.vmem [#allocation1], 5
        %3443 = vst [vmem:[%s3442] ss:$9 sm:$0xff] %v2617
        %s3444 = scalar_lea.vmem [#allocation1], 6
        %3445 = vst [vmem:[%s3444] ss:$9 sm:$0xff] %v2618
        %s3446 = scalar_lea.vmem [#allocation1], 7
        %3447 = vst [vmem:[%s3446] ss:$9 sm:$0xff] %v2619
        %v3448 = vld [vmem:[#allocation1] sm:$0xff]
        %3449 = vst [vmem:[#allocation1] ss:$9 sm:$0xff] %v2604
        %v3450 = vld [vmem:[#allocation1] sm:$0xff]
        %3451 = vst [vmem:[#allocation1] ss:$9 sm:$0xff] %v2620
        %3452 = vst [vmem:[%s3434] ss:$9 sm:$0xff] %v2621
        %3453 = vst [vmem:[%s3436] ss:$9 sm:$0xff] %v2622
        %3454 = vst [vmem:[%s3438] ss:$9 sm:$0xff] %v2623
        %3455 = vst [vmem:[%s3440] ss:$9 sm:$0xff] %v2624
        %3456 = vst [vmem:[%s3442] ss:$9 sm:$0xff] %v2625
        %3457 = vst [vmem:[%s3444] ss:$9 sm:$0xff] %v2626
        %3458 = vst [vmem:[%s3446] ss:$9 sm:$0xff] %v2607
        %v3459 = vld [vmem:[#allocation1] sm:$0xff]
        %3460 = vst [vmem:[#allocation1] ss:$9 sm:$0xff] %v2627
        %v3461 = vld [vmem:[#allocation1] sm:$0xff]
        %v3466 = vpack.c.bf16 %v3448, %v3448
        %v3467 = vpack.c.bf16 %v3450, %v3450
        %v3468 = vpack.c.bf16 %v3459, %v3459
        %v3469 = vpack.c.bf16 %v3461, %v3461
        %v3472 = vunpack.c.l.b16 %v3429
        %v3473 = vunpack.c.l.b16 %v3430
        %v3474 = vpack.c.b16 %v3473, %v3472
        %v3477 = vunpack.c.l.b16 %v3466
        %v3478 = vunpack.c.l.b16 %v3467
        %v3479 = vpack.c.b16 %v3478, %v3477
        %3480 = vrot.lane.b32.xlu0 %v3479, 48
        %v3481 = vpop.permute.xlu0 %3480
        %v3483 = vsel %vm1709, %v3474, 0
        %v3486 = vand.u32 %v3481, %v1716
        %3488 = vmatpush.bf16.msra.mxu0 0
        %3489 = vmatpush.bf16.msra.mxu0 0
        %3490 = vmatpush.bf16.msra.mxu0 0
        %3491 = vmatpush.bf16.msra.mxu0 0
        %3492 = vmatpush.bf16.msra.mxu0 0
        %3493 = vmatpush.bf16.msra.mxu0 0
        %3494 = vmatpush.bf16.msra.mxu0 0
        %3495 = vmatpush.bf16.msra.mxu0 %v3486
        %3496 = vmatmul.bf16.gmra.mxu0 %v3483
        %v3497 = vpop.f32.mrf.mxu0
        %v3498 = vadd.f32 0.0, %v3497
        %v3499 = vpop.f32.mrf.mxu0
        %v3500 = vadd.f32 0.0, %v3499
        %3501 = vdwg.mxu0
        %v3504 = vunpack.c.l.b16 %v3431
        %v3505 = vunpack.c.l.b16 %v3432
        %v3506 = vpack.c.b16 %v3505, %v3504
        %v3509 = vunpack.c.l.b16 %v3468
        %v3510 = vunpack.c.l.b16 %v3469
        %v3511 = vpack.c.b16 %v3510, %v3509
        %3512 = vrot.lane.b32.xlu0 %v3511, 48
        %v3513 = vpop.permute.xlu0 %3512
        %v3515 = vsel %vm1709, %v3506, 0
        %v3518 = vand.u32 %v3513, %v1716
        %3520 = vmatpush.bf16.msra.mxu0 0
        %3521 = vmatpush.bf16.msra.mxu0 0
        %3522 = vmatpush.bf16.msra.mxu0 0
        %3523 = vmatpush.bf16.msra.mxu0 0
        %3524 = vmatpush.bf16.msra.mxu0 0
        %3525 = vmatpush.bf16.msra.mxu0 0
        %3526 = vmatpush.bf16.msra.mxu0 0
        %3527 = vmatpush.bf16.msra.mxu0 %v3518
        %3528 = vmatmul.bf16.gmra.mxu0 %v3515
        %v3529 = vpop.f32.mrf.mxu0
        %v3530 = vadd.f32 0.0, %v3529
        %v3531 = vpop.f32.mrf.mxu0
        %v3532 = vadd.f32 0.0, %v3531
        %3533 = vdwg.mxu0
        %3538 = vrot.lane.b32.xlu0 %v3498, 16
        %v3539 = vpop.permute.xlu0 %3538
        %3540 = vrot.lane.b32.xlu0 %v3500, 16
        %v3541 = vpop.permute.xlu0 %3540
        %3542 = vrot.lane.b32.xlu0 %v3530, 16
        %v3543 = vpop.permute.xlu0 %3542
        %3544 = vrot.lane.b32.xlu0 %v3532, 16
        %v3545 = vpop.permute.xlu0 %3544
        %3550 = vst.msk [vmem:[#allocation4] sm:$0xff] %vm2336, %v3539
        %3551 = vst.msk [vmem:[#allocation4 + $0x8] sm:$0x1] %vm2338, %v3541
        %3552 = vst.msk [vmem:[#allocation4 + $0x10] sm:$0xff] %vm2336, %v3543
        %3553 = vst.msk [vmem:[#allocation4 + $0x18] sm:$0x1] %vm2338, %v3545
        %3554 = vst [vmem:[#allocation1] ss:$9 sm:$0xff] %v2602
        %s3555 = scalar_lea.vmem [#allocation1], 1
        %3556 = vst [vmem:[%s3555] ss:$9 sm:$0xff] %v2613
        %s3557 = scalar_lea.vmem [#allocation1], 2
        %3558 = vst [vmem:[%s3557] ss:$9 sm:$0xff] %v2614
        %s3559 = scalar_lea.vmem [#allocation1], 3
        %3560 = vst [vmem:[%s3559] ss:$9 sm:$0xff] %v2615
        %s3561 = scalar_lea.vmem [#allocation1], 4
        %3562 = vst [vmem:[%s3561] ss:$9 sm:$0xff] %v2616
        %s3563 = scalar_lea.vmem [#allocation1], 5
        %3564 = vst [vmem:[%s3563] ss:$9 sm:$0xff] %v2617
        %s3565 = scalar_lea.vmem [#allocation1], 6
        %3566 = vst [vmem:[%s3565] ss:$9 sm:$0xff] %v2618
        %s3567 = scalar_lea.vmem [#allocation1], 7
        %3568 = vst [vmem:[%s3567] ss:$9 sm:$0xff] %v2619
        %v3569 = vld [vmem:[#allocation1] sm:$0xff]
        %3570 = vst [vmem:[#allocation1] ss:$9 sm:$0xff] %v2604
        %v3571 = vld [vmem:[#allocation1] sm:$0xff]
        %3572 = vst [vmem:[#allocation1] ss:$9 sm:$0xff] %v2620
        %3573 = vst [vmem:[%s3555] ss:$9 sm:$0xff] %v2621
        %3574 = vst [vmem:[%s3557] ss:$9 sm:$0xff] %v2622
        %3575 = vst [vmem:[%s3559] ss:$9 sm:$0xff] %v2623
        %3576 = vst [vmem:[%s3561] ss:$9 sm:$0xff] %v2624
        %3577 = vst [vmem:[%s3563] ss:$9 sm:$0xff] %v2625
        %3578 = vst [vmem:[%s3565] ss:$9 sm:$0xff] %v2626
        %3579 = vst [vmem:[%s3567] ss:$9 sm:$0xff] %v2607
        %v3580 = vld [vmem:[#allocation1] sm:$0xff]
        %3581 = vst [vmem:[#allocation1] ss:$9 sm:$0xff] %v2627
        %v3582 = vld [vmem:[#allocation1] sm:$0xff]
        %v3587 = vpack.c.bf16 %v3569, %v3569
        %v3588 = vpack.c.bf16 %v3571, %v3571
        %v3589 = vpack.c.bf16 %v3580, %v3580
        %v3590 = vpack.c.bf16 %v3582, %v3582
        %3591 = vst [vmem:[#allocation1] ss:$9 sm:$0xff] %v2602
        %s3592 = scalar_lea.vmem [#allocation1], 1
        %3593 = vst [vmem:[%s3592] ss:$9 sm:$0xff] %v2613
        %s3594 = scalar_lea.vmem [#allocation1], 2
        %3595 = vst [vmem:[%s3594] ss:$9 sm:$0xff] %v2614
        %s3596 = scalar_lea.vmem [#allocation1], 3
        %3597 = vst [vmem:[%s3596] ss:$9 sm:$0xff] %v2615
        %s3598 = scalar_lea.vmem [#allocation1], 4
        %3599 = vst [vmem:[%s3598] ss:$9 sm:$0xff] %v2616
        %s3600 = scalar_lea.vmem [#allocation1], 5
        %3601 = vst [vmem:[%s3600] ss:$9 sm:$0xff] %v2617
        %s3602 = scalar_lea.vmem [#allocation1], 6
        %3603 = vst [vmem:[%s3602] ss:$9 sm:$0xff] %v2618
        %s3604 = scalar_lea.vmem [#allocation1], 7
        %3605 = vst [vmem:[%s3604] ss:$9 sm:$0xff] %v2619
        %v3606 = vld [vmem:[#allocation1] sm:$0xff]
        %3607 = vst [vmem:[#allocation1] ss:$9 sm:$0xff] %v2604
        %v3608 = vld [vmem:[#allocation1] sm:$0xff]
        %3609 = vst [vmem:[#allocation1] ss:$9 sm:$0xff] %v2620
        %3610 = vst [vmem:[%s3592] ss:$9 sm:$0xff] %v2621
        %3611 = vst [vmem:[%s3594] ss:$9 sm:$0xff] %v2622
        %3612 = vst [vmem:[%s3596] ss:$9 sm:$0xff] %v2623
        %3613 = vst [vmem:[%s3598] ss:$9 sm:$0xff] %v2624
        %3614 = vst [vmem:[%s3600] ss:$9 sm:$0xff] %v2625
        %3615 = vst [vmem:[%s3602] ss:$9 sm:$0xff] %v2626
        %3616 = vst [vmem:[%s3604] ss:$9 sm:$0xff] %v2607
        %v3617 = vld [vmem:[#allocation1] sm:$0xff]
        %3618 = vst [vmem:[#allocation1] ss:$9 sm:$0xff] %v2627
        %v3619 = vld [vmem:[#allocation1] sm:$0xff]
        %v3624 = vpack.c.bf16 %v3606, %v3606
        %v3625 = vpack.c.bf16 %v3608, %v3608
        %v3626 = vpack.c.bf16 %v3617, %v3617
        %v3627 = vpack.c.bf16 %v3619, %v3619
        %v3630 = vunpack.c.l.b16 %v3587
        %v3631 = vunpack.c.l.b16 %v3588
        %v3632 = vpack.c.b16 %v3631, %v3630
        %3633 = vrot.lane.b32.xlu0 %v3632, 104
        %v3634 = vpop.permute.xlu0 %3633
        %v3637 = vunpack.c.l.b16 %v3624
        %v3638 = vunpack.c.l.b16 %v3625
        %v3639 = vpack.c.b16 %v3638, %v3637
        %3640 = vrot.lane.b32.xlu0 %v3639, 72
        %v3641 = vpop.permute.xlu0 %3640
        %v3643 = vsel %vm1761, %v3634, 0
        %v3646 = vsel %vm1761, %v3641, 0
        %3648 = vmatpush.bf16.xpose.msra.mxu0 0
        %3649 = vmatpush.bf16.xpose.msra.mxu0 0
        %3650 = vmatpush.bf16.xpose.msra.mxu0 0
        %3651 = vmatpush.bf16.xpose.msra.mxu0 0
        %3652 = vmatpush.bf16.xpose.msra.mxu0 0
        %3653 = vmatpush.bf16.xpose.msra.mxu0 0
        %3654 = vmatpush.bf16.xpose.msra.mxu0 0
        %3655 = vmatpush.bf16.xpose.msra.mxu0 %v3646
        %3656 = vmatmul.bf16.gmra.mxu0 %v3643
        %v3657 = vpop.f32.mrf.mxu0
        %v3658 = vadd.f32 0.0, %v3657
        %v3659 = vpop.f32.mrf.mxu0
        %v3660 = vadd.f32 0.0, %v3659
        %3661 = vdwg.mxu0
        %v3664 = vunpack.c.l.b16 %v3589
        %v3665 = vunpack.c.l.b16 %v3590
        %v3666 = vpack.c.b16 %v3665, %v3664
        %3667 = vrot.lane.b32.xlu0 %v3666, 104
        %v3668 = vpop.permute.xlu0 %3667
        %v3671 = vunpack.c.l.b16 %v3626
        %v3672 = vunpack.c.l.b16 %v3627
        %v3673 = vpack.c.b16 %v3672, %v3671
        %3674 = vrot.lane.b32.xlu0 %v3673, 72
        %v3675 = vpop.permute.xlu0 %3674
        %v3677 = vsel %vm1761, %v3668, 0
        %v3680 = vsel %vm1761, %v3675, 0
        %3682 = vmatpush.bf16.xpose.msra.mxu0 0
        %3683 = vmatpush.bf16.xpose.msra.mxu0 0
        %3684 = vmatpush.bf16.xpose.msra.mxu0 0
        %3685 = vmatpush.bf16.xpose.msra.mxu0 0
        %3686 = vmatpush.bf16.xpose.msra.mxu0 0
        %3687 = vmatpush.bf16.xpose.msra.mxu0 0
        %3688 = vmatpush.bf16.xpose.msra.mxu0 0
        %3689 = vmatpush.bf16.xpose.msra.mxu0 %v3680
        %3690 = vmatmul.bf16.gmra.mxu0 %v3677
        %v3691 = vpop.f32.mrf.mxu0
        %v3692 = vadd.f32 0.0, %v3691
        %v3693 = vpop.f32.mrf.mxu0
        %v3694 = vadd.f32 0.0, %v3693
        %3695 = vdwg.mxu0
        %v3696 = vmul.f32 %v3658, 0.35355338
        %v3697 = vmul.f32 %v3660, 0.35355338
        %v3698 = vmul.f32 %v3692, 0.35355338
        %v3699 = vmul.f32 %v3694, 0.35355338
        %v3700 = vsel %vm1709, %v3696, -inf
        %3701 = vmax.xlane.f32.xlu0 %v3700
        %v3702 = vpop.xlane.xlu0 %3701
        %v3703 = vsel %vm2773, %v3697, -inf
        %3704 = vmax.xlane.f32.xlu0 %v3703
        %v3705 = vpop.xlane.xlu0 %3704
        %v3706 = vsel %vm1709, %v3698, -inf
        %3707 = vmax.xlane.f32.xlu0 %v3706
        %v3708 = vpop.xlane.xlu0 %3707
        %v3709 = vsel %vm2773, %v3699, -inf
        %3710 = vmax.xlane.f32.xlu0 %v3709
        %v3711 = vpop.xlane.xlu0 %3710
        %v3712 = vsub.f32 %v3696, %v3702
        %v3713 = vsub.f32 %v3697, %v3705
        %v3714 = vsub.f32 %v3698, %v3708
        %v3715 = vsub.f32 %v3699, %v3711
        %v3716 = vmul.f32 %v3712, 1.442695
        %v3717 = vpow.pop %v3716
        %v3718 = vmul.f32 %v3713, 1.442695
        %v3719 = vpow.pop %v3718
        %v3720 = vmul.f32 %v3714, 1.442695
        %v3721 = vpow.pop %v3720
        %v3722 = vmul.f32 %v3715, 1.442695
        %v3723 = vpow.pop %v3722
        %v3724 = vsel %vm1709, %v3717, 0.0
        %3725 = vadd.xlane.f32.xlu0 %v3724
        %v3726 = vpop.xlane.xlu0 %3725
        %v3727 = vsel %vm2773, %v3719, 0.0
        %3728 = vadd.xlane.f32.xlu0 %v3727
        %v3729 = vpop.xlane.xlu0 %3728
        %v3730 = vsel %vm1709, %v3721, 0.0
        %3731 = vadd.xlane.f32.xlu0 %v3730
        %v3732 = vpop.xlane.xlu0 %3731
        %v3733 = vsel %vm2773, %v3723, 0.0
        %3734 = vadd.xlane.f32.xlu0 %v3733
        %v3735 = vpop.xlane.xlu0 %3734
        %v3736 = vrcp.pop %v3726
        %v3737 = vrcp.pop %v3729
        %v3738 = vrcp.pop %v3732
        %v3739 = vrcp.pop %v3735
        %v3740 = vmul.f32 %v3717, %v3736
        %v3741 = vmul.f32 %v3719, %v3737
        %v3742 = vmul.f32 %v3721, %v3738
        %v3743 = vmul.f32 %v3723, %v3739
        %v3744 = vpack.c.bf16 %v3740, %v3740
        %v3745 = vpack.c.bf16 %v3741, %v3741
        %v3746 = vpack.c.bf16 %v3742, %v3742
        %v3747 = vpack.c.bf16 %v3743, %v3743
        %3748 = vst [vmem:[#allocation1] ss:$9 sm:$0xff] %v2602
        %s3749 = scalar_lea.vmem [#allocation1], 1
        %3750 = vst [vmem:[%s3749] ss:$9 sm:$0xff] %v2613
        %s3751 = scalar_lea.vmem [#allocation1], 2
        %3752 = vst [vmem:[%s3751] ss:$9 sm:$0xff] %v2614
        %s3753 = scalar_lea.vmem [#allocation1], 3
        %3754 = vst [vmem:[%s3753] ss:$9 sm:$0xff] %v2615
        %s3755 = scalar_lea.vmem [#allocation1], 4
        %3756 = vst [vmem:[%s3755] ss:$9 sm:$0xff] %v2616
        %s3757 = scalar_lea.vmem [#allocation1], 5
        %3758 = vst [vmem:[%s3757] ss:$9 sm:$0xff] %v2617
        %s3759 = scalar_lea.vmem [#allocation1], 6
        %3760 = vst [vmem:[%s3759] ss:$9 sm:$0xff] %v2618
        %s3761 = scalar_lea.vmem [#allocation1], 7
        %3762 = vst [vmem:[%s3761] ss:$9 sm:$0xff] %v2619
        %v3763 = vld [vmem:[#allocation1] sm:$0xff]
        %3764 = vst [vmem:[#allocation1] ss:$9 sm:$0xff] %v2604
        %v3765 = vld [vmem:[#allocation1] sm:$0xff]
        %3766 = vst [vmem:[#allocation1] ss:$9 sm:$0xff] %v2620
        %3767 = vst [vmem:[%s3749] ss:$9 sm:$0xff] %v2621
        %3768 = vst [vmem:[%s3751] ss:$9 sm:$0xff] %v2622
        %3769 = vst [vmem:[%s3753] ss:$9 sm:$0xff] %v2623
        %3770 = vst [vmem:[%s3755] ss:$9 sm:$0xff] %v2624
        %3771 = vst [vmem:[%s3757] ss:$9 sm:$0xff] %v2625
        %3772 = vst [vmem:[%s3759] ss:$9 sm:$0xff] %v2626
        %3773 = vst [vmem:[%s3761] ss:$9 sm:$0xff] %v2607
        %v3774 = vld [vmem:[#allocation1] sm:$0xff]
        %3775 = vst [vmem:[#allocation1] ss:$9 sm:$0xff] %v2627
        %v3776 = vld [vmem:[#allocation1] sm:$0xff]
        %v3781 = vpack.c.bf16 %v3763, %v3763
        %v3782 = vpack.c.bf16 %v3765, %v3765
        %v3783 = vpack.c.bf16 %v3774, %v3774
        %v3784 = vpack.c.bf16 %v3776, %v3776
        %v3787 = vunpack.c.l.b16 %v3744
        %v3788 = vunpack.c.l.b16 %v3745
        %v3789 = vpack.c.b16 %v3788, %v3787
        %v3792 = vunpack.c.l.b16 %v3781
        %v3793 = vunpack.c.l.b16 %v3782
        %v3794 = vpack.c.b16 %v3793, %v3792
        %3795 = vrot.lane.b32.xlu0 %v3794, 40
        %v3796 = vpop.permute.xlu0 %3795
        %v3798 = vsel %vm1709, %v3789, 0
        %v3801 = vand.u32 %v3796, %v1716
        %3803 = vmatpush.bf16.msra.mxu0 0
        %3804 = vmatpush.bf16.msra.mxu0 0
        %3805 = vmatpush.bf16.msra.mxu0 0
        %3806 = vmatpush.bf16.msra.mxu0 0
        %3807 = vmatpush.bf16.msra.mxu0 0
        %3808 = vmatpush.bf16.msra.mxu0 0
        %3809 = vmatpush.bf16.msra.mxu0 0
        %3810 = vmatpush.bf16.msra.mxu0 %v3801
        %3811 = vmatmul.bf16.gmra.mxu0 %v3798
        %v3812 = vpop.f32.mrf.mxu0
        %v3813 = vadd.f32 0.0, %v3812
        %v3814 = vpop.f32.mrf.mxu0
        %v3815 = vadd.f32 0.0, %v3814
        %3816 = vdwg.mxu0
        %v3819 = vunpack.c.l.b16 %v3746
        %v3820 = vunpack.c.l.b16 %v3747
        %v3821 = vpack.c.b16 %v3820, %v3819
        %v3824 = vunpack.c.l.b16 %v3783
        %v3825 = vunpack.c.l.b16 %v3784
        %v3826 = vpack.c.b16 %v3825, %v3824
        %3827 = vrot.lane.b32.xlu0 %v3826, 40
        %v3828 = vpop.permute.xlu0 %3827
        %v3830 = vsel %vm1709, %v3821, 0
        %v3833 = vand.u32 %v3828, %v1716
        %3835 = vmatpush.bf16.msra.mxu0 0
        %3836 = vmatpush.bf16.msra.mxu0 0
        %3837 = vmatpush.bf16.msra.mxu0 0
        %3838 = vmatpush.bf16.msra.mxu0 0
        %3839 = vmatpush.bf16.msra.mxu0 0
        %3840 = vmatpush.bf16.msra.mxu0 0
        %3841 = vmatpush.bf16.msra.mxu0 0
        %3842 = vmatpush.bf16.msra.mxu0 %v3833
        %3843 = vmatmul.bf16.gmra.mxu0 %v3830
        %v3844 = vpop.f32.mrf.mxu0
        %v3845 = vadd.f32 0.0, %v3844
        %v3846 = vpop.f32.mrf.mxu0
        %v3847 = vadd.f32 0.0, %v3846
        %3848 = vdwg.mxu0
        %3853 = vrot.lane.b32.xlu0 %v3813, 24
        %v3854 = vpop.permute.xlu0 %3853
        %3855 = vrot.lane.b32.xlu0 %v3815, 24
        %v3856 = vpop.permute.xlu0 %3855
        %3857 = vrot.lane.b32.xlu0 %v3845, 24
        %v3858 = vpop.permute.xlu0 %3857
        %3859 = vrot.lane.b32.xlu0 %v3847, 24
        %v3860 = vpop.permute.xlu0 %3859
        %3865 = vst.msk [vmem:[#allocation4] sm:$0xff] %vm2566, %v3854
        %3866 = vst.msk [vmem:[#allocation4 + $0x8] sm:$0x1] %vm2568, %v3856
        %3867 = vst.msk [vmem:[#allocation4 + $0x10] sm:$0xff] %vm2566, %v3858
        %3868 = vst.msk [vmem:[#allocation4 + $0x18] sm:$0x1] %vm2568, %v3860
        %v3872 = vrot.slane %v1499, 1
        %v3873 = vrot.slane %v1499, 2
        %v3874 = vrot.slane %v1499, 3
        %v3875 = vrot.slane %v1499, 4
        %v3876 = vrot.slane %v1499, 5
        %v3877 = vrot.slane %v1499, 6
        %v3878 = vrot.slane %v1499, 7
        %v3879 = vrot.slane %v1500, 1
        %v3880 = vrot.slane %v1500, 2
        %v3881 = vrot.slane %v1500, 3
        %v3882 = vrot.slane %v1500, 4
        %v3883 = vrot.slane %v1500, 5
        %v3884 = vrot.slane %v1500, 6
        %v3885 = vrot.slane %v1500, 7
        %v3886 = vrot.slane %v1501, 1
        %v3902 = vld [vmem:[#allocation3] sm:$0xff]
        %v3903 = vld [vmem:[#allocation3 + $0x8] sm:$0x1]
        %v3904 = vld [vmem:[#allocation3 + $0x10] sm:$0xff]
        %v3905 = vld [vmem:[#allocation3 + $0x18] sm:$0x1]
        %v3908 = vrot.slane %v3902, 1
        %v3909 = vrot.slane %v3902, 2
        %v3910 = vrot.slane %v3902, 3
        %v3911 = vrot.slane %v3902, 4
        %v3912 = vrot.slane %v3902, 5
        %v3913 = vrot.slane %v3902, 6
        %v3914 = vrot.slane %v3902, 7
        %v3915 = vrot.slane %v3904, 1
        %v3916 = vrot.slane %v3904, 2
        %v3917 = vrot.slane %v3904, 3
        %v3918 = vrot.slane %v3904, 4
        %v3919 = vrot.slane %v3904, 5
        %v3920 = vrot.slane %v3904, 6
        %v3921 = vrot.slane %v3904, 7
        %v3936 = vadd.f32 %v1499, %v3902
        %v3937 = vadd.f32 %v3872, %v3908
        %v3938 = vadd.f32 %v3873, %v3909
        %v3939 = vadd.f32 %v3874, %v3910
        %v3940 = vadd.f32 %v3875, %v3911
        %v3941 = vadd.f32 %v3876, %v3912
        %v3942 = vadd.f32 %v3877, %v3913
        %v3943 = vadd.f32 %v3878, %v3914
        %v3944 = vadd.f32 %v1500, %v3903
        %v3945 = vadd.f32 %v3879, %v3904
        %v3946 = vadd.f32 %v3880, %v3915
        %v3947 = vadd.f32 %v3881, %v3916
        %v3948 = vadd.f32 %v3882, %v3917
        %v3949 = vadd.f32 %v3883, %v3918
        %v3950 = vadd.f32 %v3884, %v3919
        %v3951 = vadd.f32 %v3885, %v3920
        %v3952 = vadd.f32 %v1501, %v3921
        %v3953 = vadd.f32 %v3886, %v3905
        %v3954 = vld [vmem:[#allocation4] sm:$0xff]
        %v3955 = vld [vmem:[#allocation4 + $0x8] sm:$0x1]
        %v3956 = vld [vmem:[#allocation4 + $0x10] sm:$0xff]
        %v3957 = vld [vmem:[#allocation4 + $0x18] sm:$0x1]
        %v3960 = vrot.slane %v3954, 1
        %v3961 = vrot.slane %v3954, 2
        %v3962 = vrot.slane %v3954, 3
        %v3963 = vrot.slane %v3954, 4
        %v3964 = vrot.slane %v3954, 5
        %v3965 = vrot.slane %v3954, 6
        %v3966 = vrot.slane %v3954, 7
        %v3967 = vrot.slane %v3956, 1
        %v3968 = vrot.slane %v3956, 2
        %v3969 = vrot.slane %v3956, 3
        %v3970 = vrot.slane %v3956, 4
        %v3971 = vrot.slane %v3956, 5
        %v3972 = vrot.slane %v3956, 6
        %v3973 = vrot.slane %v3956, 7
        %v3988 = vadd.f32 %v1499, %v3954
        %v3989 = vadd.f32 %v3872, %v3960
        %v3990 = vadd.f32 %v3873, %v3961
        %v3991 = vadd.f32 %v3874, %v3962
        %v3992 = vadd.f32 %v3875, %v3963
        %v3993 = vadd.f32 %v3876, %v3964
        %v3994 = vadd.f32 %v3877, %v3965
        %v3995 = vadd.f32 %v3878, %v3966
        %v3996 = vadd.f32 %v1500, %v3955
        %v3997 = vadd.f32 %v3879, %v3956
        %v3998 = vadd.f32 %v3880, %v3967
        %v3999 = vadd.f32 %v3881, %v3968
        %v4000 = vadd.f32 %v3882, %v3969
        %v4001 = vadd.f32 %v3883, %v3970
        %v4002 = vadd.f32 %v3884, %v3971
        %v4003 = vadd.f32 %v3885, %v3972
        %v4004 = vadd.f32 %v1501, %v3973
        %v4005 = vadd.f32 %v3886, %v3957
        %v4006 = vld [vmem:[%s1082] sm:$0xf]
        %v4007 = vld [vmem:[%s1082 + $0x4] sm:$0xf]
        %v4008 = vld [vmem:[%s1082 + $0x8] sm:$0xf]
        %v4009 = vld [vmem:[%s1082 + $0xc] sm:$0xf]
        %4028 = vst [vmem:[#allocation1] ss:$9 sm:$0xff] %v3936
        %s4029 = scalar_lea.vmem [#allocation1], 1
        %4030 = vst [vmem:[%s4029] ss:$9 sm:$0xff] %v3937
        %s4031 = scalar_lea.vmem [#allocation1], 2
        %4032 = vst [vmem:[%s4031] ss:$9 sm:$0xff] %v3938
        %s4033 = scalar_lea.vmem [#allocation1], 3
        %4034 = vst [vmem:[%s4033] ss:$9 sm:$0xff] %v3939
        %s4035 = scalar_lea.vmem [#allocation1], 4
        %4036 = vst [vmem:[%s4035] ss:$9 sm:$0xff] %v3940
        %s4037 = scalar_lea.vmem [#allocation1], 5
        %4038 = vst [vmem:[%s4037] ss:$9 sm:$0xff] %v3941
        %s4039 = scalar_lea.vmem [#allocation1], 6
        %4040 = vst [vmem:[%s4039] ss:$9 sm:$0xff] %v3942
        %s4041 = scalar_lea.vmem [#allocation1], 7
        %4042 = vst [vmem:[%s4041] ss:$9 sm:$0xff] %v3943
        %v4043 = vld [vmem:[#allocation1] sm:$0xff]
        %4044 = vst [vmem:[#allocation1] ss:$9 sm:$0xff] %v3944
        %4045 = vst [vmem:[%s4029] ss:$9 sm:$0xff] %v3945
        %4046 = vst [vmem:[%s4031] ss:$9 sm:$0xff] %v3946
        %4047 = vst [vmem:[%s4033] ss:$9 sm:$0xff] %v3947
        %4048 = vst [vmem:[%s4035] ss:$9 sm:$0xff] %v3948
        %4049 = vst [vmem:[%s4037] ss:$9 sm:$0xff] %v3949
        %4050 = vst [vmem:[%s4039] ss:$9 sm:$0xff] %v3950
        %4051 = vst [vmem:[%s4041] ss:$9 sm:$0xff] %v3951
        %v4052 = vld [vmem:[#allocation1] sm:$0xff]
        %4053 = vst [vmem:[#allocation1] ss:$9 sm:$0xff] %v3952
        %4054 = vst [vmem:[%s4029] ss:$9 sm:$0xff] %v3953
        %v4055 = vld [vmem:[#allocation1] sm:$0xff]
        %v4059 = vpack.c.bf16 %v4052, %v4043
        %v4060 = vpack.c.bf16 %v4055, %v4055
        %v4061 = vld [vmem:[%s1085] sm:$0x1]
        %v4063 = vperm.slane %v4061, 0
        %v4069 = vunpack.c.l.b16 %v4006
        %v4070 = vunpack.c.l.b16 %v4007
        %v4071 = vunpack.c.l.b16 %v4008
        %v4072 = vunpack.c.l.b16 %v4009
        %v4073 = vpack.c.b16 %v4070, %v4069
        %v4074 = vpack.c.b16 %v4072, %v4071
        %v4078 = vsel %vm1415, %v4059, 0
        %v4081 = vsel %vm1415, %v4060, 0
        %4083 = vmatpush.bf16.msra.mxu0 0
        %4084 = vmatpush.bf16.msra.mxu0 0
        %4085 = vmatpush.bf16.msra.mxu0 0
        %4086 = vmatpush.bf16.msra.mxu0 0
        %4087 = vmatpush.bf16.msra.mxu0 0
        %4088 = vmatpush.bf16.msra.mxu0 0
        %4089 = vmatpush.bf16.msra.mxu0 %v4074
        %4090 = vmatpush.bf16.msra.mxu0 %v4073
        %4091 = vmatmul.bf16.gmra.mxu0 %v4078
        %v4092 = vpop.f32.mrf.mxu0
        %v4093 = vadd.f32 %v4063, %v4092
        %v4094 = vpop.f32.mrf.mxu0
        %v4095 = vadd.f32 %v4063, %v4094
        %4096 = vmatmul.bf16.gmra.mxu0 %v4081
        %v4097 = vpop.f32.mrf.mxu0
        %v4098 = vadd.f32 %v4063, %v4097
        %v4099 = vpop.f32.mrf.mxu0
        %4100 = vdwg.mxu0
        %v4104 = vrot.slane %v4093, 1
        %v4105 = vrot.slane %v4093, 2
        %v4106 = vrot.slane %v4093, 3
        %v4107 = vrot.slane %v4093, 4
        %v4108 = vrot.slane %v4093, 5
        %v4109 = vrot.slane %v4093, 6
        %v4110 = vrot.slane %v4093, 7
        %v4111 = vrot.slane %v4095, 1
        %v4112 = vrot.slane %v4095, 2
        %v4113 = vrot.slane %v4095, 3
        %v4114 = vrot.slane %v4095, 4
        %v4115 = vrot.slane %v4095, 5
        %v4116 = vrot.slane %v4095, 6
        %v4117 = vrot.slane %v4095, 7
        %v4118 = vrot.slane %v4098, 1
        %v4119 = vld [vmem:[%s1090] sm:$0xf]
        %v4120 = vld [vmem:[%s1090 + $0x4] sm:$0xf]
        %v4121 = vld [vmem:[%s1090 + $0x8] sm:$0xf]
        %v4122 = vld [vmem:[%s1090 + $0xc] sm:$0xf]
        %4141 = vst [vmem:[#allocation1] ss:$9 sm:$0xff] %v3988
        %s4142 = scalar_lea.vmem [#allocation1], 1
        %4143 = vst [vmem:[%s4142] ss:$9 sm:$0xff] %v3989
        %s4144 = scalar_lea.vmem [#allocation1], 2
        %4145 = vst [vmem:[%s4144] ss:$9 sm:$0xff] %v3990
        %s4146 = scalar_lea.vmem [#allocation1], 3
        %4147 = vst [vmem:[%s4146] ss:$9 sm:$0xff] %v3991
        %s4148 = scalar_lea.vmem [#allocation1], 4
        %4149 = vst [vmem:[%s4148] ss:$9 sm:$0xff] %v3992
        %s4150 = scalar_lea.vmem [#allocation1], 5
        %4151 = vst [vmem:[%s4150] ss:$9 sm:$0xff] %v3993
        %s4152 = scalar_lea.vmem [#allocation1], 6
        %4153 = vst [vmem:[%s4152] ss:$9 sm:$0xff] %v3994
        %s4154 = scalar_lea.vmem [#allocation1], 7
        %4155 = vst [vmem:[%s4154] ss:$9 sm:$0xff] %v3995
        %v4156 = vld [vmem:[#allocation1] sm:$0xff]
        %4157 = vst [vmem:[#allocation1] ss:$9 sm:$0xff] %v3996
        %4158 = vst [vmem:[%s4142] ss:$9 sm:$0xff] %v3997
        %4159 = vst [vmem:[%s4144] ss:$9 sm:$0xff] %v3998
        %4160 = vst [vmem:[%s4146] ss:$9 sm:$0xff] %v3999
        %4161 = vst [vmem:[%s4148] ss:$9 sm:$0xff] %v4000
        %4162 = vst [vmem:[%s4150] ss:$9 sm:$0xff] %v4001
        %4163 = vst [vmem:[%s4152] ss:$9 sm:$0xff] %v4002
        %4164 = vst [vmem:[%s4154] ss:$9 sm:$0xff] %v4003
        %v4165 = vld [vmem:[#allocation1] sm:$0xff]
        %4166 = vst [vmem:[#allocation1] ss:$9 sm:$0xff] %v4004
        %4167 = vst [vmem:[%s4142] ss:$9 sm:$0xff] %v4005
        %v4168 = vld [vmem:[#allocation1] sm:$0xff]
        %v4172 = vpack.c.bf16 %v4165, %v4156
        %v4173 = vpack.c.bf16 %v4168, %v4168
        %v4174 = vld [vmem:[%s1093] sm:$0x1]
        %v4176 = vperm.slane %v4174, 0
        %v4182 = vunpack.c.l.b16 %v4119
        %v4183 = vunpack.c.l.b16 %v4120
        %v4184 = vunpack.c.l.b16 %v4121
        %v4185 = vunpack.c.l.b16 %v4122
        %v4186 = vpack.c.b16 %v4183, %v4182
        %v4187 = vpack.c.b16 %v4185, %v4184
        %v4191 = vsel %vm1415, %v4172, 0
        %v4194 = vsel %vm1415, %v4173, 0
        %4196 = vmatpush.bf16.msra.mxu0 0
        %4197 = vmatpush.bf16.msra.mxu0 0
        %4198 = vmatpush.bf16.msra.mxu0 0
        %4199 = vmatpush.bf16.msra.mxu0 0
        %4200 = vmatpush.bf16.msra.mxu0 0
        %4201 = vmatpush.bf16.msra.mxu0 0
        %4202 = vmatpush.bf16.msra.mxu0 %v4187
        %4203 = vmatpush.bf16.msra.mxu0 %v4186
        %4204 = vmatmul.bf16.gmra.mxu0 %v4191
        %v4205 = vpop.f32.mrf.mxu0
        %v4206 = vadd.f32 %v4176, %v4205
        %v4207 = vpop.f32.mrf.mxu0
        %v4208 = vadd.f32 %v4176, %v4207
        %4209 = vmatmul.bf16.gmra.mxu0 %v4194
        %v4210 = vpop.f32.mrf.mxu0
        %v4211 = vadd.f32 %v4176, %v4210
        %v4212 = vpop.f32.mrf.mxu0
        %4213 = vdwg.mxu0
        %v4217 = vrot.slane %v4206, 1
        %v4218 = vrot.slane %v4206, 2
        %v4219 = vrot.slane %v4206, 3
        %v4220 = vrot.slane %v4206, 4
        %v4221 = vrot.slane %v4206, 5
        %v4222 = vrot.slane %v4206, 6
        %v4223 = vrot.slane %v4206, 7
        %v4224 = vrot.slane %v4208, 1
        %v4225 = vrot.slane %v4208, 2
        %v4226 = vrot.slane %v4208, 3
        %v4227 = vrot.slane %v4208, 4
        %v4228 = vrot.slane %v4208, 5
        %v4229 = vrot.slane %v4208, 6
        %v4230 = vrot.slane %v4208, 7
        %v4231 = vrot.slane %v4211, 1
        %4232 = vst [vmem:[#allocation1] ss:$9 sm:$0xff] %v4093
        %s4233 = scalar_lea.vmem [#allocation1], 1
        %4234 = vst [vmem:[%s4233] ss:$9 sm:$0xff] %v4104
        %s4235 = scalar_lea.vmem [#allocation1], 2
        %4236 = vst [vmem:[%s4235] ss:$9 sm:$0xff] %v4105
        %s4237 = scalar_lea.vmem [#allocation1], 3
        %4238 = vst [vmem:[%s4237] ss:$9 sm:$0xff] %v4106
        %s4239 = scalar_lea.vmem [#allocation1], 4
        %4240 = vst [vmem:[%s4239] ss:$9 sm:$0xff] %v4107
        %s4241 = scalar_lea.vmem [#allocation1], 5
        %4242 = vst [vmem:[%s4241] ss:$9 sm:$0xff] %v4108
        %s4243 = scalar_lea.vmem [#allocation1], 6
        %4244 = vst [vmem:[%s4243] ss:$9 sm:$0xff] %v4109
        %s4245 = scalar_lea.vmem [#allocation1], 7
        %4246 = vst [vmem:[%s4245] ss:$9 sm:$0xff] %v4110
        %v4247 = vld [vmem:[#allocation1] sm:$0xff]
        %4248 = vst [vmem:[#allocation1] ss:$9 sm:$0xff] %v4095
        %v4249 = vld [vmem:[#allocation1] sm:$0xff]
        %4250 = vst [vmem:[#allocation1] ss:$9 sm:$0xff] %v4111
        %4251 = vst [vmem:[%s4233] ss:$9 sm:$0xff] %v4112
        %4252 = vst [vmem:[%s4235] ss:$9 sm:$0xff] %v4113
        %4253 = vst [vmem:[%s4237] ss:$9 sm:$0xff] %v4114
        %4254 = vst [vmem:[%s4239] ss:$9 sm:$0xff] %v4115
        %4255 = vst [vmem:[%s4241] ss:$9 sm:$0xff] %v4116
        %4256 = vst [vmem:[%s4243] ss:$9 sm:$0xff] %v4117
        %4257 = vst [vmem:[%s4245] ss:$9 sm:$0xff] %v4098
        %v4258 = vld [vmem:[#allocation1] sm:$0xff]
        %4259 = vst [vmem:[#allocation1] ss:$9 sm:$0xff] %v4118
        %v4260 = vld [vmem:[#allocation1] sm:$0xff]
        %v4265 = vpack.c.bf16 %v4247, %v4247
        %v4266 = vpack.c.bf16 %v4249, %v4249
        %v4267 = vpack.c.bf16 %v4258, %v4258
        %v4268 = vpack.c.bf16 %v4260, %v4260
        %4269 = vst [vmem:[#allocation1] ss:$9 sm:$0xff] %v4206
        %s4270 = scalar_lea.vmem [#allocation1], 1
        %4271 = vst [vmem:[%s4270] ss:$9 sm:$0xff] %v4217
        %s4272 = scalar_lea.vmem [#allocation1], 2
        %4273 = vst [vmem:[%s4272] ss:$9 sm:$0xff] %v4218
        %s4274 = scalar_lea.vmem [#allocation1], 3
        %4275 = vst [vmem:[%s4274] ss:$9 sm:$0xff] %v4219
        %s4276 = scalar_lea.vmem [#allocation1], 4
        %4277 = vst [vmem:[%s4276] ss:$9 sm:$0xff] %v4220
        %s4278 = scalar_lea.vmem [#allocation1], 5
        %4279 = vst [vmem:[%s4278] ss:$9 sm:$0xff] %v4221
        %s4280 = scalar_lea.vmem [#allocation1], 6
        %4281 = vst [vmem:[%s4280] ss:$9 sm:$0xff] %v4222
        %s4282 = scalar_lea.vmem [#allocation1], 7
        %4283 = vst [vmem:[%s4282] ss:$9 sm:$0xff] %v4223
        %v4284 = vld [vmem:[#allocation1] sm:$0xff]
        %4285 = vst [vmem:[#allocation1] ss:$9 sm:$0xff] %v4208
        %v4286 = vld [vmem:[#allocation1] sm:$0xff]
        %4287 = vst [vmem:[#allocation1] ss:$9 sm:$0xff] %v4224
        %4288 = vst [vmem:[%s4270] ss:$9 sm:$0xff] %v4225
        %4289 = vst [vmem:[%s4272] ss:$9 sm:$0xff] %v4226
        %4290 = vst [vmem:[%s4274] ss:$9 sm:$0xff] %v4227
        %4291 = vst [vmem:[%s4276] ss:$9 sm:$0xff] %v4228
        %4292 = vst [vmem:[%s4278] ss:$9 sm:$0xff] %v4229
        %4293 = vst [vmem:[%s4280] ss:$9 sm:$0xff] %v4230
        %4294 = vst [vmem:[%s4282] ss:$9 sm:$0xff] %v4211
        %v4295 = vld [vmem:[#allocation1] sm:$0xff]
        %4296 = vst [vmem:[#allocation1] ss:$9 sm:$0xff] %v4231
        %v4297 = vld [vmem:[#allocation1] sm:$0xff]
        %v4302 = vpack.c.bf16 %v4284, %v4284
        %v4303 = vpack.c.bf16 %v4286, %v4286
        %v4304 = vpack.c.bf16 %v4295, %v4295
        %v4305 = vpack.c.bf16 %v4297, %v4297
        %v4308 = vunpack.c.l.b16 %v4265
        %v4309 = vunpack.c.l.b16 %v4266
        %v4310 = vpack.c.b16 %v4309, %v4308
        %v4313 = vunpack.c.l.b16 %v4302
        %v4314 = vunpack.c.l.b16 %v4303
        %v4315 = vpack.c.b16 %v4314, %v4313
        %v4317 = vsel %vm1761, %v4310, 0
        %v4320 = vsel %vm1761, %v4315, 0
        %4322 = vmatpush.bf16.xpose.msra.mxu0 0
        %4323 = vmatpush.bf16.xpose.msra.mxu0 0
        %4324 = vmatpush.bf16.xpose.msra.mxu0 0
        %4325 = vmatpush.bf16.xpose.msra.mxu0 0
        %4326 = vmatpush.bf16.xpose.msra.mxu0 0
        %4327 = vmatpush.bf16.xpose.msra.mxu0 0
        %4328 = vmatpush.bf16.xpose.msra.mxu0 0
        %4329 = vmatpush.bf16.xpose.msra.mxu0 %v4320
        %4330 = vmatmul.bf16.gmra.mxu0 %v4317
        %v4331 = vpop.f32.mrf.mxu0
        %v4332 = vadd.f32 0.0, %v4331
        %v4333 = vpop.f32.mrf.mxu0
        %v4334 = vadd.f32 0.0, %v4333
        %4335 = vdwg.mxu0
        %v4338 = vunpack.c.l.b16 %v4267
        %v4339 = vunpack.c.l.b16 %v4268
        %v4340 = vpack.c.b16 %v4339, %v4338
        %v4343 = vunpack.c.l.b16 %v4304
        %v4344 = vunpack.c.l.b16 %v4305
        %v4345 = vpack.c.b16 %v4344, %v4343
        %v4347 = vsel %vm1761, %v4340, 0
        %v4350 = vsel %vm1761, %v4345, 0
        %4352 = vmatpush.bf16.xpose.msra.mxu0 0
        %4353 = vmatpush.bf16.xpose.msra.mxu0 0
        %4354 = vmatpush.bf16.xpose.msra.mxu0 0
        %4355 = vmatpush.bf16.xpose.msra.mxu0 0
        %4356 = vmatpush.bf16.xpose.msra.mxu0 0
        %4357 = vmatpush.bf16.xpose.msra.mxu0 0
        %4358 = vmatpush.bf16.xpose.msra.mxu0 0
        %4359 = vmatpush.bf16.xpose.msra.mxu0 %v4350
        %4360 = vmatmul.bf16.gmra.mxu0 %v4347
        %v4361 = vpop.f32.mrf.mxu0
        %v4362 = vadd.f32 0.0, %v4361
        %v4363 = vpop.f32.mrf.mxu0
        %v4364 = vadd.f32 0.0, %v4363
        %4365 = vdwg.mxu0
        %v4366 = vmul.f32 %v4332, 0.35355338
        %v4367 = vmul.f32 %v4334, 0.35355338
        %v4368 = vmul.f32 %v4362, 0.35355338
        %v4369 = vmul.f32 %v4364, 0.35355338
        %v4370 = vsel %vm1709, %v4366, -inf
        %4371 = vmax.xlane.f32.xlu0 %v4370
        %v4372 = vpop.xlane.xlu0 %4371
        %v4373 = vsel %vm2773, %v4367, -inf
        %4374 = vmax.xlane.f32.xlu0 %v4373
        %v4375 = vpop.xlane.xlu0 %4374
        %v4376 = vsel %vm1709, %v4368, -inf
        %4377 = vmax.xlane.f32.xlu0 %v4376
        %v4378 = vpop.xlane.xlu0 %4377
        %v4379 = vsel %vm2773, %v4369, -inf
        %4380 = vmax.xlane.f32.xlu0 %v4379
        %v4381 = vpop.xlane.xlu0 %4380
        %v4382 = vsub.f32 %v4366, %v4372
        %v4383 = vsub.f32 %v4367, %v4375
        %v4384 = vsub.f32 %v4368, %v4378
        %v4385 = vsub.f32 %v4369, %v4381
        %v4386 = vmul.f32 %v4382, 1.442695
        %v4387 = vpow.pop %v4386
        %v4388 = vmul.f32 %v4383, 1.442695
        %v4389 = vpow.pop %v4388
        %v4390 = vmul.f32 %v4384, 1.442695
        %v4391 = vpow.pop %v4390
        %v4392 = vmul.f32 %v4385, 1.442695
        %v4393 = vpow.pop %v4392
        %v4394 = vsel %vm1709, %v4387, 0.0
        %4395 = vadd.xlane.f32.xlu0 %v4394
        %v4396 = vpop.xlane.xlu0 %4395
        %v4397 = vsel %vm2773, %v4389, 0.0
        %4398 = vadd.xlane.f32.xlu0 %v4397
        %v4399 = vpop.xlane.xlu0 %4398
        %v4400 = vsel %vm1709, %v4391, 0.0
        %4401 = vadd.xlane.f32.xlu0 %v4400
        %v4402 = vpop.xlane.xlu0 %4401
        %v4403 = vsel %vm2773, %v4393, 0.0
        %4404 = vadd.xlane.f32.xlu0 %v4403
        %v4405 = vpop.xlane.xlu0 %4404
        %v4406 = vrcp.pop %v4396
        %v4407 = vrcp.pop %v4399
        %v4408 = vrcp.pop %v4402
        %v4409 = vrcp.pop %v4405
        %v4410 = vmul.f32 %v4387, %v4406
        %v4411 = vmul.f32 %v4389, %v4407
        %v4412 = vmul.f32 %v4391, %v4408
        %v4413 = vmul.f32 %v4393, %v4409
        %v4414 = vpack.c.bf16 %v4410, %v4410
        %v4415 = vpack.c.bf16 %v4411, %v4411
        %v4416 = vpack.c.bf16 %v4412, %v4412
        %v4417 = vpack.c.bf16 %v4413, %v4413
        %4418 = vst [vmem:[#allocation1] ss:$9 sm:$0xff] %v4206
        %s4419 = scalar_lea.vmem [#allocation1], 1
        %4420 = vst [vmem:[%s4419] ss:$9 sm:$0xff] %v4217
        %s4421 = scalar_lea.vmem [#allocation1], 2
        %4422 = vst [vmem:[%s4421] ss:$9 sm:$0xff] %v4218
        %s4423 = scalar_lea.vmem [#allocation1], 3
        %4424 = vst [vmem:[%s4423] ss:$9 sm:$0xff] %v4219
        %s4425 = scalar_lea.vmem [#allocation1], 4
        %4426 = vst [vmem:[%s4425] ss:$9 sm:$0xff] %v4220
        %s4427 = scalar_lea.vmem [#allocation1], 5
        %4428 = vst [vmem:[%s4427] ss:$9 sm:$0xff] %v4221
        %s4429 = scalar_lea.vmem [#allocation1], 6
        %4430 = vst [vmem:[%s4429] ss:$9 sm:$0xff] %v4222
        %s4431 = scalar_lea.vmem [#allocation1], 7
        %4432 = vst [vmem:[%s4431] ss:$9 sm:$0xff] %v4223
        %v4433 = vld [vmem:[#allocation1] sm:$0xff]
        %4434 = vst [vmem:[#allocation1] ss:$9 sm:$0xff] %v4208
        %v4435 = vld [vmem:[#allocation1] sm:$0xff]
        %4436 = vst [vmem:[#allocation1] ss:$9 sm:$0xff] %v4224
        %4437 = vst [vmem:[%s4419] ss:$9 sm:$0xff] %v4225
        %4438 = vst [vmem:[%s4421] ss:$9 sm:$0xff] %v4226
        %4439 = vst [vmem:[%s4423] ss:$9 sm:$0xff] %v4227
        %4440 = vst [vmem:[%s4425] ss:$9 sm:$0xff] %v4228
        %4441 = vst [vmem:[%s4427] ss:$9 sm:$0xff] %v4229
        %4442 = vst [vmem:[%s4429] ss:$9 sm:$0xff] %v4230
        %4443 = vst [vmem:[%s4431] ss:$9 sm:$0xff] %v4211
        %v4444 = vld [vmem:[#allocation1] sm:$0xff]
        %4445 = vst [vmem:[#allocation1] ss:$9 sm:$0xff] %v4231
        %v4446 = vld [vmem:[#allocation1] sm:$0xff]
        %v4451 = vpack.c.bf16 %v4433, %v4433
        %v4452 = vpack.c.bf16 %v4435, %v4435
        %v4453 = vpack.c.bf16 %v4444, %v4444
        %v4454 = vpack.c.bf16 %v4446, %v4446
        %v4457 = vunpack.c.l.b16 %v4414
        %v4458 = vunpack.c.l.b16 %v4415
        %v4459 = vpack.c.b16 %v4458, %v4457
        %v4462 = vunpack.c.l.b16 %v4451
        %v4463 = vunpack.c.l.b16 %v4452
        %v4464 = vpack.c.b16 %v4463, %v4462
        %4465 = vrot.lane.b32.xlu0 %v4464, 96
        %v4466 = vpop.permute.xlu0 %4465
        %v4468 = vsel %vm1709, %v4459, 0
        %v4471 = vand.u32 %v4466, %v1716
        %4473 = vmatpush.bf16.msra.mxu0 0
        %4474 = vmatpush.bf16.msra.mxu0 0
        %4475 = vmatpush.bf16.msra.mxu0 0
        %4476 = vmatpush.bf16.msra.mxu0 0
        %4477 = vmatpush.bf16.msra.mxu0 0
        %4478 = vmatpush.bf16.msra.mxu0 0
        %4479 = vmatpush.bf16.msra.mxu0 0
        %4480 = vmatpush.bf16.msra.mxu0 %v4471
        %4481 = vmatmul.bf16.gmra.mxu0 %v4468
        %v4482 = vpop.f32.mrf.mxu0
        %v4483 = vadd.f32 0.0, %v4482
        %v4484 = vpop.f32.mrf.mxu0
        %v4485 = vadd.f32 0.0, %v4484
        %4486 = vdwg.mxu0
        %v4489 = vunpack.c.l.b16 %v4416
        %v4490 = vunpack.c.l.b16 %v4417
        %v4491 = vpack.c.b16 %v4490, %v4489
        %v4494 = vunpack.c.l.b16 %v4453
        %v4495 = vunpack.c.l.b16 %v4454
        %v4496 = vpack.c.b16 %v4495, %v4494
        %4497 = vrot.lane.b32.xlu0 %v4496, 96
        %v4498 = vpop.permute.xlu0 %4497
        %v4500 = vsel %vm1709, %v4491, 0
        %v4503 = vand.u32 %v4498, %v1716
        %4505 = vmatpush.bf16.msra.mxu0 0
        %4506 = vmatpush.bf16.msra.mxu0 0
        %4507 = vmatpush.bf16.msra.mxu0 0
        %4508 = vmatpush.bf16.msra.mxu0 0
        %4509 = vmatpush.bf16.msra.mxu0 0
        %4510 = vmatpush.bf16.msra.mxu0 0
        %4511 = vmatpush.bf16.msra.mxu0 0
        %4512 = vmatpush.bf16.msra.mxu0 %v4503
        %4513 = vmatmul.bf16.gmra.mxu0 %v4500
        %v4514 = vpop.f32.mrf.mxu0
        %v4515 = vadd.f32 0.0, %v4514
        %v4516 = vpop.f32.mrf.mxu0
        %v4517 = vadd.f32 0.0, %v4516
        %4518 = vdwg.mxu0
        %4519 = vst.msk [vmem:[#allocation5] sm:$0xff] %vm1761, %v4483
        %4520 = vst.msk [vmem:[#allocation5 + $0x8] sm:$0x1] %vm1878, %v4485
        %4521 = vst.msk [vmem:[#allocation5 + $0x10] sm:$0xff] %vm1761, %v4515
        %4522 = vst.msk [vmem:[#allocation5 + $0x18] sm:$0x1] %vm1878, %v4517
        %4523 = vst [vmem:[#allocation1] ss:$9 sm:$0xff] %v4093
        %s4524 = scalar_lea.vmem [#allocation1], 1
        %4525 = vst [vmem:[%s4524] ss:$9 sm:$0xff] %v4104
        %s4526 = scalar_lea.vmem [#allocation1], 2
        %4527 = vst [vmem:[%s4526] ss:$9 sm:$0xff] %v4105
        %s4528 = scalar_lea.vmem [#allocation1], 3
        %4529 = vst [vmem:[%s4528] ss:$9 sm:$0xff] %v4106
        %s4530 = scalar_lea.vmem [#allocation1], 4
        %4531 = vst [vmem:[%s4530] ss:$9 sm:$0xff] %v4107
        %s4532 = scalar_lea.vmem [#allocation1], 5
        %4533 = vst [vmem:[%s4532] ss:$9 sm:$0xff] %v4108
        %s4534 = scalar_lea.vmem [#allocation1], 6
        %4535 = vst [vmem:[%s4534] ss:$9 sm:$0xff] %v4109
        %s4536 = scalar_lea.vmem [#allocation1], 7
        %4537 = vst [vmem:[%s4536] ss:$9 sm:$0xff] %v4110
        %v4538 = vld [vmem:[#allocation1] sm:$0xff]
        %4539 = vst [vmem:[#allocation1] ss:$9 sm:$0xff] %v4095
        %v4540 = vld [vmem:[#allocation1] sm:$0xff]
        %4541 = vst [vmem:[#allocation1] ss:$9 sm:$0xff] %v4111
        %4542 = vst [vmem:[%s4524] ss:$9 sm:$0xff] %v4112
        %4543 = vst [vmem:[%s4526] ss:$9 sm:$0xff] %v4113
        %4544 = vst [vmem:[%s4528] ss:$9 sm:$0xff] %v4114
        %4545 = vst [vmem:[%s4530] ss:$9 sm:$0xff] %v4115
        %4546 = vst [vmem:[%s4532] ss:$9 sm:$0xff] %v4116
        %4547 = vst [vmem:[%s4534] ss:$9 sm:$0xff] %v4117
        %4548 = vst [vmem:[%s4536] ss:$9 sm:$0xff] %v4098
        %v4549 = vld [vmem:[#allocation1] sm:$0xff]
        %4550 = vst [vmem:[#allocation1] ss:$9 sm:$0xff] %v4118
        %v4551 = vld [vmem:[#allocation1] sm:$0xff]
        %v4556 = vpack.c.bf16 %v4538, %v4538
        %v4557 = vpack.c.bf16 %v4540, %v4540
        %v4558 = vpack.c.bf16 %v4549, %v4549
        %v4559 = vpack.c.bf16 %v4551, %v4551
        %4560 = vst [vmem:[#allocation1] ss:$9 sm:$0xff] %v4206
        %s4561 = scalar_lea.vmem [#allocation1], 1
        %4562 = vst [vmem:[%s4561] ss:$9 sm:$0xff] %v4217
        %s4563 = scalar_lea.vmem [#allocation1], 2
        %4564 = vst [vmem:[%s4563] ss:$9 sm:$0xff] %v4218
        %s4565 = scalar_lea.vmem [#allocation1], 3
        %4566 = vst [vmem:[%s4565] ss:$9 sm:$0xff] %v4219
        %s4567 = scalar_lea.vmem [#allocation1], 4
        %4568 = vst [vmem:[%s4567] ss:$9 sm:$0xff] %v4220
        %s4569 = scalar_lea.vmem [#allocation1], 5
        %4570 = vst [vmem:[%s4569] ss:$9 sm:$0xff] %v4221
        %s4571 = scalar_lea.vmem [#allocation1], 6
        %4572 = vst [vmem:[%s4571] ss:$9 sm:$0xff] %v4222
        %s4573 = scalar_lea.vmem [#allocation1], 7
        %4574 = vst [vmem:[%s4573] ss:$9 sm:$0xff] %v4223
        %v4575 = vld [vmem:[#allocation1] sm:$0xff]
        %4576 = vst [vmem:[#allocation1] ss:$9 sm:$0xff] %v4208
        %v4577 = vld [vmem:[#allocation1] sm:$0xff]
        %4578 = vst [vmem:[#allocation1] ss:$9 sm:$0xff] %v4224
        %4579 = vst [vmem:[%s4561] ss:$9 sm:$0xff] %v4225
        %4580 = vst [vmem:[%s4563] ss:$9 sm:$0xff] %v4226
        %4581 = vst [vmem:[%s4565] ss:$9 sm:$0xff] %v4227
        %4582 = vst [vmem:[%s4567] ss:$9 sm:$0xff] %v4228
        %4583 = vst [vmem:[%s4569] ss:$9 sm:$0xff] %v4229
        %4584 = vst [vmem:[%s4571] ss:$9 sm:$0xff] %v4230
        %4585 = vst [vmem:[%s4573] ss:$9 sm:$0xff] %v4211
        %v4586 = vld [vmem:[#allocation1] sm:$0xff]
        %4587 = vst [vmem:[#allocation1] ss:$9 sm:$0xff] %v4231
        %v4588 = vld [vmem:[#allocation1] sm:$0xff]
        %v4593 = vpack.c.bf16 %v4575, %v4575
        %v4594 = vpack.c.bf16 %v4577, %v4577
        %v4595 = vpack.c.bf16 %v4586, %v4586
        %v4596 = vpack.c.bf16 %v4588, %v4588
        %v4599 = vunpack.c.l.b16 %v4556
        %v4600 = vunpack.c.l.b16 %v4557
        %v4601 = vpack.c.b16 %v4600, %v4599
        %4602 = vrot.lane.b32.xlu0 %v4601, 120
        %v4603 = vpop.permute.xlu0 %4602
        %v4606 = vunpack.c.l.b16 %v4593
        %v4607 = vunpack.c.l.b16 %v4594
        %v4608 = vpack.c.b16 %v4607, %v4606
        %4609 = vrot.lane.b32.xlu0 %v4608, 120
        %v4610 = vpop.permute.xlu0 %4609
        %v4612 = vsel %vm1761, %v4603, 0
        %v4615 = vsel %vm1761, %v4610, 0
        %4617 = vmatpush.bf16.xpose.msra.mxu0 0
        %4618 = vmatpush.bf16.xpose.msra.mxu0 0
        %4619 = vmatpush.bf16.xpose.msra.mxu0 0
        %4620 = vmatpush.bf16.xpose.msra.mxu0 0
        %4621 = vmatpush.bf16.xpose.msra.mxu0 0
        %4622 = vmatpush.bf16.xpose.msra.mxu0 0
        %4623 = vmatpush.bf16.xpose.msra.mxu0 0
        %4624 = vmatpush.bf16.xpose.msra.mxu0 %v4615
        %4625 = vmatmul.bf16.gmra.mxu0 %v4612
        %v4626 = vpop.f32.mrf.mxu0
        %v4627 = vadd.f32 0.0, %v4626
        %v4628 = vpop.f32.mrf.mxu0
        %v4629 = vadd.f32 0.0, %v4628
        %4630 = vdwg.mxu0
        %v4633 = vunpack.c.l.b16 %v4558
        %v4634 = vunpack.c.l.b16 %v4559
        %v4635 = vpack.c.b16 %v4634, %v4633
        %4636 = vrot.lane.b32.xlu0 %v4635, 120
        %v4637 = vpop.permute.xlu0 %4636
        %v4640 = vunpack.c.l.b16 %v4595
        %v4641 = vunpack.c.l.b16 %v4596
        %v4642 = vpack.c.b16 %v4641, %v4640
        %4643 = vrot.lane.b32.xlu0 %v4642, 120
        %v4644 = vpop.permute.xlu0 %4643
        %v4646 = vsel %vm1761, %v4637, 0
        %v4649 = vsel %vm1761, %v4644, 0
        %4651 = vmatpush.bf16.xpose.msra.mxu0 0
        %4652 = vmatpush.bf16.xpose.msra.mxu0 0
        %4653 = vmatpush.bf16.xpose.msra.mxu0 0
        %4654 = vmatpush.bf16.xpose.msra.mxu0 0
        %4655 = vmatpush.bf16.xpose.msra.mxu0 0
        %4656 = vmatpush.bf16.xpose.msra.mxu0 0
        %4657 = vmatpush.bf16.xpose.msra.mxu0 0
        %4658 = vmatpush.bf16.xpose.msra.mxu0 %v4649
        %4659 = vmatmul.bf16.gmra.mxu0 %v4646
        %v4660 = vpop.f32.mrf.mxu0
        %v4661 = vadd.f32 0.0, %v4660
        %v4662 = vpop.f32.mrf.mxu0
        %v4663 = vadd.f32 0.0, %v4662
        %4664 = vdwg.mxu0
        %v4665 = vmul.f32 %v4627, 0.35355338
        %v4666 = vmul.f32 %v4629, 0.35355338
        %v4667 = vmul.f32 %v4661, 0.35355338
        %v4668 = vmul.f32 %v4663, 0.35355338
        %v4669 = vsel %vm1709, %v4665, -inf
        %4670 = vmax.xlane.f32.xlu0 %v4669
        %v4671 = vpop.xlane.xlu0 %4670
        %v4672 = vsel %vm2773, %v4666, -inf
        %4673 = vmax.xlane.f32.xlu0 %v4672
        %v4674 = vpop.xlane.xlu0 %4673
        %v4675 = vsel %vm1709, %v4667, -inf
        %4676 = vmax.xlane.f32.xlu0 %v4675
        %v4677 = vpop.xlane.xlu0 %4676
        %v4678 = vsel %vm2773, %v4668, -inf
        %4679 = vmax.xlane.f32.xlu0 %v4678
        %v4680 = vpop.xlane.xlu0 %4679
        %v4681 = vsub.f32 %v4665, %v4671
        %v4682 = vsub.f32 %v4666, %v4674
        %v4683 = vsub.f32 %v4667, %v4677
        %v4684 = vsub.f32 %v4668, %v4680
        %v4685 = vmul.f32 %v4681, 1.442695
        %v4686 = vpow.pop %v4685
        %v4687 = vmul.f32 %v4682, 1.442695
        %v4688 = vpow.pop %v4687
        %v4689 = vmul.f32 %v4683, 1.442695
        %v4690 = vpow.pop %v4689
        %v4691 = vmul.f32 %v4684, 1.442695
        %v4692 = vpow.pop %v4691
        %v4693 = vsel %vm1709, %v4686, 0.0
        %4694 = vadd.xlane.f32.xlu0 %v4693
        %v4695 = vpop.xlane.xlu0 %4694
        %v4696 = vsel %vm2773, %v4688, 0.0
        %4697 = vadd.xlane.f32.xlu0 %v4696
        %v4698 = vpop.xlane.xlu0 %4697
        %v4699 = vsel %vm1709, %v4690, 0.0
        %4700 = vadd.xlane.f32.xlu0 %v4699
        %v4701 = vpop.xlane.xlu0 %4700
        %v4702 = vsel %vm2773, %v4692, 0.0
        %4703 = vadd.xlane.f32.xlu0 %v4702
        %v4704 = vpop.xlane.xlu0 %4703
        %v4705 = vrcp.pop %v4695
        %v4706 = vrcp.pop %v4698
        %v4707 = vrcp.pop %v4701
        %v4708 = vrcp.pop %v4704
        %v4709 = vmul.f32 %v4686, %v4705
        %v4710 = vmul.f32 %v4688, %v4706
        %v4711 = vmul.f32 %v4690, %v4707
        %v4712 = vmul.f32 %v4692, %v4708
        %v4713 = vpack.c.bf16 %v4709, %v4709
        %v4714 = vpack.c.bf16 %v4710, %v4710
        %v4715 = vpack.c.bf16 %v4711, %v4711
        %v4716 = vpack.c.bf16 %v4712, %v4712
        %4717 = vst [vmem:[#allocation1] ss:$9 sm:$0xff] %v4206
        %s4718 = scalar_lea.vmem [#allocation1], 1
        %4719 = vst [vmem:[%s4718] ss:$9 sm:$0xff] %v4217
        %s4720 = scalar_lea.vmem [#allocation1], 2
        %4721 = vst [vmem:[%s4720] ss:$9 sm:$0xff] %v4218
        %s4722 = scalar_lea.vmem [#allocation1], 3
        %4723 = vst [vmem:[%s4722] ss:$9 sm:$0xff] %v4219
        %s4724 = scalar_lea.vmem [#allocation1], 4
        %4725 = vst [vmem:[%s4724] ss:$9 sm:$0xff] %v4220
        %s4726 = scalar_lea.vmem [#allocation1], 5
        %4727 = vst [vmem:[%s4726] ss:$9 sm:$0xff] %v4221
        %s4728 = scalar_lea.vmem [#allocation1], 6
        %4729 = vst [vmem:[%s4728] ss:$9 sm:$0xff] %v4222
        %s4730 = scalar_lea.vmem [#allocation1], 7
        %4731 = vst [vmem:[%s4730] ss:$9 sm:$0xff] %v4223
        %v4732 = vld [vmem:[#allocation1] sm:$0xff]
        %4733 = vst [vmem:[#allocation1] ss:$9 sm:$0xff] %v4208
        %v4734 = vld [vmem:[#allocation1] sm:$0xff]
        %4735 = vst [vmem:[#allocation1] ss:$9 sm:$0xff] %v4224
        %4736 = vst [vmem:[%s4718] ss:$9 sm:$0xff] %v4225
        %4737 = vst [vmem:[%s4720] ss:$9 sm:$0xff] %v4226
        %4738 = vst [vmem:[%s4722] ss:$9 sm:$0xff] %v4227
        %4739 = vst [vmem:[%s4724] ss:$9 sm:$0xff] %v4228
        %4740 = vst [vmem:[%s4726] ss:$9 sm:$0xff] %v4229
        %4741 = vst [vmem:[%s4728] ss:$9 sm:$0xff] %v4230
        %4742 = vst [vmem:[%s4730] ss:$9 sm:$0xff] %v4211
        %v4743 = vld [vmem:[#allocation1] sm:$0xff]
        %4744 = vst [vmem:[#allocation1] ss:$9 sm:$0xff] %v4231
        %v4745 = vld [vmem:[#allocation1] sm:$0xff]
        %v4750 = vpack.c.bf16 %v4732, %v4732
        %v4751 = vpack.c.bf16 %v4734, %v4734
        %v4752 = vpack.c.bf16 %v4743, %v4743
        %v4753 = vpack.c.bf16 %v4745, %v4745
        %v4756 = vunpack.c.l.b16 %v4713
        %v4757 = vunpack.c.l.b16 %v4714
        %v4758 = vpack.c.b16 %v4757, %v4756
        %v4761 = vunpack.c.l.b16 %v4750
        %v4762 = vunpack.c.l.b16 %v4751
        %v4763 = vpack.c.b16 %v4762, %v4761
        %4764 = vrot.lane.b32.xlu0 %v4763, 88
        %v4765 = vpop.permute.xlu0 %4764
        %v4767 = vsel %vm1709, %v4758, 0
        %v4770 = vand.u32 %v4765, %v1716
        %4772 = vmatpush.bf16.msra.mxu0 0
        %4773 = vmatpush.bf16.msra.mxu0 0
        %4774 = vmatpush.bf16.msra.mxu0 0
        %4775 = vmatpush.bf16.msra.mxu0 0
        %4776 = vmatpush.bf16.msra.mxu0 0
        %4777 = vmatpush.bf16.msra.mxu0 0
        %4778 = vmatpush.bf16.msra.mxu0 0
        %4779 = vmatpush.bf16.msra.mxu0 %v4770
        %4780 = vmatmul.bf16.gmra.mxu0 %v4767
        %v4781 = vpop.f32.mrf.mxu0
        %v4782 = vadd.f32 0.0, %v4781
        %v4783 = vpop.f32.mrf.mxu0
        %v4784 = vadd.f32 0.0, %v4783
        %4785 = vdwg.mxu0
        %v4788 = vunpack.c.l.b16 %v4715
        %v4789 = vunpack.c.l.b16 %v4716
        %v4790 = vpack.c.b16 %v4789, %v4788
        %v4793 = vunpack.c.l.b16 %v4752
        %v4794 = vunpack.c.l.b16 %v4753
        %v4795 = vpack.c.b16 %v4794, %v4793
        %4796 = vrot.lane.b32.xlu0 %v4795, 88
        %v4797 = vpop.permute.xlu0 %4796
        %v4799 = vsel %vm1709, %v4790, 0
        %v4802 = vand.u32 %v4797, %v1716
        %4804 = vmatpush.bf16.msra.mxu0 0
        %4805 = vmatpush.bf16.msra.mxu0 0
        %4806 = vmatpush.bf16.msra.mxu0 0
        %4807 = vmatpush.bf16.msra.mxu0 0
        %4808 = vmatpush.bf16.msra.mxu0 0
        %4809 = vmatpush.bf16.msra.mxu0 0
        %4810 = vmatpush.bf16.msra.mxu0 0
        %4811 = vmatpush.bf16.msra.mxu0 %v4802
        %4812 = vmatmul.bf16.gmra.mxu0 %v4799
        %v4813 = vpop.f32.mrf.mxu0
        %v4814 = vadd.f32 0.0, %v4813
        %v4815 = vpop.f32.mrf.mxu0
        %v4816 = vadd.f32 0.0, %v4815
        %4817 = vdwg.mxu0
        %4822 = vrot.lane.b32.xlu0 %v4782, 8
        %v4823 = vpop.permute.xlu0 %4822
        %4824 = vrot.lane.b32.xlu0 %v4784, 8
        %v4825 = vpop.permute.xlu0 %4824
        %4826 = vrot.lane.b32.xlu0 %v4814, 8
        %v4827 = vpop.permute.xlu0 %4826
        %4828 = vrot.lane.b32.xlu0 %v4816, 8
        %v4829 = vpop.permute.xlu0 %4828
        %4834 = vst.msk [vmem:[#allocation5] sm:$0xff] %vm2106, %v4823
        %4835 = vst.msk [vmem:[#allocation5 + $0x8] sm:$0x1] %vm2108, %v4825
        %4836 = vst.msk [vmem:[#allocation5 + $0x10] sm:$0xff] %vm2106, %v4827
        %4837 = vst.msk [vmem:[#allocation5 + $0x18] sm:$0x1] %vm2108, %v4829
        %4838 = vst [vmem:[#allocation1] ss:$9 sm:$0xff] %v4093
        %s4839 = scalar_lea.vmem [#allocation1], 1
        %4840 = vst [vmem:[%s4839] ss:$9 sm:$0xff] %v4104
        %s4841 = scalar_lea.vmem [#allocation1], 2
        %4842 = vst [vmem:[%s4841] ss:$9 sm:$0xff] %v4105
        %s4843 = scalar_lea.vmem [#allocation1], 3
        %4844 = vst [vmem:[%s4843] ss:$9 sm:$0xff] %v4106
        %s4845 = scalar_lea.vmem [#allocation1], 4
        %4846 = vst [vmem:[%s4845] ss:$9 sm:$0xff] %v4107
        %s4847 = scalar_lea.vmem [#allocation1], 5
        %4848 = vst [vmem:[%s4847] ss:$9 sm:$0xff] %v4108
        %s4849 = scalar_lea.vmem [#allocation1], 6
        %4850 = vst [vmem:[%s4849] ss:$9 sm:$0xff] %v4109
        %s4851 = scalar_lea.vmem [#allocation1], 7
        %4852 = vst [vmem:[%s4851] ss:$9 sm:$0xff] %v4110
        %v4853 = vld [vmem:[#allocation1] sm:$0xff]
        %4854 = vst [vmem:[#allocation1] ss:$9 sm:$0xff] %v4095
        %v4855 = vld [vmem:[#allocation1] sm:$0xff]
        %4856 = vst [vmem:[#allocation1] ss:$9 sm:$0xff] %v4111
        %4857 = vst [vmem:[%s4839] ss:$9 sm:$0xff] %v4112
        %4858 = vst [vmem:[%s4841] ss:$9 sm:$0xff] %v4113
        %4859 = vst [vmem:[%s4843] ss:$9 sm:$0xff] %v4114
        %4860 = vst [vmem:[%s4845] ss:$9 sm:$0xff] %v4115
        %4861 = vst [vmem:[%s4847] ss:$9 sm:$0xff] %v4116
        %4862 = vst [vmem:[%s4849] ss:$9 sm:$0xff] %v4117
        %4863 = vst [vmem:[%s4851] ss:$9 sm:$0xff] %v4098
        %v4864 = vld [vmem:[#allocation1] sm:$0xff]
        %4865 = vst [vmem:[#allocation1] ss:$9 sm:$0xff] %v4118
        %v4866 = vld [vmem:[#allocation1] sm:$0xff]
        %v4871 = vpack.c.bf16 %v4853, %v4853
        %v4872 = vpack.c.bf16 %v4855, %v4855
        %v4873 = vpack.c.bf16 %v4864, %v4864
        %v4874 = vpack.c.bf16 %v4866, %v4866
        %4875 = vst [vmem:[#allocation1] ss:$9 sm:$0xff] %v4206
        %s4876 = scalar_lea.vmem [#allocation1], 1
        %4877 = vst [vmem:[%s4876] ss:$9 sm:$0xff] %v4217
        %s4878 = scalar_lea.vmem [#allocation1], 2
        %4879 = vst [vmem:[%s4878] ss:$9 sm:$0xff] %v4218
        %s4880 = scalar_lea.vmem [#allocation1], 3
        %4881 = vst [vmem:[%s4880] ss:$9 sm:$0xff] %v4219
        %s4882 = scalar_lea.vmem [#allocation1], 4
        %4883 = vst [vmem:[%s4882] ss:$9 sm:$0xff] %v4220
        %s4884 = scalar_lea.vmem [#allocation1], 5
        %4885 = vst [vmem:[%s4884] ss:$9 sm:$0xff] %v4221
        %s4886 = scalar_lea.vmem [#allocation1], 6
        %4887 = vst [vmem:[%s4886] ss:$9 sm:$0xff] %v4222
        %s4888 = scalar_lea.vmem [#allocation1], 7
        %4889 = vst [vmem:[%s4888] ss:$9 sm:$0xff] %v4223
        %v4890 = vld [vmem:[#allocation1] sm:$0xff]
        %4891 = vst [vmem:[#allocation1] ss:$9 sm:$0xff] %v4208
        %v4892 = vld [vmem:[#allocation1] sm:$0xff]
        %4893 = vst [vmem:[#allocation1] ss:$9 sm:$0xff] %v4224
        %4894 = vst [vmem:[%s4876] ss:$9 sm:$0xff] %v4225
        %4895 = vst [vmem:[%s4878] ss:$9 sm:$0xff] %v4226
        %4896 = vst [vmem:[%s4880] ss:$9 sm:$0xff] %v4227
        %4897 = vst [vmem:[%s4882] ss:$9 sm:$0xff] %v4228
        %4898 = vst [vmem:[%s4884] ss:$9 sm:$0xff] %v4229
        %4899 = vst [vmem:[%s4886] ss:$9 sm:$0xff] %v4230
        %4900 = vst [vmem:[%s4888] ss:$9 sm:$0xff] %v4211
        %v4901 = vld [vmem:[#allocation1] sm:$0xff]
        %4902 = vst [vmem:[#allocation1] ss:$9 sm:$0xff] %v4231
        %v4903 = vld [vmem:[#allocation1] sm:$0xff]
        %v4908 = vpack.c.bf16 %v4890, %v4890
        %v4909 = vpack.c.bf16 %v4892, %v4892
        %v4910 = vpack.c.bf16 %v4901, %v4901
        %v4911 = vpack.c.bf16 %v4903, %v4903
        %v4914 = vunpack.c.l.b16 %v4871
        %v4915 = vunpack.c.l.b16 %v4872
        %v4916 = vpack.c.b16 %v4915, %v4914
        %4917 = vrot.lane.b32.xlu0 %v4916, 112
        %v4918 = vpop.permute.xlu0 %4917
        %v4921 = vunpack.c.l.b16 %v4908
        %v4922 = vunpack.c.l.b16 %v4909
        %v4923 = vpack.c.b16 %v4922, %v4921
        %4924 = vrot.lane.b32.xlu0 %v4923, 112
        %v4925 = vpop.permute.xlu0 %4924
        %v4927 = vsel %vm1761, %v4918, 0
        %v4930 = vsel %vm1761, %v4925, 0
        %4932 = vmatpush.bf16.xpose.msra.mxu0 0
        %4933 = vmatpush.bf16.xpose.msra.mxu0 0
        %4934 = vmatpush.bf16.xpose.msra.mxu0 0
        %4935 = vmatpush.bf16.xpose.msra.mxu0 0
        %4936 = vmatpush.bf16.xpose.msra.mxu0 0
        %4937 = vmatpush.bf16.xpose.msra.mxu0 0
        %4938 = vmatpush.bf16.xpose.msra.mxu0 0
        %4939 = vmatpush.bf16.xpose.msra.mxu0 %v4930
        %4940 = vmatmul.bf16.gmra.mxu0 %v4927
        %v4941 = vpop.f32.mrf.mxu0
        %v4942 = vadd.f32 0.0, %v4941
        %v4943 = vpop.f32.mrf.mxu0
        %v4944 = vadd.f32 0.0, %v4943
        %4945 = vdwg.mxu0
        %v4948 = vunpack.c.l.b16 %v4873
        %v4949 = vunpack.c.l.b16 %v4874
        %v4950 = vpack.c.b16 %v4949, %v4948
        %4951 = vrot.lane.b32.xlu0 %v4950, 112
        %v4952 = vpop.permute.xlu0 %4951
        %v4955 = vunpack.c.l.b16 %v4910
        %v4956 = vunpack.c.l.b16 %v4911
        %v4957 = vpack.c.b16 %v4956, %v4955
        %4958 = vrot.lane.b32.xlu0 %v4957, 112
        %v4959 = vpop.permute.xlu0 %4958
        %v4961 = vsel %vm1761, %v4952, 0
        %v4964 = vsel %vm1761, %v4959, 0
        %4966 = vmatpush.bf16.xpose.msra.mxu0 0
        %4967 = vmatpush.bf16.xpose.msra.mxu0 0
        %4968 = vmatpush.bf16.xpose.msra.mxu0 0
        %4969 = vmatpush.bf16.xpose.msra.mxu0 0
        %4970 = vmatpush.bf16.xpose.msra.mxu0 0
        %4971 = vmatpush.bf16.xpose.msra.mxu0 0
        %4972 = vmatpush.bf16.xpose.msra.mxu0 0
        %4973 = vmatpush.bf16.xpose.msra.mxu0 %v4964
        %4974 = vmatmul.bf16.gmra.mxu0 %v4961
        %v4975 = vpop.f32.mrf.mxu0
        %v4976 = vadd.f32 0.0, %v4975
        %v4977 = vpop.f32.mrf.mxu0
        %v4978 = vadd.f32 0.0, %v4977
        %4979 = vdwg.mxu0
        %v4980 = vmul.f32 %v4942, 0.35355338
        %v4981 = vmul.f32 %v4944, 0.35355338
        %v4982 = vmul.f32 %v4976, 0.35355338
        %v4983 = vmul.f32 %v4978, 0.35355338
        %v4984 = vsel %vm1709, %v4980, -inf
        %4985 = vmax.xlane.f32.xlu0 %v4984
        %v4986 = vpop.xlane.xlu0 %4985
        %v4987 = vsel %vm2773, %v4981, -inf
        %4988 = vmax.xlane.f32.xlu0 %v4987
        %v4989 = vpop.xlane.xlu0 %4988
        %v4990 = vsel %vm1709, %v4982, -inf
        %4991 = vmax.xlane.f32.xlu0 %v4990
        %v4992 = vpop.xlane.xlu0 %4991
        %v4993 = vsel %vm2773, %v4983, -inf
        %4994 = vmax.xlane.f32.xlu0 %v4993
        %v4995 = vpop.xlane.xlu0 %4994
        %v4996 = vsub.f32 %v4980, %v4986
        %v4997 = vsub.f32 %v4981, %v4989
        %v4998 = vsub.f32 %v4982, %v4992
        %v4999 = vsub.f32 %v4983, %v4995
        %v5000 = vmul.f32 %v4996, 1.442695
        %v5001 = vpow.pop %v5000
        %v5002 = vmul.f32 %v4997, 1.442695
        %v5003 = vpow.pop %v5002
        %v5004 = vmul.f32 %v4998, 1.442695
        %v5005 = vpow.pop %v5004
        %v5006 = vmul.f32 %v4999, 1.442695
        %v5007 = vpow.pop %v5006
        %v5008 = vsel %vm1709, %v5001, 0.0
        %5009 = vadd.xlane.f32.xlu0 %v5008
        %v5010 = vpop.xlane.xlu0 %5009
        %v5011 = vsel %vm2773, %v5003, 0.0
        %5012 = vadd.xlane.f32.xlu0 %v5011
        %v5013 = vpop.xlane.xlu0 %5012
        %v5014 = vsel %vm1709, %v5005, 0.0
        %5015 = vadd.xlane.f32.xlu0 %v5014
        %v5016 = vpop.xlane.xlu0 %5015
        %v5017 = vsel %vm2773, %v5007, 0.0
        %5018 = vadd.xlane.f32.xlu0 %v5017
        %v5019 = vpop.xlane.xlu0 %5018
        %v5020 = vrcp.pop %v5010
        %v5021 = vrcp.pop %v5013
        %v5022 = vrcp.pop %v5016
        %v5023 = vrcp.pop %v5019
        %v5024 = vmul.f32 %v5001, %v5020
        %v5025 = vmul.f32 %v5003, %v5021
        %v5026 = vmul.f32 %v5005, %v5022
        %v5027 = vmul.f32 %v5007, %v5023
        %v5028 = vpack.c.bf16 %v5024, %v5024
        %v5029 = vpack.c.bf16 %v5025, %v5025
        %v5030 = vpack.c.bf16 %v5026, %v5026
        %v5031 = vpack.c.bf16 %v5027, %v5027
        %5032 = vst [vmem:[#allocation1] ss:$9 sm:$0xff] %v4206
        %s5033 = scalar_lea.vmem [#allocation1], 1
        %5034 = vst [vmem:[%s5033] ss:$9 sm:$0xff] %v4217
        %s5035 = scalar_lea.vmem [#allocation1], 2
        %5036 = vst [vmem:[%s5035] ss:$9 sm:$0xff] %v4218
        %s5037 = scalar_lea.vmem [#allocation1], 3
        %5038 = vst [vmem:[%s5037] ss:$9 sm:$0xff] %v4219
        %s5039 = scalar_lea.vmem [#allocation1], 4
        %5040 = vst [vmem:[%s5039] ss:$9 sm:$0xff] %v4220
        %s5041 = scalar_lea.vmem [#allocation1], 5
        %5042 = vst [vmem:[%s5041] ss:$9 sm:$0xff] %v4221
        %s5043 = scalar_lea.vmem [#allocation1], 6
        %5044 = vst [vmem:[%s5043] ss:$9 sm:$0xff] %v4222
        %s5045 = scalar_lea.vmem [#allocation1], 7
        %5046 = vst [vmem:[%s5045] ss:$9 sm:$0xff] %v4223
        %v5047 = vld [vmem:[#allocation1] sm:$0xff]
        %5048 = vst [vmem:[#allocation1] ss:$9 sm:$0xff] %v4208
        %v5049 = vld [vmem:[#allocation1] sm:$0xff]
        %5050 = vst [vmem:[#allocation1] ss:$9 sm:$0xff] %v4224
        %5051 = vst [vmem:[%s5033] ss:$9 sm:$0xff] %v4225
        %5052 = vst [vmem:[%s5035] ss:$9 sm:$0xff] %v4226
        %5053 = vst [vmem:[%s5037] ss:$9 sm:$0xff] %v4227
        %5054 = vst [vmem:[%s5039] ss:$9 sm:$0xff] %v4228
        %5055 = vst [vmem:[%s5041] ss:$9 sm:$0xff] %v4229
        %5056 = vst [vmem:[%s5043] ss:$9 sm:$0xff] %v4230
        %5057 = vst [vmem:[%s5045] ss:$9 sm:$0xff] %v4211
        %v5058 = vld [vmem:[#allocation1] sm:$0xff]
        %5059 = vst [vmem:[#allocation1] ss:$9 sm:$0xff] %v4231
        %v5060 = vld [vmem:[#allocation1] sm:$0xff]
        %v5065 = vpack.c.bf16 %v5047, %v5047
        %v5066 = vpack.c.bf16 %v5049, %v5049
        %v5067 = vpack.c.bf16 %v5058, %v5058
        %v5068 = vpack.c.bf16 %v5060, %v5060
        %v5071 = vunpack.c.l.b16 %v5028
        %v5072 = vunpack.c.l.b16 %v5029
        %v5073 = vpack.c.b16 %v5072, %v5071
        %v5076 = vunpack.c.l.b16 %v5065
        %v5077 = vunpack.c.l.b16 %v5066
        %v5078 = vpack.c.b16 %v5077, %v5076
        %5079 = vrot.lane.b32.xlu0 %v5078, 80
        %v5080 = vpop.permute.xlu0 %5079
        %v5082 = vsel %vm1709, %v5073, 0
        %v5085 = vand.u32 %v5080, %v1716
        %5087 = vmatpush.bf16.msra.mxu0 0
        %5088 = vmatpush.bf16.msra.mxu0 0
        %5089 = vmatpush.bf16.msra.mxu0 0
        %5090 = vmatpush.bf16.msra.mxu0 0
        %5091 = vmatpush.bf16.msra.mxu0 0
        %5092 = vmatpush.bf16.msra.mxu0 0
        %5093 = vmatpush.bf16.msra.mxu0 0
        %5094 = vmatpush.bf16.msra.mxu0 %v5085
        %5095 = vmatmul.bf16.gmra.mxu0 %v5082
        %v5096 = vpop.f32.mrf.mxu0
        %v5097 = vadd.f32 0.0, %v5096
        %v5098 = vpop.f32.mrf.mxu0
        %v5099 = vadd.f32 0.0, %v5098
        %5100 = vdwg.mxu0
        %v5103 = vunpack.c.l.b16 %v5030
        %v5104 = vunpack.c.l.b16 %v5031
        %v5105 = vpack.c.b16 %v5104, %v5103
        %v5108 = vunpack.c.l.b16 %v5067
        %v5109 = vunpack.c.l.b16 %v5068
        %v5110 = vpack.c.b16 %v5109, %v5108
        %5111 = vrot.lane.b32.xlu0 %v5110, 80
        %v5112 = vpop.permute.xlu0 %5111
        %v5114 = vsel %vm1709, %v5105, 0
        %v5117 = vand.u32 %v5112, %v1716
        %5119 = vmatpush.bf16.msra.mxu0 0
        %5120 = vmatpush.bf16.msra.mxu0 0
        %5121 = vmatpush.bf16.msra.mxu0 0
        %5122 = vmatpush.bf16.msra.mxu0 0
        %5123 = vmatpush.bf16.msra.mxu0 0
        %5124 = vmatpush.bf16.msra.mxu0 0
        %5125 = vmatpush.bf16.msra.mxu0 0
        %5126 = vmatpush.bf16.msra.mxu0 %v5117
        %5127 = vmatmul.bf16.gmra.mxu0 %v5114
        %v5128 = vpop.f32.mrf.mxu0
        %v5129 = vadd.f32 0.0, %v5128
        %v5130 = vpop.f32.mrf.mxu0
        %v5131 = vadd.f32 0.0, %v5130
        %5132 = vdwg.mxu0
        %5137 = vrot.lane.b32.xlu0 %v5097, 16
        %v5138 = vpop.permute.xlu0 %5137
        %5139 = vrot.lane.b32.xlu0 %v5099, 16
        %v5140 = vpop.permute.xlu0 %5139
        %5141 = vrot.lane.b32.xlu0 %v5129, 16
        %v5142 = vpop.permute.xlu0 %5141
        %5143 = vrot.lane.b32.xlu0 %v5131, 16
        %v5144 = vpop.permute.xlu0 %5143
        %5149 = vst.msk [vmem:[#allocation5] sm:$0xff] %vm2336, %v5138
        %5150 = vst.msk [vmem:[#allocation5 + $0x8] sm:$0x1] %vm2338, %v5140
        %5151 = vst.msk [vmem:[#allocation5 + $0x10] sm:$0xff] %vm2336, %v5142
        %5152 = vst.msk [vmem:[#allocation5 + $0x18] sm:$0x1] %vm2338, %v5144
        %5153 = vst [vmem:[#allocation1] ss:$9 sm:$0xff] %v4093
        %s5154 = scalar_lea.vmem [#allocation1], 1
        %5155 = vst [vmem:[%s5154] ss:$9 sm:$0xff] %v4104
        %s5156 = scalar_lea.vmem [#allocation1], 2
        %5157 = vst [vmem:[%s5156] ss:$9 sm:$0xff] %v4105
        %s5158 = scalar_lea.vmem [#allocation1], 3
        %5159 = vst [vmem:[%s5158] ss:$9 sm:$0xff] %v4106
        %s5160 = scalar_lea.vmem [#allocation1], 4
        %5161 = vst [vmem:[%s5160] ss:$9 sm:$0xff] %v4107
        %s5162 = scalar_lea.vmem [#allocation1], 5
        %5163 = vst [vmem:[%s5162] ss:$9 sm:$0xff] %v4108
        %s5164 = scalar_lea.vmem [#allocation1], 6
        %5165 = vst [vmem:[%s5164] ss:$9 sm:$0xff] %v4109
        %s5166 = scalar_lea.vmem [#allocation1], 7
        %5167 = vst [vmem:[%s5166] ss:$9 sm:$0xff] %v4110
        %v5168 = vld [vmem:[#allocation1] sm:$0xff]
        %5169 = vst [vmem:[#allocation1] ss:$9 sm:$0xff] %v4095
        %v5170 = vld [vmem:[#allocation1] sm:$0xff]
        %5171 = vst [vmem:[#allocation1] ss:$9 sm:$0xff] %v4111
        %5172 = vst [vmem:[%s5154] ss:$9 sm:$0xff] %v4112
        %5173 = vst [vmem:[%s5156] ss:$9 sm:$0xff] %v4113
        %5174 = vst [vmem:[%s5158] ss:$9 sm:$0xff] %v4114
        %5175 = vst [vmem:[%s5160] ss:$9 sm:$0xff] %v4115
        %5176 = vst [vmem:[%s5162] ss:$9 sm:$0xff] %v4116
        %5177 = vst [vmem:[%s5164] ss:$9 sm:$0xff] %v4117
        %5178 = vst [vmem:[%s5166] ss:$9 sm:$0xff] %v4098
        %v5179 = vld [vmem:[#allocation1] sm:$0xff]
        %5180 = vst [vmem:[#allocation1] ss:$9 sm:$0xff] %v4118
        %v5181 = vld [vmem:[#allocation1] sm:$0xff]
        %v5186 = vpack.c.bf16 %v5168, %v5168
        %v5187 = vpack.c.bf16 %v5170, %v5170
        %v5188 = vpack.c.bf16 %v5179, %v5179
        %v5189 = vpack.c.bf16 %v5181, %v5181
        %5190 = vst [vmem:[#allocation1] ss:$9 sm:$0xff] %v4206
        %s5191 = scalar_lea.vmem [#allocation1], 1
        %5192 = vst [vmem:[%s5191] ss:$9 sm:$0xff] %v4217
        %s5193 = scalar_lea.vmem [#allocation1], 2
        %5194 = vst [vmem:[%s5193] ss:$9 sm:$0xff] %v4218
        %s5195 = scalar_lea.vmem [#allocation1], 3
        %5196 = vst [vmem:[%s5195] ss:$9 sm:$0xff] %v4219
        %s5197 = scalar_lea.vmem [#allocation1], 4
        %5198 = vst [vmem:[%s5197] ss:$9 sm:$0xff] %v4220
        %s5199 = scalar_lea.vmem [#allocation1], 5
        %5200 = vst [vmem:[%s5199] ss:$9 sm:$0xff] %v4221
        %s5201 = scalar_lea.vmem [#allocation1], 6
        %5202 = vst [vmem:[%s5201] ss:$9 sm:$0xff] %v4222
        %s5203 = scalar_lea.vmem [#allocation1], 7
        %5204 = vst [vmem:[%s5203] ss:$9 sm:$0xff] %v4223
        %v5205 = vld [vmem:[#allocation1] sm:$0xff]
        %5206 = vst [vmem:[#allocation1] ss:$9 sm:$0xff] %v4208
        %v5207 = vld [vmem:[#allocation1] sm:$0xff]
        %5208 = vst [vmem:[#allocation1] ss:$9 sm:$0xff] %v4224
        %5209 = vst [vmem:[%s5191] ss:$9 sm:$0xff] %v4225
        %5210 = vst [vmem:[%s5193] ss:$9 sm:$0xff] %v4226
        %5211 = vst [vmem:[%s5195] ss:$9 sm:$0xff] %v4227
        %5212 = vst [vmem:[%s5197] ss:$9 sm:$0xff] %v4228
        %5213 = vst [vmem:[%s5199] ss:$9 sm:$0xff] %v4229
        %5214 = vst [vmem:[%s5201] ss:$9 sm:$0xff] %v4230
        %5215 = vst [vmem:[%s5203] ss:$9 sm:$0xff] %v4211
        %v5216 = vld [vmem:[#allocation1] sm:$0xff]
        %5217 = vst [vmem:[#allocation1] ss:$9 sm:$0xff] %v4231
        %v5218 = vld [vmem:[#allocation1] sm:$0xff]
        %v5223 = vpack.c.bf16 %v5205, %v5205
        %v5224 = vpack.c.bf16 %v5207, %v5207
        %v5225 = vpack.c.bf16 %v5216, %v5216
        %v5226 = vpack.c.bf16 %v5218, %v5218
        %v5229 = vunpack.c.l.b16 %v5186
        %v5230 = vunpack.c.l.b16 %v5187
        %v5231 = vpack.c.b16 %v5230, %v5229
        %5232 = vrot.lane.b32.xlu0 %v5231, 104
        %v5233 = vpop.permute.xlu0 %5232
        %v5236 = vunpack.c.l.b16 %v5223
        %v5237 = vunpack.c.l.b16 %v5224
        %v5238 = vpack.c.b16 %v5237, %v5236
        %5239 = vrot.lane.b32.xlu0 %v5238, 104
        %v5240 = vpop.permute.xlu0 %5239
        %v5242 = vsel %vm1761, %v5233, 0
        %v5245 = vsel %vm1761, %v5240, 0
        %5247 = vmatpush.bf16.xpose.msra.mxu0 0
        %5248 = vmatpush.bf16.xpose.msra.mxu0 0
        %5249 = vmatpush.bf16.xpose.msra.mxu0 0
        %5250 = vmatpush.bf16.xpose.msra.mxu0 0
        %5251 = vmatpush.bf16.xpose.msra.mxu0 0
        %5252 = vmatpush.bf16.xpose.msra.mxu0 0
        %5253 = vmatpush.bf16.xpose.msra.mxu0 0
        %5254 = vmatpush.bf16.xpose.msra.mxu0 %v5245
        %5255 = vmatmul.bf16.gmra.mxu0 %v5242
        %v5256 = vpop.f32.mrf.mxu0
        %v5257 = vadd.f32 0.0, %v5256
        %v5258 = vpop.f32.mrf.mxu0
        %v5259 = vadd.f32 0.0, %v5258
        %5260 = vdwg.mxu0
        %v5263 = vunpack.c.l.b16 %v5188
        %v5264 = vunpack.c.l.b16 %v5189
        %v5265 = vpack.c.b16 %v5264, %v5263
        %5266 = vrot.lane.b32.xlu0 %v5265, 104
        %v5267 = vpop.permute.xlu0 %5266
        %v5270 = vunpack.c.l.b16 %v5225
        %v5271 = vunpack.c.l.b16 %v5226
        %v5272 = vpack.c.b16 %v5271, %v5270
        %5273 = vrot.lane.b32.xlu0 %v5272, 104
        %v5274 = vpop.permute.xlu0 %5273
        %v5276 = vsel %vm1761, %v5267, 0
        %v5279 = vsel %vm1761, %v5274, 0
        %5281 = vmatpush.bf16.xpose.msra.mxu0 0
        %5282 = vmatpush.bf16.xpose.msra.mxu0 0
        %5283 = vmatpush.bf16.xpose.msra.mxu0 0
        %5284 = vmatpush.bf16.xpose.msra.mxu0 0
        %5285 = vmatpush.bf16.xpose.msra.mxu0 0
        %5286 = vmatpush.bf16.xpose.msra.mxu0 0
        %5287 = vmatpush.bf16.xpose.msra.mxu0 0
        %5288 = vmatpush.bf16.xpose.msra.mxu0 %v5279
        %5289 = vmatmul.bf16.gmra.mxu0 %v5276
        %v5290 = vpop.f32.mrf.mxu0
        %v5291 = vadd.f32 0.0, %v5290
        %v5292 = vpop.f32.mrf.mxu0
        %v5293 = vadd.f32 0.0, %v5292
        %5294 = vdwg.mxu0
        %v5295 = vmul.f32 %v5257, 0.35355338
        %v5296 = vmul.f32 %v5259, 0.35355338
        %v5297 = vmul.f32 %v5291, 0.35355338
        %v5298 = vmul.f32 %v5293, 0.35355338
        %v5299 = vsel %vm1709, %v5295, -inf
        %5300 = vmax.xlane.f32.xlu0 %v5299
        %v5301 = vpop.xlane.xlu0 %5300
        %v5302 = vsel %vm2773, %v5296, -inf
        %5303 = vmax.xlane.f32.xlu0 %v5302
        %v5304 = vpop.xlane.xlu0 %5303
        %v5305 = vsel %vm1709, %v5297, -inf
        %5306 = vmax.xlane.f32.xlu0 %v5305
        %v5307 = vpop.xlane.xlu0 %5306
        %v5308 = vsel %vm2773, %v5298, -inf
        %5309 = vmax.xlane.f32.xlu0 %v5308
        %v5310 = vpop.xlane.xlu0 %5309
        %v5311 = vsub.f32 %v5295, %v5301
        %v5312 = vsub.f32 %v5296, %v5304
        %v5313 = vsub.f32 %v5297, %v5307
        %v5314 = vsub.f32 %v5298, %v5310
        %v5315 = vmul.f32 %v5311, 1.442695
        %v5316 = vpow.pop %v5315
        %v5317 = vmul.f32 %v5312, 1.442695
        %v5318 = vpow.pop %v5317
        %v5319 = vmul.f32 %v5313, 1.442695
        %v5320 = vpow.pop %v5319
        %v5321 = vmul.f32 %v5314, 1.442695
        %v5322 = vpow.pop %v5321
        %v5323 = vsel %vm1709, %v5316, 0.0
        %5324 = vadd.xlane.f32.xlu0 %v5323
        %v5325 = vpop.xlane.xlu0 %5324
        %v5326 = vsel %vm2773, %v5318, 0.0
        %5327 = vadd.xlane.f32.xlu0 %v5326
        %v5328 = vpop.xlane.xlu0 %5327
        %v5329 = vsel %vm1709, %v5320, 0.0
        %5330 = vadd.xlane.f32.xlu0 %v5329
        %v5331 = vpop.xlane.xlu0 %5330
        %v5332 = vsel %vm2773, %v5322, 0.0
        %5333 = vadd.xlane.f32.xlu0 %v5332
        %v5334 = vpop.xlane.xlu0 %5333
        %v5335 = vrcp.pop %v5325
        %v5336 = vrcp.pop %v5328
        %v5337 = vrcp.pop %v5331
        %v5338 = vrcp.pop %v5334
        %v5339 = vmul.f32 %v5316, %v5335
        %v5340 = vmul.f32 %v5318, %v5336
        %v5341 = vmul.f32 %v5320, %v5337
        %v5342 = vmul.f32 %v5322, %v5338
        %v5343 = vpack.c.bf16 %v5339, %v5339
        %v5344 = vpack.c.bf16 %v5340, %v5340
        %v5345 = vpack.c.bf16 %v5341, %v5341
        %v5346 = vpack.c.bf16 %v5342, %v5342
        %5347 = vst [vmem:[#allocation1] ss:$9 sm:$0xff] %v4206
        %s5348 = scalar_lea.vmem [#allocation1], 1
        %5349 = vst [vmem:[%s5348] ss:$9 sm:$0xff] %v4217
        %s5350 = scalar_lea.vmem [#allocation1], 2
        %5351 = vst [vmem:[%s5350] ss:$9 sm:$0xff] %v4218
        %s5352 = scalar_lea.vmem [#allocation1], 3
        %5353 = vst [vmem:[%s5352] ss:$9 sm:$0xff] %v4219
        %s5354 = scalar_lea.vmem [#allocation1], 4
        %5355 = vst [vmem:[%s5354] ss:$9 sm:$0xff] %v4220
        %s5356 = scalar_lea.vmem [#allocation1], 5
        %5357 = vst [vmem:[%s5356] ss:$9 sm:$0xff] %v4221
        %s5358 = scalar_lea.vmem [#allocation1], 6
        %5359 = vst [vmem:[%s5358] ss:$9 sm:$0xff] %v4222
        %s5360 = scalar_lea.vmem [#allocation1], 7
        %5361 = vst [vmem:[%s5360] ss:$9 sm:$0xff] %v4223
        %v5362 = vld [vmem:[#allocation1] sm:$0xff]
        %5363 = vst [vmem:[#allocation1] ss:$9 sm:$0xff] %v4208
        %v5364 = vld [vmem:[#allocation1] sm:$0xff]
        %5365 = vst [vmem:[#allocation1] ss:$9 sm:$0xff] %v4224
        %5366 = vst [vmem:[%s5348] ss:$9 sm:$0xff] %v4225
        %5367 = vst [vmem:[%s5350] ss:$9 sm:$0xff] %v4226
        %5368 = vst [vmem:[%s5352] ss:$9 sm:$0xff] %v4227
        %5369 = vst [vmem:[%s5354] ss:$9 sm:$0xff] %v4228
        %5370 = vst [vmem:[%s5356] ss:$9 sm:$0xff] %v4229
        %5371 = vst [vmem:[%s5358] ss:$9 sm:$0xff] %v4230
        %5372 = vst [vmem:[%s5360] ss:$9 sm:$0xff] %v4211
        %v5373 = vld [vmem:[#allocation1] sm:$0xff]
        %5374 = vst [vmem:[#allocation1] ss:$9 sm:$0xff] %v4231
        %v5375 = vld [vmem:[#allocation1] sm:$0xff]
        %v5380 = vpack.c.bf16 %v5362, %v5362
        %v5381 = vpack.c.bf16 %v5364, %v5364
        %v5382 = vpack.c.bf16 %v5373, %v5373
        %v5383 = vpack.c.bf16 %v5375, %v5375
        %v5386 = vunpack.c.l.b16 %v5343
        %v5387 = vunpack.c.l.b16 %v5344
        %v5388 = vpack.c.b16 %v5387, %v5386
        %v5391 = vunpack.c.l.b16 %v5380
        %v5392 = vunpack.c.l.b16 %v5381
        %v5393 = vpack.c.b16 %v5392, %v5391
        %5394 = vrot.lane.b32.xlu0 %v5393, 72
        %v5395 = vpop.permute.xlu0 %5394
        %v5397 = vsel %vm1709, %v5388, 0
        %v5400 = vand.u32 %v5395, %v1716
        %5402 = vmatpush.bf16.msra.mxu0 0
        %5403 = vmatpush.bf16.msra.mxu0 0
        %5404 = vmatpush.bf16.msra.mxu0 0
        %5405 = vmatpush.bf16.msra.mxu0 0
        %5406 = vmatpush.bf16.msra.mxu0 0
        %5407 = vmatpush.bf16.msra.mxu0 0
        %5408 = vmatpush.bf16.msra.mxu0 0
        %5409 = vmatpush.bf16.msra.mxu0 %v5400
        %5410 = vmatmul.bf16.gmra.mxu0 %v5397
        %v5411 = vpop.f32.mrf.mxu0
        %v5412 = vadd.f32 0.0, %v5411
        %v5413 = vpop.f32.mrf.mxu0
        %v5414 = vadd.f32 0.0, %v5413
        %5415 = vdwg.mxu0
        %v5418 = vunpack.c.l.b16 %v5345
        %v5419 = vunpack.c.l.b16 %v5346
        %v5420 = vpack.c.b16 %v5419, %v5418
        %v5423 = vunpack.c.l.b16 %v5382
        %v5424 = vunpack.c.l.b16 %v5383
        %v5425 = vpack.c.b16 %v5424, %v5423
        %5426 = vrot.lane.b32.xlu0 %v5425, 72
        %v5427 = vpop.permute.xlu0 %5426
        %v5429 = vsel %vm1709, %v5420, 0
        %v5432 = vand.u32 %v5427, %v1716
        %5434 = vmatpush.bf16.msra.mxu0 0
        %5435 = vmatpush.bf16.msra.mxu0 0
        %5436 = vmatpush.bf16.msra.mxu0 0
        %5437 = vmatpush.bf16.msra.mxu0 0
        %5438 = vmatpush.bf16.msra.mxu0 0
        %5439 = vmatpush.bf16.msra.mxu0 0
        %5440 = vmatpush.bf16.msra.mxu0 0
        %5441 = vmatpush.bf16.msra.mxu0 %v5432
        %5442 = vmatmul.bf16.gmra.mxu0 %v5429
        %v5443 = vpop.f32.mrf.mxu0
        %v5444 = vadd.f32 0.0, %v5443
        %v5445 = vpop.f32.mrf.mxu0
        %v5446 = vadd.f32 0.0, %v5445
        %5447 = vdwg.mxu0
        %5452 = vrot.lane.b32.xlu0 %v5412, 24
        %v5453 = vpop.permute.xlu0 %5452
        %5454 = vrot.lane.b32.xlu0 %v5414, 24
        %v5455 = vpop.permute.xlu0 %5454
        %5456 = vrot.lane.b32.xlu0 %v5444, 24
        %v5457 = vpop.permute.xlu0 %5456
        %5458 = vrot.lane.b32.xlu0 %v5446, 24
        %v5459 = vpop.permute.xlu0 %5458
        %5464 = vst.msk [vmem:[#allocation5] sm:$0xff] %vm2566, %v5453
        %5465 = vst.msk [vmem:[#allocation5 + $0x8] sm:$0x1] %vm2568, %v5455
        %5466 = vst.msk [vmem:[#allocation5 + $0x10] sm:$0xff] %vm2566, %v5457
        %5467 = vst.msk [vmem:[#allocation5 + $0x18] sm:$0x1] %vm2568, %v5459
        %v5468 = vld [vmem:[%s1098] sm:$0xf]
        %v5469 = vld [vmem:[%s1098 + $0x4] sm:$0xf]
        %v5470 = vld [vmem:[%s1098 + $0x8] sm:$0xf]
        %v5471 = vld [vmem:[%s1098 + $0xc] sm:$0xf]
        %v5472 = vld [vmem:[%s1101] sm:$0x1]
        %v5474 = vperm.slane %v5472, 0
        %v5480 = vunpack.c.l.b16 %v5468
        %v5481 = vunpack.c.l.b16 %v5469
        %v5482 = vunpack.c.l.b16 %v5470
        %v5483 = vunpack.c.l.b16 %v5471
        %v5484 = vpack.c.b16 %v5481, %v5480
        %v5485 = vpack.c.b16 %v5483, %v5482
        %5488 = vmatpush.bf16.msra.mxu0 0
        %5489 = vmatpush.bf16.msra.mxu0 0
        %5490 = vmatpush.bf16.msra.mxu0 0
        %5491 = vmatpush.bf16.msra.mxu0 0
        %5492 = vmatpush.bf16.msra.mxu0 0
        %5493 = vmatpush.bf16.msra.mxu0 0
        %5494 = vmatpush.bf16.msra.mxu0 %v5485
        %5495 = vmatpush.bf16.msra.mxu0 %v5484
        %5496 = vmatmul.bf16.gmra.mxu0 %v4191
        %v5497 = vpop.f32.mrf.mxu0
        %v5498 = vadd.f32 %v5474, %v5497
        %v5499 = vpop.f32.mrf.mxu0
        %v5500 = vadd.f32 %v5474, %v5499
        %5501 = vmatmul.bf16.gmra.mxu0 %v4194
        %v5502 = vpop.f32.mrf.mxu0
        %v5503 = vadd.f32 %v5474, %v5502
        %v5504 = vpop.f32.mrf.mxu0
        %5505 = vdwg.mxu0
        %v5509 = vrot.slane %v5498, 1
        %v5510 = vrot.slane %v5498, 2
        %v5511 = vrot.slane %v5498, 3
        %v5512 = vrot.slane %v5498, 4
        %v5513 = vrot.slane %v5498, 5
        %v5514 = vrot.slane %v5498, 6
        %v5515 = vrot.slane %v5498, 7
        %v5516 = vrot.slane %v5500, 1
        %v5517 = vrot.slane %v5500, 2
        %v5518 = vrot.slane %v5500, 3
        %v5519 = vrot.slane %v5500, 4
        %v5520 = vrot.slane %v5500, 5
        %v5521 = vrot.slane %v5500, 6
        %v5522 = vrot.slane %v5500, 7
        %v5523 = vrot.slane %v5503, 1
        %v5524 = vld [vmem:[%s1106] sm:$0xf]
        %v5525 = vld [vmem:[%s1106 + $0x4] sm:$0xf]
        %v5526 = vld [vmem:[%s1106 + $0x8] sm:$0xf]
        %v5527 = vld [vmem:[%s1106 + $0xc] sm:$0xf]
        %v5528 = vld [vmem:[%s1109] sm:$0x1]
        %v5530 = vperm.slane %v5528, 0
        %v5536 = vunpack.c.l.b16 %v5524
        %v5537 = vunpack.c.l.b16 %v5525
        %v5538 = vunpack.c.l.b16 %v5526
        %v5539 = vunpack.c.l.b16 %v5527
        %v5540 = vpack.c.b16 %v5537, %v5536
        %v5541 = vpack.c.b16 %v5539, %v5538
        %5544 = vmatpush.bf16.msra.mxu0 0
        %5545 = vmatpush.bf16.msra.mxu0 0
        %5546 = vmatpush.bf16.msra.mxu0 0
        %5547 = vmatpush.bf16.msra.mxu0 0
        %5548 = vmatpush.bf16.msra.mxu0 0
        %5549 = vmatpush.bf16.msra.mxu0 0
        %5550 = vmatpush.bf16.msra.mxu0 %v5541
        %5551 = vmatpush.bf16.msra.mxu0 %v5540
        %5552 = vmatmul.bf16.gmra.mxu0 %v4078
        %v5553 = vpop.f32.mrf.mxu0
        %v5554 = vadd.f32 %v5530, %v5553
        %v5555 = vpop.f32.mrf.mxu0
        %v5556 = vadd.f32 %v5530, %v5555
        %5557 = vmatmul.bf16.gmra.mxu0 %v4081
        %v5558 = vpop.f32.mrf.mxu0
        %v5559 = vadd.f32 %v5530, %v5558
        %v5560 = vpop.f32.mrf.mxu0
        %5561 = vdwg.mxu0
        %v5565 = vrot.slane %v5554, 1
        %v5566 = vrot.slane %v5554, 2
        %v5567 = vrot.slane %v5554, 3
        %v5568 = vrot.slane %v5554, 4
        %v5569 = vrot.slane %v5554, 5
        %v5570 = vrot.slane %v5554, 6
        %v5571 = vrot.slane %v5554, 7
        %v5572 = vrot.slane %v5556, 1
        %v5573 = vrot.slane %v5556, 2
        %v5574 = vrot.slane %v5556, 3
        %v5575 = vrot.slane %v5556, 4
        %v5576 = vrot.slane %v5556, 5
        %v5577 = vrot.slane %v5556, 6
        %v5578 = vrot.slane %v5556, 7
        %v5579 = vrot.slane %v5559, 1
        %5580 = vst [vmem:[#allocation1] ss:$9 sm:$0xff] %v5498
        %s5581 = scalar_lea.vmem [#allocation1], 1
        %5582 = vst [vmem:[%s5581] ss:$9 sm:$0xff] %v5509
        %s5583 = scalar_lea.vmem [#allocation1], 2
        %5584 = vst [vmem:[%s5583] ss:$9 sm:$0xff] %v5510
        %s5585 = scalar_lea.vmem [#allocation1], 3
        %5586 = vst [vmem:[%s5585] ss:$9 sm:$0xff] %v5511
        %s5587 = scalar_lea.vmem [#allocation1], 4
        %5588 = vst [vmem:[%s5587] ss:$9 sm:$0xff] %v5512
        %s5589 = scalar_lea.vmem [#allocation1], 5
        %5590 = vst [vmem:[%s5589] ss:$9 sm:$0xff] %v5513
        %s5591 = scalar_lea.vmem [#allocation1], 6
        %5592 = vst [vmem:[%s5591] ss:$9 sm:$0xff] %v5514
        %s5593 = scalar_lea.vmem [#allocation1], 7
        %5594 = vst [vmem:[%s5593] ss:$9 sm:$0xff] %v5515
        %v5595 = vld [vmem:[#allocation1] sm:$0xff]
        %5596 = vst [vmem:[#allocation1] ss:$9 sm:$0xff] %v5500
        %v5597 = vld [vmem:[#allocation1] sm:$0xff]
        %5598 = vst [vmem:[#allocation1] ss:$9 sm:$0xff] %v5516
        %5599 = vst [vmem:[%s5581] ss:$9 sm:$0xff] %v5517
        %5600 = vst [vmem:[%s5583] ss:$9 sm:$0xff] %v5518
        %5601 = vst [vmem:[%s5585] ss:$9 sm:$0xff] %v5519
        %5602 = vst [vmem:[%s5587] ss:$9 sm:$0xff] %v5520
        %5603 = vst [vmem:[%s5589] ss:$9 sm:$0xff] %v5521
        %5604 = vst [vmem:[%s5591] ss:$9 sm:$0xff] %v5522
        %5605 = vst [vmem:[%s5593] ss:$9 sm:$0xff] %v5503
        %v5606 = vld [vmem:[#allocation1] sm:$0xff]
        %5607 = vst [vmem:[#allocation1] ss:$9 sm:$0xff] %v5523
        %v5608 = vld [vmem:[#allocation1] sm:$0xff]
        %v5613 = vpack.c.bf16 %v5595, %v5595
        %v5614 = vpack.c.bf16 %v5597, %v5597
        %v5615 = vpack.c.bf16 %v5606, %v5606
        %v5616 = vpack.c.bf16 %v5608, %v5608
        %5617 = vst [vmem:[#allocation1] ss:$9 sm:$0xff] %v5554
        %s5618 = scalar_lea.vmem [#allocation1], 1
        %5619 = vst [vmem:[%s5618] ss:$9 sm:$0xff] %v5565
        %s5620 = scalar_lea.vmem [#allocation1], 2
        %5621 = vst [vmem:[%s5620] ss:$9 sm:$0xff] %v5566
        %s5622 = scalar_lea.vmem [#allocation1], 3
        %5623 = vst [vmem:[%s5622] ss:$9 sm:$0xff] %v5567
        %s5624 = scalar_lea.vmem [#allocation1], 4
        %5625 = vst [vmem:[%s5624] ss:$9 sm:$0xff] %v5568
        %s5626 = scalar_lea.vmem [#allocation1], 5
        %5627 = vst [vmem:[%s5626] ss:$9 sm:$0xff] %v5569
        %s5628 = scalar_lea.vmem [#allocation1], 6
        %5629 = vst [vmem:[%s5628] ss:$9 sm:$0xff] %v5570
        %s5630 = scalar_lea.vmem [#allocation1], 7
        %5631 = vst [vmem:[%s5630] ss:$9 sm:$0xff] %v5571
        %v5632 = vld [vmem:[#allocation1] sm:$0xff]
        %5633 = vst [vmem:[#allocation1] ss:$9 sm:$0xff] %v5556
        %v5634 = vld [vmem:[#allocation1] sm:$0xff]
        %5635 = vst [vmem:[#allocation1] ss:$9 sm:$0xff] %v5572
        %5636 = vst [vmem:[%s5618] ss:$9 sm:$0xff] %v5573
        %5637 = vst [vmem:[%s5620] ss:$9 sm:$0xff] %v5574
        %5638 = vst [vmem:[%s5622] ss:$9 sm:$0xff] %v5575
        %5639 = vst [vmem:[%s5624] ss:$9 sm:$0xff] %v5576
        %5640 = vst [vmem:[%s5626] ss:$9 sm:$0xff] %v5577
        %5641 = vst [vmem:[%s5628] ss:$9 sm:$0xff] %v5578
        %5642 = vst [vmem:[%s5630] ss:$9 sm:$0xff] %v5559
        %v5643 = vld [vmem:[#allocation1] sm:$0xff]
        %5644 = vst [vmem:[#allocation1] ss:$9 sm:$0xff] %v5579
        %v5645 = vld [vmem:[#allocation1] sm:$0xff]
        %v5650 = vpack.c.bf16 %v5632, %v5632
        %v5651 = vpack.c.bf16 %v5634, %v5634
        %v5652 = vpack.c.bf16 %v5643, %v5643
        %v5653 = vpack.c.bf16 %v5645, %v5645
        %v5656 = vunpack.c.l.b16 %v5613
        %v5657 = vunpack.c.l.b16 %v5614
        %v5658 = vpack.c.b16 %v5657, %v5656
        %v5661 = vunpack.c.l.b16 %v5650
        %v5662 = vunpack.c.l.b16 %v5651
        %v5663 = vpack.c.b16 %v5662, %v5661
        %v5665 = vsel %vm1761, %v5658, 0
        %v5668 = vsel %vm1761, %v5663, 0
        %5670 = vmatpush.bf16.xpose.msra.mxu0 0
        %5671 = vmatpush.bf16.xpose.msra.mxu0 0
        %5672 = vmatpush.bf16.xpose.msra.mxu0 0
        %5673 = vmatpush.bf16.xpose.msra.mxu0 0
        %5674 = vmatpush.bf16.xpose.msra.mxu0 0
        %5675 = vmatpush.bf16.xpose.msra.mxu0 0
        %5676 = vmatpush.bf16.xpose.msra.mxu0 0
        %5677 = vmatpush.bf16.xpose.msra.mxu0 %v5668
        %5678 = vmatmul.bf16.gmra.mxu0 %v5665
        %v5679 = vpop.f32.mrf.mxu0
        %v5680 = vadd.f32 0.0, %v5679
        %v5681 = vpop.f32.mrf.mxu0
        %v5682 = vadd.f32 0.0, %v5681
        %5683 = vdwg.mxu0
        %v5686 = vunpack.c.l.b16 %v5615
        %v5687 = vunpack.c.l.b16 %v5616
        %v5688 = vpack.c.b16 %v5687, %v5686
        %v5691 = vunpack.c.l.b16 %v5652
        %v5692 = vunpack.c.l.b16 %v5653
        %v5693 = vpack.c.b16 %v5692, %v5691
        %v5695 = vsel %vm1761, %v5688, 0
        %v5698 = vsel %vm1761, %v5693, 0
        %5700 = vmatpush.bf16.xpose.msra.mxu0 0
        %5701 = vmatpush.bf16.xpose.msra.mxu0 0
        %5702 = vmatpush.bf16.xpose.msra.mxu0 0
        %5703 = vmatpush.bf16.xpose.msra.mxu0 0
        %5704 = vmatpush.bf16.xpose.msra.mxu0 0
        %5705 = vmatpush.bf16.xpose.msra.mxu0 0
        %5706 = vmatpush.bf16.xpose.msra.mxu0 0
        %5707 = vmatpush.bf16.xpose.msra.mxu0 %v5698
        %5708 = vmatmul.bf16.gmra.mxu0 %v5695
        %v5709 = vpop.f32.mrf.mxu0
        %v5710 = vadd.f32 0.0, %v5709
        %v5711 = vpop.f32.mrf.mxu0
        %v5712 = vadd.f32 0.0, %v5711
        %5713 = vdwg.mxu0
        %v5714 = vmul.f32 %v5680, 0.35355338
        %v5715 = vmul.f32 %v5682, 0.35355338
        %v5716 = vmul.f32 %v5710, 0.35355338
        %v5717 = vmul.f32 %v5712, 0.35355338
        %v5718 = vsel %vm1709, %v5714, -inf
        %5719 = vmax.xlane.f32.xlu0 %v5718
        %v5720 = vpop.xlane.xlu0 %5719
        %v5721 = vsel %vm2773, %v5715, -inf
        %5722 = vmax.xlane.f32.xlu0 %v5721
        %v5723 = vpop.xlane.xlu0 %5722
        %v5724 = vsel %vm1709, %v5716, -inf
        %5725 = vmax.xlane.f32.xlu0 %v5724
        %v5726 = vpop.xlane.xlu0 %5725
        %v5727 = vsel %vm2773, %v5717, -inf
        %5728 = vmax.xlane.f32.xlu0 %v5727
        %v5729 = vpop.xlane.xlu0 %5728
        %v5730 = vsub.f32 %v5714, %v5720
        %v5731 = vsub.f32 %v5715, %v5723
        %v5732 = vsub.f32 %v5716, %v5726
        %v5733 = vsub.f32 %v5717, %v5729
        %v5734 = vmul.f32 %v5730, 1.442695
        %v5735 = vpow.pop %v5734
        %v5736 = vmul.f32 %v5731, 1.442695
        %v5737 = vpow.pop %v5736
        %v5738 = vmul.f32 %v5732, 1.442695
        %v5739 = vpow.pop %v5738
        %v5740 = vmul.f32 %v5733, 1.442695
        %v5741 = vpow.pop %v5740
        %v5742 = vsel %vm1709, %v5735, 0.0
        %5743 = vadd.xlane.f32.xlu0 %v5742
        %v5744 = vpop.xlane.xlu0 %5743
        %v5745 = vsel %vm2773, %v5737, 0.0
        %5746 = vadd.xlane.f32.xlu0 %v5745
        %v5747 = vpop.xlane.xlu0 %5746
        %v5748 = vsel %vm1709, %v5739, 0.0
        %5749 = vadd.xlane.f32.xlu0 %v5748
        %v5750 = vpop.xlane.xlu0 %5749
        %v5751 = vsel %vm2773, %v5741, 0.0
        %5752 = vadd.xlane.f32.xlu0 %v5751
        %v5753 = vpop.xlane.xlu0 %5752
        %v5754 = vrcp.pop %v5744
        %v5755 = vrcp.pop %v5747
        %v5756 = vrcp.pop %v5750
        %v5757 = vrcp.pop %v5753
        %v5758 = vmul.f32 %v5735, %v5754
        %v5759 = vmul.f32 %v5737, %v5755
        %v5760 = vmul.f32 %v5739, %v5756
        %v5761 = vmul.f32 %v5741, %v5757
        %v5762 = vpack.c.bf16 %v5758, %v5758
        %v5763 = vpack.c.bf16 %v5759, %v5759
        %v5764 = vpack.c.bf16 %v5760, %v5760
        %v5765 = vpack.c.bf16 %v5761, %v5761
        %5766 = vst [vmem:[#allocation1] ss:$9 sm:$0xff] %v5554
        %s5767 = scalar_lea.vmem [#allocation1], 1
        %5768 = vst [vmem:[%s5767] ss:$9 sm:$0xff] %v5565
        %s5769 = scalar_lea.vmem [#allocation1], 2
        %5770 = vst [vmem:[%s5769] ss:$9 sm:$0xff] %v5566
        %s5771 = scalar_lea.vmem [#allocation1], 3
        %5772 = vst [vmem:[%s5771] ss:$9 sm:$0xff] %v5567
        %s5773 = scalar_lea.vmem [#allocation1], 4
        %5774 = vst [vmem:[%s5773] ss:$9 sm:$0xff] %v5568
        %s5775 = scalar_lea.vmem [#allocation1], 5
        %5776 = vst [vmem:[%s5775] ss:$9 sm:$0xff] %v5569
        %s5777 = scalar_lea.vmem [#allocation1], 6
        %5778 = vst [vmem:[%s5777] ss:$9 sm:$0xff] %v5570
        %s5779 = scalar_lea.vmem [#allocation1], 7
        %5780 = vst [vmem:[%s5779] ss:$9 sm:$0xff] %v5571
        %v5781 = vld [vmem:[#allocation1] sm:$0xff]
        %5782 = vst [vmem:[#allocation1] ss:$9 sm:$0xff] %v5556
        %v5783 = vld [vmem:[#allocation1] sm:$0xff]
        %5784 = vst [vmem:[#allocation1] ss:$9 sm:$0xff] %v5572
        %5785 = vst [vmem:[%s5767] ss:$9 sm:$0xff] %v5573
        %5786 = vst [vmem:[%s5769] ss:$9 sm:$0xff] %v5574
        %5787 = vst [vmem:[%s5771] ss:$9 sm:$0xff] %v5575
        %5788 = vst [vmem:[%s5773] ss:$9 sm:$0xff] %v5576
        %5789 = vst [vmem:[%s5775] ss:$9 sm:$0xff] %v5577
        %5790 = vst [vmem:[%s5777] ss:$9 sm:$0xff] %v5578
        %5791 = vst [vmem:[%s5779] ss:$9 sm:$0xff] %v5559
        %v5792 = vld [vmem:[#allocation1] sm:$0xff]
        %5793 = vst [vmem:[#allocation1] ss:$9 sm:$0xff] %v5579
        %v5794 = vld [vmem:[#allocation1] sm:$0xff]
        %v5799 = vpack.c.bf16 %v5781, %v5781
        %v5800 = vpack.c.bf16 %v5783, %v5783
        %v5801 = vpack.c.bf16 %v5792, %v5792
        %v5802 = vpack.c.bf16 %v5794, %v5794
        %v5805 = vunpack.c.l.b16 %v5762
        %v5806 = vunpack.c.l.b16 %v5763
        %v5807 = vpack.c.b16 %v5806, %v5805
        %v5810 = vunpack.c.l.b16 %v5799
        %v5811 = vunpack.c.l.b16 %v5800
        %v5812 = vpack.c.b16 %v5811, %v5810
        %5813 = vrot.lane.b32.xlu0 %v5812, 96
        %v5814 = vpop.permute.xlu0 %5813
        %v5816 = vsel %vm1709, %v5807, 0
        %v5819 = vand.u32 %v5814, %v1716
        %5821 = vmatpush.bf16.msra.mxu0 0
        %5822 = vmatpush.bf16.msra.mxu0 0
        %5823 = vmatpush.bf16.msra.mxu0 0
        %5824 = vmatpush.bf16.msra.mxu0 0
        %5825 = vmatpush.bf16.msra.mxu0 0
        %5826 = vmatpush.bf16.msra.mxu0 0
        %5827 = vmatpush.bf16.msra.mxu0 0
        %5828 = vmatpush.bf16.msra.mxu0 %v5819
        %5829 = vmatmul.bf16.gmra.mxu0 %v5816
        %v5830 = vpop.f32.mrf.mxu0
        %v5831 = vadd.f32 0.0, %v5830
        %v5832 = vpop.f32.mrf.mxu0
        %v5833 = vadd.f32 0.0, %v5832
        %5834 = vdwg.mxu0
        %v5837 = vunpack.c.l.b16 %v5764
        %v5838 = vunpack.c.l.b16 %v5765
        %v5839 = vpack.c.b16 %v5838, %v5837
        %v5842 = vunpack.c.l.b16 %v5801
        %v5843 = vunpack.c.l.b16 %v5802
        %v5844 = vpack.c.b16 %v5843, %v5842
        %5845 = vrot.lane.b32.xlu0 %v5844, 96
        %v5846 = vpop.permute.xlu0 %5845
        %v5848 = vsel %vm1709, %v5839, 0
        %v5851 = vand.u32 %v5846, %v1716
        %5853 = vmatpush.bf16.msra.mxu0 0
        %5854 = vmatpush.bf16.msra.mxu0 0
        %5855 = vmatpush.bf16.msra.mxu0 0
        %5856 = vmatpush.bf16.msra.mxu0 0
        %5857 = vmatpush.bf16.msra.mxu0 0
        %5858 = vmatpush.bf16.msra.mxu0 0
        %5859 = vmatpush.bf16.msra.mxu0 0
        %5860 = vmatpush.bf16.msra.mxu0 %v5851
        %5861 = vmatmul.bf16.gmra.mxu0 %v5848
        %v5862 = vpop.f32.mrf.mxu0
        %v5863 = vadd.f32 0.0, %v5862
        %v5864 = vpop.f32.mrf.mxu0
        %v5865 = vadd.f32 0.0, %v5864
        %5866 = vdwg.mxu0
        %5871 = vrot.lane.b32.xlu0 %v5831, 32
        %v5872 = vpop.permute.xlu0 %5871
        %5873 = vrot.lane.b32.xlu0 %v5833, 32
        %v5874 = vpop.permute.xlu0 %5873
        %5875 = vrot.lane.b32.xlu0 %v5863, 32
        %v5876 = vpop.permute.xlu0 %5875
        %5877 = vrot.lane.b32.xlu0 %v5865, 32
        %v5878 = vpop.permute.xlu0 %5877
        %vm5883 = vcmask 326912
        %5884 = vst.msk [vmem:[#allocation5] sm:$0xff] %vm5883, %v5872
        %vm5885 = vcmask 319744
        %5886 = vst.msk [vmem:[#allocation5 + $0x8] sm:$0x1] %vm5885, %v5874
        %5887 = vst.msk [vmem:[#allocation5 + $0x10] sm:$0xff] %vm5883, %v5876
        %5888 = vst.msk [vmem:[#allocation5 + $0x18] sm:$0x1] %vm5885, %v5878
        %5889 = vst [vmem:[#allocation1] ss:$9 sm:$0xff] %v5498
        %s5890 = scalar_lea.vmem [#allocation1], 1
        %5891 = vst [vmem:[%s5890] ss:$9 sm:$0xff] %v5509
        %s5892 = scalar_lea.vmem [#allocation1], 2
        %5893 = vst [vmem:[%s5892] ss:$9 sm:$0xff] %v5510
        %s5894 = scalar_lea.vmem [#allocation1], 3
        %5895 = vst [vmem:[%s5894] ss:$9 sm:$0xff] %v5511
        %s5896 = scalar_lea.vmem [#allocation1], 4
        %5897 = vst [vmem:[%s5896] ss:$9 sm:$0xff] %v5512
        %s5898 = scalar_lea.vmem [#allocation1], 5
        %5899 = vst [vmem:[%s5898] ss:$9 sm:$0xff] %v5513
        %s5900 = scalar_lea.vmem [#allocation1], 6
        %5901 = vst [vmem:[%s5900] ss:$9 sm:$0xff] %v5514
        %s5902 = scalar_lea.vmem [#allocation1], 7
        %5903 = vst [vmem:[%s5902] ss:$9 sm:$0xff] %v5515
        %v5904 = vld [vmem:[#allocation1] sm:$0xff]
        %5905 = vst [vmem:[#allocation1] ss:$9 sm:$0xff] %v5500
        %v5906 = vld [vmem:[#allocation1] sm:$0xff]
        %5907 = vst [vmem:[#allocation1] ss:$9 sm:$0xff] %v5516
        %5908 = vst [vmem:[%s5890] ss:$9 sm:$0xff] %v5517
        %5909 = vst [vmem:[%s5892] ss:$9 sm:$0xff] %v5518
        %5910 = vst [vmem:[%s5894] ss:$9 sm:$0xff] %v5519
        %5911 = vst [vmem:[%s5896] ss:$9 sm:$0xff] %v5520
        %5912 = vst [vmem:[%s5898] ss:$9 sm:$0xff] %v5521
        %5913 = vst [vmem:[%s5900] ss:$9 sm:$0xff] %v5522
        %5914 = vst [vmem:[%s5902] ss:$9 sm:$0xff] %v5503
        %v5915 = vld [vmem:[#allocation1] sm:$0xff]
        %5916 = vst [vmem:[#allocation1] ss:$9 sm:$0xff] %v5523
        %v5917 = vld [vmem:[#allocation1] sm:$0xff]
        %v5922 = vpack.c.bf16 %v5904, %v5904
        %v5923 = vpack.c.bf16 %v5906, %v5906
        %v5924 = vpack.c.bf16 %v5915, %v5915
        %v5925 = vpack.c.bf16 %v5917, %v5917
        %5926 = vst [vmem:[#allocation1] ss:$9 sm:$0xff] %v5554
        %s5927 = scalar_lea.vmem [#allocation1], 1
        %5928 = vst [vmem:[%s5927] ss:$9 sm:$0xff] %v5565
        %s5929 = scalar_lea.vmem [#allocation1], 2
        %5930 = vst [vmem:[%s5929] ss:$9 sm:$0xff] %v5566
        %s5931 = scalar_lea.vmem [#allocation1], 3
        %5932 = vst [vmem:[%s5931] ss:$9 sm:$0xff] %v5567
        %s5933 = scalar_lea.vmem [#allocation1], 4
        %5934 = vst [vmem:[%s5933] ss:$9 sm:$0xff] %v5568
        %s5935 = scalar_lea.vmem [#allocation1], 5
        %5936 = vst [vmem:[%s5935] ss:$9 sm:$0xff] %v5569
        %s5937 = scalar_lea.vmem [#allocation1], 6
        %5938 = vst [vmem:[%s5937] ss:$9 sm:$0xff] %v5570
        %s5939 = scalar_lea.vmem [#allocation1], 7
        %5940 = vst [vmem:[%s5939] ss:$9 sm:$0xff] %v5571
        %v5941 = vld [vmem:[#allocation1] sm:$0xff]
        %5942 = vst [vmem:[#allocation1] ss:$9 sm:$0xff] %v5556
        %v5943 = vld [vmem:[#allocation1] sm:$0xff]
        %5944 = vst [vmem:[#allocation1] ss:$9 sm:$0xff] %v5572
        %5945 = vst [vmem:[%s5927] ss:$9 sm:$0xff] %v5573
        %5946 = vst [vmem:[%s5929] ss:$9 sm:$0xff] %v5574
        %5947 = vst [vmem:[%s5931] ss:$9 sm:$0xff] %v5575
        %5948 = vst [vmem:[%s5933] ss:$9 sm:$0xff] %v5576
        %5949 = vst [vmem:[%s5935] ss:$9 sm:$0xff] %v5577
        %5950 = vst [vmem:[%s5937] ss:$9 sm:$0xff] %v5578
        %5951 = vst [vmem:[%s5939] ss:$9 sm:$0xff] %v5559
        %v5952 = vld [vmem:[#allocation1] sm:$0xff]
        %5953 = vst [vmem:[#allocation1] ss:$9 sm:$0xff] %v5579
        %v5954 = vld [vmem:[#allocation1] sm:$0xff]
        %v5959 = vpack.c.bf16 %v5941, %v5941
        %v5960 = vpack.c.bf16 %v5943, %v5943
        %v5961 = vpack.c.bf16 %v5952, %v5952
        %v5962 = vpack.c.bf16 %v5954, %v5954
        %v5965 = vunpack.c.l.b16 %v5922
        %v5966 = vunpack.c.l.b16 %v5923
        %v5967 = vpack.c.b16 %v5966, %v5965
        %5968 = vrot.lane.b32.xlu0 %v5967, 120
        %v5969 = vpop.permute.xlu0 %5968
        %v5972 = vunpack.c.l.b16 %v5959
        %v5973 = vunpack.c.l.b16 %v5960
        %v5974 = vpack.c.b16 %v5973, %v5972
        %5975 = vrot.lane.b32.xlu0 %v5974, 120
        %v5976 = vpop.permute.xlu0 %5975
        %v5978 = vsel %vm1761, %v5969, 0
        %v5981 = vsel %vm1761, %v5976, 0
        %5983 = vmatpush.bf16.xpose.msra.mxu0 0
        %5984 = vmatpush.bf16.xpose.msra.mxu0 0
        %5985 = vmatpush.bf16.xpose.msra.mxu0 0
        %5986 = vmatpush.bf16.xpose.msra.mxu0 0
        %5987 = vmatpush.bf16.xpose.msra.mxu0 0
        %5988 = vmatpush.bf16.xpose.msra.mxu0 0
        %5989 = vmatpush.bf16.xpose.msra.mxu0 0
        %5990 = vmatpush.bf16.xpose.msra.mxu0 %v5981
        %5991 = vmatmul.bf16.gmra.mxu0 %v5978
        %v5992 = vpop.f32.mrf.mxu0
        %v5993 = vadd.f32 0.0, %v5992
        %v5994 = vpop.f32.mrf.mxu0
        %v5995 = vadd.f32 0.0, %v5994
        %5996 = vdwg.mxu0
        %v5999 = vunpack.c.l.b16 %v5924
        %v6000 = vunpack.c.l.b16 %v5925
        %v6001 = vpack.c.b16 %v6000, %v5999
        %6002 = vrot.lane.b32.xlu0 %v6001, 120
        %v6003 = vpop.permute.xlu0 %6002
        %v6006 = vunpack.c.l.b16 %v5961
        %v6007 = vunpack.c.l.b16 %v5962
        %v6008 = vpack.c.b16 %v6007, %v6006
        %6009 = vrot.lane.b32.xlu0 %v6008, 120
        %v6010 = vpop.permute.xlu0 %6009
        %v6012 = vsel %vm1761, %v6003, 0
        %v6015 = vsel %vm1761, %v6010, 0
        %6017 = vmatpush.bf16.xpose.msra.mxu0 0
        %6018 = vmatpush.bf16.xpose.msra.mxu0 0
        %6019 = vmatpush.bf16.xpose.msra.mxu0 0
        %6020 = vmatpush.bf16.xpose.msra.mxu0 0
        %6021 = vmatpush.bf16.xpose.msra.mxu0 0
        %6022 = vmatpush.bf16.xpose.msra.mxu0 0
        %6023 = vmatpush.bf16.xpose.msra.mxu0 0
        %6024 = vmatpush.bf16.xpose.msra.mxu0 %v6015
        %6025 = vmatmul.bf16.gmra.mxu0 %v6012
        %v6026 = vpop.f32.mrf.mxu0
        %v6027 = vadd.f32 0.0, %v6026
        %v6028 = vpop.f32.mrf.mxu0
        %v6029 = vadd.f32 0.0, %v6028
        %6030 = vdwg.mxu0
        %v6031 = vmul.f32 %v5993, 0.35355338
        %v6032 = vmul.f32 %v5995, 0.35355338
        %v6033 = vmul.f32 %v6027, 0.35355338
        %v6034 = vmul.f32 %v6029, 0.35355338
        %v6035 = vsel %vm1709, %v6031, -inf
        %6036 = vmax.xlane.f32.xlu0 %v6035
        %v6037 = vpop.xlane.xlu0 %6036
        %v6038 = vsel %vm2773, %v6032, -inf
        %6039 = vmax.xlane.f32.xlu0 %v6038
        %v6040 = vpop.xlane.xlu0 %6039
        %v6041 = vsel %vm1709, %v6033, -inf
        %6042 = vmax.xlane.f32.xlu0 %v6041
        %v6043 = vpop.xlane.xlu0 %6042
        %v6044 = vsel %vm2773, %v6034, -inf
        %6045 = vmax.xlane.f32.xlu0 %v6044
        %v6046 = vpop.xlane.xlu0 %6045
        %v6047 = vsub.f32 %v6031, %v6037
        %v6048 = vsub.f32 %v6032, %v6040
        %v6049 = vsub.f32 %v6033, %v6043
        %v6050 = vsub.f32 %v6034, %v6046
        %v6051 = vmul.f32 %v6047, 1.442695
        %v6052 = vpow.pop %v6051
        %v6053 = vmul.f32 %v6048, 1.442695
        %v6054 = vpow.pop %v6053
        %v6055 = vmul.f32 %v6049, 1.442695
        %v6056 = vpow.pop %v6055
        %v6057 = vmul.f32 %v6050, 1.442695
        %v6058 = vpow.pop %v6057
        %v6059 = vsel %vm1709, %v6052, 0.0
        %6060 = vadd.xlane.f32.xlu0 %v6059
        %v6061 = vpop.xlane.xlu0 %6060
        %v6062 = vsel %vm2773, %v6054, 0.0
        %6063 = vadd.xlane.f32.xlu0 %v6062
        %v6064 = vpop.xlane.xlu0 %6063
        %v6065 = vsel %vm1709, %v6056, 0.0
        %6066 = vadd.xlane.f32.xlu0 %v6065
        %v6067 = vpop.xlane.xlu0 %6066
        %v6068 = vsel %vm2773, %v6058, 0.0
        %6069 = vadd.xlane.f32.xlu0 %v6068
        %v6070 = vpop.xlane.xlu0 %6069
        %v6071 = vrcp.pop %v6061
        %v6072 = vrcp.pop %v6064
        %v6073 = vrcp.pop %v6067
        %v6074 = vrcp.pop %v6070
        %v6075 = vmul.f32 %v6052, %v6071
        %v6076 = vmul.f32 %v6054, %v6072
        %v6077 = vmul.f32 %v6056, %v6073
        %v6078 = vmul.f32 %v6058, %v6074
        %v6079 = vpack.c.bf16 %v6075, %v6075
        %v6080 = vpack.c.bf16 %v6076, %v6076
        %v6081 = vpack.c.bf16 %v6077, %v6077
        %v6082 = vpack.c.bf16 %v6078, %v6078
        %6083 = vst [vmem:[#allocation1] ss:$9 sm:$0xff] %v5554
        %s6084 = scalar_lea.vmem [#allocation1], 1
        %6085 = vst [vmem:[%s6084] ss:$9 sm:$0xff] %v5565
        %s6086 = scalar_lea.vmem [#allocation1], 2
        %6087 = vst [vmem:[%s6086] ss:$9 sm:$0xff] %v5566
        %s6088 = scalar_lea.vmem [#allocation1], 3
        %6089 = vst [vmem:[%s6088] ss:$9 sm:$0xff] %v5567
        %s6090 = scalar_lea.vmem [#allocation1], 4
        %6091 = vst [vmem:[%s6090] ss:$9 sm:$0xff] %v5568
        %s6092 = scalar_lea.vmem [#allocation1], 5
        %6093 = vst [vmem:[%s6092] ss:$9 sm:$0xff] %v5569
        %s6094 = scalar_lea.vmem [#allocation1], 6
        %6095 = vst [vmem:[%s6094] ss:$9 sm:$0xff] %v5570
        %s6096 = scalar_lea.vmem [#allocation1], 7
        %6097 = vst [vmem:[%s6096] ss:$9 sm:$0xff] %v5571
        %v6098 = vld [vmem:[#allocation1] sm:$0xff]
        %6099 = vst [vmem:[#allocation1] ss:$9 sm:$0xff] %v5556
        %v6100 = vld [vmem:[#allocation1] sm:$0xff]
        %6101 = vst [vmem:[#allocation1] ss:$9 sm:$0xff] %v5572
        %6102 = vst [vmem:[%s6084] ss:$9 sm:$0xff] %v5573
        %6103 = vst [vmem:[%s6086] ss:$9 sm:$0xff] %v5574
        %6104 = vst [vmem:[%s6088] ss:$9 sm:$0xff] %v5575
        %6105 = vst [vmem:[%s6090] ss:$9 sm:$0xff] %v5576
        %6106 = vst [vmem:[%s6092] ss:$9 sm:$0xff] %v5577
        %6107 = vst [vmem:[%s6094] ss:$9 sm:$0xff] %v5578
        %6108 = vst [vmem:[%s6096] ss:$9 sm:$0xff] %v5559
        %v6109 = vld [vmem:[#allocation1] sm:$0xff]
        %6110 = vst [vmem:[#allocation1] ss:$9 sm:$0xff] %v5579
        %v6111 = vld [vmem:[#allocation1] sm:$0xff]
        %v6116 = vpack.c.bf16 %v6098, %v6098
        %v6117 = vpack.c.bf16 %v6100, %v6100
        %v6118 = vpack.c.bf16 %v6109, %v6109
        %v6119 = vpack.c.bf16 %v6111, %v6111
        %v6122 = vunpack.c.l.b16 %v6079
        %v6123 = vunpack.c.l.b16 %v6080
        %v6124 = vpack.c.b16 %v6123, %v6122
        %v6127 = vunpack.c.l.b16 %v6116
        %v6128 = vunpack.c.l.b16 %v6117
        %v6129 = vpack.c.b16 %v6128, %v6127
        %6130 = vrot.lane.b32.xlu0 %v6129, 88
        %v6131 = vpop.permute.xlu0 %6130
        %v6133 = vsel %vm1709, %v6124, 0
        %v6136 = vand.u32 %v6131, %v1716
        %6138 = vmatpush.bf16.msra.mxu0 0
        %6139 = vmatpush.bf16.msra.mxu0 0
        %6140 = vmatpush.bf16.msra.mxu0 0
        %6141 = vmatpush.bf16.msra.mxu0 0
        %6142 = vmatpush.bf16.msra.mxu0 0
        %6143 = vmatpush.bf16.msra.mxu0 0
        %6144 = vmatpush.bf16.msra.mxu0 0
        %6145 = vmatpush.bf16.msra.mxu0 %v6136
        %6146 = vmatmul.bf16.gmra.mxu0 %v6133
        %v6147 = vpop.f32.mrf.mxu0
        %v6148 = vadd.f32 0.0, %v6147
        %v6149 = vpop.f32.mrf.mxu0
        %v6150 = vadd.f32 0.0, %v6149
        %6151 = vdwg.mxu0
        %v6154 = vunpack.c.l.b16 %v6081
        %v6155 = vunpack.c.l.b16 %v6082
        %v6156 = vpack.c.b16 %v6155, %v6154
        %v6159 = vunpack.c.l.b16 %v6118
        %v6160 = vunpack.c.l.b16 %v6119
        %v6161 = vpack.c.b16 %v6160, %v6159
        %6162 = vrot.lane.b32.xlu0 %v6161, 88
        %v6163 = vpop.permute.xlu0 %6162
        %v6165 = vsel %vm1709, %v6156, 0
        %v6168 = vand.u32 %v6163, %v1716
        %6170 = vmatpush.bf16.msra.mxu0 0
        %6171 = vmatpush.bf16.msra.mxu0 0
        %6172 = vmatpush.bf16.msra.mxu0 0
        %6173 = vmatpush.bf16.msra.mxu0 0
        %6174 = vmatpush.bf16.msra.mxu0 0
        %6175 = vmatpush.bf16.msra.mxu0 0
        %6176 = vmatpush.bf16.msra.mxu0 0
        %6177 = vmatpush.bf16.msra.mxu0 %v6168
        %6178 = vmatmul.bf16.gmra.mxu0 %v6165
        %v6179 = vpop.f32.mrf.mxu0
        %v6180 = vadd.f32 0.0, %v6179
        %v6181 = vpop.f32.mrf.mxu0
        %v6182 = vadd.f32 0.0, %v6181
        %6183 = vdwg.mxu0
        %6188 = vrot.lane.b32.xlu0 %v6148, 40
        %v6189 = vpop.permute.xlu0 %6188
        %6190 = vrot.lane.b32.xlu0 %v6150, 40
        %v6191 = vpop.permute.xlu0 %6190
        %6192 = vrot.lane.b32.xlu0 %v6180, 40
        %v6193 = vpop.permute.xlu0 %6192
        %6194 = vrot.lane.b32.xlu0 %v6182, 40
        %v6195 = vpop.permute.xlu0 %6194
        %vm6200 = vcmask 392512
        %6201 = vst.msk [vmem:[#allocation5] sm:$0xff] %vm6200, %v6189
        %vm6202 = vcmask 385344
        %6203 = vst.msk [vmem:[#allocation5 + $0x8] sm:$0x1] %vm6202, %v6191
        %6204 = vst.msk [vmem:[#allocation5 + $0x10] sm:$0xff] %vm6200, %v6193
        %6205 = vst.msk [vmem:[#allocation5 + $0x18] sm:$0x1] %vm6202, %v6195
        %6206 = vst [vmem:[#allocation1] ss:$9 sm:$0xff] %v5498
        %s6207 = scalar_lea.vmem [#allocation1], 1
        %6208 = vst [vmem:[%s6207] ss:$9 sm:$0xff] %v5509
        %s6209 = scalar_lea.vmem [#allocation1], 2
        %6210 = vst [vmem:[%s6209] ss:$9 sm:$0xff] %v5510
        %s6211 = scalar_lea.vmem [#allocation1], 3
        %6212 = vst [vmem:[%s6211] ss:$9 sm:$0xff] %v5511
        %s6213 = scalar_lea.vmem [#allocation1], 4
        %6214 = vst [vmem:[%s6213] ss:$9 sm:$0xff] %v5512
        %s6215 = scalar_lea.vmem [#allocation1], 5
        %6216 = vst [vmem:[%s6215] ss:$9 sm:$0xff] %v5513
        %s6217 = scalar_lea.vmem [#allocation1], 6
        %6218 = vst [vmem:[%s6217] ss:$9 sm:$0xff] %v5514
        %s6219 = scalar_lea.vmem [#allocation1], 7
        %6220 = vst [vmem:[%s6219] ss:$9 sm:$0xff] %v5515
        %v6221 = vld [vmem:[#allocation1] sm:$0xff]
        %6222 = vst [vmem:[#allocation1] ss:$9 sm:$0xff] %v5500
        %v6223 = vld [vmem:[#allocation1] sm:$0xff]
        %6224 = vst [vmem:[#allocation1] ss:$9 sm:$0xff] %v5516
        %6225 = vst [vmem:[%s6207] ss:$9 sm:$0xff] %v5517
        %6226 = vst [vmem:[%s6209] ss:$9 sm:$0xff] %v5518
        %6227 = vst [vmem:[%s6211] ss:$9 sm:$0xff] %v5519
        %6228 = vst [vmem:[%s6213] ss:$9 sm:$0xff] %v5520
        %6229 = vst [vmem:[%s6215] ss:$9 sm:$0xff] %v5521
        %6230 = vst [vmem:[%s6217] ss:$9 sm:$0xff] %v5522
        %6231 = vst [vmem:[%s6219] ss:$9 sm:$0xff] %v5503
        %v6232 = vld [vmem:[#allocation1] sm:$0xff]
        %6233 = vst [vmem:[#allocation1] ss:$9 sm:$0xff] %v5523
        %v6234 = vld [vmem:[#allocation1] sm:$0xff]
        %v6239 = vpack.c.bf16 %v6221, %v6221
        %v6240 = vpack.c.bf16 %v6223, %v6223
        %v6241 = vpack.c.bf16 %v6232, %v6232
        %v6242 = vpack.c.bf16 %v6234, %v6234
        %6243 = vst [vmem:[#allocation1] ss:$9 sm:$0xff] %v5554
        %s6244 = scalar_lea.vmem [#allocation1], 1
        %6245 = vst [vmem:[%s6244] ss:$9 sm:$0xff] %v5565
        %s6246 = scalar_lea.vmem [#allocation1], 2
        %6247 = vst [vmem:[%s6246] ss:$9 sm:$0xff] %v5566
        %s6248 = scalar_lea.vmem [#allocation1], 3
        %6249 = vst [vmem:[%s6248] ss:$9 sm:$0xff] %v5567
        %s6250 = scalar_lea.vmem [#allocation1], 4
        %6251 = vst [vmem:[%s6250] ss:$9 sm:$0xff] %v5568
        %s6252 = scalar_lea.vmem [#allocation1], 5
        %6253 = vst [vmem:[%s6252] ss:$9 sm:$0xff] %v5569
        %s6254 = scalar_lea.vmem [#allocation1], 6
        %6255 = vst [vmem:[%s6254] ss:$9 sm:$0xff] %v5570
        %s6256 = scalar_lea.vmem [#allocation1], 7
        %6257 = vst [vmem:[%s6256] ss:$9 sm:$0xff] %v5571
        %v6258 = vld [vmem:[#allocation1] sm:$0xff]
        %6259 = vst [vmem:[#allocation1] ss:$9 sm:$0xff] %v5556
        %v6260 = vld [vmem:[#allocation1] sm:$0xff]
        %6261 = vst [vmem:[#allocation1] ss:$9 sm:$0xff] %v5572
        %6262 = vst [vmem:[%s6244] ss:$9 sm:$0xff] %v5573
        %6263 = vst [vmem:[%s6246] ss:$9 sm:$0xff] %v5574
        %6264 = vst [vmem:[%s6248] ss:$9 sm:$0xff] %v5575
        %6265 = vst [vmem:[%s6250] ss:$9 sm:$0xff] %v5576
        %6266 = vst [vmem:[%s6252] ss:$9 sm:$0xff] %v5577
        %6267 = vst [vmem:[%s6254] ss:$9 sm:$0xff] %v5578
        %6268 = vst [vmem:[%s6256] ss:$9 sm:$0xff] %v5559
        %v6269 = vld [vmem:[#allocation1] sm:$0xff]
        %6270 = vst [vmem:[#allocation1] ss:$9 sm:$0xff] %v5579
        %v6271 = vld [vmem:[#allocation1] sm:$0xff]
        %v6276 = vpack.c.bf16 %v6258, %v6258
        %v6277 = vpack.c.bf16 %v6260, %v6260
        %v6278 = vpack.c.bf16 %v6269, %v6269
        %v6279 = vpack.c.bf16 %v6271, %v6271
        %v6282 = vunpack.c.l.b16 %v6239
        %v6283 = vunpack.c.l.b16 %v6240
        %v6284 = vpack.c.b16 %v6283, %v6282
        %6285 = vrot.lane.b32.xlu0 %v6284, 112
        %v6286 = vpop.permute.xlu0 %6285
        %v6289 = vunpack.c.l.b16 %v6276
        %v6290 = vunpack.c.l.b16 %v6277
        %v6291 = vpack.c.b16 %v6290, %v6289
        %6292 = vrot.lane.b32.xlu0 %v6291, 112
        %v6293 = vpop.permute.xlu0 %6292
        %v6295 = vsel %vm1761, %v6286, 0
        %v6298 = vsel %vm1761, %v6293, 0
        %6300 = vmatpush.bf16.xpose.msra.mxu0 0
        %6301 = vmatpush.bf16.xpose.msra.mxu0 0
        %6302 = vmatpush.bf16.xpose.msra.mxu0 0
        %6303 = vmatpush.bf16.xpose.msra.mxu0 0
        %6304 = vmatpush.bf16.xpose.msra.mxu0 0
        %6305 = vmatpush.bf16.xpose.msra.mxu0 0
        %6306 = vmatpush.bf16.xpose.msra.mxu0 0
        %6307 = vmatpush.bf16.xpose.msra.mxu0 %v6298
        %6308 = vmatmul.bf16.gmra.mxu0 %v6295
        %v6309 = vpop.f32.mrf.mxu0
        %v6310 = vadd.f32 0.0, %v6309
        %v6311 = vpop.f32.mrf.mxu0
        %v6312 = vadd.f32 0.0, %v6311
        %6313 = vdwg.mxu0
        %v6316 = vunpack.c.l.b16 %v6241
        %v6317 = vunpack.c.l.b16 %v6242
        %v6318 = vpack.c.b16 %v6317, %v6316
        %6319 = vrot.lane.b32.xlu0 %v6318, 112
        %v6320 = vpop.permute.xlu0 %6319
        %v6323 = vunpack.c.l.b16 %v6278
        %v6324 = vunpack.c.l.b16 %v6279
        %v6325 = vpack.c.b16 %v6324, %v6323
        %6326 = vrot.lane.b32.xlu0 %v6325, 112
        %v6327 = vpop.permute.xlu0 %6326
        %v6329 = vsel %vm1761, %v6320, 0
        %v6332 = vsel %vm1761, %v6327, 0
        %6334 = vmatpush.bf16.xpose.msra.mxu0 0
        %6335 = vmatpush.bf16.xpose.msra.mxu0 0
        %6336 = vmatpush.bf16.xpose.msra.mxu0 0
        %6337 = vmatpush.bf16.xpose.msra.mxu0 0
        %6338 = vmatpush.bf16.xpose.msra.mxu0 0
        %6339 = vmatpush.bf16.xpose.msra.mxu0 0
        %6340 = vmatpush.bf16.xpose.msra.mxu0 0
        %6341 = vmatpush.bf16.xpose.msra.mxu0 %v6332
        %6342 = vmatmul.bf16.gmra.mxu0 %v6329
        %v6343 = vpop.f32.mrf.mxu0
        %v6344 = vadd.f32 0.0, %v6343
        %v6345 = vpop.f32.mrf.mxu0
        %v6346 = vadd.f32 0.0, %v6345
        %6347 = vdwg.mxu0
        %v6348 = vmul.f32 %v6310, 0.35355338
        %v6349 = vmul.f32 %v6312, 0.35355338
        %v6350 = vmul.f32 %v6344, 0.35355338
        %v6351 = vmul.f32 %v6346, 0.35355338
        %v6352 = vsel %vm1709, %v6348, -inf
        %6353 = vmax.xlane.f32.xlu0 %v6352
        %v6354 = vpop.xlane.xlu0 %6353
        %v6355 = vsel %vm2773, %v6349, -inf
        %6356 = vmax.xlane.f32.xlu0 %v6355
        %v6357 = vpop.xlane.xlu0 %6356
        %v6358 = vsel %vm1709, %v6350, -inf
        %6359 = vmax.xlane.f32.xlu0 %v6358
        %v6360 = vpop.xlane.xlu0 %6359
        %v6361 = vsel %vm2773, %v6351, -inf
        %6362 = vmax.xlane.f32.xlu0 %v6361
        %v6363 = vpop.xlane.xlu0 %6362
        %v6364 = vsub.f32 %v6348, %v6354
        %v6365 = vsub.f32 %v6349, %v6357
        %v6366 = vsub.f32 %v6350, %v6360
        %v6367 = vsub.f32 %v6351, %v6363
        %v6368 = vmul.f32 %v6364, 1.442695
        %v6369 = vpow.pop %v6368
        %v6370 = vmul.f32 %v6365, 1.442695
        %v6371 = vpow.pop %v6370
        %v6372 = vmul.f32 %v6366, 1.442695
        %v6373 = vpow.pop %v6372
        %v6374 = vmul.f32 %v6367, 1.442695
        %v6375 = vpow.pop %v6374
        %v6376 = vsel %vm1709, %v6369, 0.0
        %6377 = vadd.xlane.f32.xlu0 %v6376
        %v6378 = vpop.xlane.xlu0 %6377
        %v6379 = vsel %vm2773, %v6371, 0.0
        %6380 = vadd.xlane.f32.xlu0 %v6379
        %v6381 = vpop.xlane.xlu0 %6380
        %v6382 = vsel %vm1709, %v6373, 0.0
        %6383 = vadd.xlane.f32.xlu0 %v6382
        %v6384 = vpop.xlane.xlu0 %6383
        %v6385 = vsel %vm2773, %v6375, 0.0
        %6386 = vadd.xlane.f32.xlu0 %v6385
        %v6387 = vpop.xlane.xlu0 %6386
        %v6388 = vrcp.pop %v6378
        %v6389 = vrcp.pop %v6381
        %v6390 = vrcp.pop %v6384
        %v6391 = vrcp.pop %v6387
        %v6392 = vmul.f32 %v6369, %v6388
        %v6393 = vmul.f32 %v6371, %v6389
        %v6394 = vmul.f32 %v6373, %v6390
        %v6395 = vmul.f32 %v6375, %v6391
        %v6396 = vpack.c.bf16 %v6392, %v6392
        %v6397 = vpack.c.bf16 %v6393, %v6393
        %v6398 = vpack.c.bf16 %v6394, %v6394
        %v6399 = vpack.c.bf16 %v6395, %v6395
        %6400 = vst [vmem:[#allocation1] ss:$9 sm:$0xff] %v5554
        %s6401 = scalar_lea.vmem [#allocation1], 1
        %6402 = vst [vmem:[%s6401] ss:$9 sm:$0xff] %v5565
        %s6403 = scalar_lea.vmem [#allocation1], 2
        %6404 = vst [vmem:[%s6403] ss:$9 sm:$0xff] %v5566
        %s6405 = scalar_lea.vmem [#allocation1], 3
        %6406 = vst [vmem:[%s6405] ss:$9 sm:$0xff] %v5567
        %s6407 = scalar_lea.vmem [#allocation1], 4
        %6408 = vst [vmem:[%s6407] ss:$9 sm:$0xff] %v5568
        %s6409 = scalar_lea.vmem [#allocation1], 5
        %6410 = vst [vmem:[%s6409] ss:$9 sm:$0xff] %v5569
        %s6411 = scalar_lea.vmem [#allocation1], 6
        %6412 = vst [vmem:[%s6411] ss:$9 sm:$0xff] %v5570
        %s6413 = scalar_lea.vmem [#allocation1], 7
        %6414 = vst [vmem:[%s6413] ss:$9 sm:$0xff] %v5571
        %v6415 = vld [vmem:[#allocation1] sm:$0xff]
        %6416 = vst [vmem:[#allocation1] ss:$9 sm:$0xff] %v5556
        %v6417 = vld [vmem:[#allocation1] sm:$0xff]
        %6418 = vst [vmem:[#allocation1] ss:$9 sm:$0xff] %v5572
        %6419 = vst [vmem:[%s6401] ss:$9 sm:$0xff] %v5573
        %6420 = vst [vmem:[%s6403] ss:$9 sm:$0xff] %v5574
        %6421 = vst [vmem:[%s6405] ss:$9 sm:$0xff] %v5575
        %6422 = vst [vmem:[%s6407] ss:$9 sm:$0xff] %v5576
        %6423 = vst [vmem:[%s6409] ss:$9 sm:$0xff] %v5577
        %6424 = vst [vmem:[%s6411] ss:$9 sm:$0xff] %v5578
        %6425 = vst [vmem:[%s6413] ss:$9 sm:$0xff] %v5559
        %v6426 = vld [vmem:[#allocation1] sm:$0xff]
        %6427 = vst [vmem:[#allocation1] ss:$9 sm:$0xff] %v5579
        %v6428 = vld [vmem:[#allocation1] sm:$0xff]
        %v6433 = vpack.c.bf16 %v6415, %v6415
        %v6434 = vpack.c.bf16 %v6417, %v6417
        %v6435 = vpack.c.bf16 %v6426, %v6426
        %v6436 = vpack.c.bf16 %v6428, %v6428
        %v6439 = vunpack.c.l.b16 %v6396
        %v6440 = vunpack.c.l.b16 %v6397
        %v6441 = vpack.c.b16 %v6440, %v6439
        %v6444 = vunpack.c.l.b16 %v6433
        %v6445 = vunpack.c.l.b16 %v6434
        %v6446 = vpack.c.b16 %v6445, %v6444
        %6447 = vrot.lane.b32.xlu0 %v6446, 80
        %v6448 = vpop.permute.xlu0 %6447
        %v6450 = vsel %vm1709, %v6441, 0
        %v6453 = vand.u32 %v6448, %v1716
        %6455 = vmatpush.bf16.msra.mxu0 0
        %6456 = vmatpush.bf16.msra.mxu0 0
        %6457 = vmatpush.bf16.msra.mxu0 0
        %6458 = vmatpush.bf16.msra.mxu0 0
        %6459 = vmatpush.bf16.msra.mxu0 0
        %6460 = vmatpush.bf16.msra.mxu0 0
        %6461 = vmatpush.bf16.msra.mxu0 0
        %6462 = vmatpush.bf16.msra.mxu0 %v6453
        %6463 = vmatmul.bf16.gmra.mxu0 %v6450
        %v6464 = vpop.f32.mrf.mxu0
        %v6465 = vadd.f32 0.0, %v6464
        %v6466 = vpop.f32.mrf.mxu0
        %v6467 = vadd.f32 0.0, %v6466
        %6468 = vdwg.mxu0
        %v6471 = vunpack.c.l.b16 %v6398
        %v6472 = vunpack.c.l.b16 %v6399
        %v6473 = vpack.c.b16 %v6472, %v6471
        %v6476 = vunpack.c.l.b16 %v6435
        %v6477 = vunpack.c.l.b16 %v6436
        %v6478 = vpack.c.b16 %v6477, %v6476
        %6479 = vrot.lane.b32.xlu0 %v6478, 80
        %v6480 = vpop.permute.xlu0 %6479
        %v6482 = vsel %vm1709, %v6473, 0
        %v6485 = vand.u32 %v6480, %v1716
        %6487 = vmatpush.bf16.msra.mxu0 0
        %6488 = vmatpush.bf16.msra.mxu0 0
        %6489 = vmatpush.bf16.msra.mxu0 0
        %6490 = vmatpush.bf16.msra.mxu0 0
        %6491 = vmatpush.bf16.msra.mxu0 0
        %6492 = vmatpush.bf16.msra.mxu0 0
        %6493 = vmatpush.bf16.msra.mxu0 0
        %6494 = vmatpush.bf16.msra.mxu0 %v6485
        %6495 = vmatmul.bf16.gmra.mxu0 %v6482
        %v6496 = vpop.f32.mrf.mxu0
        %v6497 = vadd.f32 0.0, %v6496
        %v6498 = vpop.f32.mrf.mxu0
        %v6499 = vadd.f32 0.0, %v6498
        %6500 = vdwg.mxu0
        %6505 = vrot.lane.b32.xlu0 %v6465, 48
        %v6506 = vpop.permute.xlu0 %6505
        %6507 = vrot.lane.b32.xlu0 %v6467, 48
        %v6508 = vpop.permute.xlu0 %6507
        %6509 = vrot.lane.b32.xlu0 %v6497, 48
        %v6510 = vpop.permute.xlu0 %6509
        %6511 = vrot.lane.b32.xlu0 %v6499, 48
        %v6512 = vpop.permute.xlu0 %6511
        %vm6517 = vcmask 458112
        %6518 = vst.msk [vmem:[#allocation5] sm:$0xff] %vm6517, %v6506
        %vm6519 = vcmask 450944
        %6520 = vst.msk [vmem:[#allocation5 + $0x8] sm:$0x1] %vm6519, %v6508
        %6521 = vst.msk [vmem:[#allocation5 + $0x10] sm:$0xff] %vm6517, %v6510
        %6522 = vst.msk [vmem:[#allocation5 + $0x18] sm:$0x1] %vm6519, %v6512
        %6523 = vst [vmem:[#allocation1] ss:$9 sm:$0xff] %v5498
        %s6524 = scalar_lea.vmem [#allocation1], 1
        %6525 = vst [vmem:[%s6524] ss:$9 sm:$0xff] %v5509
        %s6526 = scalar_lea.vmem [#allocation1], 2
        %6527 = vst [vmem:[%s6526] ss:$9 sm:$0xff] %v5510
        %s6528 = scalar_lea.vmem [#allocation1], 3
        %6529 = vst [vmem:[%s6528] ss:$9 sm:$0xff] %v5511
        %s6530 = scalar_lea.vmem [#allocation1], 4
        %6531 = vst [vmem:[%s6530] ss:$9 sm:$0xff] %v5512
        %s6532 = scalar_lea.vmem [#allocation1], 5
        %6533 = vst [vmem:[%s6532] ss:$9 sm:$0xff] %v5513
        %s6534 = scalar_lea.vmem [#allocation1], 6
        %6535 = vst [vmem:[%s6534] ss:$9 sm:$0xff] %v5514
        %s6536 = scalar_lea.vmem [#allocation1], 7
        %6537 = vst [vmem:[%s6536] ss:$9 sm:$0xff] %v5515
        %v6538 = vld [vmem:[#allocation1] sm:$0xff]
        %6539 = vst [vmem:[#allocation1] ss:$9 sm:$0xff] %v5500
        %v6540 = vld [vmem:[#allocation1] sm:$0xff]
        %6541 = vst [vmem:[#allocation1] ss:$9 sm:$0xff] %v5516
        %6542 = vst [vmem:[%s6524] ss:$9 sm:$0xff] %v5517
        %6543 = vst [vmem:[%s6526] ss:$9 sm:$0xff] %v5518
        %6544 = vst [vmem:[%s6528] ss:$9 sm:$0xff] %v5519
        %6545 = vst [vmem:[%s6530] ss:$9 sm:$0xff] %v5520
        %6546 = vst [vmem:[%s6532] ss:$9 sm:$0xff] %v5521
        %6547 = vst [vmem:[%s6534] ss:$9 sm:$0xff] %v5522
        %6548 = vst [vmem:[%s6536] ss:$9 sm:$0xff] %v5503
        %v6549 = vld [vmem:[#allocation1] sm:$0xff]
        %6550 = vst [vmem:[#allocation1] ss:$9 sm:$0xff] %v5523
        %v6551 = vld [vmem:[#allocation1] sm:$0xff]
        %v6556 = vpack.c.bf16 %v6538, %v6538
        %v6557 = vpack.c.bf16 %v6540, %v6540
        %v6558 = vpack.c.bf16 %v6549, %v6549
        %v6559 = vpack.c.bf16 %v6551, %v6551
        %6560 = vst [vmem:[#allocation1] ss:$9 sm:$0xff] %v5554
        %s6561 = scalar_lea.vmem [#allocation1], 1
        %6562 = vst [vmem:[%s6561] ss:$9 sm:$0xff] %v5565
        %s6563 = scalar_lea.vmem [#allocation1], 2
        %6564 = vst [vmem:[%s6563] ss:$9 sm:$0xff] %v5566
        %s6565 = scalar_lea.vmem [#allocation1], 3
        %6566 = vst [vmem:[%s6565] ss:$9 sm:$0xff] %v5567
        %s6567 = scalar_lea.vmem [#allocation1], 4
        %6568 = vst [vmem:[%s6567] ss:$9 sm:$0xff] %v5568
        %s6569 = scalar_lea.vmem [#allocation1], 5
        %6570 = vst [vmem:[%s6569] ss:$9 sm:$0xff] %v5569
        %s6571 = scalar_lea.vmem [#allocation1], 6
        %6572 = vst [vmem:[%s6571] ss:$9 sm:$0xff] %v5570
        %s6573 = scalar_lea.vmem [#allocation1], 7
        %6574 = vst [vmem:[%s6573] ss:$9 sm:$0xff] %v5571
        %v6575 = vld [vmem:[#allocation1] sm:$0xff]
        %6576 = vst [vmem:[#allocation1] ss:$9 sm:$0xff] %v5556
        %v6577 = vld [vmem:[#allocation1] sm:$0xff]
        %6578 = vst [vmem:[#allocation1] ss:$9 sm:$0xff] %v5572
        %6579 = vst [vmem:[%s6561] ss:$9 sm:$0xff] %v5573
        %6580 = vst [vmem:[%s6563] ss:$9 sm:$0xff] %v5574
        %6581 = vst [vmem:[%s6565] ss:$9 sm:$0xff] %v5575
        %6582 = vst [vmem:[%s6567] ss:$9 sm:$0xff] %v5576
        %6583 = vst [vmem:[%s6569] ss:$9 sm:$0xff] %v5577
        %6584 = vst [vmem:[%s6571] ss:$9 sm:$0xff] %v5578
        %6585 = vst [vmem:[%s6573] ss:$9 sm:$0xff] %v5559
        %v6586 = vld [vmem:[#allocation1] sm:$0xff]
        %6587 = vst [vmem:[#allocation1] ss:$9 sm:$0xff] %v5579
        %v6588 = vld [vmem:[#allocation1] sm:$0xff]
        %v6593 = vpack.c.bf16 %v6575, %v6575
        %v6594 = vpack.c.bf16 %v6577, %v6577
        %v6595 = vpack.c.bf16 %v6586, %v6586
        %v6596 = vpack.c.bf16 %v6588, %v6588
        %v6599 = vunpack.c.l.b16 %v6556
        %v6600 = vunpack.c.l.b16 %v6557
        %v6601 = vpack.c.b16 %v6600, %v6599
        %6602 = vrot.lane.b32.xlu0 %v6601, 104
        %v6603 = vpop.permute.xlu0 %6602
        %v6606 = vunpack.c.l.b16 %v6593
        %v6607 = vunpack.c.l.b16 %v6594
        %v6608 = vpack.c.b16 %v6607, %v6606
        %6609 = vrot.lane.b32.xlu0 %v6608, 104
        %v6610 = vpop.permute.xlu0 %6609
        %v6612 = vsel %vm1761, %v6603, 0
        %v6615 = vsel %vm1761, %v6610, 0
        %6617 = vmatpush.bf16.xpose.msra.mxu0 0
        %6618 = vmatpush.bf16.xpose.msra.mxu0 0
        %6619 = vmatpush.bf16.xpose.msra.mxu0 0
        %6620 = vmatpush.bf16.xpose.msra.mxu0 0
        %6621 = vmatpush.bf16.xpose.msra.mxu0 0
        %6622 = vmatpush.bf16.xpose.msra.mxu0 0
        %6623 = vmatpush.bf16.xpose.msra.mxu0 0
        %6624 = vmatpush.bf16.xpose.msra.mxu0 %v6615
        %6625 = vmatmul.bf16.gmra.mxu0 %v6612
        %v6626 = vpop.f32.mrf.mxu0
        %v6627 = vadd.f32 0.0, %v6626
        %v6628 = vpop.f32.mrf.mxu0
        %v6629 = vadd.f32 0.0, %v6628
        %6630 = vdwg.mxu0
        %v6633 = vunpack.c.l.b16 %v6558
        %v6634 = vunpack.c.l.b16 %v6559
        %v6635 = vpack.c.b16 %v6634, %v6633
        %6636 = vrot.lane.b32.xlu0 %v6635, 104
        %v6637 = vpop.permute.xlu0 %6636
        %v6640 = vunpack.c.l.b16 %v6595
        %v6641 = vunpack.c.l.b16 %v6596
        %v6642 = vpack.c.b16 %v6641, %v6640
        %6643 = vrot.lane.b32.xlu0 %v6642, 104
        %v6644 = vpop.permute.xlu0 %6643
        %v6646 = vsel %vm1761, %v6637, 0
        %v6649 = vsel %vm1761, %v6644, 0
        %6651 = vmatpush.bf16.xpose.msra.mxu0 0
        %6652 = vmatpush.bf16.xpose.msra.mxu0 0
        %6653 = vmatpush.bf16.xpose.msra.mxu0 0
        %6654 = vmatpush.bf16.xpose.msra.mxu0 0
        %6655 = vmatpush.bf16.xpose.msra.mxu0 0
        %6656 = vmatpush.bf16.xpose.msra.mxu0 0
        %6657 = vmatpush.bf16.xpose.msra.mxu0 0
        %6658 = vmatpush.bf16.xpose.msra.mxu0 %v6649
        %6659 = vmatmul.bf16.gmra.mxu0 %v6646
        %v6660 = vpop.f32.mrf.mxu0
        %v6661 = vadd.f32 0.0, %v6660
        %v6662 = vpop.f32.mrf.mxu0
        %v6663 = vadd.f32 0.0, %v6662
        %6664 = vdwg.mxu0
        %v6665 = vmul.f32 %v6627, 0.35355338
        %v6666 = vmul.f32 %v6629, 0.35355338
        %v6667 = vmul.f32 %v6661, 0.35355338
        %v6668 = vmul.f32 %v6663, 0.35355338
        %v6669 = vsel %vm1709, %v6665, -inf
        %6670 = vmax.xlane.f32.xlu0 %v6669
        %v6671 = vpop.xlane.xlu0 %6670
        %v6672 = vsel %vm2773, %v6666, -inf
        %6673 = vmax.xlane.f32.xlu0 %v6672
        %v6674 = vpop.xlane.xlu0 %6673
        %v6675 = vsel %vm1709, %v6667, -inf
        %6676 = vmax.xlane.f32.xlu0 %v6675
        %v6677 = vpop.xlane.xlu0 %6676
        %v6678 = vsel %vm2773, %v6668, -inf
        %6679 = vmax.xlane.f32.xlu0 %v6678
        %v6680 = vpop.xlane.xlu0 %6679
        %v6681 = vsub.f32 %v6665, %v6671
        %v6682 = vsub.f32 %v6666, %v6674
        %v6683 = vsub.f32 %v6667, %v6677
        %v6684 = vsub.f32 %v6668, %v6680
        %v6685 = vmul.f32 %v6681, 1.442695
        %v6686 = vpow.pop %v6685
        %v6687 = vmul.f32 %v6682, 1.442695
        %v6688 = vpow.pop %v6687
        %v6689 = vmul.f32 %v6683, 1.442695
        %v6690 = vpow.pop %v6689
        %v6691 = vmul.f32 %v6684, 1.442695
        %v6692 = vpow.pop %v6691
        %v6693 = vsel %vm1709, %v6686, 0.0
        %6694 = vadd.xlane.f32.xlu0 %v6693
        %v6695 = vpop.xlane.xlu0 %6694
        %v6696 = vsel %vm2773, %v6688, 0.0
        %6697 = vadd.xlane.f32.xlu0 %v6696
        %v6698 = vpop.xlane.xlu0 %6697
        %v6699 = vsel %vm1709, %v6690, 0.0
        %6700 = vadd.xlane.f32.xlu0 %v6699
        %v6701 = vpop.xlane.xlu0 %6700
        %v6702 = vsel %vm2773, %v6692, 0.0
        %6703 = vadd.xlane.f32.xlu0 %v6702
        %v6704 = vpop.xlane.xlu0 %6703
        %v6705 = vrcp.pop %v6695
        %v6706 = vrcp.pop %v6698
        %v6707 = vrcp.pop %v6701
        %v6708 = vrcp.pop %v6704
        %v6709 = vmul.f32 %v6686, %v6705
        %v6710 = vmul.f32 %v6688, %v6706
        %v6711 = vmul.f32 %v6690, %v6707
        %v6712 = vmul.f32 %v6692, %v6708
        %v6713 = vpack.c.bf16 %v6709, %v6709
        %v6714 = vpack.c.bf16 %v6710, %v6710
        %v6715 = vpack.c.bf16 %v6711, %v6711
        %v6716 = vpack.c.bf16 %v6712, %v6712
        %6717 = vst [vmem:[#allocation1] ss:$9 sm:$0xff] %v5554
        %s6718 = scalar_lea.vmem [#allocation1], 1
        %6719 = vst [vmem:[%s6718] ss:$9 sm:$0xff] %v5565
        %s6720 = scalar_lea.vmem [#allocation1], 2
        %6721 = vst [vmem:[%s6720] ss:$9 sm:$0xff] %v5566
        %s6722 = scalar_lea.vmem [#allocation1], 3
        %6723 = vst [vmem:[%s6722] ss:$9 sm:$0xff] %v5567
        %s6724 = scalar_lea.vmem [#allocation1], 4
        %6725 = vst [vmem:[%s6724] ss:$9 sm:$0xff] %v5568
        %s6726 = scalar_lea.vmem [#allocation1], 5
        %6727 = vst [vmem:[%s6726] ss:$9 sm:$0xff] %v5569
        %s6728 = scalar_lea.vmem [#allocation1], 6
        %6729 = vst [vmem:[%s6728] ss:$9 sm:$0xff] %v5570
        %s6730 = scalar_lea.vmem [#allocation1], 7
        %6731 = vst [vmem:[%s6730] ss:$9 sm:$0xff] %v5571
        %v6732 = vld [vmem:[#allocation1] sm:$0xff]
        %6733 = vst [vmem:[#allocation1] ss:$9 sm:$0xff] %v5556
        %v6734 = vld [vmem:[#allocation1] sm:$0xff]
        %6735 = vst [vmem:[#allocation1] ss:$9 sm:$0xff] %v5572
        %6736 = vst [vmem:[%s6718] ss:$9 sm:$0xff] %v5573
        %6737 = vst [vmem:[%s6720] ss:$9 sm:$0xff] %v5574
        %6738 = vst [vmem:[%s6722] ss:$9 sm:$0xff] %v5575
        %6739 = vst [vmem:[%s6724] ss:$9 sm:$0xff] %v5576
        %6740 = vst [vmem:[%s6726] ss:$9 sm:$0xff] %v5577
        %6741 = vst [vmem:[%s6728] ss:$9 sm:$0xff] %v5578
        %6742 = vst [vmem:[%s6730] ss:$9 sm:$0xff] %v5559
        %v6743 = vld [vmem:[#allocation1] sm:$0xff]
        %6744 = vst [vmem:[#allocation1] ss:$9 sm:$0xff] %v5579
        %v6745 = vld [vmem:[#allocation1] sm:$0xff]
        %v6750 = vpack.c.bf16 %v6732, %v6732
        %v6751 = vpack.c.bf16 %v6734, %v6734
        %v6752 = vpack.c.bf16 %v6743, %v6743
        %v6753 = vpack.c.bf16 %v6745, %v6745
        %v6756 = vunpack.c.l.b16 %v6713
        %v6757 = vunpack.c.l.b16 %v6714
        %v6758 = vpack.c.b16 %v6757, %v6756
        %v6761 = vunpack.c.l.b16 %v6750
        %v6762 = vunpack.c.l.b16 %v6751
        %v6763 = vpack.c.b16 %v6762, %v6761
        %6764 = vrot.lane.b32.xlu0 %v6763, 72
        %v6765 = vpop.permute.xlu0 %6764
        %v6767 = vsel %vm1709, %v6758, 0
        %v6770 = vand.u32 %v6765, %v1716
        %6772 = vmatpush.bf16.msra.mxu0 0
        %6773 = vmatpush.bf16.msra.mxu0 0
        %6774 = vmatpush.bf16.msra.mxu0 0
        %6775 = vmatpush.bf16.msra.mxu0 0
        %6776 = vmatpush.bf16.msra.mxu0 0
        %6777 = vmatpush.bf16.msra.mxu0 0
        %6778 = vmatpush.bf16.msra.mxu0 0
        %6779 = vmatpush.bf16.msra.mxu0 %v6770
        %6780 = vmatmul.bf16.gmra.mxu0 %v6767
        %v6781 = vpop.f32.mrf.mxu0
        %v6782 = vadd.f32 0.0, %v6781
        %v6783 = vpop.f32.mrf.mxu0
        %v6784 = vadd.f32 0.0, %v6783
        %6785 = vdwg.mxu0
        %v6788 = vunpack.c.l.b16 %v6715
        %v6789 = vunpack.c.l.b16 %v6716
        %v6790 = vpack.c.b16 %v6789, %v6788
        %v6793 = vunpack.c.l.b16 %v6752
        %v6794 = vunpack.c.l.b16 %v6753
        %v6795 = vpack.c.b16 %v6794, %v6793
        %6796 = vrot.lane.b32.xlu0 %v6795, 72
        %v6797 = vpop.permute.xlu0 %6796
        %v6799 = vsel %vm1709, %v6790, 0
        %v6802 = vand.u32 %v6797, %v1716
        %6804 = vmatpush.bf16.msra.mxu0 0
        %6805 = vmatpush.bf16.msra.mxu0 0
        %6806 = vmatpush.bf16.msra.mxu0 0
        %6807 = vmatpush.bf16.msra.mxu0 0
        %6808 = vmatpush.bf16.msra.mxu0 0
        %6809 = vmatpush.bf16.msra.mxu0 0
        %6810 = vmatpush.bf16.msra.mxu0 0
        %6811 = vmatpush.bf16.msra.mxu0 %v6802
        %6812 = vmatmul.bf16.gmra.mxu0 %v6799
        %v6813 = vpop.f32.mrf.mxu0
        %v6814 = vadd.f32 0.0, %v6813
        %v6815 = vpop.f32.mrf.mxu0
        %v6816 = vadd.f32 0.0, %v6815
        %6817 = vdwg.mxu0
        %6822 = vrot.lane.b32.xlu0 %v6782, 56
        %v6823 = vpop.permute.xlu0 %6822
        %6824 = vrot.lane.b32.xlu0 %v6784, 56
        %v6825 = vpop.permute.xlu0 %6824
        %6826 = vrot.lane.b32.xlu0 %v6814, 56
        %v6827 = vpop.permute.xlu0 %6826
        %6828 = vrot.lane.b32.xlu0 %v6816, 56
        %v6829 = vpop.permute.xlu0 %6828
        %vm6834 = vcmask 523712
        %6835 = vst.msk [vmem:[#allocation5] sm:$0xff] %vm6834, %v6823
        %vm6836 = vcmask 516544
        %6837 = vst.msk [vmem:[#allocation5 + $0x8] sm:$0x1] %vm6836, %v6825
        %6838 = vst.msk [vmem:[#allocation5 + $0x10] sm:$0xff] %vm6834, %v6827
        %6839 = vst.msk [vmem:[#allocation5 + $0x18] sm:$0x1] %vm6836, %v6829
        %v6840 = vld [vmem:[#allocation5] sm:$0xff]
        %v6841 = vld [vmem:[#allocation5 + $0x8] sm:$0x1]
        %v6842 = vld [vmem:[#allocation5 + $0x10] sm:$0xff]
        %v6843 = vld [vmem:[#allocation5 + $0x18] sm:$0x1]
        %v6848 = vrot.slane %v6840, 1
        %v6849 = vrot.slane %v6840, 2
        %v6850 = vrot.slane %v6840, 3
        %v6851 = vrot.slane %v6840, 4
        %v6852 = vrot.slane %v6840, 5
        %v6853 = vrot.slane %v6840, 6
        %v6854 = vrot.slane %v6840, 7
        %v6855 = vrot.slane %v6842, 1
        %v6856 = vrot.slane %v6842, 2
        %v6857 = vrot.slane %v6842, 3
        %v6858 = vrot.slane %v6842, 4
        %v6859 = vrot.slane %v6842, 5
        %v6860 = vrot.slane %v6842, 6
        %v6861 = vrot.slane %v6842, 7
        %v6876 = vld [vmem:[%s1112] sm:$0x1]
        %v6877 = vld [vmem:[%s1115] sm:$0x1]
        %6878 = vst [vmem:[#allocation1] ss:$9 sm:$0xff] %v6840
        %s6879 = scalar_lea.vmem [#allocation1], 1
        %6880 = vst [vmem:[%s6879] ss:$9 sm:$0xff] %v6848
        %s6881 = scalar_lea.vmem [#allocation1], 2
        %6882 = vst [vmem:[%s6881] ss:$9 sm:$0xff] %v6849
        %s6883 = scalar_lea.vmem [#allocation1], 3
        %6884 = vst [vmem:[%s6883] ss:$9 sm:$0xff] %v6850
        %s6885 = scalar_lea.vmem [#allocation1], 4
        %6886 = vst [vmem:[%s6885] ss:$9 sm:$0xff] %v6851
        %s6887 = scalar_lea.vmem [#allocation1], 5
        %6888 = vst [vmem:[%s6887] ss:$9 sm:$0xff] %v6852
        %s6889 = scalar_lea.vmem [#allocation1], 6
        %6890 = vst [vmem:[%s6889] ss:$9 sm:$0xff] %v6853
        %s6891 = scalar_lea.vmem [#allocation1], 7
        %6892 = vst [vmem:[%s6891] ss:$9 sm:$0xff] %v6854
        %v6893 = vld [vmem:[#allocation1] sm:$0xff]
        %6894 = vst [vmem:[#allocation1] ss:$9 sm:$0xff] %v6841
        %6895 = vst [vmem:[%s6879] ss:$9 sm:$0xff] %v6842
        %6896 = vst [vmem:[%s6881] ss:$9 sm:$0xff] %v6855
        %6897 = vst [vmem:[%s6883] ss:$9 sm:$0xff] %v6856
        %6898 = vst [vmem:[%s6885] ss:$9 sm:$0xff] %v6857
        %6899 = vst [vmem:[%s6887] ss:$9 sm:$0xff] %v6858
        %6900 = vst [vmem:[%s6889] ss:$9 sm:$0xff] %v6859
        %6901 = vst [vmem:[%s6891] ss:$9 sm:$0xff] %v6860
        %v6902 = vld [vmem:[#allocation1] sm:$0xff]
        %6903 = vst [vmem:[#allocation1] ss:$9 sm:$0xff] %v6861
        %6904 = vst [vmem:[%s6879] ss:$9 sm:$0xff] %v6843
        %v6905 = vld [vmem:[#allocation1] sm:$0xff]
        %vm6909 = vcmask 523264
        %v6910 = vsel %vm6909, %v6893, 0.0
        %6911 = vadd.xlane.f32.xlu0 %v6910
        %v6912 = vpop.xlane.xlu0 %6911
        %v6913 = vsel %vm6909, %v6902, 0.0
        %6914 = vadd.xlane.f32.xlu0 %v6913
        %v6915 = vpop.xlane.xlu0 %6914
        %vm6916 = vcmask 517120
        %v6917 = vsel %vm6916, %v6905, 0.0
        %6918 = vadd.xlane.f32.xlu0 %v6917
        %v6919 = vpop.xlane.xlu0 %6918
        %v6920 = vrcp.pop 64.0
        %v6921 = vmul.f32 64.0, %v6920
        %v6922 = vsub.f32 1.0, %v6921
        %v6923 = vmul.f32 %v6920, %v6922
        %v6924 = vadd.f32 %v6920, %v6923
        %vm6925 = vweird.f32 %v6920
        %v6926 = vsel %vm6925, %v6920, %v6924
        %v6927 = vmul.f32 %v6912, %v6926
        %v6928 = vmul.f32 %v6915, %v6926
        %v6929 = vmul.f32 %v6919, %v6926
        %v6933 = vperm.slane %v6927, 0
        %v6934 = vperm.slane %v6927, 1
        %v6935 = vperm.slane %v6927, 2
        %v6936 = vperm.slane %v6927, 3
        %v6937 = vperm.slane %v6927, 4
        %v6938 = vperm.slane %v6927, 5
        %v6939 = vperm.slane %v6927, 6
        %v6940 = vperm.slane %v6927, 7
        %v6941 = vperm.slane %v6928, 0
        %v6942 = vperm.slane %v6928, 1
        %v6943 = vperm.slane %v6928, 2
        %v6944 = vperm.slane %v6928, 3
        %v6945 = vperm.slane %v6928, 4
        %v6946 = vperm.slane %v6928, 5
        %v6947 = vperm.slane %v6928, 6
        %v6948 = vperm.slane %v6928, 7
        %v6949 = vperm.slane %v6929, 0
        %v6950 = vperm.slane %v6929, 1
        %v6969 = vsub.f32 %v6840, %v6933
        %v6970 = vsub.f32 %v6848, %v6934
        %v6971 = vsub.f32 %v6849, %v6935
        %v6972 = vsub.f32 %v6850, %v6936
        %v6973 = vsub.f32 %v6851, %v6937
        %v6974 = vsub.f32 %v6852, %v6938
        %v6975 = vsub.f32 %v6853, %v6939
        %v6976 = vsub.f32 %v6854, %v6940
        %v6977 = vsub.f32 %v6841, %v6941
        %v6978 = vsub.f32 %v6842, %v6942
        %v6979 = vsub.f32 %v6855, %v6943
        %v6980 = vsub.f32 %v6856, %v6944
        %v6981 = vsub.f32 %v6857, %v6945
        %v6982 = vsub.f32 %v6858, %v6946
        %v6983 = vsub.f32 %v6859, %v6947
        %v6984 = vsub.f32 %v6860, %v6948
        %v6985 = vsub.f32 %v6861, %v6949
        %v6986 = vsub.f32 %v6843, %v6950
        %v6987 = vmul.f32 %v6969, %v6969
        %v6988 = vmul.f32 %v6970, %v6970
        %v6989 = vmul.f32 %v6971, %v6971
        %v6990 = vmul.f32 %v6972, %v6972
        %v6991 = vmul.f32 %v6973, %v6973
        %v6992 = vmul.f32 %v6974, %v6974
        %v6993 = vmul.f32 %v6975, %v6975
        %v6994 = vmul.f32 %v6976, %v6976
        %v6995 = vmul.f32 %v6977, %v6977
        %v6996 = vmul.f32 %v6978, %v6978
        %v6997 = vmul.f32 %v6979, %v6979
        %v6998 = vmul.f32 %v6980, %v6980
        %v6999 = vmul.f32 %v6981, %v6981
        %v7000 = vmul.f32 %v6982, %v6982
        %v7001 = vmul.f32 %v6983, %v6983
        %v7002 = vmul.f32 %v6984, %v6984
        %v7003 = vmul.f32 %v6985, %v6985
        %v7004 = vmul.f32 %v6986, %v6986
        %7023 = vst [vmem:[#allocation1] ss:$9 sm:$0xff] %v6987
        %s7024 = scalar_lea.vmem [#allocation1], 1
        %7025 = vst [vmem:[%s7024] ss:$9 sm:$0xff] %v6988
        %s7026 = scalar_lea.vmem [#allocation1], 2
        %7027 = vst [vmem:[%s7026] ss:$9 sm:$0xff] %v6989
        %s7028 = scalar_lea.vmem [#allocation1], 3
        %7029 = vst [vmem:[%s7028] ss:$9 sm:$0xff] %v6990
        %s7030 = scalar_lea.vmem [#allocation1], 4
        %7031 = vst [vmem:[%s7030] ss:$9 sm:$0xff] %v6991
        %s7032 = scalar_lea.vmem [#allocation1], 5
        %7033 = vst [vmem:[%s7032] ss:$9 sm:$0xff] %v6992
        %s7034 = scalar_lea.vmem [#allocation1], 6
        %7035 = vst [vmem:[%s7034] ss:$9 sm:$0xff] %v6993
        %s7036 = scalar_lea.vmem [#allocation1], 7
        %7037 = vst [vmem:[%s7036] ss:$9 sm:$0xff] %v6994
        %v7038 = vld [vmem:[#allocation1] sm:$0xff]
        %7039 = vst [vmem:[#allocation1] ss:$9 sm:$0xff] %v6995
        %7040 = vst [vmem:[%s7024] ss:$9 sm:$0xff] %v6996
        %7041 = vst [vmem:[%s7026] ss:$9 sm:$0xff] %v6997
        %7042 = vst [vmem:[%s7028] ss:$9 sm:$0xff] %v6998
        %7043 = vst [vmem:[%s7030] ss:$9 sm:$0xff] %v6999
        %7044 = vst [vmem:[%s7032] ss:$9 sm:$0xff] %v7000
        %7045 = vst [vmem:[%s7034] ss:$9 sm:$0xff] %v7001
        %7046 = vst [vmem:[%s7036] ss:$9 sm:$0xff] %v7002
        %v7047 = vld [vmem:[#allocation1] sm:$0xff]
        %7048 = vst [vmem:[#allocation1] ss:$9 sm:$0xff] %v7003
        %7049 = vst [vmem:[%s7024] ss:$9 sm:$0xff] %v7004
        %v7050 = vld [vmem:[#allocation1] sm:$0xff]
        %v7054 = vsel %vm6909, %v7038, 0.0
        %7055 = vadd.xlane.f32.xlu0 %v7054
        %v7056 = vpop.xlane.xlu0 %7055
        %v7057 = vsel %vm6909, %v7047, 0.0
        %7058 = vadd.xlane.f32.xlu0 %v7057
        %v7059 = vpop.xlane.xlu0 %7058
        %v7060 = vsel %vm6916, %v7050, 0.0
        %7061 = vadd.xlane.f32.xlu0 %v7060
        %v7062 = vpop.xlane.xlu0 %7061
        %v7063 = vmul.f32 %v7056, %v6926
        %v7064 = vmul.f32 %v7059, %v6926
        %v7065 = vmul.f32 %v7062, %v6926
        %v7066 = vadd.f32 %v7063, 1e-12
        %v7067 = vadd.f32 %v7064, 1e-12
        %v7068 = vadd.f32 %v7065, 1e-12
        %v7069 = vrsqrt.pop %v7066
        %v7070 = vmul.f32 %v7069, %v7066
        %v7071 = vmul.f32 %v7070, %v7069
        %v7072 = vmul.f32 0.5, %v7071
        %v7073 = vsub.f32 1.5, %v7072
        %v7074 = vmul.f32 %v7069, %v7073
        %vm7075 = vweird.f32 %v7066
        %vm7076 = vweird.f32 %v7069
        %vm7077 = vmor %vm7075, %vm7076
        %v7078 = vsel %vm7077, %v7069, %v7074
        %v7079 = vrsqrt.pop %v7067
        %v7080 = vmul.f32 %v7079, %v7067
        %v7081 = vmul.f32 %v7080, %v7079
        %v7082 = vmul.f32 0.5, %v7081
        %v7083 = vsub.f32 1.5, %v7082
        %v7084 = vmul.f32 %v7079, %v7083
        %vm7085 = vweird.f32 %v7067
        %vm7086 = vweird.f32 %v7079
        %vm7087 = vmor %vm7085, %vm7086
        %v7088 = vsel %vm7087, %v7079, %v7084
        %v7089 = vrsqrt.pop %v7068
        %v7090 = vmul.f32 %v7089, %v7068
        %v7091 = vmul.f32 %v7090, %v7089
        %v7092 = vmul.f32 0.5, %v7091
        %v7093 = vsub.f32 1.5, %v7092
        %v7094 = vmul.f32 %v7089, %v7093
        %vm7095 = vweird.f32 %v7068
        %vm7096 = vweird.f32 %v7089
        %vm7097 = vmor %vm7095, %vm7096
        %v7098 = vsel %vm7097, %v7089, %v7094
        %v7102 = vperm.slane %v7078, 0
        %v7103 = vperm.slane %v7078, 1
        %v7104 = vperm.slane %v7078, 2
        %v7105 = vperm.slane %v7078, 3
        %v7106 = vperm.slane %v7078, 4
        %v7107 = vperm.slane %v7078, 5
        %v7108 = vperm.slane %v7078, 6
        %v7109 = vperm.slane %v7078, 7
        %v7110 = vperm.slane %v7088, 0
        %v7111 = vperm.slane %v7088, 1
        %v7112 = vperm.slane %v7088, 2
        %v7113 = vperm.slane %v7088, 3
        %v7114 = vperm.slane %v7088, 4
        %v7115 = vperm.slane %v7088, 5
        %v7116 = vperm.slane %v7088, 6
        %v7117 = vperm.slane %v7088, 7
        %v7118 = vperm.slane %v7098, 0
        %v7119 = vperm.slane %v7098, 1
        %v7138 = vmul.f32 %v6969, %v7102
        %v7139 = vmul.f32 %v6970, %v7103
        %v7140 = vmul.f32 %v6971, %v7104
        %v7141 = vmul.f32 %v6972, %v7105
        %v7142 = vmul.f32 %v6973, %v7106
        %v7143 = vmul.f32 %v6974, %v7107
        %v7144 = vmul.f32 %v6975, %v7108
        %v7145 = vmul.f32 %v6976, %v7109
        %v7146 = vmul.f32 %v6977, %v7110
        %v7147 = vmul.f32 %v6978, %v7111
        %v7148 = vmul.f32 %v6979, %v7112
        %v7149 = vmul.f32 %v6980, %v7113
        %v7150 = vmul.f32 %v6981, %v7114
        %v7151 = vmul.f32 %v6982, %v7115
        %v7152 = vmul.f32 %v6983, %v7116
        %v7153 = vmul.f32 %v6984, %v7117
        %v7154 = vmul.f32 %v6985, %v7118
        %v7155 = vmul.f32 %v6986, %v7119
        %v7157 = vperm.slane %v6876, 0
        %v7159 = vrot.slane %v7157, 1
        %v7160 = vrot.slane %v7157, 2
        %v7161 = vrot.slane %v7157, 3
        %v7162 = vrot.slane %v7157, 4
        %v7163 = vrot.slane %v7157, 5
        %v7164 = vrot.slane %v7157, 6
        %v7165 = vrot.slane %v7157, 7
        %v7173 = vmul.f32 %v7138, %v7157
        %v7174 = vmul.f32 %v7139, %v7159
        %v7175 = vmul.f32 %v7140, %v7160
        %v7176 = vmul.f32 %v7141, %v7161
        %v7177 = vmul.f32 %v7142, %v7162
        %v7178 = vmul.f32 %v7143, %v7163
        %v7179 = vmul.f32 %v7144, %v7164
        %v7180 = vmul.f32 %v7145, %v7165
        %v7181 = vmul.f32 %v7146, %v7157
        %v7182 = vmul.f32 %v7147, %v7159
        %v7183 = vmul.f32 %v7148, %v7160
        %v7184 = vmul.f32 %v7149, %v7161
        %v7185 = vmul.f32 %v7150, %v7162
        %v7186 = vmul.f32 %v7151, %v7163
        %v7187 = vmul.f32 %v7152, %v7164
        %v7188 = vmul.f32 %v7153, %v7165
        %v7189 = vmul.f32 %v7154, %v7157
        %v7190 = vmul.f32 %v7155, %v7159
        %v7192 = vperm.slane %v6877, 0
        %v7194 = vrot.slane %v7192, 1
        %v7195 = vrot.slane %v7192, 2
        %v7196 = vrot.slane %v7192, 3
        %v7197 = vrot.slane %v7192, 4
        %v7198 = vrot.slane %v7192, 5
        %v7199 = vrot.slane %v7192, 6
        %v7200 = vrot.slane %v7192, 7
        %v7208 = vadd.f32 %v7173, %v7192
        %v7209 = vadd.f32 %v7174, %v7194
        %v7210 = vadd.f32 %v7175, %v7195
        %v7211 = vadd.f32 %v7176, %v7196
        %v7212 = vadd.f32 %v7177, %v7197
        %v7213 = vadd.f32 %v7178, %v7198
        %v7214 = vadd.f32 %v7179, %v7199
        %v7215 = vadd.f32 %v7180, %v7200
        %v7216 = vadd.f32 %v7181, %v7192
        %v7217 = vadd.f32 %v7182, %v7194
        %v7218 = vadd.f32 %v7183, %v7195
        %v7219 = vadd.f32 %v7184, %v7196
        %v7220 = vadd.f32 %v7185, %v7197
        %v7221 = vadd.f32 %v7186, %v7198
        %v7222 = vadd.f32 %v7187, %v7199
        %v7223 = vadd.f32 %v7188, %v7200
        %v7224 = vadd.f32 %v7189, %v7192
        %v7225 = vadd.f32 %v7190, %v7194
        %v7226 = vld [vmem:[%s1120] sm:$0xf]
        %v7227 = vld [vmem:[%s1120 + $0x4] sm:$0xf]
        %v7228 = vld [vmem:[%s1120 + $0x8] sm:$0xf]
        %v7229 = vld [vmem:[%s1120 + $0xc] sm:$0xf]
        %v7230 = vld [vmem:[%s1120 + $0x10] sm:$0xf]
        %v7231 = vld [vmem:[%s1120 + $0x14] sm:$0xf]
        %v7232 = vld [vmem:[%s1120 + $0x18] sm:$0xf]
        %v7233 = vld [vmem:[%s1120 + $0x1c] sm:$0xf]
        %7252 = vst [vmem:[#allocation1] ss:$9 sm:$0xff] %v7208
        %s7253 = scalar_lea.vmem [#allocation1], 1
        %7254 = vst [vmem:[%s7253] ss:$9 sm:$0xff] %v7209
        %s7255 = scalar_lea.vmem [#allocation1], 2
        %7256 = vst [vmem:[%s7255] ss:$9 sm:$0xff] %v7210
        %s7257 = scalar_lea.vmem [#allocation1], 3
        %7258 = vst [vmem:[%s7257] ss:$9 sm:$0xff] %v7211
        %s7259 = scalar_lea.vmem [#allocation1], 4
        %7260 = vst [vmem:[%s7259] ss:$9 sm:$0xff] %v7212
        %s7261 = scalar_lea.vmem [#allocation1], 5
        %7262 = vst [vmem:[%s7261] ss:$9 sm:$0xff] %v7213
        %s7263 = scalar_lea.vmem [#allocation1], 6
        %7264 = vst [vmem:[%s7263] ss:$9 sm:$0xff] %v7214
        %s7265 = scalar_lea.vmem [#allocation1], 7
        %7266 = vst [vmem:[%s7265] ss:$9 sm:$0xff] %v7215
        %v7267 = vld [vmem:[#allocation1] sm:$0xff]
        %7268 = vst [vmem:[#allocation1] ss:$9 sm:$0xff] %v7216
        %7269 = vst [vmem:[%s7253] ss:$9 sm:$0xff] %v7217
        %7270 = vst [vmem:[%s7255] ss:$9 sm:$0xff] %v7218
        %7271 = vst [vmem:[%s7257] ss:$9 sm:$0xff] %v7219
        %7272 = vst [vmem:[%s7259] ss:$9 sm:$0xff] %v7220
        %7273 = vst [vmem:[%s7261] ss:$9 sm:$0xff] %v7221
        %7274 = vst [vmem:[%s7263] ss:$9 sm:$0xff] %v7222
        %7275 = vst [vmem:[%s7265] ss:$9 sm:$0xff] %v7223
        %v7276 = vld [vmem:[#allocation1] sm:$0xff]
        %7277 = vst [vmem:[#allocation1] ss:$9 sm:$0xff] %v7224
        %7278 = vst [vmem:[%s7253] ss:$9 sm:$0xff] %v7225
        %v7279 = vld [vmem:[#allocation1] sm:$0xff]
        %v7283 = vpack.c.bf16 %v7276, %v7267
        %v7284 = vpack.c.bf16 %v7279, %v7279
        %v7285 = vld [vmem:[%s1123] sm:$0x1]
        %v7287 = vperm.slane %v7285, 0
        %v7297 = vunpack.c.l.b16 %v7226
        %v7298 = vunpack.c.l.b16 %v7227
        %v7299 = vunpack.c.l.b16 %v7228
        %v7300 = vunpack.c.l.b16 %v7229
        %v7301 = vunpack.c.l.b16 %v7230
        %v7302 = vunpack.c.l.b16 %v7231
        %v7303 = vunpack.c.l.b16 %v7232
        %v7304 = vunpack.c.l.b16 %v7233
        %v7305 = vpack.c.b16 %v7298, %v7297
        %v7306 = vpack.c.b16 %v7300, %v7299
        %v7307 = vpack.c.b16 %v7302, %v7301
        %v7308 = vpack.c.b16 %v7304, %v7303
        %v7314 = vsel %vm6909, %v7283, 0
        %v7317 = vsel %vm6909, %v7284, 0
        %7319 = vmatpush.bf16.msra.mxu0 0
        %7320 = vmatpush.bf16.msra.mxu0 0
        %7321 = vmatpush.bf16.msra.mxu0 0
        %7322 = vmatpush.bf16.msra.mxu0 0
        %7323 = vmatpush.bf16.msra.mxu0 %v7308
        %7324 = vmatpush.bf16.msra.mxu0 %v7307
        %7325 = vmatpush.bf16.msra.mxu0 %v7306
        %7326 = vmatpush.bf16.msra.mxu0 %v7305
        %7327 = vmatmul.bf16.gmra.mxu0 %v7314
        %v7328 = vpop.f32.mrf.mxu0
        %v7329 = vadd.f32 %v7287, %v7328
        %v7330 = vpop.f32.mrf.mxu0
        %v7331 = vadd.f32 %v7287, %v7330
        %7332 = vmatmul.bf16.gmra.mxu0 %v7317
        %v7333 = vpop.f32.mrf.mxu0
        %v7334 = vadd.f32 %v7287, %v7333
        %v7335 = vpop.f32.mrf.mxu0
        %7336 = vdwg.mxu0
        %v7337 = vmul.f32 %v7329, %v7329
        %v7338 = vmul.f32 %v7331, %v7331
        %v7339 = vmul.f32 %v7334, %v7334
        %v7340 = vmul.f32 %v7329, %v7337
        %v7341 = vmul.f32 %v7331, %v7338
        %v7342 = vmul.f32 %v7334, %v7339
        %v7343 = vmul.f32 %v7340, 0.044715
        %v7344 = vmul.f32 %v7341, 0.044715
        %v7345 = vmul.f32 %v7342, 0.044715
        %v7346 = vadd.f32 %v7329, %v7343
        %v7347 = vadd.f32 %v7331, %v7344
        %v7348 = vadd.f32 %v7334, %v7345
        %v7349 = vmul.f32 %v7346, 0.7978846
        %v7350 = vmul.f32 %v7347, 0.7978846
        %v7351 = vmul.f32 %v7348, 0.7978846
        %v7352 = vtanh.pop %v7349
        %v7353 = vtanh.pop %v7350
        %v7354 = vtanh.pop %v7351
        %v7355 = vadd.f32 %v7352, 1.0
        %v7356 = vadd.f32 %v7353, 1.0
        %v7357 = vadd.f32 %v7354, 1.0
        %v7358 = vmul.f32 %v7355, 0.5
        %v7359 = vmul.f32 %v7356, 0.5
        %v7360 = vmul.f32 %v7357, 0.5
        %v7361 = vmul.f32 %v7329, %v7358
        %v7362 = vmul.f32 %v7331, %v7359
        %v7363 = vmul.f32 %v7334, %v7360
        %v7364 = vld [vmem:[%s1128] sm:$0xf]
        %v7365 = vld [vmem:[%s1128 + $0x4] sm:$0xf]
        %v7366 = vld [vmem:[%s1128 + $0x8] sm:$0xf]
        %v7367 = vld [vmem:[%s1128 + $0xc] sm:$0xf]
        %v7368 = vld [vmem:[%s1128 + $0x10] sm:$0xf]
        %v7369 = vld [vmem:[%s1128 + $0x14] sm:$0xf]
        %v7370 = vld [vmem:[%s1128 + $0x18] sm:$0xf]
        %v7371 = vld [vmem:[%s1128 + $0x1c] sm:$0xf]
        %v7372 = vld [vmem:[%s1128 + $0x20] sm:$0xf]
        %v7373 = vld [vmem:[%s1128 + $0x24] sm:$0xf]
        %v7374 = vld [vmem:[%s1128 + $0x28] sm:$0xf]
        %v7375 = vld [vmem:[%s1128 + $0x2c] sm:$0xf]
        %v7376 = vld [vmem:[%s1128 + $0x30] sm:$0xf]
        %v7377 = vld [vmem:[%s1128 + $0x34] sm:$0xf]
        %v7378 = vld [vmem:[%s1128 + $0x38] sm:$0xf]
        %v7379 = vld [vmem:[%s1128 + $0x3c] sm:$0xf]
        %v7380 = vpack.c.bf16 %v7362, %v7361
        %v7381 = vpack.c.bf16 %v7363, %v7363
        %v7398 = vunpack.c.l.b16 %v7364
        %v7399 = vunpack.c.l.b16 %v7365
        %v7400 = vunpack.c.l.b16 %v7366
        %v7401 = vunpack.c.l.b16 %v7367
        %v7402 = vunpack.c.l.b16 %v7368
        %v7403 = vunpack.c.l.b16 %v7369
        %v7404 = vunpack.c.l.b16 %v7370
        %v7405 = vunpack.c.l.b16 %v7371
        %v7406 = vunpack.c.l.b16 %v7372
        %v7407 = vunpack.c.l.b16 %v7373
        %v7408 = vunpack.c.l.b16 %v7374
        %v7409 = vunpack.c.l.b16 %v7375
        %v7410 = vunpack.c.l.b16 %v7376
        %v7411 = vunpack.c.l.b16 %v7377
        %v7412 = vunpack.c.l.b16 %v7378
        %v7413 = vunpack.c.l.b16 %v7379
        %v7414 = vpack.c.b16 %v7399, %v7398
        %v7415 = vpack.c.b16 %v7401, %v7400
        %v7416 = vpack.c.b16 %v7403, %v7402
        %v7417 = vpack.c.b16 %v7405, %v7404
        %v7418 = vpack.c.b16 %v7407, %v7406
        %v7419 = vpack.c.b16 %v7409, %v7408
        %v7420 = vpack.c.b16 %v7411, %v7410
        %v7421 = vpack.c.b16 %v7413, %v7412
        %7430 = vmatpush.bf16.msra.mxu0 %v7421
        %7431 = vmatpush.bf16.msra.mxu0 %v7420
        %7432 = vmatpush.bf16.msra.mxu0 %v7419
        %7433 = vmatpush.bf16.msra.mxu0 %v7418
        %7434 = vmatpush.bf16.msra.mxu0 %v7417
        %7435 = vmatpush.bf16.msra.mxu0 %v7416
        %7436 = vmatpush.bf16.msra.mxu0 %v7415
        %7437 = vmatpush.bf16.msra.mxu0 %v7414
        %7438 = vmatmul.bf16.gmra.mxu0 %v7380
        %v7439 = vpop.f32.mrf.mxu0
        %v7440 = vadd.f32 0.0, %v7439
        %v7441 = vpop.f32.mrf.mxu0
        %v7442 = vadd.f32 0.0, %v7441
        %7443 = vmatmul.bf16.gmra.mxu0 %v7381
        %v7444 = vpop.f32.mrf.mxu0
        %v7445 = vadd.f32 0.0, %v7444
        %v7446 = vpop.f32.mrf.mxu0
        %7447 = vdwg.mxu0
        %v7448 = vadd.f32 %v1499, %v7440
        %v7449 = vadd.f32 %v1500, %v7442
        %v7450 = vadd.f32 %v1501, %v7445
        %v7451 = vld [vmem:[%s1131] sm:$0x1]
        %v7453 = vperm.slane %v7451, 0
        %v7455 = vadd.f32 %v7448, %v7453
        %v7456 = vadd.f32 %v7449, %v7453
        %v7457 = vadd.f32 %v7450, %v7453
        %7458 = vst.msk [vmem:[#allocation2] sm:$0xff] %vm1415, %v7455
        %7459 = vst.msk [vmem:[#allocation2 + $0x8] sm:$0xff] %vm1415, %v7456
        %7460 = vst.msk [vmem:[#allocation2 + $0x10] sm:$0x3] %vm1422, %v7457
        %p7461 = scmp.eq.s32.totalorder %s45, 1
        // Predicated region
        $region125: #{bnt_forward.1} parent=119 // pred_check
          %p7462 = pneg %p7461
        $region126: #{bnt_forward.1} parent=119 // pred_check_branch
          %7464 = sbr.rel (%p7462) target = $region128
        $region127: #{bnt_forward.1} parent=119 // pred_region
          %v7465 = vld [vmem:[#allocation2] sm:$0xff]
          %v7466 = vld [vmem:[#allocation2 + $0x8] sm:$0xff]
          %v7467 = vld [vmem:[#allocation2 + $0x10] sm:$0x3]
          %v7471 = vrot.slane %v7465, 1
          %v7472 = vrot.slane %v7465, 2
          %v7473 = vrot.slane %v7465, 3
          %v7474 = vrot.slane %v7465, 4
          %v7475 = vrot.slane %v7465, 5
          %v7476 = vrot.slane %v7465, 6
          %v7477 = vrot.slane %v7465, 7
          %v7478 = vrot.slane %v7466, 1
          %v7479 = vrot.slane %v7466, 2
          %v7480 = vrot.slane %v7466, 3
          %v7481 = vrot.slane %v7466, 4
          %v7482 = vrot.slane %v7466, 5
          %v7483 = vrot.slane %v7466, 6
          %v7484 = vrot.slane %v7466, 7
          %v7485 = vrot.slane %v7467, 1
          %7487 = vst [vmem:[#allocation1] ss:$9 sm:$0xff] %v7465
          %s7488 = scalar_lea.vmem [#allocation1], 1
          %7489 = vst [vmem:[%s7488] ss:$9 sm:$0xff] %v7471
          %s7490 = scalar_lea.vmem [#allocation1], 2
          %7491 = vst [vmem:[%s7490] ss:$9 sm:$0xff] %v7472
          %s7492 = scalar_lea.vmem [#allocation1], 3
          %7493 = vst [vmem:[%s7492] ss:$9 sm:$0xff] %v7473
          %s7494 = scalar_lea.vmem [#allocation1], 4
          %7495 = vst [vmem:[%s7494] ss:$9 sm:$0xff] %v7474
          %s7496 = scalar_lea.vmem [#allocation1], 5
          %7497 = vst [vmem:[%s7496] ss:$9 sm:$0xff] %v7475
          %s7498 = scalar_lea.vmem [#allocation1], 6
          %7499 = vst [vmem:[%s7498] ss:$9 sm:$0xff] %v7476
          %s7500 = scalar_lea.vmem [#allocation1], 7
          %7501 = vst [vmem:[%s7500] ss:$9 sm:$0xff] %v7477
          %v7502 = vld [vmem:[#allocation1] sm:$0xff]
          %7503 = vst [vmem:[#allocation1] ss:$9 sm:$0xff] %v7466
          %v7504 = vld [vmem:[#allocation1] sm:$0xff]
          %7505 = vst [vmem:[#allocation1] ss:$9 sm:$0xff] %v7478
          %7506 = vst [vmem:[%s7488] ss:$9 sm:$0xff] %v7479
          %7507 = vst [vmem:[%s7490] ss:$9 sm:$0xff] %v7480
          %7508 = vst [vmem:[%s7492] ss:$9 sm:$0xff] %v7481
          %7509 = vst [vmem:[%s7494] ss:$9 sm:$0xff] %v7482
          %7510 = vst [vmem:[%s7496] ss:$9 sm:$0xff] %v7483
          %7511 = vst [vmem:[%s7498] ss:$9 sm:$0xff] %v7484
          %7512 = vst [vmem:[%s7500] ss:$9 sm:$0xff] %v7467
          %v7513 = vld [vmem:[#allocation1] sm:$0xff]
          %7514 = vst [vmem:[#allocation1] ss:$9 sm:$0xff] %v7485
          %v7515 = vld [vmem:[#allocation1] sm:$0xff]
          %v7520 = vsel %vm1415, %v7502, 0.0
          %vm7521 = vcmask 253952
          %v7522 = vsel %vm7521, %v7504, 0.0
          %v7523 = vadd.f32 %v7520, %v7522
          %v7524 = vrot.slane %v7523, 4
          %v7525 = vadd.f32 %v7523, %v7524
          %v7526 = vrot.slane %v7525, 2
          %v7527 = vadd.f32 %v7525, %v7526
          %v7528 = vrot.slane %v7527, 1
          %v7529 = vadd.f32 %v7527, %v7528
          %v7530 = vsel %vm1415, %v7513, 0.0
          %v7531 = vsel %vm7521, %v7515, 0.0
          %v7532 = vadd.f32 %v7530, %v7531
          %v7533 = vrot.slane %v7532, 4
          %v7534 = vadd.f32 %v7532, %v7533
          %v7535 = vrot.slane %v7534, 2
          %v7536 = vadd.f32 %v7534, %v7535
          %v7537 = vrot.slane %v7536, 1
          %v7538 = vadd.f32 %v7536, %v7537
          %v7539 = vsub.f32 %v7529, %v7465
          %v7540 = vsub.f32 %v7538, %v7478
          %v7541 = vmul.f32 %v7539, 0.125
          %v7542 = vmul.f32 %v7540, 0.125
          %v7545 = vrot.slane %v7542, 7
          %vm7546 = vcmask 1041409
          %v7547 = vsel %vm7546, %v7545, %v7541
          %7549 = vst.msk [vmem:[#allocation6] sm:$0x3] %vm1422, %v7547
          %v7550 = vld [vmem:[%s23] sm:$0xff]
          %v7551 = vld [vmem:[%s23 + $0x8] sm:$0xff]
          %v7552 = vld [vmem:[%s23 + $0x10] sm:$0xff]
          %v7553 = vld [vmem:[%s23 + $0x18] sm:$0xff]
          %v7554 = vld [vmem:[%s24] sm:$0x1]
          %v7556 = vperm.slane %v7554, 0
          %v7558 = vsel %vm1415, %v7547, 0
          %7560 = vmatpush.msra.mxu0 0.0
          %7561 = vmatpush.msra.mxu0 0.0
          %7562 = vmatpush.msra.mxu0 0.0
          %7563 = vmatpush.msra.mxu0 0.0
          %7564 = vmatpush.msra.mxu0 0.0
          %7565 = vmatpush.msra.mxu0 0.0
          %7566 = vmatpush.msra.mxu0 0.0
          %7567 = vmatpush.msra.mxu0 0.0
          %7568 = vmatpush.msra.mxu0 0.0
          %7569 = vmatpush.msra.mxu0 0.0
          %7570 = vmatpush.msra.mxu0 0.0
          %7571 = vmatpush.msra.mxu0 0.0
          %7572 = vmatpush.msra.mxu0 %v7553
          %7573 = vmatpush.msra.mxu0 %v7552
          %7574 = vmatpush.msra.mxu0 %v7551
          %7575 = vmatpush.msra.mxu0 %v7550
          %7576 = vmatmul.f32.gmra.mxu0 %v7558
          %v7577 = vpop.f32.mrf.mxu0
          %v7578 = vadd.f32 %v7556, %v7577
          %7579 = vdwg.mxu0
          %7580 = vst [vmem:[#allocation8] sm:$0x3] %v7578
        $region128: #{bnt_forward.1} parent=119 // pred_fallthru
          _
        // Predicated region
        $region129: #{bnt_forward.1} parent=119 // pred_check
          %p7581 = pneg %p700
        $region130: #{bnt_forward.1} parent=119 // pred_check_branch
          %7583 = sbr.rel (%p7581) target = $region132
        $region131: #{bnt_forward.1} parent=119 // pred_region
          %7585 = vsyncadd [#allocation7], 0
          %s7586 = smul.addr %s44, 2
          %s7587 = scalar_lea.hbm %s25, %s7586
          %s7589 = sshll.u32 [#allocation6], 4
          %s7590 = int_to_ptr.vmem [resolvable:$true] %s7589
          %s7591 = sshll.u32 %s7587, 4
          %s7592 = int_to_ptr.hbm [resolvable:$true] %s7591
          %7594 = dma.vmem_to_hbm [thread:$0]  %s7590, 32, %s7592, [#allocation7]
        $region132: #{bnt_forward.1} parent=119 // pred_fallthru
          _
        // Predicated region
        $region133: #{bnt_forward.1} parent=119 // pred_check
          %p7595 = pneg %p726
        $region134: #{bnt_forward.1} parent=119 // pred_check_branch
          %7597 = sbr.rel (%p7595) target = $region136
        $region135: #{bnt_forward.1} parent=119 // pred_region
          %7599 = vsyncadd [#allocation9], 0
          %s7600 = smul.addr %s44, 2
          %s7601 = scalar_lea.hbm %s26, %s7600
          %s7603 = sshll.u32 [#allocation8], 4
          %s7604 = int_to_ptr.vmem [resolvable:$true] %s7603
          %s7605 = sshll.u32 %s7601, 4
          %s7606 = int_to_ptr.hbm [resolvable:$true] %s7605
          %7608 = dma.vmem_to_hbm [thread:$0]  %s7604, 32, %s7606, [#allocation9]
        $region136: #{bnt_forward.1} parent=119 // pred_fallthru
          _
        // Predicated region
        $region137: #{bnt_forward.1} parent=119 // pred_check
          %p7609 = pneg %p700
        $region138: #{bnt_forward.1} parent=119 // pred_check_branch
          %7611 = sbr.rel (%p7609) target = $region140
        $region139: #{bnt_forward.1} parent=119 // pred_region
          %7613 = dma.done [#allocation7], 32
        $region140: #{bnt_forward.1} parent=119 // pred_fallthru
          _
        // Predicated region
        $region141: #{bnt_forward.1} parent=119 // pred_check
          %p7614 = pneg %p726
        $region142: #{bnt_forward.1} parent=119 // pred_check_branch
          %7616 = sbr.rel (%p7614) target = $region144
        $region143: #{bnt_forward.1} parent=119 // pred_region
          %7618 = dma.done [#allocation9], 32
        $region144: #{bnt_forward.1} parent=119 // pred_fallthru
          _
      $region120: #{bnt_forward.1} parent=5 // pred_fallthru
        _
      %p7619 = scmp.le.s32.totalorder 2, %s35
      // Predicated region
      $region145: #{bnt_forward.1} parent=5 // pred_check
        %p7620 = pneg %p7619
      $region146: #{bnt_forward.1} parent=5 // pred_check_branch
        %7622 = sbr.rel (%p7620) target = $region148
      $region147: #{bnt_forward.1} parent=5 // pred_region
        %s7623 = ssub.s32 %s35, 2
      $region148: #{bnt_forward.1} parent=5 // pred_fallthru
        _
    $region6: #{bnt_forward.1} parent=1 // loop_footer
      %s39 = sadd.s32 1, %s35
    $region7: #{bnt_forward.1} parent=1 // loop_footer_branch
      %34 = sbr.rel target = $region3
    $region8: #{bnt_forward.1} parent=1 // loop_exit
      _
    %7624 = vsyncpa [#allocation7], 1
    %s7625 = scalar_lea.sflag [#allocation7], 1
    %7626 = vsyncpa %s7625, 1
    %7627 = vsyncpa [#allocation9], 1

</llo_original>
